<compile_context>
chip_gen: v5e
topology: v5e:2x2
jax: 0.10.0
libtpu: 0.0.40
codegen_flags: <defaults>
</compile_context>

<pallas_src>
import functools
import inspect
import math

import jax
import jax.numpy as jnp
from jax.experimental import pallas as pl
from jax.experimental.pallas import tpu as pltpu

SCALE_WEIGHT = 0.5 ** 0.5
LN_EPS = 1e-5


def _layer_norm(x, gamma, beta):
    mu = jnp.mean(x, axis=-1, keepdims=True)
    c = x - mu
    var = jnp.mean(c * c, axis=-1, keepdims=True)
    return c * jax.lax.rsqrt(var + LN_EPS) * gamma + beta


def _transformer_glu_kernel(src_ref, vec_ref, wqkv_ref, woh_ref, wl_ref, wc_ref, bc_ref,
                            *out_refs, nhead):
    out_ref = out_refs[0]
    att_ref = out_refs[1] if len(out_refs) > 1 else None

    x = src_ref[...].astype(jnp.float32)            # (Bb, T, D)
    Bb, T, D = x.shape
    H = nhead
    dh = D // H
    BT = Bb * T
    inv_sqrt_dh = 1.0 / math.sqrt(dh)
    bf16 = jnp.bfloat16

    xf = x.reshape(BT, D)                           # T % 8 == 0 -> layout-preserving reshape

    g1, b1 = vec_ref[0:1, :], vec_ref[1:2, :]
    g2, b2 = vec_ref[2:3, :], vec_ref[3:4, :]
    bo, bl = vec_ref[4:5, :], vec_ref[5:6, :]

    # ---------------- norm1 + fused bf16 QKV projection (one wide MXU call) ----------------
    x1 = _layer_norm(xf, g1, b1)
    qkv = jnp.dot(x1.astype(bf16), wqkv_ref[...],
                  preferred_element_type=jnp.float32)        # (BT, 3D) f32 accum
    qkv16 = qkv.astype(bf16)

    # ---------------- per-(batch, head) attention: all 2-D MXU matmuls ----------------
    attn_rows = []
    for bi in range(Bb):                             # static unroll, Bb small
        rows = slice(bi * T, (bi + 1) * T)
        acc = None
        for h in range(H):                           # static unroll over heads
            qh = qkv16[rows, h * dh:(h + 1) * dh]
            kh = qkv16[rows, D + h * dh:D + (h + 1) * dh]
            vh = qkv16[rows, 2 * D + h * dh:2 * D + (h + 1) * dh]
            s = jax.lax.dot_general(qh, kh, (((1,), (1,)), ((), ())),
                                    preferred_element_type=jnp.float32) * inv_sqrt_dh
            s = s - jnp.max(s, axis=-1, keepdims=True)
            e = jnp.exp(s)
            w = e * pl.reciprocal(jnp.sum(e, axis=-1, keepdims=True), approx=True)
            if att_ref is not None:
                att_ref[bi, h] = w.astype(att_ref.dtype)
            ctx = jnp.dot(w.astype(bf16), vh, preferred_element_type=jnp.float32)   # (T, dh)
            part = jnp.dot(ctx.astype(bf16), woh_ref[h],
                           preferred_element_type=jnp.float32)                      # (T, D)
            acc = part if acc is None else acc + part
        attn_rows.append(acc)
    attn_out = attn_rows[0] if Bb == 1 else jnp.concatenate(attn_rows, axis=0)      # (BT, D)
    attn_out = attn_out + bo

    # dropout1: eval-mode identity
    src3 = (xf + attn_out) * SCALE_WEIGHT

    # ---------------- norm2 + GLU (linear -> width-3 gated conv) + residuals ----------------
    x2 = _layer_norm(src3, g2, b2)
    y = jnp.dot(x2.astype(bf16), wl_ref[...], preferred_element_type=jnp.float32) + bl

    # time-shifted copies via XLU roll; (BT,1) 0/1 masks zero the per-batch boundary rows
    r = jax.lax.broadcasted_iota(jnp.int32, (BT, 1), 0)
    first_rows = sum((r == bi * T).astype(jnp.float32) for bi in range(Bb))
    last_rows = sum((r == bi * T + T - 1).astype(jnp.float32) for bi in range(Bb))
    y_prev = pltpu.roll(y, shift=1, axis=0) * (1.0 - first_rows)      # y[t-1], zero-padded
    y_next = pltpu.roll(y, shift=BT - 1, axis=0) * (1.0 - last_rows)  # y[t+1], zero-padded

    c = (jnp.dot(y_prev.astype(bf16), wc_ref[0], preferred_element_type=jnp.float32)
         + jnp.dot(y.astype(bf16), wc_ref[1], preferred_element_type=jnp.float32)
         + jnp.dot(y_next.astype(bf16), wc_ref[2], preferred_element_type=jnp.float32)
         + bc_ref[...])                                               # (BT, 2D)
    glu = c[:, :D] * jax.nn.sigmoid(c[:, D:])        # GatedConv (dropout eval identity)
    cnn = (y + glu) * SCALE_WEIGHT                   # StackedCNN residual (1 layer)
    src6 = (src3 + cnn) * SCALE_WEIGHT               # dropout2: eval-mode identity
    out_ref[...] = src6.reshape(Bb, T, D).astype(out_ref.dtype)


def _supports_single_buffering():
    if not hasattr(pl, "Buffered"):
        return False
    try:
        return "pipeline_mode" in inspect.signature(pl.BlockSpec).parameters
    except (ValueError, TypeError):
        return False


def _build_call(B, T, D, nhead, block_b, return_att, src_dtype, single_buffer_weights):
    H = nhead
    dh = D // H
    Bb = block_b

    def resident(shape):
        idx = lambda b, n=len(shape): (0,) * n
        if single_buffer_weights:
            # constant index_map -> double-buffering buys nothing; halve weight VMEM
            return pl.BlockSpec(shape, idx, pipeline_mode=pl.Buffered(1))
        return pl.BlockSpec(shape, idx)

    in_specs = [
        pl.BlockSpec((Bb, T, D), lambda b: (b, 0, 0)),    # src
        resident((6, D)),                                 # [g1,b1,g2,b2,bo,bl] f32
        resident((D, 3 * D)),                             # fused Wq|Wk|Wv  bf16
        resident((H, dh, D)),                             # Wo split per head bf16
        resident((D, D)),                                 # GLU linear      bf16
        resident((3, D, 2 * D)),                          # conv taps       bf16
        resident((1, 2 * D)),                             # conv bias       f32
    ]
    out_specs = [pl.BlockSpec((Bb, T, D), lambda b: (b, 0, 0))]
    out_shape = [jax.ShapeDtypeStruct((B, T, D), src_dtype)]
    if return_att:
        out_specs.append(pl.BlockSpec((Bb, H, T, T), lambda b: (b, 0, 0, 0)))
        out_shape.append(jax.ShapeDtypeStruct((B, H, T, T), jnp.float32))

    # VMEM budget from the actual footprint (cap leaves headroom under v7x's 64 MiB)
    w_bytes = (D * 3 * D + H * dh * D + D * D + 3 * D * 2 * D) * 2 + (6 * D + 2 * D) * 4
    w_bytes *= 1 if single_buffer_weights else 2
    io_bytes = 2 * (2 * Bb * T * D * 4) + (2 * Bb * H * T * T * 4 if return_att else 0)
    interm_bytes = 24 * Bb * T * D * 4 + 3 * Bb * H * T * T * 4
    est = int(1.25 * (w_bytes + io_bytes + interm_bytes))
    vmem_limit = min(max(est, 32 * 1024 * 1024), 56 * 1024 * 1024)

    kernel = functools.partial(_transformer_glu_kernel, nhead=H)
    return pl.pallas_call(
        kernel,
        out_shape=tuple(out_shape) if return_att else out_shape[0],
        grid_spec=pltpu.PrefetchScalarGridSpec(
            num_scalar_prefetch=0,
            grid=(B // Bb,),
            in_specs=in_specs,
            out_specs=tuple(out_specs) if return_att else out_specs[0],
        ),
        # TODO(synk): on v7x, pltpu.CORE_PARALLEL (or pl.core_map) can force the batch
        #             axis to split across the two TensorCores.
        compiler_params=pltpu.CompilerParams(
            dimension_semantics=("parallel",),
            vmem_limit_bytes=vmem_limit,
        ),
    )


def transformer_glu_layer_forward(src, packed, *, nhead, block_b=1, return_att=True):
    """src: [B, T, D] f32.  Returns src6 [B,T,D] (and att [B,H,T,T] f32 if return_att)."""
    B, T, D = src.shape
    assert D % nhead == 0, "d_model must be divisible by nhead"
    assert D % 128 == 0, "d_model must be a multiple of 128 (lane width)"
    assert T % 8 == 0, "seq length must be a multiple of 8 (sublane tile)"
    assert B % block_b == 0, "batch must be divisible by block_b"

    args = (src, packed["vecs"], packed["wqkv"], packed["wo_h"],
            packed["wl"], packed["wc"], packed["bc"])

    want_single = _supports_single_buffering()
    try:
        fn = _build_call(B, T, D, nhead, block_b, return_att, src.dtype, want_single)
        return fn(*args)
    except Exception:
        if not want_single:
            raise
        # Fall back to default double-buffered resident weights (older jax / lowering).
        fn = _build_call(B, T, D, nhead, block_b, return_att, src.dtype, False)
        return fn(*args)


def init_params(key, d_model):
    D = d_model
    ks = jax.random.split(key, 12)
    sc = 1.0 / math.sqrt(D)
    p = {
        "g1": 1.0 + 0.1 * jax.random.normal(ks[0], (1, D), jnp.float32),
        "b1": 0.1 * jax.random.normal(ks[1], (1, D), jnp.float32),
        "wq": sc * jax.random.normal(ks[2], (D, D), jnp.float32),
        "wk": sc * jax.random.normal(ks[3], (D, D), jnp.float32),
        "wv": sc * jax.random.normal(ks[4], (D, D), jnp.float32),
        "wo": sc * jax.random.normal(ks[5], (D, D), jnp.float32),
        "bo": 0.1 * jax.random.normal(ks[6], (1, D), jnp.float32),
        "g2": 1.0 + 0.1 * jax.random.normal(ks[7], (1, D), jnp.float32),
        "b2": 0.1 * jax.random.normal(ks[8], (1, D), jnp.float32),
        "wl": sc * jax.random.normal(ks[9], (D, D), jnp.float32),
        "bl": 0.1 * jax.random.normal(ks[10], (1, D), jnp.float32),
    }
    kc = jax.random.split(ks[11], 4)
    p["w0"] = sc * jax.random.normal(kc[0], (D, 2 * D), jnp.float32)
    p["w1"] = sc * jax.random.normal(kc[1], (D, 2 * D), jnp.float32)
    p["w2"] = sc * jax.random.normal(kc[2], (D, 2 * D), jnp.float32)
    p["bc"] = 0.1 * jax.random.normal(kc[3], (1, 2 * D), jnp.float32)
    return p


def pack_params(p, nhead):
    """Pack / cast params for the kernel: bf16 matmul weights, stacked small vectors."""
    D = p["wq"].shape[0]
    dh = D // nhead
    return {
        "vecs": jnp.concatenate([p["g1"], p["b1"], p["g2"], p["b2"], p["bo"], p["bl"]], 0),
        "wqkv": jnp.concatenate([p["wq"], p["wk"], p["wv"]], axis=1).astype(jnp.bfloat16),
        "wo_h": p["wo"].reshape(nhead, dh, D).astype(jnp.bfloat16),
        "wl": p["wl"].astype(jnp.bfloat16),
        "wc": jnp.stack([p["w0"], p["w1"], p["w2"]], axis=0).astype(jnp.bfloat16),
        "bc": p["bc"],
    }


def reference_forward(src, p, nhead):
    """Pure-JAX reference with the same deliberate bf16-matmul / f32-accum policy."""
    B, T, D = src.shape
    dh = D // nhead
    bf16 = jnp.bfloat16

    def mm(a, w):
        return jnp.dot(a.astype(bf16), w.astype(bf16), preferred_element_type=jnp.float32)

    def ln(v, g, b):
        mu = v.mean(-1, keepdims=True)
        var = ((v - mu) ** 2).mean(-1, keepdims=True)
        return (v - mu) / jnp.sqrt(var + LN_EPS) * g + b

    x1 = ln(src, p["g1"], p["b1"])
    q = mm(x1, p["wq"])
    k = mm(x1, p["wk"])
    v = mm(x1, p["wv"])
    qh = q.reshape(B, T, nhead, dh)
    kh = k.reshape(B, T, nhead, dh)
    vh = v.reshape(B, T, nhead, dh)
    s = jnp.einsum("bqhd,bkhd->bhqk", qh.astype(bf16), kh.astype(bf16),
                   preferred_element_type=jnp.float32) / math.sqrt(dh)
    w = jax.nn.softmax(s, axis=-1)
    ctx = jnp.einsum("bhqk,bkhd->bqhd", w.astype(bf16), vh.astype(bf16),
                     preferred_element_type=jnp.float32).reshape(B, T, D)
    attn_out = mm(ctx, p["wo"]) + p["bo"]
    src3 = (src + attn_out) * SCALE_WEIGHT

    x2 = ln(src3, p["g2"], p["b2"])
    y = mm(x2, p["wl"]) + p["bl"]
    y_prev = jnp.pad(y, ((0, 0), (1, 0), (0, 0)))[:, :T]
    y_next = jnp.pad(y, ((0, 0), (0, 1), (0, 0)))[:, 1:]
    c = mm(y_prev, p["w0"]) + mm(y, p["w1"]) + mm(y_next, p["w2"]) + p["bc"]
    glu = c[..., :D] * jax.nn.sigmoid(c[..., D:])
    cnn = (y + glu) * SCALE_WEIGHT
    src6 = (src3 + cnn) * SCALE_WEIGHT
    return src6, w


if __name__ == "__main__":
    # Small but lane-dense shapes: d_model = 128 (one lane width), 4 heads, 2 batch per block.
    B, T, D, H = 4, 16, 128, 4

    key = jax.random.PRNGKey(0)
    k_src, k_par = jax.random.split(key)
    src = jax.random.normal(k_src, (B, T, D), dtype=jnp.float32)
    params = init_params(k_par, D)
    packed = pack_params(params, H)

    out, att = transformer_glu_layer_forward(src, packed, nhead=H, block_b=2, return_att=True)
    out = jax.block_until_ready(out)
    att = jax.block_until_ready(att)

    # Variant without the attention-probability output (drops the largest HBM write).
    out_only = transformer_glu_layer_forward(src, packed, nhead=H, block_b=2, return_att=False)
    out_only = jax.block_until_ready(out_only)

    ref_out, ref_att = reference_forward(src, params, H)

    assert out.shape == (B, T, D)
    assert att.shape == (B, H, T, T)
    assert jnp.allclose(out, ref_out, atol=2e-2, rtol=2e-2), "output mismatch vs reference"
    assert jnp.allclose(att, ref_att, atol=2e-2, rtol=2e-2), "att-weight mismatch vs reference"
    assert jnp.allclose(out_only, out, atol=1e-3, rtol=1e-3), "return_att=False path mismatch"

    print("KERNEL_OK")
</pallas_src>

<mosaic_0001>
module attributes {stable_mosaic.version = 11 : i64} {
  func.func @_transformer_glu_kernel(%arg0: i32, %arg1: memref<2x16x128xf32, #tpu.memory_space<vmem>>, %arg2: memref<6x128xf32, #tpu.memory_space<vmem>>, %arg3: memref<128x384xbf16, #tpu.memory_space<vmem>>, %arg4: memref<4x32x128xbf16, #tpu.memory_space<vmem>>, %arg5: memref<128x128xbf16, #tpu.memory_space<vmem>>, %arg6: memref<3x128x256xbf16, #tpu.memory_space<vmem>>, %arg7: memref<1x256xf32, #tpu.memory_space<vmem>>, %arg8: memref<2x16x128xf32, #tpu.memory_space<vmem>>, %arg9: memref<2x4x16x16xf32, #tpu.memory_space<vmem>>) attributes {dimension_semantics = [#tpu.dimension_semantics<parallel>], iteration_bounds = array<i64: 2>, scalar_prefetch = 0 : i64, scratch_operands = 0 : i64, tpu.core_type = #tpu.core_type<tc>, window_params = [{transform_indices = @transform_0, window_bounds = array<i64: 2, 16, 128>}, {pipeline_mode = #tpu.pipeline_mode<synchronous>, transform_indices = @transform_1, window_bounds = array<i64: 6, 128>}, {pipeline_mode = #tpu.pipeline_mode<synchronous>, transform_indices = @transform_2, window_bounds = array<i64: 128, 384>}, {pipeline_mode = #tpu.pipeline_mode<synchronous>, transform_indices = @transform_3, window_bounds = array<i64: 4, 32, 128>}, {pipeline_mode = #tpu.pipeline_mode<synchronous>, transform_indices = @transform_4, window_bounds = array<i64: 128, 128>}, {pipeline_mode = #tpu.pipeline_mode<synchronous>, transform_indices = @transform_5, window_bounds = array<i64: 3, 128, 256>}, {pipeline_mode = #tpu.pipeline_mode<synchronous>, transform_indices = @transform_6, window_bounds = array<i64: 1, 256>}, {transform_indices = @transform_7, window_bounds = array<i64: 2, 16, 128>}, {transform_indices = @transform_8, window_bounds = array<i64: 2, 4, 16, 16>}]} {
    %c0 = arith.constant 0 : index
    %c0_0 = arith.constant 0 : index
    %c0_1 = arith.constant 0 : index
    %0 = vector.load %arg1[%c0, %c0_0, %c0_1] : memref<2x16x128xf32, #tpu.memory_space<vmem>>, vector<2x16x128xf32>
    %1 = vector.shape_cast %0 : vector<2x16x128xf32> to vector<32x128xf32>
    %c0_2 = arith.constant 0 : index
    %c0_3 = arith.constant 0 : index
    %2 = vector.load %arg2[%c0_2, %c0_3] : memref<6x128xf32, #tpu.memory_space<vmem>>, vector<1x128xf32>
    %c1 = arith.constant 1 : index
    %c0_4 = arith.constant 0 : index
    %3 = vector.load %arg2[%c1, %c0_4] : memref<6x128xf32, #tpu.memory_space<vmem>>, vector<1x128xf32>
    %c2 = arith.constant 2 : index
    %c0_5 = arith.constant 0 : index
    %4 = vector.load %arg2[%c2, %c0_5] : memref<6x128xf32, #tpu.memory_space<vmem>>, vector<1x128xf32>
    %c3 = arith.constant 3 : index
    %c0_6 = arith.constant 0 : index
    %5 = vector.load %arg2[%c3, %c0_6] : memref<6x128xf32, #tpu.memory_space<vmem>>, vector<1x128xf32>
    %c4 = arith.constant 4 : index
    %c0_7 = arith.constant 0 : index
    %6 = vector.load %arg2[%c4, %c0_7] : memref<6x128xf32, #tpu.memory_space<vmem>>, vector<1x128xf32>
    %c5 = arith.constant 5 : index
    %c0_8 = arith.constant 0 : index
    %7 = vector.load %arg2[%c5, %c0_8] : memref<6x128xf32, #tpu.memory_space<vmem>>, vector<1x128xf32>
    %cst = arith.constant dense<0.000000e+00> : vector<32xf32>
    %8 = vector.multi_reduction <add>, %1, %cst [1] : vector<32x128xf32> to vector<32xf32>
    %9 = vector.shape_cast %8 : vector<32xf32> to vector<32x1xf32>
    %cst_9 = arith.constant 1.280000e+02 : f32
    %10 = vector.broadcast %cst_9 : f32 to vector<32x1xf32>
    %11 = arith.divf %9, %10 : vector<32x1xf32>
    %12 = vector.broadcast %11 : vector<32x1xf32> to vector<32x128xf32>
    %13 = arith.subf %1, %12 : vector<32x128xf32>
    %14 = arith.mulf %13, %13 : vector<32x128xf32>
    %cst_10 = arith.constant dense<0.000000e+00> : vector<32xf32>
    %15 = vector.multi_reduction <add>, %14, %cst_10 [1] : vector<32x128xf32> to vector<32xf32>
    %16 = vector.shape_cast %15 : vector<32xf32> to vector<32x1xf32>
    %cst_11 = arith.constant 1.280000e+02 : f32
    %17 = vector.broadcast %cst_11 : f32 to vector<32x1xf32>
    %18 = arith.divf %16, %17 : vector<32x1xf32>
    %cst_12 = arith.constant 9.99999974E-6 : f32
    %19 = vector.broadcast %cst_12 : f32 to vector<32x1xf32>
    %20 = arith.addf %18, %19 : vector<32x1xf32>
    %21 = math.rsqrt %20 : vector<32x1xf32>
    %22 = vector.broadcast %21 : vector<32x1xf32> to vector<32x128xf32>
    %23 = arith.mulf %13, %22 : vector<32x128xf32>
    %24 = vector.broadcast %2 : vector<1x128xf32> to vector<32x128xf32>
    %25 = arith.mulf %23, %24 : vector<32x128xf32>
    %26 = vector.broadcast %3 : vector<1x128xf32> to vector<32x128xf32>
    %27 = arith.addf %25, %26 : vector<32x128xf32>
    %28 = arith.truncf %27 : vector<32x128xf32> to vector<32x128xbf16>
    %c0_13 = arith.constant 0 : index
    %c0_14 = arith.constant 0 : index
    %29 = vector.load %arg3[%c0_13, %c0_14] : memref<128x384xbf16, #tpu.memory_space<vmem>>, vector<128x384xbf16>
    %cst_15 = arith.constant dense<0.000000e+00> : vector<32x384xf32>
    %30 = tpu.matmul %28, %29, %cst_15 {dimension_numbers = #tpu.dot_dimension_numbers<[1], [0], [0], [1], [0, 0, 1, 1], [], []>} : vector<32x128xbf16>, vector<128x384xbf16>, vector<32x384xf32> -> vector<32x384xf32>
    %31 = arith.truncf %30 : vector<32x384xf32> to vector<32x384xbf16>
    %32 = vector.extract_strided_slice %31 {offsets = [0, 0], sizes = [16, 32], strides = [1, 1]} : vector<32x384xbf16> to vector<16x32xbf16>
    %33 = vector.extract_strided_slice %31 {offsets = [0, 128], sizes = [16, 32], strides = [1, 1]} : vector<32x384xbf16> to vector<16x32xbf16>
    %34 = vector.extract_strided_slice %31 {offsets = [0, 256], sizes = [16, 32], strides = [1, 1]} : vector<32x384xbf16> to vector<16x32xbf16>
    %cst_16 = arith.constant dense<0.000000e+00> : vector<16x16xf32>
    %35 = tpu.matmul %32, %33, %cst_16 {dimension_numbers = #tpu.dot_dimension_numbers<[1], [1], [0], [0], [0, 0, 1, 0], [], []>} : vector<16x32xbf16>, vector<16x32xbf16>, vector<16x16xf32> -> vector<16x16xf32>
    %cst_17 = arith.constant 0.176776692 : f32
    %36 = vector.broadcast %cst_17 : f32 to vector<16x16xf32>
    %37 = arith.mulf %35, %36 : vector<16x16xf32>
    %cst_18 = arith.constant dense<0xFF800000> : vector<16xf32>
    %38 = vector.multi_reduction <maximumf>, %37, %cst_18 [1] : vector<16x16xf32> to vector<16xf32>
    %39 = vector.shape_cast %38 : vector<16xf32> to vector<16x1xf32>
    %40 = vector.broadcast %39 : vector<16x1xf32> to vector<16x16xf32>
    %41 = arith.subf %37, %40 : vector<16x16xf32>
    %42 = math.exp %41 : vector<16x16xf32>
    %cst_19 = arith.constant dense<0.000000e+00> : vector<16xf32>
    %43 = vector.multi_reduction <add>, %42, %cst_19 [1] : vector<16x16xf32> to vector<16xf32>
    %44 = vector.shape_cast %43 : vector<16xf32> to vector<16x1xf32>
    %45 = tpu.reciprocal %44 {approx = true} : vector<16x1xf32> -> vector<16x1xf32>
    %46 = vector.broadcast %45 : vector<16x1xf32> to vector<16x16xf32>
    %47 = arith.mulf %42, %46 : vector<16x16xf32>
    %c0_20 = arith.constant 0 : index
    %c0_21 = arith.constant 0 : index
    %c0_22 = arith.constant 0 : index
    %c0_23 = arith.constant 0 : index
    %48 = vector.load %arg9[%c0_20, %c0_21, %c0_22, %c0_23] : memref<2x4x16x16xf32, #tpu.memory_space<vmem>>, vector<1x1x16x16xf32>
    %49 = vector.shape_cast %48 : vector<1x1x16x16xf32> to vector<16x16xf32>
    %50 = vector.shape_cast %47 : vector<16x16xf32> to vector<1x1x16x16xf32>
    tpu.vector_store %arg9[%c0_20, %c0_21, %c0_22, %c0_23], %50 {strides = array<i32>} : memref<2x4x16x16xf32, #tpu.memory_space<vmem>>, vector<1x1x16x16xf32>,
    %51 = arith.truncf %47 : vector<16x16xf32> to vector<16x16xbf16>
    %cst_24 = arith.constant dense<0.000000e+00> : vector<16x32xf32>
    %52 = tpu.matmul %51, %34, %cst_24 {dimension_numbers = #tpu.dot_dimension_numbers<[1], [0], [0], [1], [0, 0, 1, 1], [], []>} : vector<16x16xbf16>, vector<16x32xbf16>, vector<16x32xf32> -> vector<16x32xf32>
    %53 = arith.truncf %52 : vector<16x32xf32> to vector<16x32xbf16>
    %c0_25 = arith.constant 0 : index
    %c0_26 = arith.constant 0 : index
    %c0_27 = arith.constant 0 : index
    %54 = vector.load %arg4[%c0_25, %c0_26, %c0_27] : memref<4x32x128xbf16, #tpu.memory_space<vmem>>, vector<1x32x128xbf16>
    %55 = vector.shape_cast %54 : vector<1x32x128xbf16> to vector<32x128xbf16>
    %cst_28 = arith.constant dense<0.000000e+00> : vector<16x128xf32>
    %56 = tpu.matmul %53, %55, %cst_28 {dimension_numbers = #tpu.dot_dimension_numbers<[1], [0], [0], [1], [0, 0, 1, 1], [], []>} : vector<16x32xbf16>, vector<32x128xbf16>, vector<16x128xf32> -> vector<16x128xf32>
    %57 = vector.extract_strided_slice %31 {offsets = [0, 32], sizes = [16, 32], strides = [1, 1]} : vector<32x384xbf16> to vector<16x32xbf16>
    %58 = vector.extract_strided_slice %31 {offsets = [0, 160], sizes = [16, 32], strides = [1, 1]} : vector<32x384xbf16> to vector<16x32xbf16>
    %59 = vector.extract_strided_slice %31 {offsets = [0, 288], sizes = [16, 32], strides = [1, 1]} : vector<32x384xbf16> to vector<16x32xbf16>
    %cst_29 = arith.constant dense<0.000000e+00> : vector<16x16xf32>
    %60 = tpu.matmul %57, %58, %cst_29 {dimension_numbers = #tpu.dot_dimension_numbers<[1], [1], [0], [0], [0, 0, 1, 0], [], []>} : vector<16x32xbf16>, vector<16x32xbf16>, vector<16x16xf32> -> vector<16x16xf32>
    %cst_30 = arith.constant 0.176776692 : f32
    %61 = vector.broadcast %cst_30 : f32 to vector<16x16xf32>
    %62 = arith.mulf %60, %61 : vector<16x16xf32>
    %cst_31 = arith.constant dense<0xFF800000> : vector<16xf32>
    %63 = vector.multi_reduction <maximumf>, %62, %cst_31 [1] : vector<16x16xf32> to vector<16xf32>
    %64 = vector.shape_cast %63 : vector<16xf32> to vector<16x1xf32>
    %65 = vector.broadcast %64 : vector<16x1xf32> to vector<16x16xf32>
    %66 = arith.subf %62, %65 : vector<16x16xf32>
    %67 = math.exp %66 : vector<16x16xf32>
    %cst_32 = arith.constant dense<0.000000e+00> : vector<16xf32>
    %68 = vector.multi_reduction <add>, %67, %cst_32 [1] : vector<16x16xf32> to vector<16xf32>
    %69 = vector.shape_cast %68 : vector<16xf32> to vector<16x1xf32>
    %70 = tpu.reciprocal %69 {approx = true} : vector<16x1xf32> -> vector<16x1xf32>
    %71 = vector.broadcast %70 : vector<16x1xf32> to vector<16x16xf32>
    %72 = arith.mulf %67, %71 : vector<16x16xf32>
    %c0_33 = arith.constant 0 : index
    %c1_34 = arith.constant 1 : index
    %c0_35 = arith.constant 0 : index
    %c0_36 = arith.constant 0 : index
    %73 = vector.load %arg9[%c0_33, %c1_34, %c0_35, %c0_36] : memref<2x4x16x16xf32, #tpu.memory_space<vmem>>, vector<1x1x16x16xf32>
    %74 = vector.shape_cast %73 : vector<1x1x16x16xf32> to vector<16x16xf32>
    %75 = vector.shape_cast %72 : vector<16x16xf32> to vector<1x1x16x16xf32>
    tpu.vector_store %arg9[%c0_33, %c1_34, %c0_35, %c0_36], %75 {strides = array<i32>} : memref<2x4x16x16xf32, #tpu.memory_space<vmem>>, vector<1x1x16x16xf32>,
    %76 = arith.truncf %72 : vector<16x16xf32> to vector<16x16xbf16>
    %cst_37 = arith.constant dense<0.000000e+00> : vector<16x32xf32>
    %77 = tpu.matmul %76, %59, %cst_37 {dimension_numbers = #tpu.dot_dimension_numbers<[1], [0], [0], [1], [0, 0, 1, 1], [], []>} : vector<16x16xbf16>, vector<16x32xbf16>, vector<16x32xf32> -> vector<16x32xf32>
    %78 = arith.truncf %77 : vector<16x32xf32> to vector<16x32xbf16>
    %c1_38 = arith.constant 1 : index
    %c0_39 = arith.constant 0 : index
    %c0_40 = arith.constant 0 : index
    %79 = vector.load %arg4[%c1_38, %c0_39, %c0_40] : memref<4x32x128xbf16, #tpu.memory_space<vmem>>, vector<1x32x128xbf16>
    %80 = vector.shape_cast %79 : vector<1x32x128xbf16> to vector<32x128xbf16>
    %cst_41 = arith.constant dense<0.000000e+00> : vector<16x128xf32>
    %81 = tpu.matmul %78, %80, %cst_41 {dimension_numbers = #tpu.dot_dimension_numbers<[1], [0], [0], [1], [0, 0, 1, 1], [], []>} : vector<16x32xbf16>, vector<32x128xbf16>, vector<16x128xf32> -> vector<16x128xf32>
    %82 = arith.addf %56, %81 : vector<16x128xf32>
    %83 = vector.extract_strided_slice %31 {offsets = [0, 64], sizes = [16, 32], strides = [1, 1]} : vector<32x384xbf16> to vector<16x32xbf16>
    %84 = vector.extract_strided_slice %31 {offsets = [0, 192], sizes = [16, 32], strides = [1, 1]} : vector<32x384xbf16> to vector<16x32xbf16>
    %85 = vector.extract_strided_slice %31 {offsets = [0, 320], sizes = [16, 32], strides = [1, 1]} : vector<32x384xbf16> to vector<16x32xbf16>
    %cst_42 = arith.constant dense<0.000000e+00> : vector<16x16xf32>
    %86 = tpu.matmul %83, %84, %cst_42 {dimension_numbers = #tpu.dot_dimension_numbers<[1], [1], [0], [0], [0, 0, 1, 0], [], []>} : vector<16x32xbf16>, vector<16x32xbf16>, vector<16x16xf32> -> vector<16x16xf32>
    %cst_43 = arith.constant 0.176776692 : f32
    %87 = vector.broadcast %cst_43 : f32 to vector<16x16xf32>
    %88 = arith.mulf %86, %87 : vector<16x16xf32>
    %cst_44 = arith.constant dense<0xFF800000> : vector<16xf32>
    %89 = vector.multi_reduction <maximumf>, %88, %cst_44 [1] : vector<16x16xf32> to vector<16xf32>
    %90 = vector.shape_cast %89 : vector<16xf32> to vector<16x1xf32>
    %91 = vector.broadcast %90 : vector<16x1xf32> to vector<16x16xf32>
    %92 = arith.subf %88, %91 : vector<16x16xf32>
    %93 = math.exp %92 : vector<16x16xf32>
    %cst_45 = arith.constant dense<0.000000e+00> : vector<16xf32>
    %94 = vector.multi_reduction <add>, %93, %cst_45 [1] : vector<16x16xf32> to vector<16xf32>
    %95 = vector.shape_cast %94 : vector<16xf32> to vector<16x1xf32>
    %96 = tpu.reciprocal %95 {approx = true} : vector<16x1xf32> -> vector<16x1xf32>
    %97 = vector.broadcast %96 : vector<16x1xf32> to vector<16x16xf32>
    %98 = arith.mulf %93, %97 : vector<16x16xf32>
    %c0_46 = arith.constant 0 : index
    %c2_47 = arith.constant 2 : index
    %c0_48 = arith.constant 0 : index
    %c0_49 = arith.constant 0 : index
    %99 = vector.load %arg9[%c0_46, %c2_47, %c0_48, %c0_49] : memref<2x4x16x16xf32, #tpu.memory_space<vmem>>, vector<1x1x16x16xf32>
    %100 = vector.shape_cast %99 : vector<1x1x16x16xf32> to vector<16x16xf32>
    %101 = vector.shape_cast %98 : vector<16x16xf32> to vector<1x1x16x16xf32>
    tpu.vector_store %arg9[%c0_46, %c2_47, %c0_48, %c0_49], %101 {strides = array<i32>} : memref<2x4x16x16xf32, #tpu.memory_space<vmem>>, vector<1x1x16x16xf32>,
    %102 = arith.truncf %98 : vector<16x16xf32> to vector<16x16xbf16>
    %cst_50 = arith.constant dense<0.000000e+00> : vector<16x32xf32>
    %103 = tpu.matmul %102, %85, %cst_50 {dimension_numbers = #tpu.dot_dimension_numbers<[1], [0], [0], [1], [0, 0, 1, 1], [], []>} : vector<16x16xbf16>, vector<16x32xbf16>, vector<16x32xf32> -> vector<16x32xf32>
    %104 = arith.truncf %103 : vector<16x32xf32> to vector<16x32xbf16>
    %c2_51 = arith.constant 2 : index
    %c0_52 = arith.constant 0 : index
    %c0_53 = arith.constant 0 : index
    %105 = vector.load %arg4[%c2_51, %c0_52, %c0_53] : memref<4x32x128xbf16, #tpu.memory_space<vmem>>, vector<1x32x128xbf16>
    %106 = vector.shape_cast %105 : vector<1x32x128xbf16> to vector<32x128xbf16>
    %cst_54 = arith.constant dense<0.000000e+00> : vector<16x128xf32>
    %107 = tpu.matmul %104, %106, %cst_54 {dimension_numbers = #tpu.dot_dimension_numbers<[1], [0], [0], [1], [0, 0, 1, 1], [], []>} : vector<16x32xbf16>, vector<32x128xbf16>, vector<16x128xf32> -> vector<16x128xf32>
    %108 = arith.addf %82, %107 : vector<16x128xf32>
    %109 = vector.extract_strided_slice %31 {offsets = [0, 96], sizes = [16, 32], strides = [1, 1]} : vector<32x384xbf16> to vector<16x32xbf16>
    %110 = vector.extract_strided_slice %31 {offsets = [0, 224], sizes = [16, 32], strides = [1, 1]} : vector<32x384xbf16> to vector<16x32xbf16>
    %111 = vector.extract_strided_slice %31 {offsets = [0, 352], sizes = [16, 32], strides = [1, 1]} : vector<32x384xbf16> to vector<16x32xbf16>
    %cst_55 = arith.constant dense<0.000000e+00> : vector<16x16xf32>
    %112 = tpu.matmul %109, %110, %cst_55 {dimension_numbers = #tpu.dot_dimension_numbers<[1], [1], [0], [0], [0, 0, 1, 0], [], []>} : vector<16x32xbf16>, vector<16x32xbf16>, vector<16x16xf32> -> vector<16x16xf32>
    %cst_56 = arith.constant 0.176776692 : f32
    %113 = vector.broadcast %cst_56 : f32 to vector<16x16xf32>
    %114 = arith.mulf %112, %113 : vector<16x16xf32>
    %cst_57 = arith.constant dense<0xFF800000> : vector<16xf32>
    %115 = vector.multi_reduction <maximumf>, %114, %cst_57 [1] : vector<16x16xf32> to vector<16xf32>
    %116 = vector.shape_cast %115 : vector<16xf32> to vector<16x1xf32>
    %117 = vector.broadcast %116 : vector<16x1xf32> to vector<16x16xf32>
    %118 = arith.subf %114, %117 : vector<16x16xf32>
    %119 = math.exp %118 : vector<16x16xf32>
    %cst_58 = arith.constant dense<0.000000e+00> : vector<16xf32>
    %120 = vector.multi_reduction <add>, %119, %cst_58 [1] : vector<16x16xf32> to vector<16xf32>
    %121 = vector.shape_cast %120 : vector<16xf32> to vector<16x1xf32>
    %122 = tpu.reciprocal %121 {approx = true} : vector<16x1xf32> -> vector<16x1xf32>
    %123 = vector.broadcast %122 : vector<16x1xf32> to vector<16x16xf32>
    %124 = arith.mulf %119, %123 : vector<16x16xf32>
    %c0_59 = arith.constant 0 : index
    %c3_60 = arith.constant 3 : index
    %c0_61 = arith.constant 0 : index
    %c0_62 = arith.constant 0 : index
    %125 = vector.load %arg9[%c0_59, %c3_60, %c0_61, %c0_62] : memref<2x4x16x16xf32, #tpu.memory_space<vmem>>, vector<1x1x16x16xf32>
    %126 = vector.shape_cast %125 : vector<1x1x16x16xf32> to vector<16x16xf32>
    %127 = vector.shape_cast %124 : vector<16x16xf32> to vector<1x1x16x16xf32>
    tpu.vector_store %arg9[%c0_59, %c3_60, %c0_61, %c0_62], %127 {strides = array<i32>} : memref<2x4x16x16xf32, #tpu.memory_space<vmem>>, vector<1x1x16x16xf32>,
    %128 = arith.truncf %124 : vector<16x16xf32> to vector<16x16xbf16>
    %cst_63 = arith.constant dense<0.000000e+00> : vector<16x32xf32>
    %129 = tpu.matmul %128, %111, %cst_63 {dimension_numbers = #tpu.dot_dimension_numbers<[1], [0], [0], [1], [0, 0, 1, 1], [], []>} : vector<16x16xbf16>, vector<16x32xbf16>, vector<16x32xf32> -> vector<16x32xf32>
    %130 = arith.truncf %129 : vector<16x32xf32> to vector<16x32xbf16>
    %c3_64 = arith.constant 3 : index
    %c0_65 = arith.constant 0 : index
    %c0_66 = arith.constant 0 : index
    %131 = vector.load %arg4[%c3_64, %c0_65, %c0_66] : memref<4x32x128xbf16, #tpu.memory_space<vmem>>, vector<1x32x128xbf16>
    %132 = vector.shape_cast %131 : vector<1x32x128xbf16> to vector<32x128xbf16>
    %cst_67 = arith.constant dense<0.000000e+00> : vector<16x128xf32>
    %133 = tpu.matmul %130, %132, %cst_67 {dimension_numbers = #tpu.dot_dimension_numbers<[1], [0], [0], [1], [0, 0, 1, 1], [], []>} : vector<16x32xbf16>, vector<32x128xbf16>, vector<16x128xf32> -> vector<16x128xf32>
    %134 = arith.addf %108, %133 : vector<16x128xf32>
    %135 = vector.extract_strided_slice %31 {offsets = [16, 0], sizes = [16, 32], strides = [1, 1]} : vector<32x384xbf16> to vector<16x32xbf16>
    %136 = vector.extract_strided_slice %31 {offsets = [16, 128], sizes = [16, 32], strides = [1, 1]} : vector<32x384xbf16> to vector<16x32xbf16>
    %137 = vector.extract_strided_slice %31 {offsets = [16, 256], sizes = [16, 32], strides = [1, 1]} : vector<32x384xbf16> to vector<16x32xbf16>
    %cst_68 = arith.constant dense<0.000000e+00> : vector<16x16xf32>
    %138 = tpu.matmul %135, %136, %cst_68 {dimension_numbers = #tpu.dot_dimension_numbers<[1], [1], [0], [0], [0, 0, 1, 0], [], []>} : vector<16x32xbf16>, vector<16x32xbf16>, vector<16x16xf32> -> vector<16x16xf32>
    %cst_69 = arith.constant 0.176776692 : f32
    %139 = vector.broadcast %cst_69 : f32 to vector<16x16xf32>
    %140 = arith.mulf %138, %139 : vector<16x16xf32>
    %cst_70 = arith.constant dense<0xFF800000> : vector<16xf32>
    %141 = vector.multi_reduction <maximumf>, %140, %cst_70 [1] : vector<16x16xf32> to vector<16xf32>
    %142 = vector.shape_cast %141 : vector<16xf32> to vector<16x1xf32>
    %143 = vector.broadcast %142 : vector<16x1xf32> to vector<16x16xf32>
    %144 = arith.subf %140, %143 : vector<16x16xf32>
    %145 = math.exp %144 : vector<16x16xf32>
    %cst_71 = arith.constant dense<0.000000e+00> : vector<16xf32>
    %146 = vector.multi_reduction <add>, %145, %cst_71 [1] : vector<16x16xf32> to vector<16xf32>
    %147 = vector.shape_cast %146 : vector<16xf32> to vector<16x1xf32>
    %148 = tpu.reciprocal %147 {approx = true} : vector<16x1xf32> -> vector<16x1xf32>
    %149 = vector.broadcast %148 : vector<16x1xf32> to vector<16x16xf32>
    %150 = arith.mulf %145, %149 : vector<16x16xf32>
    %c1_72 = arith.constant 1 : index
    %c0_73 = arith.constant 0 : index
    %c0_74 = arith.constant 0 : index
    %c0_75 = arith.constant 0 : index
    %151 = vector.load %arg9[%c1_72, %c0_73, %c0_74, %c0_75] : memref<2x4x16x16xf32, #tpu.memory_space<vmem>>, vector<1x1x16x16xf32>
    %152 = vector.shape_cast %151 : vector<1x1x16x16xf32> to vector<16x16xf32>
    %153 = vector.shape_cast %150 : vector<16x16xf32> to vector<1x1x16x16xf32>
    tpu.vector_store %arg9[%c1_72, %c0_73, %c0_74, %c0_75], %153 {strides = array<i32>} : memref<2x4x16x16xf32, #tpu.memory_space<vmem>>, vector<1x1x16x16xf32>,
    %154 = arith.truncf %150 : vector<16x16xf32> to vector<16x16xbf16>
    %cst_76 = arith.constant dense<0.000000e+00> : vector<16x32xf32>
    %155 = tpu.matmul %154, %137, %cst_76 {dimension_numbers = #tpu.dot_dimension_numbers<[1], [0], [0], [1], [0, 0, 1, 1], [], []>} : vector<16x16xbf16>, vector<16x32xbf16>, vector<16x32xf32> -> vector<16x32xf32>
    %156 = arith.truncf %155 : vector<16x32xf32> to vector<16x32xbf16>
    %c0_77 = arith.constant 0 : index
    %c0_78 = arith.constant 0 : index
    %c0_79 = arith.constant 0 : index
    %157 = vector.load %arg4[%c0_77, %c0_78, %c0_79] : memref<4x32x128xbf16, #tpu.memory_space<vmem>>, vector<1x32x128xbf16>
    %158 = vector.shape_cast %157 : vector<1x32x128xbf16> to vector<32x128xbf16>
    %cst_80 = arith.constant dense<0.000000e+00> : vector<16x128xf32>
    %159 = tpu.matmul %156, %158, %cst_80 {dimension_numbers = #tpu.dot_dimension_numbers<[1], [0], [0], [1], [0, 0, 1, 1], [], []>} : vector<16x32xbf16>, vector<32x128xbf16>, vector<16x128xf32> -> vector<16x128xf32>
    %160 = vector.extract_strided_slice %31 {offsets = [16, 32], sizes = [16, 32], strides = [1, 1]} : vector<32x384xbf16> to vector<16x32xbf16>
    %161 = vector.extract_strided_slice %31 {offsets = [16, 160], sizes = [16, 32], strides = [1, 1]} : vector<32x384xbf16> to vector<16x32xbf16>
    %162 = vector.extract_strided_slice %31 {offsets = [16, 288], sizes = [16, 32], strides = [1, 1]} : vector<32x384xbf16> to vector<16x32xbf16>
    %cst_81 = arith.constant dense<0.000000e+00> : vector<16x16xf32>
    %163 = tpu.matmul %160, %161, %cst_81 {dimension_numbers = #tpu.dot_dimension_numbers<[1], [1], [0], [0], [0, 0, 1, 0], [], []>} : vector<16x32xbf16>, vector<16x32xbf16>, vector<16x16xf32> -> vector<16x16xf32>
    %cst_82 = arith.constant 0.176776692 : f32
    %164 = vector.broadcast %cst_82 : f32 to vector<16x16xf32>
    %165 = arith.mulf %163, %164 : vector<16x16xf32>
    %cst_83 = arith.constant dense<0xFF800000> : vector<16xf32>
    %166 = vector.multi_reduction <maximumf>, %165, %cst_83 [1] : vector<16x16xf32> to vector<16xf32>
    %167 = vector.shape_cast %166 : vector<16xf32> to vector<16x1xf32>
    %168 = vector.broadcast %167 : vector<16x1xf32> to vector<16x16xf32>
    %169 = arith.subf %165, %168 : vector<16x16xf32>
    %170 = math.exp %169 : vector<16x16xf32>
    %cst_84 = arith.constant dense<0.000000e+00> : vector<16xf32>
    %171 = vector.multi_reduction <add>, %170, %cst_84 [1] : vector<16x16xf32> to vector<16xf32>
    %172 = vector.shape_cast %171 : vector<16xf32> to vector<16x1xf32>
    %173 = tpu.reciprocal %172 {approx = true} : vector<16x1xf32> -> vector<16x1xf32>
    %174 = vector.broadcast %173 : vector<16x1xf32> to vector<16x16xf32>
    %175 = arith.mulf %170, %174 : vector<16x16xf32>
    %c1_85 = arith.constant 1 : index
    %c1_86 = arith.constant 1 : index
    %c0_87 = arith.constant 0 : index
    %c0_88 = arith.constant 0 : index
    %176 = vector.load %arg9[%c1_85, %c1_86, %c0_87, %c0_88] : memref<2x4x16x16xf32, #tpu.memory_space<vmem>>, vector<1x1x16x16xf32>
    %177 = vector.shape_cast %176 : vector<1x1x16x16xf32> to vector<16x16xf32>
    %178 = vector.shape_cast %175 : vector<16x16xf32> to vector<1x1x16x16xf32>
    tpu.vector_store %arg9[%c1_85, %c1_86, %c0_87, %c0_88], %178 {strides = array<i32>} : memref<2x4x16x16xf32, #tpu.memory_space<vmem>>, vector<1x1x16x16xf32>,
    %179 = arith.truncf %175 : vector<16x16xf32> to vector<16x16xbf16>
    %cst_89 = arith.constant dense<0.000000e+00> : vector<16x32xf32>
    %180 = tpu.matmul %179, %162, %cst_89 {dimension_numbers = #tpu.dot_dimension_numbers<[1], [0], [0], [1], [0, 0, 1, 1], [], []>} : vector<16x16xbf16>, vector<16x32xbf16>, vector<16x32xf32> -> vector<16x32xf32>
    %181 = arith.truncf %180 : vector<16x32xf32> to vector<16x32xbf16>
    %c1_90 = arith.constant 1 : index
    %c0_91 = arith.constant 0 : index
    %c0_92 = arith.constant 0 : index
    %182 = vector.load %arg4[%c1_90, %c0_91, %c0_92] : memref<4x32x128xbf16, #tpu.memory_space<vmem>>, vector<1x32x128xbf16>
    %183 = vector.shape_cast %182 : vector<1x32x128xbf16> to vector<32x128xbf16>
    %cst_93 = arith.constant dense<0.000000e+00> : vector<16x128xf32>
    %184 = tpu.matmul %181, %183, %cst_93 {dimension_numbers = #tpu.dot_dimension_numbers<[1], [0], [0], [1], [0, 0, 1, 1], [], []>} : vector<16x32xbf16>, vector<32x128xbf16>, vector<16x128xf32> -> vector<16x128xf32>
    %185 = arith.addf %159, %184 : vector<16x128xf32>
    %186 = vector.extract_strided_slice %31 {offsets = [16, 64], sizes = [16, 32], strides = [1, 1]} : vector<32x384xbf16> to vector<16x32xbf16>
    %187 = vector.extract_strided_slice %31 {offsets = [16, 192], sizes = [16, 32], strides = [1, 1]} : vector<32x384xbf16> to vector<16x32xbf16>
    %188 = vector.extract_strided_slice %31 {offsets = [16, 320], sizes = [16, 32], strides = [1, 1]} : vector<32x384xbf16> to vector<16x32xbf16>
    %cst_94 = arith.constant dense<0.000000e+00> : vector<16x16xf32>
    %189 = tpu.matmul %186, %187, %cst_94 {dimension_numbers = #tpu.dot_dimension_numbers<[1], [1], [0], [0], [0, 0, 1, 0], [], []>} : vector<16x32xbf16>, vector<16x32xbf16>, vector<16x16xf32> -> vector<16x16xf32>
    %cst_95 = arith.constant 0.176776692 : f32
    %190 = vector.broadcast %cst_95 : f32 to vector<16x16xf32>
    %191 = arith.mulf %189, %190 : vector<16x16xf32>
    %cst_96 = arith.constant dense<0xFF800000> : vector<16xf32>
    %192 = vector.multi_reduction <maximumf>, %191, %cst_96 [1] : vector<16x16xf32> to vector<16xf32>
    %193 = vector.shape_cast %192 : vector<16xf32> to vector<16x1xf32>
    %194 = vector.broadcast %193 : vector<16x1xf32> to vector<16x16xf32>
    %195 = arith.subf %191, %194 : vector<16x16xf32>
    %196 = math.exp %195 : vector<16x16xf32>
    %cst_97 = arith.constant dense<0.000000e+00> : vector<16xf32>
    %197 = vector.multi_reduction <add>, %196, %cst_97 [1] : vector<16x16xf32> to vector<16xf32>
    %198 = vector.shape_cast %197 : vector<16xf32> to vector<16x1xf32>
    %199 = tpu.reciprocal %198 {approx = true} : vector<16x1xf32> -> vector<16x1xf32>
    %200 = vector.broadcast %199 : vector<16x1xf32> to vector<16x16xf32>
    %201 = arith.mulf %196, %200 : vector<16x16xf32>
    %c1_98 = arith.constant 1 : index
    %c2_99 = arith.constant 2 : index
    %c0_100 = arith.constant 0 : index
    %c0_101 = arith.constant 0 : index
    %202 = vector.load %arg9[%c1_98, %c2_99, %c0_100, %c0_101] : memref<2x4x16x16xf32, #tpu.memory_space<vmem>>, vector<1x1x16x16xf32>
    %203 = vector.shape_cast %202 : vector<1x1x16x16xf32> to vector<16x16xf32>
    %204 = vector.shape_cast %201 : vector<16x16xf32> to vector<1x1x16x16xf32>
    tpu.vector_store %arg9[%c1_98, %c2_99, %c0_100, %c0_101], %204 {strides = array<i32>} : memref<2x4x16x16xf32, #tpu.memory_space<vmem>>, vector<1x1x16x16xf32>,
    %205 = arith.truncf %201 : vector<16x16xf32> to vector<16x16xbf16>
    %cst_102 = arith.constant dense<0.000000e+00> : vector<16x32xf32>
    %206 = tpu.matmul %205, %188, %cst_102 {dimension_numbers = #tpu.dot_dimension_numbers<[1], [0], [0], [1], [0, 0, 1, 1], [], []>} : vector<16x16xbf16>, vector<16x32xbf16>, vector<16x32xf32> -> vector<16x32xf32>
    %207 = arith.truncf %206 : vector<16x32xf32> to vector<16x32xbf16>
    %c2_103 = arith.constant 2 : index
    %c0_104 = arith.constant 0 : index
    %c0_105 = arith.constant 0 : index
    %208 = vector.load %arg4[%c2_103, %c0_104, %c0_105] : memref<4x32x128xbf16, #tpu.memory_space<vmem>>, vector<1x32x128xbf16>
    %209 = vector.shape_cast %208 : vector<1x32x128xbf16> to vector<32x128xbf16>
    %cst_106 = arith.constant dense<0.000000e+00> : vector<16x128xf32>
    %210 = tpu.matmul %207, %209, %cst_106 {dimension_numbers = #tpu.dot_dimension_numbers<[1], [0], [0], [1], [0, 0, 1, 1], [], []>} : vector<16x32xbf16>, vector<32x128xbf16>, vector<16x128xf32> -> vector<16x128xf32>
    %211 = arith.addf %185, %210 : vector<16x128xf32>
    %212 = vector.extract_strided_slice %31 {offsets = [16, 96], sizes = [16, 32], strides = [1, 1]} : vector<32x384xbf16> to vector<16x32xbf16>
    %213 = vector.extract_strided_slice %31 {offsets = [16, 224], sizes = [16, 32], strides = [1, 1]} : vector<32x384xbf16> to vector<16x32xbf16>
    %214 = vector.extract_strided_slice %31 {offsets = [16, 352], sizes = [16, 32], strides = [1, 1]} : vector<32x384xbf16> to vector<16x32xbf16>
    %cst_107 = arith.constant dense<0.000000e+00> : vector<16x16xf32>
    %215 = tpu.matmul %212, %213, %cst_107 {dimension_numbers = #tpu.dot_dimension_numbers<[1], [1], [0], [0], [0, 0, 1, 0], [], []>} : vector<16x32xbf16>, vector<16x32xbf16>, vector<16x16xf32> -> vector<16x16xf32>
    %cst_108 = arith.constant 0.176776692 : f32
    %216 = vector.broadcast %cst_108 : f32 to vector<16x16xf32>
    %217 = arith.mulf %215, %216 : vector<16x16xf32>
    %cst_109 = arith.constant dense<0xFF800000> : vector<16xf32>
    %218 = vector.multi_reduction <maximumf>, %217, %cst_109 [1] : vector<16x16xf32> to vector<16xf32>
    %219 = vector.shape_cast %218 : vector<16xf32> to vector<16x1xf32>
    %220 = vector.broadcast %219 : vector<16x1xf32> to vector<16x16xf32>
    %221 = arith.subf %217, %220 : vector<16x16xf32>
    %222 = math.exp %221 : vector<16x16xf32>
    %cst_110 = arith.constant dense<0.000000e+00> : vector<16xf32>
    %223 = vector.multi_reduction <add>, %222, %cst_110 [1] : vector<16x16xf32> to vector<16xf32>
    %224 = vector.shape_cast %223 : vector<16xf32> to vector<16x1xf32>
    %225 = tpu.reciprocal %224 {approx = true} : vector<16x1xf32> -> vector<16x1xf32>
    %226 = vector.broadcast %225 : vector<16x1xf32> to vector<16x16xf32>
    %227 = arith.mulf %222, %226 : vector<16x16xf32>
    %c1_111 = arith.constant 1 : index
    %c3_112 = arith.constant 3 : index
    %c0_113 = arith.constant 0 : index
    %c0_114 = arith.constant 0 : index
    %228 = vector.load %arg9[%c1_111, %c3_112, %c0_113, %c0_114] : memref<2x4x16x16xf32, #tpu.memory_space<vmem>>, vector<1x1x16x16xf32>
    %229 = vector.shape_cast %228 : vector<1x1x16x16xf32> to vector<16x16xf32>
    %230 = vector.shape_cast %227 : vector<16x16xf32> to vector<1x1x16x16xf32>
    tpu.vector_store %arg9[%c1_111, %c3_112, %c0_113, %c0_114], %230 {strides = array<i32>} : memref<2x4x16x16xf32, #tpu.memory_space<vmem>>, vector<1x1x16x16xf32>,
    %231 = arith.truncf %227 : vector<16x16xf32> to vector<16x16xbf16>
    %cst_115 = arith.constant dense<0.000000e+00> : vector<16x32xf32>
    %232 = tpu.matmul %231, %214, %cst_115 {dimension_numbers = #tpu.dot_dimension_numbers<[1], [0], [0], [1], [0, 0, 1, 1], [], []>} : vector<16x16xbf16>, vector<16x32xbf16>, vector<16x32xf32> -> vector<16x32xf32>
    %233 = arith.truncf %232 : vector<16x32xf32> to vector<16x32xbf16>
    %c3_116 = arith.constant 3 : index
    %c0_117 = arith.constant 0 : index
    %c0_118 = arith.constant 0 : index
    %234 = vector.load %arg4[%c3_116, %c0_117, %c0_118] : memref<4x32x128xbf16, #tpu.memory_space<vmem>>, vector<1x32x128xbf16>
    %235 = vector.shape_cast %234 : vector<1x32x128xbf16> to vector<32x128xbf16>
    %cst_119 = arith.constant dense<0.000000e+00> : vector<16x128xf32>
    %236 = tpu.matmul %233, %235, %cst_119 {dimension_numbers = #tpu.dot_dimension_numbers<[1], [0], [0], [1], [0, 0, 1, 1], [], []>} : vector<16x32xbf16>, vector<32x128xbf16>, vector<16x128xf32> -> vector<16x128xf32>
    %237 = arith.addf %211, %236 : vector<16x128xf32>
    %238 = tpu.concatenate %134, %237 in 0 : vector<16x128xf32>, vector<16x128xf32> -> vector<32x128xf32>
    %239 = vector.broadcast %6 : vector<1x128xf32> to vector<32x128xf32>
    %240 = arith.addf %238, %239 : vector<32x128xf32>
    %241 = arith.addf %1, %240 : vector<32x128xf32>
    %cst_120 = arith.constant 0.707106769 : f32
    %242 = vector.broadcast %cst_120 : f32 to vector<32x128xf32>
    %243 = arith.mulf %241, %242 : vector<32x128xf32>
    %cst_121 = arith.constant dense<0.000000e+00> : vector<32xf32>
    %244 = vector.multi_reduction <add>, %243, %cst_121 [1] : vector<32x128xf32> to vector<32xf32>
    %245 = vector.shape_cast %244 : vector<32xf32> to vector<32x1xf32>
    %cst_122 = arith.constant 1.280000e+02 : f32
    %246 = vector.broadcast %cst_122 : f32 to vector<32x1xf32>
    %247 = arith.divf %245, %246 : vector<32x1xf32>
    %248 = vector.broadcast %247 : vector<32x1xf32> to vector<32x128xf32>
    %249 = arith.subf %243, %248 : vector<32x128xf32>
    %250 = arith.mulf %249, %249 : vector<32x128xf32>
    %cst_123 = arith.constant dense<0.000000e+00> : vector<32xf32>
    %251 = vector.multi_reduction <add>, %250, %cst_123 [1] : vector<32x128xf32> to vector<32xf32>
    %252 = vector.shape_cast %251 : vector<32xf32> to vector<32x1xf32>
    %cst_124 = arith.constant 1.280000e+02 : f32
    %253 = vector.broadcast %cst_124 : f32 to vector<32x1xf32>
    %254 = arith.divf %252, %253 : vector<32x1xf32>
    %cst_125 = arith.constant 9.99999974E-6 : f32
    %255 = vector.broadcast %cst_125 : f32 to vector<32x1xf32>
    %256 = arith.addf %254, %255 : vector<32x1xf32>
    %257 = math.rsqrt %256 : vector<32x1xf32>
    %258 = vector.broadcast %257 : vector<32x1xf32> to vector<32x128xf32>
    %259 = arith.mulf %249, %258 : vector<32x128xf32>
    %260 = vector.broadcast %4 : vector<1x128xf32> to vector<32x128xf32>
    %261 = arith.mulf %259, %260 : vector<32x128xf32>
    %262 = vector.broadcast %5 : vector<1x128xf32> to vector<32x128xf32>
    %263 = arith.addf %261, %262 : vector<32x128xf32>
    %264 = arith.truncf %263 : vector<32x128xf32> to vector<32x128xbf16>
    %c0_126 = arith.constant 0 : index
    %c0_127 = arith.constant 0 : index
    %265 = vector.load %arg5[%c0_126, %c0_127] : memref<128x128xbf16, #tpu.memory_space<vmem>>, vector<128x128xbf16>
    %cst_128 = arith.constant dense<0.000000e+00> : vector<32x128xf32>
    %266 = tpu.matmul %264, %265, %cst_128 {dimension_numbers = #tpu.dot_dimension_numbers<[1], [0], [0], [1], [0, 0, 1, 1], [], []>} : vector<32x128xbf16>, vector<128x128xbf16>, vector<32x128xf32> -> vector<32x128xf32>
    %267 = vector.broadcast %7 : vector<1x128xf32> to vector<32x128xf32>
    %268 = arith.addf %266, %267 : vector<32x128xf32>
    %269 = tpu.iota {dimensions = array<i32: 0>} : vector<32x1xi32>
    %c0_i32 = arith.constant 0 : i32
    %270 = vector.broadcast %c0_i32 : i32 to vector<32x1xi32>
    %271 = arith.cmpi eq, %269, %270 : vector<32x1xi32>
    %272 = arith.extui %271 : vector<32x1xi1> to vector<32x1xi32>
    %273 = arith.sitofp %272 : vector<32x1xi32> to vector<32x1xf32>
    %cst_129 = arith.constant 0.000000e+00 : f32
    %274 = vector.broadcast %cst_129 : f32 to vector<32x1xf32>
    %275 = arith.addf %274, %273 : vector<32x1xf32>
    %c16_i32 = arith.constant 16 : i32
    %276 = vector.broadcast %c16_i32 : i32 to vector<32x1xi32>
    %277 = arith.cmpi eq, %269, %276 : vector<32x1xi32>
    %278 = arith.extui %277 : vector<32x1xi1> to vector<32x1xi32>
    %279 = arith.sitofp %278 : vector<32x1xi32> to vector<32x1xf32>
    %280 = arith.addf %275, %279 : vector<32x1xf32>
    %c15_i32 = arith.constant 15 : i32
    %281 = vector.broadcast %c15_i32 : i32 to vector<32x1xi32>
    %282 = arith.cmpi eq, %269, %281 : vector<32x1xi32>
    %283 = arith.extui %282 : vector<32x1xi1> to vector<32x1xi32>
    %284 = arith.sitofp %283 : vector<32x1xi32> to vector<32x1xf32>
    %cst_130 = arith.constant 0.000000e+00 : f32
    %285 = vector.broadcast %cst_130 : f32 to vector<32x1xf32>
    %286 = arith.addf %285, %284 : vector<32x1xf32>
    %c31_i32 = arith.constant 31 : i32
    %287 = vector.broadcast %c31_i32 : i32 to vector<32x1xi32>
    %288 = arith.cmpi eq, %269, %287 : vector<32x1xi32>
    %289 = arith.extui %288 : vector<32x1xi1> to vector<32x1xi32>
    %290 = arith.sitofp %289 : vector<32x1xi32> to vector<32x1xf32>
    %291 = arith.addf %286, %290 : vector<32x1xf32>
    %c1_i32 = arith.constant 1 : i32
    %292 = tpu.dynamic_rotate %268 by %c1_i32 dim 0 : vector<32x128xf32>, i32 -> vector<32x128xf32>
    %cst_131 = arith.constant 1.000000e+00 : f32
    %293 = vector.broadcast %cst_131 : f32 to vector<32x1xf32>
    %294 = arith.subf %293, %280 : vector<32x1xf32>
    %295 = vector.broadcast %294 : vector<32x1xf32> to vector<32x128xf32>
    %296 = arith.mulf %292, %295 : vector<32x128xf32>
    %c31_i32_132 = arith.constant 31 : i32
    %297 = tpu.dynamic_rotate %268 by %c31_i32_132 dim 0 : vector<32x128xf32>, i32 -> vector<32x128xf32>
    %cst_133 = arith.constant 1.000000e+00 : f32
    %298 = vector.broadcast %cst_133 : f32 to vector<32x1xf32>
    %299 = arith.subf %298, %291 : vector<32x1xf32>
    %300 = vector.broadcast %299 : vector<32x1xf32> to vector<32x128xf32>
    %301 = arith.mulf %297, %300 : vector<32x128xf32>
    %302 = arith.truncf %296 : vector<32x128xf32> to vector<32x128xbf16>
    %c0_134 = arith.constant 0 : index
    %c0_135 = arith.constant 0 : index
    %c0_136 = arith.constant 0 : index
    %303 = vector.load %arg6[%c0_134, %c0_135, %c0_136] : memref<3x128x256xbf16, #tpu.memory_space<vmem>>, vector<1x128x256xbf16>
    %304 = vector.shape_cast %303 : vector<1x128x256xbf16> to vector<128x256xbf16>
    %cst_137 = arith.constant dense<0.000000e+00> : vector<32x256xf32>
    %305 = tpu.matmul %302, %304, %cst_137 {dimension_numbers = #tpu.dot_dimension_numbers<[1], [0], [0], [1], [0, 0, 1, 1], [], []>} : vector<32x128xbf16>, vector<128x256xbf16>, vector<32x256xf32> -> vector<32x256xf32>
    %306 = arith.truncf %268 : vector<32x128xf32> to vector<32x128xbf16>
    %c1_138 = arith.constant 1 : index
    %c0_139 = arith.constant 0 : index
    %c0_140 = arith.constant 0 : index
    %307 = vector.load %arg6[%c1_138, %c0_139, %c0_140] : memref<3x128x256xbf16, #tpu.memory_space<vmem>>, vector<1x128x256xbf16>
    %308 = vector.shape_cast %307 : vector<1x128x256xbf16> to vector<128x256xbf16>
    %cst_141 = arith.constant dense<0.000000e+00> : vector<32x256xf32>
    %309 = tpu.matmul %306, %308, %cst_141 {dimension_numbers = #tpu.dot_dimension_numbers<[1], [0], [0], [1], [0, 0, 1, 1], [], []>} : vector<32x128xbf16>, vector<128x256xbf16>, vector<32x256xf32> -> vector<32x256xf32>
    %310 = arith.addf %305, %309 : vector<32x256xf32>
    %311 = arith.truncf %301 : vector<32x128xf32> to vector<32x128xbf16>
    %c2_142 = arith.constant 2 : index
    %c0_143 = arith.constant 0 : index
    %c0_144 = arith.constant 0 : index
    %312 = vector.load %arg6[%c2_142, %c0_143, %c0_144] : memref<3x128x256xbf16, #tpu.memory_space<vmem>>, vector<1x128x256xbf16>
    %313 = vector.shape_cast %312 : vector<1x128x256xbf16> to vector<128x256xbf16>
    %cst_145 = arith.constant dense<0.000000e+00> : vector<32x256xf32>
    %314 = tpu.matmul %311, %313, %cst_145 {dimension_numbers = #tpu.dot_dimension_numbers<[1], [0], [0], [1], [0, 0, 1, 1], [], []>} : vector<32x128xbf16>, vector<128x256xbf16>, vector<32x256xf32> -> vector<32x256xf32>
    %315 = arith.addf %310, %314 : vector<32x256xf32>
    %c0_146 = arith.constant 0 : index
    %c0_147 = arith.constant 0 : index
    %316 = vector.load %arg7[%c0_146, %c0_147] : memref<1x256xf32, #tpu.memory_space<vmem>>, vector<1x256xf32>
    %317 = vector.broadcast %316 : vector<1x256xf32> to vector<32x256xf32>
    %318 = arith.addf %315, %317 : vector<32x256xf32>
    %319 = vector.extract_strided_slice %318 {offsets = [0, 0], sizes = [32, 128], strides = [1, 1]} : vector<32x256xf32> to vector<32x128xf32>
    %320 = vector.extract_strided_slice %318 {offsets = [0, 128], sizes = [32, 128], strides = [1, 1]} : vector<32x256xf32> to vector<32x128xf32>
    %321 = arith.negf %320 : vector<32x128xf32>
    %322 = math.exp %321 : vector<32x128xf32>
    %cst_148 = arith.constant 1.000000e+00 : f32
    %323 = vector.broadcast %cst_148 : f32 to vector<32x128xf32>
    %324 = arith.addf %323, %322 : vector<32x128xf32>
    %325 = arith.divf %323, %324 : vector<32x128xf32>
    %326 = arith.mulf %319, %325 : vector<32x128xf32>
    %327 = arith.addf %268, %326 : vector<32x128xf32>
    %cst_149 = arith.constant 0.707106769 : f32
    %328 = vector.broadcast %cst_149 : f32 to vector<32x128xf32>
    %329 = arith.mulf %327, %328 : vector<32x128xf32>
    %330 = arith.addf %243, %329 : vector<32x128xf32>
    %cst_150 = arith.constant 0.707106769 : f32
    %331 = vector.broadcast %cst_150 : f32 to vector<32x128xf32>
    %332 = arith.mulf %330, %331 : vector<32x128xf32>
    %333 = vector.shape_cast %332 : vector<32x128xf32> to vector<2x16x128xf32>
    %c0_151 = arith.constant 0 : index
    %c0_152 = arith.constant 0 : index
    %c0_153 = arith.constant 0 : index
    %334 = vector.load %arg8[%c0_151, %c0_152, %c0_153] : memref<2x16x128xf32, #tpu.memory_space<vmem>>, vector<2x16x128xf32>
    tpu.vector_store %arg8[%c0_151, %c0_152, %c0_153], %333 {strides = array<i32>} : memref<2x16x128xf32, #tpu.memory_space<vmem>>, vector<2x16x128xf32>,
    return
  }
  func.func @transform_0(%arg0: i32) -> (i32, i32, i32) {
    %c0_i32 = arith.constant 0 : i32
    %c0_i32_0 = arith.constant 0 : i32
    %c0_i32_1 = arith.constant 0 : i32
    return %arg0, %c0_i32, %c0_i32_0 : i32, i32, i32
  }
  func.func @transform_1(%arg0: i32) -> (i32, i32) {
    %c0_i32 = arith.constant 0 : i32
    %c0_i32_0 = arith.constant 0 : i32
    %c0_i32_1 = arith.constant 0 : i32
    return %c0_i32, %c0_i32_0 : i32, i32
  }
  func.func @transform_2(%arg0: i32) -> (i32, i32) {
    %c0_i32 = arith.constant 0 : i32
    %c0_i32_0 = arith.constant 0 : i32
    %c0_i32_1 = arith.constant 0 : i32
    return %c0_i32, %c0_i32_0 : i32, i32
  }
  func.func @transform_3(%arg0: i32) -> (i32, i32, i32) {
    %c0_i32 = arith.constant 0 : i32
    %c0_i32_0 = arith.constant 0 : i32
    %c0_i32_1 = arith.constant 0 : i32
    %c0_i32_2 = arith.constant 0 : i32
    return %c0_i32, %c0_i32_0, %c0_i32_1 : i32, i32, i32
  }
  func.func @transform_4(%arg0: i32) -> (i32, i32) {
    %c0_i32 = arith.constant 0 : i32
    %c0_i32_0 = arith.constant 0 : i32
    %c0_i32_1 = arith.constant 0 : i32
    return %c0_i32, %c0_i32_0 : i32, i32
  }
  func.func @transform_5(%arg0: i32) -> (i32, i32, i32) {
    %c0_i32 = arith.constant 0 : i32
    %c0_i32_0 = arith.constant 0 : i32
    %c0_i32_1 = arith.constant 0 : i32
    %c0_i32_2 = arith.constant 0 : i32
    return %c0_i32, %c0_i32_0, %c0_i32_1 : i32, i32, i32
  }
  func.func @transform_6(%arg0: i32) -> (i32, i32) {
    %c0_i32 = arith.constant 0 : i32
    %c0_i32_0 = arith.constant 0 : i32
    %c0_i32_1 = arith.constant 0 : i32
    return %c0_i32, %c0_i32_0 : i32, i32
  }
  func.func @transform_7(%arg0: i32) -> (i32, i32, i32) {
    %c0_i32 = arith.constant 0 : i32
    %c0_i32_0 = arith.constant 0 : i32
    %c0_i32_1 = arith.constant 0 : i32
    return %arg0, %c0_i32, %c0_i32_0 : i32, i32, i32
  }
  func.func @transform_8(%arg0: i32) -> (i32, i32, i32, i32) {
    %c0_i32 = arith.constant 0 : i32
    %c0_i32_0 = arith.constant 0 : i32
    %c0_i32_1 = arith.constant 0 : i32
    %c0_i32_2 = arith.constant 0 : i32
    return %arg0, %c0_i32, %c0_i32_0, %c0_i32_1 : i32, i32, i32, i32
  }
}

module attributes {stable_mosaic.version = 11 : i64} {
  func.func @_transformer_glu_kernel(%arg0: i32, %arg1: memref<2x16x128xf32, #tpu.memory_space<vmem>>, %arg2: memref<6x128xf32, #tpu.memory_space<vmem>>, %arg3: memref<128x384xbf16, #tpu.memory_space<vmem>>, %arg4: memref<4x32x128xbf16, #tpu.memory_space<vmem>>, %arg5: memref<128x128xbf16, #tpu.memory_space<vmem>>, %arg6: memref<3x128x256xbf16, #tpu.memory_space<vmem>>, %arg7: memref<1x256xf32, #tpu.memory_space<vmem>>, %arg8: memref<2x16x128xf32, #tpu.memory_space<vmem>>, %arg9: memref<2x4x16x16xf32, #tpu.memory_space<vmem>>) attributes {dimension_semantics = [#tpu.dimension_semantics<parallel>], iteration_bounds = array<i64: 2>, scalar_prefetch = 0 : i64, scratch_operands = 0 : i64, tpu.core_type = #tpu.core_type<tc>, window_params = [{transform_indices = @transform_0, window_bounds = array<i64: 2, 16, 128>}, {pipeline_mode = #tpu.pipeline_mode<synchronous>, transform_indices = @transform_1, window_bounds = array<i64: 6, 128>}, {pipeline_mode = #tpu.pipeline_mode<synchronous>, transform_indices = @transform_2, window_bounds = array<i64: 128, 384>}, {pipeline_mode = #tpu.pipeline_mode<synchronous>, transform_indices = @transform_3, window_bounds = array<i64: 4, 32, 128>}, {pipeline_mode = #tpu.pipeline_mode<synchronous>, transform_indices = @transform_4, window_bounds = array<i64: 128, 128>}, {pipeline_mode = #tpu.pipeline_mode<synchronous>, transform_indices = @transform_5, window_bounds = array<i64: 3, 128, 256>}, {pipeline_mode = #tpu.pipeline_mode<synchronous>, transform_indices = @transform_6, window_bounds = array<i64: 1, 256>}, {transform_indices = @transform_7, window_bounds = array<i64: 2, 16, 128>}, {transform_indices = @transform_8, window_bounds = array<i64: 2, 4, 16, 16>}]} {
    %c0 = arith.constant 0 : index
    %c0_0 = arith.constant 0 : index
    %c0_1 = arith.constant 0 : index
    %0 = vector.load %arg1[%c0, %c0_0, %c0_1] : memref<2x16x128xf32, #tpu.memory_space<vmem>>, vector<2x16x128xf32>
    %1 = vector.shape_cast %0 : vector<2x16x128xf32> to vector<32x128xf32>
    %c0_2 = arith.constant 0 : index
    %c0_3 = arith.constant 0 : index
    %2 = vector.load %arg2[%c0_2, %c0_3] : memref<6x128xf32, #tpu.memory_space<vmem>>, vector<1x128xf32>
    %c1 = arith.constant 1 : index
    %c0_4 = arith.constant 0 : index
    %3 = vector.load %arg2[%c1, %c0_4] : memref<6x128xf32, #tpu.memory_space<vmem>>, vector<1x128xf32>
    %c2 = arith.constant 2 : index
    %c0_5 = arith.constant 0 : index
    %4 = vector.load %arg2[%c2, %c0_5] : memref<6x128xf32, #tpu.memory_space<vmem>>, vector<1x128xf32>
    %c3 = arith.constant 3 : index
    %c0_6 = arith.constant 0 : index
    %5 = vector.load %arg2[%c3, %c0_6] : memref<6x128xf32, #tpu.memory_space<vmem>>, vector<1x128xf32>
    %c4 = arith.constant 4 : index
    %c0_7 = arith.constant 0 : index
    %6 = vector.load %arg2[%c4, %c0_7] : memref<6x128xf32, #tpu.memory_space<vmem>>, vector<1x128xf32>
    %c5 = arith.constant 5 : index
    %c0_8 = arith.constant 0 : index
    %7 = vector.load %arg2[%c5, %c0_8] : memref<6x128xf32, #tpu.memory_space<vmem>>, vector<1x128xf32>
    %cst = arith.constant dense<0.000000e+00> : vector<32xf32>
    %8 = vector.multi_reduction <add>, %1, %cst [1] : vector<32x128xf32> to vector<32xf32>
    %9 = vector.shape_cast %8 : vector<32xf32> to vector<32x1xf32>
    %cst_9 = arith.constant 1.280000e+02 : f32
    %10 = vector.broadcast %cst_9 : f32 to vector<32x1xf32>
    %11 = arith.divf %9, %10 : vector<32x1xf32>
    %12 = vector.broadcast %11 : vector<32x1xf32> to vector<32x128xf32>
    %13 = arith.subf %1, %12 : vector<32x128xf32>
    %14 = arith.mulf %13, %13 : vector<32x128xf32>
    %cst_10 = arith.constant dense<0.000000e+00> : vector<32xf32>
    %15 = vector.multi_reduction <add>, %14, %cst_10 [1] : vector<32x128xf32> to vector<32xf32>
    %16 = vector.shape_cast %15 : vector<32xf32> to vector<32x1xf32>
    %cst_11 = arith.constant 1.280000e+02 : f32
    %17 = vector.broadcast %cst_11 : f32 to vector<32x1xf32>
    %18 = arith.divf %16, %17 : vector<32x1xf32>
    %cst_12 = arith.constant 9.99999974E-6 : f32
    %19 = vector.broadcast %cst_12 : f32 to vector<32x1xf32>
    %20 = arith.addf %18, %19 : vector<32x1xf32>
    %21 = math.rsqrt %20 : vector<32x1xf32>
    %22 = vector.broadcast %21 : vector<32x1xf32> to vector<32x128xf32>
    %23 = arith.mulf %13, %22 : vector<32x128xf32>
    %24 = vector.broadcast %2 : vector<1x128xf32> to vector<32x128xf32>
    %25 = arith.mulf %23, %24 : vector<32x128xf32>
    %26 = vector.broadcast %3 : vector<1x128xf32> to vector<32x128xf32>
    %27 = arith.addf %25, %26 : vector<32x128xf32>
    %28 = arith.truncf %27 : vector<32x128xf32> to vector<32x128xbf16>
    %c0_13 = arith.constant 0 : index
    %c0_14 = arith.constant 0 : index
    %29 = vector.load %arg3[%c0_13, %c0_14] : memref<128x384xbf16, #tpu.memory_space<vmem>>, vector<128x384xbf16>
    %cst_15 = arith.constant dense<0.000000e+00> : vector<32x384xf32>
    %30 = tpu.matmul %28, %29, %cst_15 {dimension_numbers = #tpu.dot_dimension_numbers<[1], [0], [0], [1], [0, 0, 1, 1], [], []>} : vector<32x128xbf16>, vector<128x384xbf16>, vector<32x384xf32> -> vector<32x384xf32>
    %31 = arith.truncf %30 : vector<32x384xf32> to vector<32x384xbf16>
    %32 = vector.extract_strided_slice %31 {offsets = [0, 0], sizes = [16, 32], strides = [1, 1]} : vector<32x384xbf16> to vector<16x32xbf16>
    %33 = vector.extract_strided_slice %31 {offsets = [0, 128], sizes = [16, 32], strides = [1, 1]} : vector<32x384xbf16> to vector<16x32xbf16>
    %34 = vector.extract_strided_slice %31 {offsets = [0, 256], sizes = [16, 32], strides = [1, 1]} : vector<32x384xbf16> to vector<16x32xbf16>
    %cst_16 = arith.constant dense<0.000000e+00> : vector<16x16xf32>
    %35 = tpu.matmul %32, %33, %cst_16 {dimension_numbers = #tpu.dot_dimension_numbers<[1], [1], [0], [0], [0, 0, 1, 0], [], []>} : vector<16x32xbf16>, vector<16x32xbf16>, vector<16x16xf32> -> vector<16x16xf32>
    %cst_17 = arith.constant 0.176776692 : f32
    %36 = vector.broadcast %cst_17 : f32 to vector<16x16xf32>
    %37 = arith.mulf %35, %36 : vector<16x16xf32>
    %cst_18 = arith.constant dense<0xFF800000> : vector<16xf32>
    %38 = vector.multi_reduction <maximumf>, %37, %cst_18 [1] : vector<16x16xf32> to vector<16xf32>
    %39 = vector.shape_cast %38 : vector<16xf32> to vector<16x1xf32>
    %40 = vector.broadcast %39 : vector<16x1xf32> to vector<16x16xf32>
    %41 = arith.subf %37, %40 : vector<16x16xf32>
    %42 = math.exp %41 : vector<16x16xf32>
    %cst_19 = arith.constant dense<0.000000e+00> : vector<16xf32>
    %43 = vector.multi_reduction <add>, %42, %cst_19 [1] : vector<16x16xf32> to vector<16xf32>
    %44 = vector.shape_cast %43 : vector<16xf32> to vector<16x1xf32>
    %45 = tpu.reciprocal %44 {approx = true} : vector<16x1xf32> -> vector<16x1xf32>
    %46 = vector.broadcast %45 : vector<16x1xf32> to vector<16x16xf32>
    %47 = arith.mulf %42, %46 : vector<16x16xf32>
    %c0_20 = arith.constant 0 : index
    %c0_21 = arith.constant 0 : index
    %c0_22 = arith.constant 0 : index
    %c0_23 = arith.constant 0 : index
    %48 = vector.load %arg9[%c0_20, %c0_21, %c0_22, %c0_23] : memref<2x4x16x16xf32, #tpu.memory_space<vmem>>, vector<1x1x16x16xf32>
    %49 = vector.shape_cast %48 : vector<1x1x16x16xf32> to vector<16x16xf32>
    %50 = vector.shape_cast %47 : vector<16x16xf32> to vector<1x1x16x16xf32>
    tpu.vector_store %arg9[%c0_20, %c0_21, %c0_22, %c0_23], %50 {strides = array<i32>} : memref<2x4x16x16xf32, #tpu.memory_space<vmem>>, vector<1x1x16x16xf32>,
    %51 = arith.truncf %47 : vector<16x16xf32> to vector<16x16xbf16>
    %cst_24 = arith.constant dense<0.000000e+00> : vector<16x32xf32>
    %52 = tpu.matmul %51, %34, %cst_24 {dimension_numbers = #tpu.dot_dimension_numbers<[1], [0], [0], [1], [0, 0, 1, 1], [], []>} : vector<16x16xbf16>, vector<16x32xbf16>, vector<16x32xf32> -> vector<16x32xf32>
    %53 = arith.truncf %52 : vector<16x32xf32> to vector<16x32xbf16>
    %c0_25 = arith.constant 0 : index
    %c0_26 = arith.constant 0 : index
    %c0_27 = arith.constant 0 : index
    %54 = vector.load %arg4[%c0_25, %c0_26, %c0_27] : memref<4x32x128xbf16, #tpu.memory_space<vmem>>, vector<1x32x128xbf16>
    %55 = vector.shape_cast %54 : vector<1x32x128xbf16> to vector<32x128xbf16>
    %cst_28 = arith.constant dense<0.000000e+00> : vector<16x128xf32>
    %56 = tpu.matmul %53, %55, %cst_28 {dimension_numbers = #tpu.dot_dimension_numbers<[1], [0], [0], [1], [0, 0, 1, 1], [], []>} : vector<16x32xbf16>, vector<32x128xbf16>, vector<16x128xf32> -> vector<16x128xf32>
    %57 = vector.extract_strided_slice %31 {offsets = [0, 32], sizes = [16, 32], strides = [1, 1]} : vector<32x384xbf16> to vector<16x32xbf16>
    %58 = vector.extract_strided_slice %31 {offsets = [0, 160], sizes = [16, 32], strides = [1, 1]} : vector<32x384xbf16> to vector<16x32xbf16>
    %59 = vector.extract_strided_slice %31 {offsets = [0, 288], sizes = [16, 32], strides = [1, 1]} : vector<32x384xbf16> to vector<16x32xbf16>
    %cst_29 = arith.constant dense<0.000000e+00> : vector<16x16xf32>
    %60 = tpu.matmul %57, %58, %cst_29 {dimension_numbers = #tpu.dot_dimension_numbers<[1], [1], [0], [0], [0, 0, 1, 0], [], []>} : vector<16x32xbf16>, vector<16x32xbf16>, vector<16x16xf32> -> vector<16x16xf32>
    %cst_30 = arith.constant 0.176776692 : f32
    %61 = vector.broadcast %cst_30 : f32 to vector<16x16xf32>
    %62 = arith.mulf %60, %61 : vector<16x16xf32>
    %cst_31 = arith.constant dense<0xFF800000> : vector<16xf32>
    %63 = vector.multi_reduction <maximumf>, %62, %cst_31 [1] : vector<16x16xf32> to vector<16xf32>
    %64 = vector.shape_cast %63 : vector<16xf32> to vector<16x1xf32>
    %65 = vector.broadcast %64 : vector<16x1xf32> to vector<16x16xf32>
    %66 = arith.subf %62, %65 : vector<16x16xf32>
    %67 = math.exp %66 : vector<16x16xf32>
    %cst_32 = arith.constant dense<0.000000e+00> : vector<16xf32>
    %68 = vector.multi_reduction <add>, %67, %cst_32 [1] : vector<16x16xf32> to vector<16xf32>
    %69 = vector.shape_cast %68 : vector<16xf32> to vector<16x1xf32>
    %70 = tpu.reciprocal %69 {approx = true} : vector<16x1xf32> -> vector<16x1xf32>
    %71 = vector.broadcast %70 : vector<16x1xf32> to vector<16x16xf32>
    %72 = arith.mulf %67, %71 : vector<16x16xf32>
    %c0_33 = arith.constant 0 : index
    %c1_34 = arith.constant 1 : index
    %c0_35 = arith.constant 0 : index
    %c0_36 = arith.constant 0 : index
    %73 = vector.load %arg9[%c0_33, %c1_34, %c0_35, %c0_36] : memref<2x4x16x16xf32, #tpu.memory_space<vmem>>, vector<1x1x16x16xf32>
    %74 = vector.shape_cast %73 : vector<1x1x16x16xf32> to vector<16x16xf32>
    %75 = vector.shape_cast %72 : vector<16x16xf32> to vector<1x1x16x16xf32>
    tpu.vector_store %arg9[%c0_33, %c1_34, %c0_35, %c0_36], %75 {strides = array<i32>} : memref<2x4x16x16xf32, #tpu.memory_space<vmem>>, vector<1x1x16x16xf32>,
    %76 = arith.truncf %72 : vector<16x16xf32> to vector<16x16xbf16>
    %cst_37 = arith.constant dense<0.000000e+00> : vector<16x32xf32>
    %77 = tpu.matmul %76, %59, %cst_37 {dimension_numbers = #tpu.dot_dimension_numbers<[1], [0], [0], [1], [0, 0, 1, 1], [], []>} : vector<16x16xbf16>, vector<16x32xbf16>, vector<16x32xf32> -> vector<16x32xf32>
    %78 = arith.truncf %77 : vector<16x32xf32> to vector<16x32xbf16>
    %c1_38 = arith.constant 1 : index
    %c0_39 = arith.constant 0 : index
    %c0_40 = arith.constant 0 : index
    %79 = vector.load %arg4[%c1_38, %c0_39, %c0_40] : memref<4x32x128xbf16, #tpu.memory_space<vmem>>, vector<1x32x128xbf16>
    %80 = vector.shape_cast %79 : vector<1x32x128xbf16> to vector<32x128xbf16>
    %cst_41 = arith.constant dense<0.000000e+00> : vector<16x128xf32>
    %81 = tpu.matmul %78, %80, %cst_41 {dimension_numbers = #tpu.dot_dimension_numbers<[1], [0], [0], [1], [0, 0, 1, 1], [], []>} : vector<16x32xbf16>, vector<32x128xbf16>, vector<16x128xf32> -> vector<16x128xf32>
    %82 = arith.addf %56, %81 : vector<16x128xf32>
    %83 = vector.extract_strided_slice %31 {offsets = [0, 64], sizes = [16, 32], strides = [1, 1]} : vector<32x384xbf16> to vector<16x32xbf16>
    %84 = vector.extract_strided_slice %31 {offsets = [0, 192], sizes = [16, 32], strides = [1, 1]} : vector<32x384xbf16> to vector<16x32xbf16>
    %85 = vector.extract_strided_slice %31 {offsets = [0, 320], sizes = [16, 32], strides = [1, 1]} : vector<32x384xbf16> to vector<16x32xbf16>
    %cst_42 = arith.constant dense<0.000000e+00> : vector<16x16xf32>
    %86 = tpu.matmul %83, %84, %cst_42 {dimension_numbers = #tpu.dot_dimension_numbers<[1], [1], [0], [0], [0, 0, 1, 0], [], []>} : vector<16x32xbf16>, vector<16x32xbf16>, vector<16x16xf32> -> vector<16x16xf32>
    %cst_43 = arith.constant 0.176776692 : f32
    %87 = vector.broadcast %cst_43 : f32 to vector<16x16xf32>
    %88 = arith.mulf %86, %87 : vector<16x16xf32>
    %cst_44 = arith.constant dense<0xFF800000> : vector<16xf32>
    %89 = vector.multi_reduction <maximumf>, %88, %cst_44 [1] : vector<16x16xf32> to vector<16xf32>
    %90 = vector.shape_cast %89 : vector<16xf32> to vector<16x1xf32>
    %91 = vector.broadcast %90 : vector<16x1xf32> to vector<16x16xf32>
    %92 = arith.subf %88, %91 : vector<16x16xf32>
    %93 = math.exp %92 : vector<16x16xf32>
    %cst_45 = arith.constant dense<0.000000e+00> : vector<16xf32>
    %94 = vector.multi_reduction <add>, %93, %cst_45 [1] : vector<16x16xf32> to vector<16xf32>
    %95 = vector.shape_cast %94 : vector<16xf32> to vector<16x1xf32>
    %96 = tpu.reciprocal %95 {approx = true} : vector<16x1xf32> -> vector<16x1xf32>
    %97 = vector.broadcast %96 : vector<16x1xf32> to vector<16x16xf32>
    %98 = arith.mulf %93, %97 : vector<16x16xf32>
    %c0_46 = arith.constant 0 : index
    %c2_47 = arith.constant 2 : index
    %c0_48 = arith.constant 0 : index
    %c0_49 = arith.constant 0 : index
    %99 = vector.load %arg9[%c0_46, %c2_47, %c0_48, %c0_49] : memref<2x4x16x16xf32, #tpu.memory_space<vmem>>, vector<1x1x16x16xf32>
    %100 = vector.shape_cast %99 : vector<1x1x16x16xf32> to vector<16x16xf32>
    %101 = vector.shape_cast %98 : vector<16x16xf32> to vector<1x1x16x16xf32>
    tpu.vector_store %arg9[%c0_46, %c2_47, %c0_48, %c0_49], %101 {strides = array<i32>} : memref<2x4x16x16xf32, #tpu.memory_space<vmem>>, vector<1x1x16x16xf32>,
    %102 = arith.truncf %98 : vector<16x16xf32> to vector<16x16xbf16>
    %cst_50 = arith.constant dense<0.000000e+00> : vector<16x32xf32>
    %103 = tpu.matmul %102, %85, %cst_50 {dimension_numbers = #tpu.dot_dimension_numbers<[1], [0], [0], [1], [0, 0, 1, 1], [], []>} : vector<16x16xbf16>, vector<16x32xbf16>, vector<16x32xf32> -> vector<16x32xf32>
    %104 = arith.truncf %103 : vector<16x32xf32> to vector<16x32xbf16>
    %c2_51 = arith.constant 2 : index
    %c0_52 = arith.constant 0 : index
    %c0_53 = arith.constant 0 : index
    %105 = vector.load %arg4[%c2_51, %c0_52, %c0_53] : memref<4x32x128xbf16, #tpu.memory_space<vmem>>, vector<1x32x128xbf16>
    %106 = vector.shape_cast %105 : vector<1x32x128xbf16> to vector<32x128xbf16>
    %cst_54 = arith.constant dense<0.000000e+00> : vector<16x128xf32>
    %107 = tpu.matmul %104, %106, %cst_54 {dimension_numbers = #tpu.dot_dimension_numbers<[1], [0], [0], [1], [0, 0, 1, 1], [], []>} : vector<16x32xbf16>, vector<32x128xbf16>, vector<16x128xf32> -> vector<16x128xf32>
    %108 = arith.addf %82, %107 : vector<16x128xf32>
    %109 = vector.extract_strided_slice %31 {offsets = [0, 96], sizes = [16, 32], strides = [1, 1]} : vector<32x384xbf16> to vector<16x32xbf16>
    %110 = vector.extract_strided_slice %31 {offsets = [0, 224], sizes = [16, 32], strides = [1, 1]} : vector<32x384xbf16> to vector<16x32xbf16>
    %111 = vector.extract_strided_slice %31 {offsets = [0, 352], sizes = [16, 32], strides = [1, 1]} : vector<32x384xbf16> to vector<16x32xbf16>
    %cst_55 = arith.constant dense<0.000000e+00> : vector<16x16xf32>
    %112 = tpu.matmul %109, %110, %cst_55 {dimension_numbers = #tpu.dot_dimension_numbers<[1], [1], [0], [0], [0, 0, 1, 0], [], []>} : vector<16x32xbf16>, vector<16x32xbf16>, vector<16x16xf32> -> vector<16x16xf32>
    %cst_56 = arith.constant 0.176776692 : f32
    %113 = vector.broadcast %cst_56 : f32 to vector<16x16xf32>
    %114 = arith.mulf %112, %113 : vector<16x16xf32>
    %cst_57 = arith.constant dense<0xFF800000> : vector<16xf32>
    %115 = vector.multi_reduction <maximumf>, %114, %cst_57 [1] : vector<16x16xf32> to vector<16xf32>
    %116 = vector.shape_cast %115 : vector<16xf32> to vector<16x1xf32>
    %117 = vector.broadcast %116 : vector<16x1xf32> to vector<16x16xf32>
    %118 = arith.subf %114, %117 : vector<16x16xf32>
    %119 = math.exp %118 : vector<16x16xf32>
    %cst_58 = arith.constant dense<0.000000e+00> : vector<16xf32>
    %120 = vector.multi_reduction <add>, %119, %cst_58 [1] : vector<16x16xf32> to vector<16xf32>
    %121 = vector.shape_cast %120 : vector<16xf32> to vector<16x1xf32>
    %122 = tpu.reciprocal %121 {approx = true} : vector<16x1xf32> -> vector<16x1xf32>
    %123 = vector.broadcast %122 : vector<16x1xf32> to vector<16x16xf32>
    %124 = arith.mulf %119, %123 : vector<16x16xf32>
    %c0_59 = arith.constant 0 : index
    %c3_60 = arith.constant 3 : index
    %c0_61 = arith.constant 0 : index
    %c0_62 = arith.constant 0 : index
    %125 = vector.load %arg9[%c0_59, %c3_60, %c0_61, %c0_62] : memref<2x4x16x16xf32, #tpu.memory_space<vmem>>, vector<1x1x16x16xf32>
    %126 = vector.shape_cast %125 : vector<1x1x16x16xf32> to vector<16x16xf32>
    %127 = vector.shape_cast %124 : vector<16x16xf32> to vector<1x1x16x16xf32>
    tpu.vector_store %arg9[%c0_59, %c3_60, %c0_61, %c0_62], %127 {strides = array<i32>} : memref<2x4x16x16xf32, #tpu.memory_space<vmem>>, vector<1x1x16x16xf32>,
    %128 = arith.truncf %124 : vector<16x16xf32> to vector<16x16xbf16>
    %cst_63 = arith.constant dense<0.000000e+00> : vector<16x32xf32>
    %129 = tpu.matmul %128, %111, %cst_63 {dimension_numbers = #tpu.dot_dimension_numbers<[1], [0], [0], [1], [0, 0, 1, 1], [], []>} : vector<16x16xbf16>, vector<16x32xbf16>, vector<16x32xf32> -> vector<16x32xf32>
    %130 = arith.truncf %129 : vector<16x32xf32> to vector<16x32xbf16>
    %c3_64 = arith.constant 3 : index
    %c0_65 = arith.constant 0 : index
    %c0_66 = arith.constant 0 : index
    %131 = vector.load %arg4[%c3_64, %c0_65, %c0_66] : memref<4x32x128xbf16, #tpu.memory_space<vmem>>, vector<1x32x128xbf16>
    %132 = vector.shape_cast %131 : vector<1x32x128xbf16> to vector<32x128xbf16>
    %cst_67 = arith.constant dense<0.000000e+00> : vector<16x128xf32>
    %133 = tpu.matmul %130, %132, %cst_67 {dimension_numbers = #tpu.dot_dimension_numbers<[1], [0], [0], [1], [0, 0, 1, 1], [], []>} : vector<16x32xbf16>, vector<32x128xbf16>, vector<16x128xf32> -> vector<16x128xf32>
    %134 = arith.addf %108, %133 : vector<16x128xf32>
    %135 = vector.extract_strided_slice %31 {offsets = [16, 0], sizes = [16, 32], strides = [1, 1]} : vector<32x384xbf16> to vector<16x32xbf16>
    %136 = vector.extract_strided_slice %31 {offsets = [16, 128], sizes = [16, 32], strides = [1, 1]} : vector<32x384xbf16> to vector<16x32xbf16>
    %137 = vector.extract_strided_slice %31 {offsets = [16, 256], sizes = [16, 32], strides = [1, 1]} : vector<32x384xbf16> to vector<16x32xbf16>
    %cst_68 = arith.constant dense<0.000000e+00> : vector<16x16xf32>
    %138 = tpu.matmul %135, %136, %cst_68 {dimension_numbers = #tpu.dot_dimension_numbers<[1], [1], [0], [0], [0, 0, 1, 0], [], []>} : vector<16x32xbf16>, vector<16x32xbf16>, vector<16x16xf32> -> vector<16x16xf32>
    %cst_69 = arith.constant 0.176776692 : f32
    %139 = vector.broadcast %cst_69 : f32 to vector<16x16xf32>
    %140 = arith.mulf %138, %139 : vector<16x16xf32>
    %cst_70 = arith.constant dense<0xFF800000> : vector<16xf32>
    %141 = vector.multi_reduction <maximumf>, %140, %cst_70 [1] : vector<16x16xf32> to vector<16xf32>
    %142 = vector.shape_cast %141 : vector<16xf32> to vector<16x1xf32>
    %143 = vector.broadcast %142 : vector<16x1xf32> to vector<16x16xf32>
    %144 = arith.subf %140, %143 : vector<16x16xf32>
    %145 = math.exp %144 : vector<16x16xf32>
    %cst_71 = arith.constant dense<0.000000e+00> : vector<16xf32>
    %146 = vector.multi_reduction <add>, %145, %cst_71 [1] : vector<16x16xf32> to vector<16xf32>
    %147 = vector.shape_cast %146 : vector<16xf32> to vector<16x1xf32>
    %148 = tpu.reciprocal %147 {approx = true} : vector<16x1xf32> -> vector<16x1xf32>
    %149 = vector.broadcast %148 : vector<16x1xf32> to vector<16x16xf32>
    %150 = arith.mulf %145, %149 : vector<16x16xf32>
    %c1_72 = arith.constant 1 : index
    %c0_73 = arith.constant 0 : index
    %c0_74 = arith.constant 0 : index
    %c0_75 = arith.constant 0 : index
    %151 = vector.load %arg9[%c1_72, %c0_73, %c0_74, %c0_75] : memref<2x4x16x16xf32, #tpu.memory_space<vmem>>, vector<1x1x16x16xf32>
    %152 = vector.shape_cast %151 : vector<1x1x16x16xf32> to vector<16x16xf32>
    %153 = vector.shape_cast %150 : vector<16x16xf32> to vector<1x1x16x16xf32>
    tpu.vector_store %arg9[%c1_72, %c0_73, %c0_74, %c0_75], %153 {strides = array<i32>} : memref<2x4x16x16xf32, #tpu.memory_space<vmem>>, vector<1x1x16x16xf32>,
    %154 = arith.truncf %150 : vector<16x16xf32> to vector<16x16xbf16>
    %cst_76 = arith.constant dense<0.000000e+00> : vector<16x32xf32>
    %155 = tpu.matmul %154, %137, %cst_76 {dimension_numbers = #tpu.dot_dimension_numbers<[1], [0], [0], [1], [0, 0, 1, 1], [], []>} : vector<16x16xbf16>, vector<16x32xbf16>, vector<16x32xf32> -> vector<16x32xf32>
    %156 = arith.truncf %155 : vector<16x32xf32> to vector<16x32xbf16>
    %c0_77 = arith.constant 0 : index
    %c0_78 = arith.constant 0 : index
    %c0_79 = arith.constant 0 : index
    %157 = vector.load %arg4[%c0_77, %c0_78, %c0_79] : memref<4x32x128xbf16, #tpu.memory_space<vmem>>, vector<1x32x128xbf16>
    %158 = vector.shape_cast %157 : vector<1x32x128xbf16> to vector<32x128xbf16>
    %cst_80 = arith.constant dense<0.000000e+00> : vector<16x128xf32>
    %159 = tpu.matmul %156, %158, %cst_80 {dimension_numbers = #tpu.dot_dimension_numbers<[1], [0], [0], [1], [0, 0, 1, 1], [], []>} : vector<16x32xbf16>, vector<32x128xbf16>, vector<16x128xf32> -> vector<16x128xf32>
    %160 = vector.extract_strided_slice %31 {offsets = [16, 32], sizes = [16, 32], strides = [1, 1]} : vector<32x384xbf16> to vector<16x32xbf16>
    %161 = vector.extract_strided_slice %31 {offsets = [16, 160], sizes = [16, 32], strides = [1, 1]} : vector<32x384xbf16> to vector<16x32xbf16>
    %162 = vector.extract_strided_slice %31 {offsets = [16, 288], sizes = [16, 32], strides = [1, 1]} : vector<32x384xbf16> to vector<16x32xbf16>
    %cst_81 = arith.constant dense<0.000000e+00> : vector<16x16xf32>
    %163 = tpu.matmul %160, %161, %cst_81 {dimension_numbers = #tpu.dot_dimension_numbers<[1], [1], [0], [0], [0, 0, 1, 0], [], []>} : vector<16x32xbf16>, vector<16x32xbf16>, vector<16x16xf32> -> vector<16x16xf32>
    %cst_82 = arith.constant 0.176776692 : f32
    %164 = vector.broadcast %cst_82 : f32 to vector<16x16xf32>
    %165 = arith.mulf %163, %164 : vector<16x16xf32>
    %cst_83 = arith.constant dense<0xFF800000> : vector<16xf32>
    %166 = vector.multi_reduction <maximumf>, %165, %cst_83 [1] : vector<16x16xf32> to vector<16xf32>
    %167 = vector.shape_cast %166 : vector<16xf32> to vector<16x1xf32>
    %168 = vector.broadcast %167 : vector<16x1xf32> to vector<16x16xf32>
    %169 = arith.subf %165, %168 : vector<16x16xf32>
    %170 = math.exp %169 : vector<16x16xf32>
    %cst_84 = arith.constant dense<0.000000e+00> : vector<16xf32>
    %171 = vector.multi_reduction <add>, %170, %cst_84 [1] : vector<16x16xf32> to vector<16xf32>
    %172 = vector.shape_cast %171 : vector<16xf32> to vector<16x1xf32>
    %173 = tpu.reciprocal %172 {approx = true} : vector<16x1xf32> -> vector<16x1xf32>
    %174 = vector.broadcast %173 : vector<16x1xf32> to vector<16x16xf32>
    %175 = arith.mulf %170, %174 : vector<16x16xf32>
    %c1_85 = arith.constant 1 : index
    %c1_86 = arith.constant 1 : index
    %c0_87 = arith.constant 0 : index
    %c0_88 = arith.constant 0 : index
    %176 = vector.load %arg9[%c1_85, %c1_86, %c0_87, %c0_88] : memref<2x4x16x16xf32, #tpu.memory_space<vmem>>, vector<1x1x16x16xf32>
    %177 = vector.shape_cast %176 : vector<1x1x16x16xf32> to vector<16x16xf32>
    %178 = vector.shape_cast %175 : vector<16x16xf32> to vector<1x1x16x16xf32>
    tpu.vector_store %arg9[%c1_85, %c1_86, %c0_87, %c0_88], %178 {strides = array<i32>} : memref<2x4x16x16xf32, #tpu.memory_space<vmem>>, vector<1x1x16x16xf32>,
    %179 = arith.truncf %175 : vector<16x16xf32> to vector<16x16xbf16>
    %cst_89 = arith.constant dense<0.000000e+00> : vector<16x32xf32>
    %180 = tpu.matmul %179, %162, %cst_89 {dimension_numbers = #tpu.dot_dimension_numbers<[1], [0], [0], [1], [0, 0, 1, 1], [], []>} : vector<16x16xbf16>, vector<16x32xbf16>, vector<16x32xf32> -> vector<16x32xf32>
    %181 = arith.truncf %180 : vector<16x32xf32> to vector<16x32xbf16>
    %c1_90 = arith.constant 1 : index
    %c0_91 = arith.constant 0 : index
    %c0_92 = arith.constant 0 : index
    %182 = vector.load %arg4[%c1_90, %c0_91, %c0_92] : memref<4x32x128xbf16, #tpu.memory_space<vmem>>, vector<1x32x128xbf16>
    %183 = vector.shape_cast %182 : vector<1x32x128xbf16> to vector<32x128xbf16>
    %cst_93 = arith.constant dense<0.000000e+00> : vector<16x128xf32>
    %184 = tpu.matmul %181, %183, %cst_93 {dimension_numbers = #tpu.dot_dimension_numbers<[1], [0], [0], [1], [0, 0, 1, 1], [], []>} : vector<16x32xbf16>, vector<32x128xbf16>, vector<16x128xf32> -> vector<16x128xf32>
    %185 = arith.addf %159, %184 : vector<16x128xf32>
    %186 = vector.extract_strided_slice %31 {offsets = [16, 64], sizes = [16, 32], strides = [1, 1]} : vector<32x384xbf16> to vector<16x32xbf16>
    %187 = vector.extract_strided_slice %31 {offsets = [16, 192], sizes = [16, 32], strides = [1, 1]} : vector<32x384xbf16> to vector<16x32xbf16>
    %188 = vector.extract_strided_slice %31 {offsets = [16, 320], sizes = [16, 32], strides = [1, 1]} : vector<32x384xbf16> to vector<16x32xbf16>
    %cst_94 = arith.constant dense<0.000000e+00> : vector<16x16xf32>
    %189 = tpu.matmul %186, %187, %cst_94 {dimension_numbers = #tpu.dot_dimension_numbers<[1], [1], [0], [0], [0, 0, 1, 0], [], []>} : vector<16x32xbf16>, vector<16x32xbf16>, vector<16x16xf32> -> vector<16x16xf32>
    %cst_95 = arith.constant 0.176776692 : f32
    %190 = vector.broadcast %cst_95 : f32 to vector<16x16xf32>
    %191 = arith.mulf %189, %190 : vector<16x16xf32>
    %cst_96 = arith.constant dense<0xFF800000> : vector<16xf32>
    %192 = vector.multi_reduction <maximumf>, %191, %cst_96 [1] : vector<16x16xf32> to vector<16xf32>
    %193 = vector.shape_cast %192 : vector<16xf32> to vector<16x1xf32>
    %194 = vector.broadcast %193 : vector<16x1xf32> to vector<16x16xf32>
    %195 = arith.subf %191, %194 : vector<16x16xf32>
    %196 = math.exp %195 : vector<16x16xf32>
    %cst_97 = arith.constant dense<0.000000e+00> : vector<16xf32>
    %197 = vector.multi_reduction <add>, %196, %cst_97 [1] : vector<16x16xf32> to vector<16xf32>
    %198 = vector.shape_cast %197 : vector<16xf32> to vector<16x1xf32>
    %199 = tpu.reciprocal %198 {approx = true} : vector<16x1xf32> -> vector<16x1xf32>
    %200 = vector.broadcast %199 : vector<16x1xf32> to vector<16x16xf32>
    %201 = arith.mulf %196, %200 : vector<16x16xf32>
    %c1_98 = arith.constant 1 : index
    %c2_99 = arith.constant 2 : index
    %c0_100 = arith.constant 0 : index
    %c0_101 = arith.constant 0 : index
    %202 = vector.load %arg9[%c1_98, %c2_99, %c0_100, %c0_101] : memref<2x4x16x16xf32, #tpu.memory_space<vmem>>, vector<1x1x16x16xf32>
    %203 = vector.shape_cast %202 : vector<1x1x16x16xf32> to vector<16x16xf32>
    %204 = vector.shape_cast %201 : vector<16x16xf32> to vector<1x1x16x16xf32>
    tpu.vector_store %arg9[%c1_98, %c2_99, %c0_100, %c0_101], %204 {strides = array<i32>} : memref<2x4x16x16xf32, #tpu.memory_space<vmem>>, vector<1x1x16x16xf32>,
    %205 = arith.truncf %201 : vector<16x16xf32> to vector<16x16xbf16>
    %cst_102 = arith.constant dense<0.000000e+00> : vector<16x32xf32>
    %206 = tpu.matmul %205, %188, %cst_102 {dimension_numbers = #tpu.dot_dimension_numbers<[1], [0], [0], [1], [0, 0, 1, 1], [], []>} : vector<16x16xbf16>, vector<16x32xbf16>, vector<16x32xf32> -> vector<16x32xf32>
    %207 = arith.truncf %206 : vector<16x32xf32> to vector<16x32xbf16>
    %c2_103 = arith.constant 2 : index
    %c0_104 = arith.constant 0 : index
    %c0_105 = arith.constant 0 : index
    %208 = vector.load %arg4[%c2_103, %c0_104, %c0_105] : memref<4x32x128xbf16, #tpu.memory_space<vmem>>, vector<1x32x128xbf16>
    %209 = vector.shape_cast %208 : vector<1x32x128xbf16> to vector<32x128xbf16>
    %cst_106 = arith.constant dense<0.000000e+00> : vector<16x128xf32>
    %210 = tpu.matmul %207, %209, %cst_106 {dimension_numbers = #tpu.dot_dimension_numbers<[1], [0], [0], [1], [0, 0, 1, 1], [], []>} : vector<16x32xbf16>, vector<32x128xbf16>, vector<16x128xf32> -> vector<16x128xf32>
    %211 = arith.addf %185, %210 : vector<16x128xf32>
    %212 = vector.extract_strided_slice %31 {offsets = [16, 96], sizes = [16, 32], strides = [1, 1]} : vector<32x384xbf16> to vector<16x32xbf16>
    %213 = vector.extract_strided_slice %31 {offsets = [16, 224], sizes = [16, 32], strides = [1, 1]} : vector<32x384xbf16> to vector<16x32xbf16>
    %214 = vector.extract_strided_slice %31 {offsets = [16, 352], sizes = [16, 32], strides = [1, 1]} : vector<32x384xbf16> to vector<16x32xbf16>
    %cst_107 = arith.constant dense<0.000000e+00> : vector<16x16xf32>
    %215 = tpu.matmul %212, %213, %cst_107 {dimension_numbers = #tpu.dot_dimension_numbers<[1], [1], [0], [0], [0, 0, 1, 0], [], []>} : vector<16x32xbf16>, vector<16x32xbf16>, vector<16x16xf32> -> vector<16x16xf32>
    %cst_108 = arith.constant 0.176776692 : f32
    %216 = vector.broadcast %cst_108 : f32 to vector<16x16xf32>
    %217 = arith.mulf %215, %216 : vector<16x16xf32>
    %cst_109 = arith.constant dense<0xFF800000> : vector<16xf32>
    %218 = vector.multi_reduction <maximumf>, %217, %cst_109 [1] : vector<16x16xf32> to vector<16xf32>
    %219 = vector.shape_cast %218 : vector<16xf32> to vector<16x1xf32>
    %220 = vector.broadcast %219 : vector<16x1xf32> to vector<16x16xf32>
    %221 = arith.subf %217, %220 : vector<16x16xf32>
    %222 = math.exp %221 : vector<16x16xf32>
    %cst_110 = arith.constant dense<0.000000e+00> : vector<16xf32>
    %223 = vector.multi_reduction <add>, %222, %cst_110 [1] : vector<16x16xf32> to vector<16xf32>
    %224 = vector.shape_cast %223 : vector<16xf32> to vector<16x1xf32>
    %225 = tpu.reciprocal %224 {approx = true} : vector<16x1xf32> -> vector<16x1xf32>
    %226 = vector.broadcast %225 : vector<16x1xf32> to vector<16x16xf32>
    %227 = arith.mulf %222, %226 : vector<16x16xf32>
    %c1_111 = arith.constant 1 : index
    %c3_112 = arith.constant 3 : index
    %c0_113 = arith.constant 0 : index
    %c0_114 = arith.constant 0 : index
    %228 = vector.load %arg9[%c1_111, %c3_112, %c0_113, %c0_114] : memref<2x4x16x16xf32, #tpu.memory_space<vmem>>, vector<1x1x16x16xf32>
    %229 = vector.shape_cast %228 : vector<1x1x16x16xf32> to vector<16x16xf32>
    %230 = vector.shape_cast %227 : vector<16x16xf32> to vector<1x1x16x16xf32>
    tpu.vector_store %arg9[%c1_111, %c3_112, %c0_113, %c0_114], %230 {strides = array<i32>} : memref<2x4x16x16xf32, #tpu.memory_space<vmem>>, vector<1x1x16x16xf32>,
    %231 = arith.truncf %227 : vector<16x16xf32> to vector<16x16xbf16>
    %cst_115 = arith.constant dense<0.000000e+00> : vector<16x32xf32>
    %232 = tpu.matmul %231, %214, %cst_115 {dimension_numbers = #tpu.dot_dimension_numbers<[1], [0], [0], [1], [0, 0, 1, 1], [], []>} : vector<16x16xbf16>, vector<16x32xbf16>, vector<16x32xf32> -> vector<16x32xf32>
    %233 = arith.truncf %232 : vector<16x32xf32> to vector<16x32xbf16>
    %c3_116 = arith.constant 3 : index
    %c0_117 = arith.constant 0 : index
    %c0_118 = arith.constant 0 : index
    %234 = vector.load %arg4[%c3_116, %c0_117, %c0_118] : memref<4x32x128xbf16, #tpu.memory_space<vmem>>, vector<1x32x128xbf16>
    %235 = vector.shape_cast %234 : vector<1x32x128xbf16> to vector<32x128xbf16>
    %cst_119 = arith.constant dense<0.000000e+00> : vector<16x128xf32>
    %236 = tpu.matmul %233, %235, %cst_119 {dimension_numbers = #tpu.dot_dimension_numbers<[1], [0], [0], [1], [0, 0, 1, 1], [], []>} : vector<16x32xbf16>, vector<32x128xbf16>, vector<16x128xf32> -> vector<16x128xf32>
    %237 = arith.addf %211, %236 : vector<16x128xf32>
    %238 = tpu.concatenate %134, %237 in 0 : vector<16x128xf32>, vector<16x128xf32> -> vector<32x128xf32>
    %239 = vector.broadcast %6 : vector<1x128xf32> to vector<32x128xf32>
    %240 = arith.addf %238, %239 : vector<32x128xf32>
    %241 = arith.addf %1, %240 : vector<32x128xf32>
    %cst_120 = arith.constant 0.707106769 : f32
    %242 = vector.broadcast %cst_120 : f32 to vector<32x128xf32>
    %243 = arith.mulf %241, %242 : vector<32x128xf32>
    %cst_121 = arith.constant dense<0.000000e+00> : vector<32xf32>
    %244 = vector.multi_reduction <add>, %243, %cst_121 [1] : vector<32x128xf32> to vector<32xf32>
    %245 = vector.shape_cast %244 : vector<32xf32> to vector<32x1xf32>
    %cst_122 = arith.constant 1.280000e+02 : f32
    %246 = vector.broadcast %cst_122 : f32 to vector<32x1xf32>
    %247 = arith.divf %245, %246 : vector<32x1xf32>
    %248 = vector.broadcast %247 : vector<32x1xf32> to vector<32x128xf32>
    %249 = arith.subf %243, %248 : vector<32x128xf32>
    %250 = arith.mulf %249, %249 : vector<32x128xf32>
    %cst_123 = arith.constant dense<0.000000e+00> : vector<32xf32>
    %251 = vector.multi_reduction <add>, %250, %cst_123 [1] : vector<32x128xf32> to vector<32xf32>
    %252 = vector.shape_cast %251 : vector<32xf32> to vector<32x1xf32>
    %cst_124 = arith.constant 1.280000e+02 : f32
    %253 = vector.broadcast %cst_124 : f32 to vector<32x1xf32>
    %254 = arith.divf %252, %253 : vector<32x1xf32>
    %cst_125 = arith.constant 9.99999974E-6 : f32
    %255 = vector.broadcast %cst_125 : f32 to vector<32x1xf32>
    %256 = arith.addf %254, %255 : vector<32x1xf32>
    %257 = math.rsqrt %256 : vector<32x1xf32>
    %258 = vector.broadcast %257 : vector<32x1xf32> to vector<32x128xf32>
    %259 = arith.mulf %249, %258 : vector<32x128xf32>
    %260 = vector.broadcast %4 : vector<1x128xf32> to vector<32x128xf32>
    %261 = arith.mulf %259, %260 : vector<32x128xf32>
    %262 = vector.broadcast %5 : vector<1x128xf32> to vector<32x128xf32>
    %263 = arith.addf %261, %262 : vector<32x128xf32>
    %264 = arith.truncf %263 : vector<32x128xf32> to vector<32x128xbf16>
    %c0_126 = arith.constant 0 : index
    %c0_127 = arith.constant 0 : index
    %265 = vector.load %arg5[%c0_126, %c0_127] : memref<128x128xbf16, #tpu.memory_space<vmem>>, vector<128x128xbf16>
    %cst_128 = arith.constant dense<0.000000e+00> : vector<32x128xf32>
    %266 = tpu.matmul %264, %265, %cst_128 {dimension_numbers = #tpu.dot_dimension_numbers<[1], [0], [0], [1], [0, 0, 1, 1], [], []>} : vector<32x128xbf16>, vector<128x128xbf16>, vector<32x128xf32> -> vector<32x128xf32>
    %267 = vector.broadcast %7 : vector<1x128xf32> to vector<32x128xf32>
    %268 = arith.addf %266, %267 : vector<32x128xf32>
    %269 = tpu.iota {dimensions = array<i32: 0>} : vector<32x1xi32>
    %c0_i32 = arith.constant 0 : i32
    %270 = vector.broadcast %c0_i32 : i32 to vector<32x1xi32>
    %271 = arith.cmpi eq, %269, %270 : vector<32x1xi32>
    %272 = arith.extui %271 : vector<32x1xi1> to vector<32x1xi32>
    %273 = arith.sitofp %272 : vector<32x1xi32> to vector<32x1xf32>
    %cst_129 = arith.constant 0.000000e+00 : f32
    %274 = vector.broadcast %cst_129 : f32 to vector<32x1xf32>
    %275 = arith.addf %274, %273 : vector<32x1xf32>
    %c16_i32 = arith.constant 16 : i32
    %276 = vector.broadcast %c16_i32 : i32 to vector<32x1xi32>
    %277 = arith.cmpi eq, %269, %276 : vector<32x1xi32>
    %278 = arith.extui %277 : vector<32x1xi1> to vector<32x1xi32>
    %279 = arith.sitofp %278 : vector<32x1xi32> to vector<32x1xf32>
    %280 = arith.addf %275, %279 : vector<32x1xf32>
    %c15_i32 = arith.constant 15 : i32
    %281 = vector.broadcast %c15_i32 : i32 to vector<32x1xi32>
    %282 = arith.cmpi eq, %269, %281 : vector<32x1xi32>
    %283 = arith.extui %282 : vector<32x1xi1> to vector<32x1xi32>
    %284 = arith.sitofp %283 : vector<32x1xi32> to vector<32x1xf32>
    %cst_130 = arith.constant 0.000000e+00 : f32
    %285 = vector.broadcast %cst_130 : f32 to vector<32x1xf32>
    %286 = arith.addf %285, %284 : vector<32x1xf32>
    %c31_i32 = arith.constant 31 : i32
    %287 = vector.broadcast %c31_i32 : i32 to vector<32x1xi32>
    %288 = arith.cmpi eq, %269, %287 : vector<32x1xi32>
    %289 = arith.extui %288 : vector<32x1xi1> to vector<32x1xi32>
    %290 = arith.sitofp %289 : vector<32x1xi32> to vector<32x1xf32>
    %291 = arith.addf %286, %290 : vector<32x1xf32>
    %c1_i32 = arith.constant 1 : i32
    %292 = tpu.dynamic_rotate %268 by %c1_i32 dim 0 : vector<32x128xf32>, i32 -> vector<32x128xf32>
    %cst_131 = arith.constant 1.000000e+00 : f32
    %293 = vector.broadcast %cst_131 : f32 to vector<32x1xf32>
    %294 = arith.subf %293, %280 : vector<32x1xf32>
    %295 = vector.broadcast %294 : vector<32x1xf32> to vector<32x128xf32>
    %296 = arith.mulf %292, %295 : vector<32x128xf32>
    %c31_i32_132 = arith.constant 31 : i32
    %297 = tpu.dynamic_rotate %268 by %c31_i32_132 dim 0 : vector<32x128xf32>, i32 -> vector<32x128xf32>
    %cst_133 = arith.constant 1.000000e+00 : f32
    %298 = vector.broadcast %cst_133 : f32 to vector<32x1xf32>
    %299 = arith.subf %298, %291 : vector<32x1xf32>
    %300 = vector.broadcast %299 : vector<32x1xf32> to vector<32x128xf32>
    %301 = arith.mulf %297, %300 : vector<32x128xf32>
    %302 = arith.truncf %296 : vector<32x128xf32> to vector<32x128xbf16>
    %c0_134 = arith.constant 0 : index
    %c0_135 = arith.constant 0 : index
    %c0_136 = arith.constant 0 : index
    %303 = vector.load %arg6[%c0_134, %c0_135, %c0_136] : memref<3x128x256xbf16, #tpu.memory_space<vmem>>, vector<1x128x256xbf16>
    %304 = vector.shape_cast %303 : vector<1x128x256xbf16> to vector<128x256xbf16>
    %cst_137 = arith.constant dense<0.000000e+00> : vector<32x256xf32>
    %305 = tpu.matmul %302, %304, %cst_137 {dimension_numbers = #tpu.dot_dimension_numbers<[1], [0], [0], [1], [0, 0, 1, 1], [], []>} : vector<32x128xbf16>, vector<128x256xbf16>, vector<32x256xf32> -> vector<32x256xf32>
    %306 = arith.truncf %268 : vector<32x128xf32> to vector<32x128xbf16>
    %c1_138 = arith.constant 1 : index
    %c0_139 = arith.constant 0 : index
    %c0_140 = arith.constant 0 : index
    %307 = vector.load %arg6[%c1_138, %c0_139, %c0_140] : memref<3x128x256xbf16, #tpu.memory_space<vmem>>, vector<1x128x256xbf16>
    %308 = vector.shape_cast %307 : vector<1x128x256xbf16> to vector<128x256xbf16>
    %cst_141 = arith.constant dense<0.000000e+00> : vector<32x256xf32>
    %309 = tpu.matmul %306, %308, %cst_141 {dimension_numbers = #tpu.dot_dimension_numbers<[1], [0], [0], [1], [0, 0, 1, 1], [], []>} : vector<32x128xbf16>, vector<128x256xbf16>, vector<32x256xf32> -> vector<32x256xf32>
    %310 = arith.addf %305, %309 : vector<32x256xf32>
    %311 = arith.truncf %301 : vector<32x128xf32> to vector<32x128xbf16>
    %c2_142 = arith.constant 2 : index
    %c0_143 = arith.constant 0 : index
    %c0_144 = arith.constant 0 : index
    %312 = vector.load %arg6[%c2_142, %c0_143, %c0_144] : memref<3x128x256xbf16, #tpu.memory_space<vmem>>, vector<1x128x256xbf16>
    %313 = vector.shape_cast %312 : vector<1x128x256xbf16> to vector<128x256xbf16>
    %cst_145 = arith.constant dense<0.000000e+00> : vector<32x256xf32>
    %314 = tpu.matmul %311, %313, %cst_145 {dimension_numbers = #tpu.dot_dimension_numbers<[1], [0], [0], [1], [0, 0, 1, 1], [], []>} : vector<32x128xbf16>, vector<128x256xbf16>, vector<32x256xf32> -> vector<32x256xf32>
    %315 = arith.addf %310, %314 : vector<32x256xf32>
    %c0_146 = arith.constant 0 : index
    %c0_147 = arith.constant 0 : index
    %316 = vector.load %arg7[%c0_146, %c0_147] : memref<1x256xf32, #tpu.memory_space<vmem>>, vector<1x256xf32>
    %317 = vector.broadcast %316 : vector<1x256xf32> to vector<32x256xf32>
    %318 = arith.addf %315, %317 : vector<32x256xf32>
    %319 = vector.extract_strided_slice %318 {offsets = [0, 0], sizes = [32, 128], strides = [1, 1]} : vector<32x256xf32> to vector<32x128xf32>
    %320 = vector.extract_strided_slice %318 {offsets = [0, 128], sizes = [32, 128], strides = [1, 1]} : vector<32x256xf32> to vector<32x128xf32>
    %321 = arith.negf %320 : vector<32x128xf32>
    %322 = math.exp %321 : vector<32x128xf32>
    %cst_148 = arith.constant 1.000000e+00 : f32
    %323 = vector.broadcast %cst_148 : f32 to vector<32x128xf32>
    %324 = arith.addf %323, %322 : vector<32x128xf32>
    %325 = arith.divf %323, %324 : vector<32x128xf32>
    %326 = arith.mulf %319, %325 : vector<32x128xf32>
    %327 = arith.addf %268, %326 : vector<32x128xf32>
    %cst_149 = arith.constant 0.707106769 : f32
    %328 = vector.broadcast %cst_149 : f32 to vector<32x128xf32>
    %329 = arith.mulf %327, %328 : vector<32x128xf32>
    %330 = arith.addf %243, %329 : vector<32x128xf32>
    %cst_150 = arith.constant 0.707106769 : f32
    %331 = vector.broadcast %cst_150 : f32 to vector<32x128xf32>
    %332 = arith.mulf %330, %331 : vector<32x128xf32>
    %333 = vector.shape_cast %332 : vector<32x128xf32> to vector<2x16x128xf32>
    %c0_151 = arith.constant 0 : index
    %c0_152 = arith.constant 0 : index
    %c0_153 = arith.constant 0 : index
    %334 = vector.load %arg8[%c0_151, %c0_152, %c0_153] : memref<2x16x128xf32, #tpu.memory_space<vmem>>, vector<2x16x128xf32>
    tpu.vector_store %arg8[%c0_151, %c0_152, %c0_153], %333 {strides = array<i32>} : memref<2x16x128xf32, #tpu.memory_space<vmem>>, vector<2x16x128xf32>,
    return
  }
  func.func @transform_0(%arg0: i32) -> (i32, i32, i32) {
    %c0_i32 = arith.constant 0 : i32
    %c0_i32_0 = arith.constant 0 : i32
    %c0_i32_1 = arith.constant 0 : i32
    return %arg0, %c0_i32, %c0_i32_0 : i32, i32, i32
  }
  func.func @transform_1(%arg0: i32) -> (i32, i32) {
    %c0_i32 = arith.constant 0 : i32
    %c0_i32_0 = arith.constant 0 : i32
    %c0_i32_1 = arith.constant 0 : i32
    return %c0_i32, %c0_i32_0 : i32, i32
  }
  func.func @transform_2(%arg0: i32) -> (i32, i32) {
    %c0_i32 = arith.constant 0 : i32
    %c0_i32_0 = arith.constant 0 : i32
    %c0_i32_1 = arith.constant 0 : i32
    return %c0_i32, %c0_i32_0 : i32, i32
  }
  func.func @transform_3(%arg0: i32) -> (i32, i32, i32) {
    %c0_i32 = arith.constant 0 : i32
    %c0_i32_0 = arith.constant 0 : i32
    %c0_i32_1 = arith.constant 0 : i32
    %c0_i32_2 = arith.constant 0 : i32
    return %c0_i32, %c0_i32_0, %c0_i32_1 : i32, i32, i32
  }
  func.func @transform_4(%arg0: i32) -> (i32, i32) {
    %c0_i32 = arith.constant 0 : i32
    %c0_i32_0 = arith.constant 0 : i32
    %c0_i32_1 = arith.constant 0 : i32
    return %c0_i32, %c0_i32_0 : i32, i32
  }
  func.func @transform_5(%arg0: i32) -> (i32, i32, i32) {
    %c0_i32 = arith.constant 0 : i32
    %c0_i32_0 = arith.constant 0 : i32
    %c0_i32_1 = arith.constant 0 : i32
    %c0_i32_2 = arith.constant 0 : i32
    return %c0_i32, %c0_i32_0, %c0_i32_1 : i32, i32, i32
  }
  func.func @transform_6(%arg0: i32) -> (i32, i32) {
    %c0_i32 = arith.constant 0 : i32
    %c0_i32_0 = arith.constant 0 : i32
    %c0_i32_1 = arith.constant 0 : i32
    return %c0_i32, %c0_i32_0 : i32, i32
  }
  func.func @transform_7(%arg0: i32) -> (i32, i32, i32) {
    %c0_i32 = arith.constant 0 : i32
    %c0_i32_0 = arith.constant 0 : i32
    %c0_i32_1 = arith.constant 0 : i32
    return %arg0, %c0_i32, %c0_i32_0 : i32, i32, i32
  }
  func.func @transform_8(%arg0: i32) -> (i32, i32, i32, i32) {
    %c0_i32 = arith.constant 0 : i32
    %c0_i32_0 = arith.constant 0 : i32
    %c0_i32_1 = arith.constant 0 : i32
    %c0_i32_2 = arith.constant 0 : i32
    return %arg0, %c0_i32, %c0_i32_0, %c0_i32_1 : i32, i32, i32, i32
  }
}

</mosaic_0001>

<llo_original>
// kernel: tpu_custom_call.1
$region0: #{tpu_custom_call.1}
  #allocation0 [shape = 'u32[]', space=smem, size = 0x4, offset = 0x4, fixed_abs, tag = 'smem constant byte address 0x4 - core index']
  #allocation1 [shape = 'u32[72,128]{1,0:T(1,128)}', space=vmem, size = 0x9000, scoped, tag = 'internal scratch']
  %s0 = inlined_call_operand.hbm [shape: f32[4,16,128], index: 0, kind: input, shape index: {}]
  %s1 = inlined_call_operand.hbm [shape: f32[6,128], index: 1, kind: input, shape index: {}]
  %s2 = inlined_call_operand.hbm [shape: bf16[128,384], index: 2, kind: input, shape index: {}]
  %s3 = inlined_call_operand.hbm [shape: bf16[4,32,128], index: 3, kind: input, shape index: {}]
  %s4 = inlined_call_operand.hbm [shape: bf16[128,128], index: 4, kind: input, shape index: {}]
  %s5 = inlined_call_operand.hbm [shape: bf16[3,128,256], index: 5, kind: input, shape index: {}]
  %s6 = inlined_call_operand.vmem [shape: f32[1,256], index: 6, kind: input, shape index: {}]
  %s7 = inlined_call_operand.hbm [shape: f32[4,16,128], index: 7, kind: output, shape index: {0}]
  %s8 = inlined_call_operand.hbm [shape: f32[4,4,16,16], index: 8, kind: output, shape index: {1}]
  %9 = xla_tuple %s7, %s8
  %s10 = sld [smem:[#allocation0]]
  $region93: #{tpu_custom_call.1} parent=0
    _
  %s12 = ssub.s32 1, %s10
  %s13 = scalar_select 0, %s12, %s10
  $region1: #{tpu_custom_call.1} parent=0
    #allocation2 [shape = 'u8[32768]{0}', space=vmem, size = 0x8000, scoped, tag = 'input window, operand 0']
    #allocation3 [shape = 's32[2]{0}', space=sflag, size = 0x8, scoped, tag = 'scoped memory for tpu_custom_call.1']
    #allocation4 [shape = 's32[2]{0}', space=sflag, size = 0x8, scoped, tag = 'scoped memory for tpu_custom_call.1']
    #allocation5 [shape = 'u8[4096]{0}', space=vmem, size = 0x1000, scoped, tag = 'input window, operand 1, single buffered']
    #allocation6 [shape = 's32[1]{0}', space=sflag, size = 0x4, scoped, tag = 'scoped memory for tpu_custom_call.1']
    #allocation7 [shape = 'u8[98304]{0}', space=vmem, size = 0x18000, scoped, tag = 'input window, operand 2, single buffered']
    #allocation8 [shape = 'u8[32768]{0}', space=vmem, size = 0x8000, scoped, tag = 'input window, operand 3, single buffered']
    #allocation9 [shape = 's32[1]{0}', space=sflag, size = 0x4, scoped, tag = 'scoped memory for tpu_custom_call.1']
    #allocation10 [shape = 'u8[32768]{0}', space=vmem, size = 0x8000, scoped, tag = 'input window, operand 4, single buffered']
    #allocation11 [shape = 'u8[196608]{0}', space=vmem, size = 0x30000, scoped, tag = 'input window, operand 5, single buffered']
    #allocation12 [shape = 's32[1]{0}', space=sflag, size = 0x4, scoped, tag = 'scoped memory for tpu_custom_call.1']
    #allocation13 [shape = 'u8[32768]{0}', space=vmem, size = 0x8000, scoped, tag = 'output window, operand 0']
    #allocation14 [shape = 'u8[131072]{0}', space=vmem, size = 0x20000, scoped, tag = 'output window, operand 1']
    #allocation15 [shape = 's32[2]{0}', space=sflag, size = 0x8, scoped, tag = 'scoped memory for tpu_custom_call.1']
    %14 = vsyncpa [#allocation3], 0
    %s15 = scalar_lea.sflag [#allocation3], 1
    %16 = vsyncpa %s15, 0
    %17 = vsyncpa [#allocation6], 0
    %18 = vsyncpa [#allocation9], 0
    %19 = vsyncpa [#allocation12], 0
    %20 = vsyncpa [#allocation4], 0
    %s21 = scalar_lea.sflag [#allocation4], 1
    %22 = vsyncpa %s21, 0
    %23 = vsyncpa [#allocation15], 0
    %s24 = scalar_lea.sflag [#allocation15], 1
    %25 = vsyncpa %s24, 0
    loop: start=0, step=1, limit=4
    $region2: #{tpu_custom_call.1} parent=1 // loop_pre_header
      _
    $region3: #{tpu_custom_call.1} parent=1 // loop_header
      %s27 = sphi 0, %s31
      %p28 = scmp.ge.s32.totalorder %s27, 4
      %s37 = sphi 0, %s39
      %s40 = sphi 0, %s37
      %s41 = sphi 0, %s40
      %s57 = sphi 0, %s41
      %s61 = sphi 0, %s61
      %s63 = sphi 0, %s61
      %s64 = sphi 0, %s63
      %s78 = sphi 0, %s64
      %s82 = sphi 0, %s82
      %s84 = sphi 0, %s82
      %s85 = sphi 0, %s84
      %s99 = sphi 0, %s85
      %s103 = sphi 0, %s103
      %s105 = sphi 0, %s103
      %s106 = sphi 0, %s105
      %s120 = sphi 0, %s106
      %s124 = sphi 0, %s124
      %s126 = sphi 0, %s124
      %s127 = sphi 0, %s126
      %s141 = sphi 0, %s127
      %s145 = sphi 0, %s145
      %s147 = sphi 0, %s145
      %s148 = sphi 0, %s147
      %s162 = sphi 0, %s148
      %s166 = sphi 0, %s166
      %s168 = sphi 0, %s166
      %s169 = sphi 0, %s168
      %s183 = sphi 0, %s169
      %s189 = sphi 0, %s191
      %s192 = sphi 0, %s189
      %s193 = sphi 0, %s192
      %s209 = sphi 0, %s193
      %s215 = sphi 0, %s217
      %s218 = sphi 0, %s215
      %s219 = sphi 0, %s218
      %s235 = sphi 0, %s219
    $region4: #{tpu_custom_call.1} parent=1 // loop_header_branch
      %30 = sbr.rel (%p28) target = $region8
    $region5: #{tpu_custom_call.1} parent=1 // loop_body
      %s32 = ssub.s32 %s27, 1
      %s33 = ssub.s32 %s27, 2
      %s34 = sadd.s32 %s27, 1
      %s35 = ssub.s32 %s27, %s34
      %p36 = scmp.eq.s32.totalorder %s35, 0
      %s38 = sadd.s32 %s37, 1
      %s39 = scalar_select %p36, %s37, %s38
      %p42 = pneg %p36
      %p43 = scmp.eq.s32.totalorder %s27, 1
      %p44 = por %p42, %p43
      %p45 = scmp.ne.s32.totalorder %s37, %s40
      %p46 = scmp.eq.s32.totalorder %s27, 0
      %p47 = por %p45, %p46
      %p48 = scmp.ne.s32.totalorder %s37, %s40
      %p49 = scmp.eq.s32.totalorder %s32, 1
      %p50 = por %p48, %p49
      %p51 = scmp.ne.s32.totalorder %s40, %s41
      %p52 = scmp.eq.s32.totalorder %s32, 0
      %p53 = por %p51, %p52
      %p54 = scmp.ne.s32.totalorder %s40, %s41
      %p55 = scmp.eq.s32.totalorder %s33, 1
      %p56 = por %p54, %p55
      %p58 = scmp.ne.s32.totalorder %s41, %s57
      %p59 = scmp.eq.s32.totalorder %s33, 0
      %p60 = por %p58, %p59
      %s62 = sadd.s32 %s61, 1
      %p65 = scmp.eq.s32.totalorder %s27, 1
      %p66 = scmp.ne.s32.totalorder %s61, %s63
      %p67 = scmp.eq.s32.totalorder %s27, 0
      %p68 = por %p66, %p67
      %p69 = scmp.ne.s32.totalorder %s61, %s63
      %p70 = scmp.eq.s32.totalorder %s32, 1
      %p71 = por %p69, %p70
      %p72 = scmp.ne.s32.totalorder %s63, %s64
      %p73 = scmp.eq.s32.totalorder %s32, 0
      %p74 = por %p72, %p73
      %p75 = scmp.ne.s32.totalorder %s63, %s64
      %p76 = scmp.eq.s32.totalorder %s33, 1
      %p77 = por %p75, %p76
      %p79 = scmp.ne.s32.totalorder %s64, %s78
      %p80 = scmp.eq.s32.totalorder %s33, 0
      %p81 = por %p79, %p80
      %s83 = sadd.s32 %s82, 1
      %p86 = scmp.eq.s32.totalorder %s27, 1
      %p87 = scmp.ne.s32.totalorder %s82, %s84
      %p88 = scmp.eq.s32.totalorder %s27, 0
      %p89 = por %p87, %p88
      %p90 = scmp.ne.s32.totalorder %s82, %s84
      %p91 = scmp.eq.s32.totalorder %s32, 1
      %p92 = por %p90, %p91
      %p93 = scmp.ne.s32.totalorder %s84, %s85
      %p94 = scmp.eq.s32.totalorder %s32, 0
      %p95 = por %p93, %p94
      %p96 = scmp.ne.s32.totalorder %s84, %s85
      %p97 = scmp.eq.s32.totalorder %s33, 1
      %p98 = por %p96, %p97
      %p100 = scmp.ne.s32.totalorder %s85, %s99
      %p101 = scmp.eq.s32.totalorder %s33, 0
      %p102 = por %p100, %p101
      %s104 = sadd.s32 %s103, 1
      %p107 = scmp.eq.s32.totalorder %s27, 1
      %p108 = scmp.ne.s32.totalorder %s103, %s105
      %p109 = scmp.eq.s32.totalorder %s27, 0
      %p110 = por %p108, %p109
      %p111 = scmp.ne.s32.totalorder %s103, %s105
      %p112 = scmp.eq.s32.totalorder %s32, 1
      %p113 = por %p111, %p112
      %p114 = scmp.ne.s32.totalorder %s105, %s106
      %p115 = scmp.eq.s32.totalorder %s32, 0
      %p116 = por %p114, %p115
      %p117 = scmp.ne.s32.totalorder %s105, %s106
      %p118 = scmp.eq.s32.totalorder %s33, 1
      %p119 = por %p117, %p118
      %p121 = scmp.ne.s32.totalorder %s106, %s120
      %p122 = scmp.eq.s32.totalorder %s33, 0
      %p123 = por %p121, %p122
      %s125 = sadd.s32 %s124, 1
      %p128 = scmp.eq.s32.totalorder %s27, 1
      %p129 = scmp.ne.s32.totalorder %s124, %s126
      %p130 = scmp.eq.s32.totalorder %s27, 0
      %p131 = por %p129, %p130
      %p132 = scmp.ne.s32.totalorder %s124, %s126
      %p133 = scmp.eq.s32.totalorder %s32, 1
      %p134 = por %p132, %p133
      %p135 = scmp.ne.s32.totalorder %s126, %s127
      %p136 = scmp.eq.s32.totalorder %s32, 0
      %p137 = por %p135, %p136
      %p138 = scmp.ne.s32.totalorder %s126, %s127
      %p139 = scmp.eq.s32.totalorder %s33, 1
      %p140 = por %p138, %p139
      %p142 = scmp.ne.s32.totalorder %s127, %s141
      %p143 = scmp.eq.s32.totalorder %s33, 0
      %p144 = por %p142, %p143
      %s146 = sadd.s32 %s145, 1
      %p149 = scmp.eq.s32.totalorder %s27, 1
      %p150 = scmp.ne.s32.totalorder %s145, %s147
      %p151 = scmp.eq.s32.totalorder %s27, 0
      %p152 = por %p150, %p151
      %p153 = scmp.ne.s32.totalorder %s145, %s147
      %p154 = scmp.eq.s32.totalorder %s32, 1
      %p155 = por %p153, %p154
      %p156 = scmp.ne.s32.totalorder %s147, %s148
      %p157 = scmp.eq.s32.totalorder %s32, 0
      %p158 = por %p156, %p157
      %p159 = scmp.ne.s32.totalorder %s147, %s148
      %p160 = scmp.eq.s32.totalorder %s33, 1
      %p161 = por %p159, %p160
      %p163 = scmp.ne.s32.totalorder %s148, %s162
      %p164 = scmp.eq.s32.totalorder %s33, 0
      %p165 = por %p163, %p164
      %s167 = sadd.s32 %s166, 1
      %p170 = scmp.eq.s32.totalorder %s27, 1
      %p171 = scmp.ne.s32.totalorder %s166, %s168
      %p172 = scmp.eq.s32.totalorder %s27, 0
      %p173 = por %p171, %p172
      %p174 = scmp.ne.s32.totalorder %s166, %s168
      %p175 = scmp.eq.s32.totalorder %s32, 1
      %p176 = por %p174, %p175
      %p177 = scmp.ne.s32.totalorder %s168, %s169
      %p178 = scmp.eq.s32.totalorder %s32, 0
      %p179 = por %p177, %p178
      %p180 = scmp.ne.s32.totalorder %s168, %s169
      %p181 = scmp.eq.s32.totalorder %s33, 1
      %p182 = por %p180, %p181
      %p184 = scmp.ne.s32.totalorder %s169, %s183
      %p185 = scmp.eq.s32.totalorder %s33, 0
      %p186 = por %p184, %p185
      %s187 = ssub.s32 %s27, %s34
      %p188 = scmp.eq.s32.totalorder %s187, 0
      %s190 = sadd.s32 %s189, 1
      %s191 = scalar_select %p188, %s189, %s190
      %p194 = pneg %p188
      %p195 = scmp.eq.s32.totalorder %s27, 1
      %p196 = por %p194, %p195
      %p197 = scmp.ne.s32.totalorder %s189, %s192
      %p198 = scmp.eq.s32.totalorder %s27, 0
      %p199 = por %p197, %p198
      %p200 = scmp.ne.s32.totalorder %s189, %s192
      %p201 = scmp.eq.s32.totalorder %s32, 1
      %p202 = por %p200, %p201
      %p203 = scmp.ne.s32.totalorder %s192, %s193
      %p204 = scmp.eq.s32.totalorder %s32, 0
      %p205 = por %p203, %p204
      %p206 = scmp.ne.s32.totalorder %s192, %s193
      %p207 = scmp.eq.s32.totalorder %s33, 1
      %p208 = por %p206, %p207
      %p210 = scmp.ne.s32.totalorder %s193, %s209
      %p211 = scmp.eq.s32.totalorder %s33, 0
      %p212 = por %p210, %p211
      %s213 = ssub.s32 %s27, %s34
      %p214 = scmp.eq.s32.totalorder %s213, 0
      %s216 = sadd.s32 %s215, 1
      %s217 = scalar_select %p214, %s215, %s216
      %p220 = pneg %p214
      %p221 = scmp.eq.s32.totalorder %s27, 1
      %p222 = por %p220, %p221
      %p223 = scmp.ne.s32.totalorder %s215, %s218
      %p224 = scmp.eq.s32.totalorder %s27, 0
      %p225 = por %p223, %p224
      %p226 = scmp.ne.s32.totalorder %s215, %s218
      %p227 = scmp.eq.s32.totalorder %s32, 1
      %p228 = por %p226, %p227
      %p229 = scmp.ne.s32.totalorder %s218, %s219
      %p230 = scmp.eq.s32.totalorder %s32, 0
      %p231 = por %p229, %p230
      %p232 = scmp.ne.s32.totalorder %s218, %s219
      %p233 = scmp.eq.s32.totalorder %s33, 1
      %p234 = por %p232, %p233
      %p236 = scmp.ne.s32.totalorder %s219, %s235
      %p237 = scmp.eq.s32.totalorder %s33, 0
      %p238 = por %p236, %p237
      %p239 = scmp.le.s32.totalorder 1, %s27
      %p240 = scmp.lt.s32.totalorder %s27, 3
      %p241 = pnand %p239, %p240
      %p242 = pneg %p241
      // Predicated region
      $region9: #{tpu_custom_call.1} parent=5 // pred_check
        _
      $region10: #{tpu_custom_call.1} parent=5 // pred_check_branch
        %244 = sbr.rel (%p241) target = $region12
      $region11: #{tpu_custom_call.1} parent=5 // pred_region
        %s245 = ssub.s32 %s27, 1
        // Predicated region
        $region13: #{tpu_custom_call.1} parent=11 // pred_check
          %p246 = pneg %p74
        $region14: #{tpu_custom_call.1} parent=11 // pred_check_branch
          %248 = sbr.rel (%p246) target = $region16
        $region15: #{tpu_custom_call.1} parent=11 // pred_region
          %250 = vsyncadd [#allocation6], 0
          %s252 = sshll.u32 %s1, 4
          %s253 = int_to_ptr.hbm [resolvable:$true] %s252
          %s254 = sshll.u32 [#allocation5], 4
          %s255 = int_to_ptr.vmem [resolvable:$true] %s254
          %257 = dma.hbm_to_vmem [thread:$0]  %s253, 128, %s255, [#allocation6]
        $region16: #{tpu_custom_call.1} parent=11 // pred_fallthru
          _
        // Predicated region
        $region17: #{tpu_custom_call.1} parent=11 // pred_check
          %p258 = pneg %p95
        $region18: #{tpu_custom_call.1} parent=11 // pred_check_branch
          %260 = sbr.rel (%p258) target = $region20
        $region19: #{tpu_custom_call.1} parent=11 // pred_region
          %262 = vsyncadd [#allocation6], 0
          %s263 = sshll.u32 %s2, 4
          %s264 = int_to_ptr.hbm [resolvable:$true] %s263
          %s265 = sshll.u32 [#allocation7], 4
          %s266 = int_to_ptr.vmem [resolvable:$true] %s265
          %271 = dma.hbm_to_vmem [thread:$0]  %s264, 3072, %s266, [#allocation6], 192, 192, 12
        $region20: #{tpu_custom_call.1} parent=11 // pred_fallthru
          _
        // Predicated region
        $region21: #{tpu_custom_call.1} parent=11 // pred_check
          %p272 = pneg %p116
        $region22: #{tpu_custom_call.1} parent=11 // pred_check_branch
          %274 = sbr.rel (%p272) target = $region24
        $region23: #{tpu_custom_call.1} parent=11 // pred_region
          %276 = vsyncadd [#allocation9], 0
          %s277 = sshll.u32 %s3, 4
          %s278 = int_to_ptr.hbm [resolvable:$true] %s277
          %s279 = sshll.u32 [#allocation8], 4
          %s280 = int_to_ptr.vmem [resolvable:$true] %s279
          %285 = dma.hbm_to_vmem [thread:$0]  %s278, 1024, %s280, [#allocation9], 64, 64, 4
        $region24: #{tpu_custom_call.1} parent=11 // pred_fallthru
          _
        // Predicated region
        $region25: #{tpu_custom_call.1} parent=11 // pred_check
          %p286 = pneg %p137
        $region26: #{tpu_custom_call.1} parent=11 // pred_check_branch
          %288 = sbr.rel (%p286) target = $region28
        $region27: #{tpu_custom_call.1} parent=11 // pred_region
          %290 = vsyncadd [#allocation9], 0
          %s291 = sshll.u32 %s4, 4
          %s292 = int_to_ptr.hbm [resolvable:$true] %s291
          %s293 = sshll.u32 [#allocation10], 4
          %s294 = int_to_ptr.vmem [resolvable:$true] %s293
          %299 = dma.hbm_to_vmem [thread:$0]  %s292, 1024, %s294, [#allocation9], 64, 64, 4
        $region28: #{tpu_custom_call.1} parent=11 // pred_fallthru
          _
        // Predicated region
        $region29: #{tpu_custom_call.1} parent=11 // pred_check
          %p300 = pneg %p158
        $region30: #{tpu_custom_call.1} parent=11 // pred_check_branch
          %302 = sbr.rel (%p300) target = $region32
        $region31: #{tpu_custom_call.1} parent=11 // pred_region
          %304 = vsyncadd [#allocation12], 0
          %s305 = sshll.u32 %s5, 4
          %s306 = int_to_ptr.hbm [resolvable:$true] %s305
          %s307 = sshll.u32 [#allocation11], 4
          %s308 = int_to_ptr.vmem [resolvable:$true] %s307
          %313 = dma.hbm_to_vmem [thread:$0]  %s306, 6144, %s308, [#allocation12], 128, 128, 8
        $region32: #{tpu_custom_call.1} parent=11 // pred_fallthru
          _
        // Predicated region
        $region33: #{tpu_custom_call.1} parent=11 // pred_check
          %p314 = pneg %p179
        $region34: #{tpu_custom_call.1} parent=11 // pred_check_branch
          %316 = sbr.rel (%p314) target = $region36
        $region35: #{tpu_custom_call.1} parent=11 // pred_region
          _
        $region36: #{tpu_custom_call.1} parent=11 // pred_fallthru
          _
      $region12: #{tpu_custom_call.1} parent=5 // pred_fallthru
        _
      %p317 = scmp.lt.s32.totalorder %s27, 2
      // Predicated region
      $region37: #{tpu_custom_call.1} parent=5 // pred_check
        %p318 = pneg %p317
      $region38: #{tpu_custom_call.1} parent=5 // pred_check_branch
        %320 = sbr.rel (%p318) target = $region40
      $region39: #{tpu_custom_call.1} parent=5 // pred_region
        // Predicated region
        $region41: #{tpu_custom_call.1} parent=39 // pred_check
          %p321 = pneg %p47
        $region42: #{tpu_custom_call.1} parent=39 // pred_check_branch
          %323 = sbr.rel (%p321) target = $region44
        $region43: #{tpu_custom_call.1} parent=39 // pred_region
          %s324 = sand.u32 %s37, 1
          %s325 = scalar_lea.sflag [#allocation3], %s324
          %s326 = sand.u32 %s37, 1
          %s327 = smul.addr %s326, 32
          %s328 = scalar_lea.vmem [#allocation2], %s327
          %s329 = smul.u32 2, %s27
          %331 = vsyncadd %s325, 0
          %s332 = smul.addr %s329, 2
          %s333 = smul.addr %s332, 8
          %s334 = scalar_lea.hbm %s0, %s333
          %s335 = sshll.u32 %s334, 4
          %s336 = int_to_ptr.hbm [resolvable:$true] %s335
          %s337 = sshll.u32 %s328, 4
          %s338 = int_to_ptr.vmem [resolvable:$true] %s337
          %343 = dma.hbm_to_vmem [thread:$0]  %s336, 512, %s338, %s325, 128, 128, 8
        $region44: #{tpu_custom_call.1} parent=39 // pred_fallthru
          _
      $region40: #{tpu_custom_call.1} parent=5 // pred_fallthru
        _
      %p344 = scmp.le.s32.totalorder 1, %s27
      %p345 = scmp.lt.s32.totalorder %s27, 3
      %p346 = pnand %p344, %p345
      %p347 = pneg %p346
      // Predicated region
      $region45: #{tpu_custom_call.1} parent=5 // pred_check
        _
      $region46: #{tpu_custom_call.1} parent=5 // pred_check_branch
        %349 = sbr.rel (%p346) target = $region48
      $region47: #{tpu_custom_call.1} parent=5 // pred_region
        %s350 = ssub.s32 %s27, 1
        %s351 = sand.u32 %s40, 1
        %s352 = scalar_lea.sflag [#allocation3], %s351
        %s353 = sand.u32 %s40, 1
        %s354 = smul.addr %s353, 32
        %s355 = scalar_lea.vmem [#allocation2], %s354
        // Predicated region
        $region49: #{tpu_custom_call.1} parent=47 // pred_check
          %p356 = pneg %p53
        $region50: #{tpu_custom_call.1} parent=47 // pred_check_branch
          %358 = sbr.rel (%p356) target = $region52
        $region51: #{tpu_custom_call.1} parent=47 // pred_region
          %360 = dma.done %s352, 512
        $region52: #{tpu_custom_call.1} parent=47 // pred_fallthru
          _
        // Predicated region
        $region53: #{tpu_custom_call.1} parent=47 // pred_check
          %p361 = pneg %p74
        $region54: #{tpu_custom_call.1} parent=47 // pred_check_branch
          %363 = sbr.rel (%p361) target = $region56
        $region55: #{tpu_custom_call.1} parent=47 // pred_region
          %365 = dma.done [#allocation6], 128
        $region56: #{tpu_custom_call.1} parent=47 // pred_fallthru
          _
        // Predicated region
        $region57: #{tpu_custom_call.1} parent=47 // pred_check
          %p366 = pneg %p95
        $region58: #{tpu_custom_call.1} parent=47 // pred_check_branch
          %368 = sbr.rel (%p366) target = $region60
        $region59: #{tpu_custom_call.1} parent=47 // pred_region
          %370 = dma.done [#allocation6], 3072
        $region60: #{tpu_custom_call.1} parent=47 // pred_fallthru
          _
        // Predicated region
        $region61: #{tpu_custom_call.1} parent=47 // pred_check
          %p371 = pneg %p116
        $region62: #{tpu_custom_call.1} parent=47 // pred_check_branch
          %373 = sbr.rel (%p371) target = $region64
        $region63: #{tpu_custom_call.1} parent=47 // pred_region
          %375 = dma.done [#allocation9], 1024
        $region64: #{tpu_custom_call.1} parent=47 // pred_fallthru
          _
        // Predicated region
        $region65: #{tpu_custom_call.1} parent=47 // pred_check
          %p376 = pneg %p137
        $region66: #{tpu_custom_call.1} parent=47 // pred_check_branch
          %378 = sbr.rel (%p376) target = $region68
        $region67: #{tpu_custom_call.1} parent=47 // pred_region
          %380 = dma.done [#allocation9], 1024
        $region68: #{tpu_custom_call.1} parent=47 // pred_fallthru
          _
        // Predicated region
        $region69: #{tpu_custom_call.1} parent=47 // pred_check
          %p381 = pneg %p158
        $region70: #{tpu_custom_call.1} parent=47 // pred_check_branch
          %383 = sbr.rel (%p381) target = $region72
        $region71: #{tpu_custom_call.1} parent=47 // pred_region
          %385 = dma.done [#allocation12], 6144
        $region72: #{tpu_custom_call.1} parent=47 // pred_fallthru
          _
        %s386 = sand.u32 %s40, 1
        %s387 = scalar_lea.sflag [#allocation3], %s386
        %s388 = sand.u32 %s40, 1
        %s389 = smul.addr %s388, 32
        %s390 = scalar_lea.vmem [#allocation2], %s389
        %p391 = pneg %p53
        %p392 = pneg %p50
        %p393 = pneg %p74
        %p394 = pneg %p71
        %p395 = pneg %p95
        %p396 = pneg %p92
        %p397 = pneg %p116
        %p398 = pneg %p113
        %p399 = pneg %p137
        %p400 = pneg %p134
        %p401 = pneg %p158
        %p402 = pneg %p155
        %p403 = pneg %p179
        %p404 = pneg %p176
        %p405 = pneg %p205
        %p406 = pneg %p202
        %s407 = sand.u32 %s192, 1
        %s408 = scalar_lea.sflag [#allocation4], %s407
        %s409 = sand.u32 %s192, 1
        %s410 = smul.addr %s409, 32
        %s411 = scalar_lea.vmem [#allocation13], %s410
        %p412 = pneg %p231
        %p413 = pneg %p228
        %s414 = sand.u32 %s218, 1
        %s415 = scalar_lea.sflag [#allocation15], %s414
        %s416 = sand.u32 %s218, 1
        %s417 = smul.addr %s416, 128
        %s418 = scalar_lea.vmem [#allocation14], %s417
        %s419 = smul.u32 2, %s32
        %s420 = smul.u32 2, %s32
        %s421 = smul.u32 2, %s32
        %v423 = vld [vmem:[%s355] sm:$0xff]
        %v424 = vld [vmem:[%s355 + $0x8] sm:$0xff]
        %v425 = vld [vmem:[%s355 + $0x10] sm:$0xff]
        %v426 = vld [vmem:[%s355 + $0x18] sm:$0xff]
        %v427 = vld [vmem:[#allocation5] sm:$0x1]
        %v428 = vld [vmem:[#allocation5 + $0x1] sm:$0x1]
        %v429 = vld [vmem:[#allocation5 + $0x2] sm:$0x1]
        %v430 = vld [vmem:[#allocation5 + $0x3] sm:$0x1]
        %v431 = vld [vmem:[#allocation5 + $0x4] sm:$0x1]
        %v432 = vld [vmem:[#allocation5 + $0x5] sm:$0x1]
        %433 = vadd.xlane.f32.xlu0 %v423
        %v434 = vpop.xlane.xlu0 %433
        %435 = vadd.xlane.f32.xlu0 %v424
        %v436 = vpop.xlane.xlu0 %435
        %437 = vadd.xlane.f32.xlu0 %v425
        %v438 = vpop.xlane.xlu0 %437
        %439 = vadd.xlane.f32.xlu0 %v426
        %v440 = vpop.xlane.xlu0 %439
        %v441 = vrcp.pop 128.0
        %v442 = vmul.f32 128.0, %v441
        %v443 = vsub.f32 1.0, %v442
        %v444 = vmul.f32 %v441, %v443
        %v445 = vadd.f32 %v441, %v444
        %vm446 = vweird.f32 %v441
        %v447 = vsel %vm446, %v441, %v445
        %v448 = vmul.f32 %v434, %v447
        %v449 = vmul.f32 %v436, %v447
        %v450 = vmul.f32 %v438, %v447
        %v451 = vmul.f32 %v440, %v447
        %v452 = vsub.f32 %v423, %v448
        %v453 = vsub.f32 %v424, %v449
        %v454 = vsub.f32 %v425, %v450
        %v455 = vsub.f32 %v426, %v451
        %v456 = vmul.f32 %v452, %v452
        %v457 = vmul.f32 %v453, %v453
        %v458 = vmul.f32 %v454, %v454
        %v459 = vmul.f32 %v455, %v455
        %460 = vadd.xlane.f32.xlu0 %v456
        %v461 = vpop.xlane.xlu0 %460
        %462 = vadd.xlane.f32.xlu0 %v457
        %v463 = vpop.xlane.xlu0 %462
        %464 = vadd.xlane.f32.xlu0 %v458
        %v465 = vpop.xlane.xlu0 %464
        %466 = vadd.xlane.f32.xlu0 %v459
        %v467 = vpop.xlane.xlu0 %466
        %v468 = vmul.f32 %v461, %v447
        %v469 = vmul.f32 %v463, %v447
        %v470 = vmul.f32 %v465, %v447
        %v471 = vmul.f32 %v467, %v447
        %v472 = vadd.f32 %v468, 1e-05
        %v473 = vadd.f32 %v469, 1e-05
        %v474 = vadd.f32 %v470, 1e-05
        %v475 = vadd.f32 %v471, 1e-05
        %v476 = vrsqrt.pop %v472
        %v477 = vmul.f32 %v476, %v472
        %v478 = vmul.f32 %v477, %v476
        %v479 = vmul.f32 0.5, %v478
        %v480 = vsub.f32 1.5, %v479
        %v481 = vmul.f32 %v476, %v480
        %vm482 = vweird.f32 %v472
        %vm483 = vweird.f32 %v476
        %vm484 = vmor %vm482, %vm483
        %v485 = vsel %vm484, %v476, %v481
        %v486 = vrsqrt.pop %v473
        %v487 = vmul.f32 %v486, %v473
        %v488 = vmul.f32 %v487, %v486
        %v489 = vmul.f32 0.5, %v488
        %v490 = vsub.f32 1.5, %v489
        %v491 = vmul.f32 %v486, %v490
        %vm492 = vweird.f32 %v473
        %vm493 = vweird.f32 %v486
        %vm494 = vmor %vm492, %vm493
        %v495 = vsel %vm494, %v486, %v491
        %v496 = vrsqrt.pop %v474
        %v497 = vmul.f32 %v496, %v474
        %v498 = vmul.f32 %v497, %v496
        %v499 = vmul.f32 0.5, %v498
        %v500 = vsub.f32 1.5, %v499
        %v501 = vmul.f32 %v496, %v500
        %vm502 = vweird.f32 %v474
        %vm503 = vweird.f32 %v496
        %vm504 = vmor %vm502, %vm503
        %v505 = vsel %vm504, %v496, %v501
        %v506 = vrsqrt.pop %v475
        %v507 = vmul.f32 %v506, %v475
        %v508 = vmul.f32 %v507, %v506
        %v509 = vmul.f32 0.5, %v508
        %v510 = vsub.f32 1.5, %v509
        %v511 = vmul.f32 %v506, %v510
        %vm512 = vweird.f32 %v475
        %vm513 = vweird.f32 %v506
        %vm514 = vmor %vm512, %vm513
        %v515 = vsel %vm514, %v506, %v511
        %v516 = vmul.f32 %v452, %v485
        %v517 = vmul.f32 %v453, %v495
        %v518 = vmul.f32 %v454, %v505
        %v519 = vmul.f32 %v455, %v515
        %v520 = vperm.slane %v427, 0
        %v521 = vmul.f32 %v516, %v520
        %v522 = vmul.f32 %v517, %v520
        %v523 = vmul.f32 %v518, %v520
        %v524 = vmul.f32 %v519, %v520
        %v525 = vperm.slane %v428, 0
        %v526 = vadd.f32 %v521, %v525
        %v527 = vadd.f32 %v522, %v525
        %v528 = vadd.f32 %v523, %v525
        %v529 = vadd.f32 %v524, %v525
        %v530 = vpack.c.bf16 %v527, %v526
        %v531 = vpack.c.bf16 %v529, %v528
        %v532 = vld [vmem:[#allocation7] sm:$0xff]
        %v533 = vld [vmem:[#allocation7 + $0x8] sm:$0xf]
        %v534 = vld [vmem:[#allocation7 + $0xc] sm:$0xff]
        %v535 = vld [vmem:[#allocation7 + $0x14] sm:$0xf]
        %v536 = vld [vmem:[#allocation7 + $0x18] sm:$0xff]
        %v537 = vld [vmem:[#allocation7 + $0x20] sm:$0xf]
        %v538 = vld [vmem:[#allocation7 + $0x24] sm:$0xff]
        %v539 = vld [vmem:[#allocation7 + $0x2c] sm:$0xf]
        %v540 = vld [vmem:[#allocation7 + $0x30] sm:$0xff]
        %v541 = vld [vmem:[#allocation7 + $0x38] sm:$0xf]
        %v542 = vld [vmem:[#allocation7 + $0x3c] sm:$0xff]
        %v543 = vld [vmem:[#allocation7 + $0x44] sm:$0xf]
        %v544 = vld [vmem:[#allocation7 + $0x48] sm:$0xff]
        %v545 = vld [vmem:[#allocation7 + $0x50] sm:$0xf]
        %v546 = vld [vmem:[#allocation7 + $0x54] sm:$0xff]
        %v547 = vld [vmem:[#allocation7 + $0x5c] sm:$0xf]
        %v548 = vld [vmem:[#allocation7 + $0x60] sm:$0xff]
        %v549 = vld [vmem:[#allocation7 + $0x68] sm:$0xf]
        %v550 = vld [vmem:[#allocation7 + $0x6c] sm:$0xff]
        %v551 = vld [vmem:[#allocation7 + $0x74] sm:$0xf]
        %v552 = vld [vmem:[#allocation7 + $0x78] sm:$0xff]
        %v553 = vld [vmem:[#allocation7 + $0x80] sm:$0xf]
        %v554 = vld [vmem:[#allocation7 + $0x84] sm:$0xff]
        %v555 = vld [vmem:[#allocation7 + $0x8c] sm:$0xf]
        %v556 = vld [vmem:[#allocation7 + $0x90] sm:$0xff]
        %v557 = vld [vmem:[#allocation7 + $0x98] sm:$0xf]
        %v558 = vld [vmem:[#allocation7 + $0x9c] sm:$0xff]
        %v559 = vld [vmem:[#allocation7 + $0xa4] sm:$0xf]
        %v560 = vld [vmem:[#allocation7 + $0xa8] sm:$0xff]
        %v561 = vld [vmem:[#allocation7 + $0xb0] sm:$0xf]
        %v562 = vld [vmem:[#allocation7 + $0xb4] sm:$0xff]
        %v563 = vld [vmem:[#allocation7 + $0xbc] sm:$0xf]
        %v596 = vunpack.c.l.b16 %v532
        %v597 = vunpack.c.h.b16 %v532
        %v598 = vunpack.c.l.b16 %v533
        %v599 = vunpack.c.l.b16 %v534
        %v600 = vunpack.c.h.b16 %v534
        %v601 = vunpack.c.l.b16 %v535
        %v602 = vunpack.c.l.b16 %v536
        %v603 = vunpack.c.h.b16 %v536
        %v604 = vunpack.c.l.b16 %v537
        %v605 = vunpack.c.l.b16 %v538
        %v606 = vunpack.c.h.b16 %v538
        %v607 = vunpack.c.l.b16 %v539
        %v608 = vunpack.c.l.b16 %v540
        %v609 = vunpack.c.h.b16 %v540
        %v610 = vunpack.c.l.b16 %v541
        %v611 = vunpack.c.l.b16 %v542
        %v612 = vunpack.c.h.b16 %v542
        %v613 = vunpack.c.l.b16 %v543
        %v614 = vunpack.c.l.b16 %v544
        %v615 = vunpack.c.h.b16 %v544
        %v616 = vunpack.c.l.b16 %v545
        %v617 = vunpack.c.l.b16 %v546
        %v618 = vunpack.c.h.b16 %v546
        %v619 = vunpack.c.l.b16 %v547
        %v620 = vunpack.c.l.b16 %v548
        %v621 = vunpack.c.h.b16 %v548
        %v622 = vunpack.c.l.b16 %v549
        %v623 = vunpack.c.l.b16 %v550
        %v624 = vunpack.c.h.b16 %v550
        %v625 = vunpack.c.l.b16 %v551
        %v626 = vunpack.c.l.b16 %v552
        %v627 = vunpack.c.h.b16 %v552
        %v628 = vunpack.c.l.b16 %v553
        %v629 = vunpack.c.l.b16 %v554
        %v630 = vunpack.c.h.b16 %v554
        %v631 = vunpack.c.l.b16 %v555
        %v632 = vunpack.c.l.b16 %v556
        %v633 = vunpack.c.h.b16 %v556
        %v634 = vunpack.c.l.b16 %v557
        %v635 = vunpack.c.l.b16 %v558
        %v636 = vunpack.c.h.b16 %v558
        %v637 = vunpack.c.l.b16 %v559
        %v638 = vunpack.c.l.b16 %v560
        %v639 = vunpack.c.h.b16 %v560
        %v640 = vunpack.c.l.b16 %v561
        %v641 = vunpack.c.l.b16 %v562
        %v642 = vunpack.c.h.b16 %v562
        %v643 = vunpack.c.l.b16 %v563
        %v644 = vpack.c.b16 %v599, %v596
        %v645 = vpack.c.b16 %v600, %v597
        %v646 = vpack.c.b16 %v601, %v598
        %v647 = vpack.c.b16 %v605, %v602
        %v648 = vpack.c.b16 %v606, %v603
        %v649 = vpack.c.b16 %v607, %v604
        %v650 = vpack.c.b16 %v611, %v608
        %v651 = vpack.c.b16 %v612, %v609
        %v652 = vpack.c.b16 %v613, %v610
        %v653 = vpack.c.b16 %v617, %v614
        %v654 = vpack.c.b16 %v618, %v615
        %v655 = vpack.c.b16 %v619, %v616
        %v656 = vpack.c.b16 %v623, %v620
        %v657 = vpack.c.b16 %v624, %v621
        %v658 = vpack.c.b16 %v625, %v622
        %v659 = vpack.c.b16 %v629, %v626
        %v660 = vpack.c.b16 %v630, %v627
        %v661 = vpack.c.b16 %v631, %v628
        %v662 = vpack.c.b16 %v635, %v632
        %v663 = vpack.c.b16 %v636, %v633
        %v664 = vpack.c.b16 %v637, %v634
        %v665 = vpack.c.b16 %v641, %v638
        %v666 = vpack.c.b16 %v642, %v639
        %v667 = vpack.c.b16 %v643, %v640
        %692 = vmatpush.bf16.msra.mxu0 %v665
        %693 = vmatpush.bf16.msra.mxu0 %v662
        %694 = vmatpush.bf16.msra.mxu0 %v659
        %695 = vmatpush.bf16.msra.mxu0 %v656
        %696 = vmatpush.bf16.msra.mxu0 %v653
        %697 = vmatpush.bf16.msra.mxu0 %v650
        %698 = vmatpush.bf16.msra.mxu0 %v647
        %699 = vmatpush.bf16.msra.mxu0 %v644
        %700 = vmatmul.bf16.gmra.mxu0 %v530
        %v701 = vpop.f32.mrf.mxu0
        %v702 = vadd.f32 0.0, %v701
        %v703 = vpop.f32.mrf.mxu0
        %v704 = vadd.f32 0.0, %v703
        %705 = vmatmul.bf16.gmra.mxu0 %v531
        %v706 = vpop.f32.mrf.mxu0
        %v707 = vadd.f32 0.0, %v706
        %v708 = vpop.f32.mrf.mxu0
        %v709 = vadd.f32 0.0, %v708
        %710 = vdwg.mxu0
        %711 = vmatpush.bf16.msra.mxu0 %v666
        %712 = vmatpush.bf16.msra.mxu0 %v663
        %713 = vmatpush.bf16.msra.mxu0 %v660
        %714 = vmatpush.bf16.msra.mxu0 %v657
        %715 = vmatpush.bf16.msra.mxu0 %v654
        %716 = vmatpush.bf16.msra.mxu0 %v651
        %717 = vmatpush.bf16.msra.mxu0 %v648
        %718 = vmatpush.bf16.msra.mxu0 %v645
        %719 = vmatmul.bf16.gmra.mxu0 %v530
        %v720 = vpop.f32.mrf.mxu0
        %v721 = vadd.f32 0.0, %v720
        %v722 = vpop.f32.mrf.mxu0
        %v723 = vadd.f32 0.0, %v722
        %724 = vmatmul.bf16.gmra.mxu0 %v531
        %v725 = vpop.f32.mrf.mxu0
        %v726 = vadd.f32 0.0, %v725
        %v727 = vpop.f32.mrf.mxu0
        %v728 = vadd.f32 0.0, %v727
        %729 = vdwg.mxu0
        %730 = vmatpush.bf16.msra.mxu0 %v667
        %731 = vmatpush.bf16.msra.mxu0 %v664
        %732 = vmatpush.bf16.msra.mxu0 %v661
        %733 = vmatpush.bf16.msra.mxu0 %v658
        %734 = vmatpush.bf16.msra.mxu0 %v655
        %735 = vmatpush.bf16.msra.mxu0 %v652
        %736 = vmatpush.bf16.msra.mxu0 %v649
        %737 = vmatpush.bf16.msra.mxu0 %v646
        %738 = vmatmul.bf16.gmra.mxu0 %v530
        %v739 = vpop.f32.mrf.mxu0
        %v740 = vadd.f32 0.0, %v739
        %v741 = vpop.f32.mrf.mxu0
        %v742 = vadd.f32 0.0, %v741
        %743 = vmatmul.bf16.gmra.mxu0 %v531
        %v744 = vpop.f32.mrf.mxu0
        %v745 = vadd.f32 0.0, %v744
        %v746 = vpop.f32.mrf.mxu0
        %v747 = vadd.f32 0.0, %v746
        %748 = vdwg.mxu0
        %v749 = vpack.c.bf16 %v721, %v702
        %v750 = vpack.c.bf16 %v740, %v740
        %v751 = vpack.c.bf16 %v723, %v704
        %v752 = vpack.c.bf16 %v742, %v742
        %v753 = vpack.c.bf16 %v726, %v707
        %v754 = vpack.c.bf16 %v745, %v745
        %v755 = vpack.c.bf16 %v728, %v709
        %v756 = vpack.c.bf16 %v747, %v747
        %v759 = vunpack.c.l.b16 %v749
        %v760 = vunpack.c.l.b16 %v751
        %v761 = vpack.c.b16 %v760, %v759
        %v762 = vunpack.c.h.b16 %v749
        %v763 = vunpack.c.h.b16 %v751
        %v764 = vpack.c.b16 %v763, %v762
        %vm765 = vcmask 261120
        %v767 = vsel %vm765, %v761, 0
        %v770 = vsel %vm765, %v764, 0
        %772 = vmatpush.bf16.xpose.msra.mxu0 0
        %773 = vmatpush.bf16.xpose.msra.mxu0 0
        %774 = vmatpush.bf16.xpose.msra.mxu0 0
        %775 = vmatpush.bf16.xpose.msra.mxu0 0
        %776 = vmatpush.bf16.xpose.msra.mxu0 0
        %777 = vmatpush.bf16.xpose.msra.mxu0 0
        %778 = vmatpush.bf16.xpose.msra.mxu0 0
        %779 = vmatpush.bf16.xpose.msra.mxu0 %v770
        %780 = vmatmul.bf16.gmra.mxu0 %v767
        %v781 = vpop.f32.mrf.mxu0
        %v782 = vadd.f32 0.0, %v781
        %v783 = vpop.f32.mrf.mxu0
        %v784 = vadd.f32 0.0, %v783
        %785 = vdwg.mxu0
        %v786 = vmul.f32 %v782, 0.17677669
        %v787 = vmul.f32 %v784, 0.17677669
        %vm788 = vcmask 130048
        %v789 = vsel %vm788, %v786, -inf
        %790 = vmax.xlane.f32.xlu0 %v789
        %v791 = vpop.xlane.xlu0 %790
        %v792 = vsel %vm788, %v787, -inf
        %793 = vmax.xlane.f32.xlu0 %v792
        %v794 = vpop.xlane.xlu0 %793
        %v795 = vsub.f32 %v786, %v791
        %v796 = vsub.f32 %v787, %v794
        %v797 = vmul.f32 %v795, 1.442695
        %v798 = vpow.pop %v797
        %v799 = vmul.f32 %v796, 1.442695
        %v800 = vpow.pop %v799
        %v801 = vsel %vm788, %v798, 0.0
        %802 = vadd.xlane.f32.xlu0 %v801
        %v803 = vpop.xlane.xlu0 %802
        %v804 = vsel %vm788, %v800, 0.0
        %805 = vadd.xlane.f32.xlu0 %v804
        %v806 = vpop.xlane.xlu0 %805
        %v807 = vrcp.pop %v803
        %v808 = vrcp.pop %v806
        %v809 = vmul.f32 %v798, %v807
        %v810 = vmul.f32 %v800, %v808
        %811 = vst.msk [vmem:[%s418] sm:$0xff] %vm788, %v809
        %812 = vst.msk [vmem:[%s418 + $0x8] sm:$0xff] %vm788, %v810
        %v813 = vpack.c.bf16 %v810, %v809
        %v816 = vunpack.c.l.b16 %v750
        %v817 = vunpack.c.l.b16 %v752
        %v818 = vpack.c.b16 %v817, %v816
        %v821 = vsel %vm788, %v813, 0
        %823 = vmatpush.bf16.msra.mxu0 0
        %824 = vmatpush.bf16.msra.mxu0 0
        %825 = vmatpush.bf16.msra.mxu0 0
        %826 = vmatpush.bf16.msra.mxu0 0
        %827 = vmatpush.bf16.msra.mxu0 0
        %828 = vmatpush.bf16.msra.mxu0 0
        %829 = vmatpush.bf16.msra.mxu0 0
        %830 = vmatpush.bf16.msra.mxu0 %v818
        %831 = vmatmul.bf16.gmra.mxu0 %v821
        %v832 = vpop.f32.mrf.mxu0
        %v833 = vadd.f32 0.0, %v832
        %v834 = vpop.f32.mrf.mxu0
        %v835 = vadd.f32 0.0, %v834
        %836 = vdwg.mxu0
        %v837 = vpack.c.bf16 %v835, %v833
        %v838 = vld [vmem:[#allocation8] sm:$0xf]
        %v839 = vld [vmem:[#allocation8 + $0x4] sm:$0xf]
        %v840 = vld [vmem:[#allocation8 + $0x8] sm:$0xf]
        %v841 = vld [vmem:[#allocation8 + $0xc] sm:$0xf]
        %842 = vrot.lane.b32.xlu0 %v761, 96
        %v843 = vpop.permute.xlu0 %842
        %844 = vrot.lane.b32.xlu0 %v764, 96
        %v845 = vpop.permute.xlu0 %844
        %v847 = vsel %vm765, %v843, 0
        %v850 = vsel %vm765, %v845, 0
        %852 = vmatpush.bf16.xpose.msra.mxu0 0
        %853 = vmatpush.bf16.xpose.msra.mxu0 0
        %854 = vmatpush.bf16.xpose.msra.mxu0 0
        %855 = vmatpush.bf16.xpose.msra.mxu0 0
        %856 = vmatpush.bf16.xpose.msra.mxu0 0
        %857 = vmatpush.bf16.xpose.msra.mxu0 0
        %858 = vmatpush.bf16.xpose.msra.mxu0 0
        %859 = vmatpush.bf16.xpose.msra.mxu0 %v850
        %860 = vmatmul.bf16.gmra.mxu0 %v847
        %v861 = vpop.f32.mrf.mxu0
        %v862 = vadd.f32 0.0, %v861
        %v863 = vpop.f32.mrf.mxu0
        %v864 = vadd.f32 0.0, %v863
        %865 = vdwg.mxu0
        %v866 = vmul.f32 %v862, 0.17677669
        %v867 = vmul.f32 %v864, 0.17677669
        %v868 = vsel %vm788, %v866, -inf
        %869 = vmax.xlane.f32.xlu0 %v868
        %v870 = vpop.xlane.xlu0 %869
        %v871 = vsel %vm788, %v867, -inf
        %872 = vmax.xlane.f32.xlu0 %v871
        %v873 = vpop.xlane.xlu0 %872
        %v874 = vsub.f32 %v866, %v870
        %v875 = vsub.f32 %v867, %v873
        %v876 = vmul.f32 %v874, 1.442695
        %v877 = vpow.pop %v876
        %v878 = vmul.f32 %v875, 1.442695
        %v879 = vpow.pop %v878
        %v880 = vsel %vm788, %v877, 0.0
        %881 = vadd.xlane.f32.xlu0 %v880
        %v882 = vpop.xlane.xlu0 %881
        %v883 = vsel %vm788, %v879, 0.0
        %884 = vadd.xlane.f32.xlu0 %v883
        %v885 = vpop.xlane.xlu0 %884
        %v886 = vrcp.pop %v882
        %v887 = vrcp.pop %v885
        %v888 = vmul.f32 %v877, %v886
        %v889 = vmul.f32 %v879, %v887
        %s890 = scalar_lea.vmem %s418, 16 [#allocation14]
        %891 = vst.msk [vmem:[%s890] sm:$0xff] %vm788, %v888
        %892 = vst.msk [vmem:[%s890 + $0x8] sm:$0xff] %vm788, %v889
        %v893 = vpack.c.bf16 %v889, %v888
        %894 = vrot.lane.b32.xlu0 %v818, 96
        %v895 = vpop.permute.xlu0 %894
        %v898 = vsel %vm788, %v893, 0
        %900 = vmatpush.bf16.msra.mxu0 0
        %901 = vmatpush.bf16.msra.mxu0 0
        %902 = vmatpush.bf16.msra.mxu0 0
        %903 = vmatpush.bf16.msra.mxu0 0
        %904 = vmatpush.bf16.msra.mxu0 0
        %905 = vmatpush.bf16.msra.mxu0 0
        %906 = vmatpush.bf16.msra.mxu0 0
        %907 = vmatpush.bf16.msra.mxu0 %v895
        %908 = vmatmul.bf16.gmra.mxu0 %v898
        %v909 = vpop.f32.mrf.mxu0
        %v910 = vadd.f32 0.0, %v909
        %v911 = vpop.f32.mrf.mxu0
        %v912 = vadd.f32 0.0, %v911
        %913 = vdwg.mxu0
        %v914 = vpack.c.bf16 %v912, %v910
        %s915 = scalar_lea.vmem [#allocation8], 16
        %v916 = vld [vmem:[%s915] sm:$0xf]
        %v917 = vld [vmem:[%s915 + $0x4] sm:$0xf]
        %v918 = vld [vmem:[%s915 + $0x8] sm:$0xf]
        %v919 = vld [vmem:[%s915 + $0xc] sm:$0xf]
        %v924 = vunpack.c.l.b16 %v916
        %v925 = vunpack.c.l.b16 %v917
        %v926 = vunpack.c.l.b16 %v918
        %v927 = vunpack.c.l.b16 %v919
        %v928 = vpack.c.b16 %v925, %v924
        %v929 = vpack.c.b16 %v927, %v926
        %v933 = vsel %vm765, %v914, 0
        %935 = vmatpush.bf16.msra.mxu0 0
        %936 = vmatpush.bf16.msra.mxu0 0
        %937 = vmatpush.bf16.msra.mxu0 0
        %938 = vmatpush.bf16.msra.mxu0 0
        %939 = vmatpush.bf16.msra.mxu0 0
        %940 = vmatpush.bf16.msra.mxu0 0
        %941 = vmatpush.bf16.msra.mxu0 %v929
        %942 = vmatpush.bf16.msra.mxu0 %v928
        %943 = vmatmul.bf16.gmra.mxu0 %v933
        %v944 = vpop.f32.mrf.mxu0
        %v945 = vadd.f32 0.0, %v944
        %v946 = vpop.f32.mrf.mxu0
        %v947 = vadd.f32 0.0, %v946
        %948 = vdwg.mxu0
        %v953 = vunpack.c.l.b16 %v838
        %v954 = vunpack.c.l.b16 %v839
        %v955 = vunpack.c.l.b16 %v840
        %v956 = vunpack.c.l.b16 %v841
        %v957 = vpack.c.b16 %v954, %v953
        %v958 = vpack.c.b16 %v956, %v955
        %v962 = vsel %vm765, %v837, 0
        %964 = vmatpush.bf16.msra.mxu0 0
        %965 = vmatpush.bf16.msra.mxu0 0
        %966 = vmatpush.bf16.msra.mxu0 0
        %967 = vmatpush.bf16.msra.mxu0 0
        %968 = vmatpush.bf16.msra.mxu0 0
        %969 = vmatpush.bf16.msra.mxu0 0
        %970 = vmatpush.bf16.msra.mxu0 %v958
        %971 = vmatpush.bf16.msra.mxu0 %v957
        %972 = vmatmul.bf16.gmra.mxu0 %v962
        %v973 = vpop.f32.mrf.mxu0
        %v974 = vadd.f32 %v945, %v973
        %v975 = vpop.f32.mrf.mxu0
        %v976 = vadd.f32 %v947, %v975
        %977 = vdwg.mxu0
        %978 = vrot.lane.b32.xlu0 %v761, 64
        %v979 = vpop.permute.xlu0 %978
        %980 = vrot.lane.b32.xlu0 %v764, 64
        %v981 = vpop.permute.xlu0 %980
        %v983 = vsel %vm765, %v979, 0
        %v986 = vsel %vm765, %v981, 0
        %988 = vmatpush.bf16.xpose.msra.mxu0 0
        %989 = vmatpush.bf16.xpose.msra.mxu0 0
        %990 = vmatpush.bf16.xpose.msra.mxu0 0
        %991 = vmatpush.bf16.xpose.msra.mxu0 0
        %992 = vmatpush.bf16.xpose.msra.mxu0 0
        %993 = vmatpush.bf16.xpose.msra.mxu0 0
        %994 = vmatpush.bf16.xpose.msra.mxu0 0
        %995 = vmatpush.bf16.xpose.msra.mxu0 %v986
        %996 = vmatmul.bf16.gmra.mxu0 %v983
        %v997 = vpop.f32.mrf.mxu0
        %v998 = vadd.f32 0.0, %v997
        %v999 = vpop.f32.mrf.mxu0
        %v1000 = vadd.f32 0.0, %v999
        %1001 = vdwg.mxu0
        %v1002 = vmul.f32 %v998, 0.17677669
        %v1003 = vmul.f32 %v1000, 0.17677669
        %v1004 = vsel %vm788, %v1002, -inf
        %1005 = vmax.xlane.f32.xlu0 %v1004
        %v1006 = vpop.xlane.xlu0 %1005
        %v1007 = vsel %vm788, %v1003, -inf
        %1008 = vmax.xlane.f32.xlu0 %v1007
        %v1009 = vpop.xlane.xlu0 %1008
        %v1010 = vsub.f32 %v1002, %v1006
        %v1011 = vsub.f32 %v1003, %v1009
        %v1012 = vmul.f32 %v1010, 1.442695
        %v1013 = vpow.pop %v1012
        %v1014 = vmul.f32 %v1011, 1.442695
        %v1015 = vpow.pop %v1014
        %v1016 = vsel %vm788, %v1013, 0.0
        %1017 = vadd.xlane.f32.xlu0 %v1016
        %v1018 = vpop.xlane.xlu0 %1017
        %v1019 = vsel %vm788, %v1015, 0.0
        %1020 = vadd.xlane.f32.xlu0 %v1019
        %v1021 = vpop.xlane.xlu0 %1020
        %v1022 = vrcp.pop %v1018
        %v1023 = vrcp.pop %v1021
        %v1024 = vmul.f32 %v1013, %v1022
        %v1025 = vmul.f32 %v1015, %v1023
        %s1026 = scalar_lea.vmem %s418, 32 [#allocation14]
        %1027 = vst.msk [vmem:[%s1026] sm:$0xff] %vm788, %v1024
        %1028 = vst.msk [vmem:[%s1026 + $0x8] sm:$0xff] %vm788, %v1025
        %v1029 = vpack.c.bf16 %v1025, %v1024
        %1030 = vrot.lane.b32.xlu0 %v818, 64
        %v1031 = vpop.permute.xlu0 %1030
        %v1034 = vsel %vm788, %v1029, 0
        %1036 = vmatpush.bf16.msra.mxu0 0
        %1037 = vmatpush.bf16.msra.mxu0 0
        %1038 = vmatpush.bf16.msra.mxu0 0
        %1039 = vmatpush.bf16.msra.mxu0 0
        %1040 = vmatpush.bf16.msra.mxu0 0
        %1041 = vmatpush.bf16.msra.mxu0 0
        %1042 = vmatpush.bf16.msra.mxu0 0
        %1043 = vmatpush.bf16.msra.mxu0 %v1031
        %1044 = vmatmul.bf16.gmra.mxu0 %v1034
        %v1045 = vpop.f32.mrf.mxu0
        %v1046 = vadd.f32 0.0, %v1045
        %v1047 = vpop.f32.mrf.mxu0
        %v1048 = vadd.f32 0.0, %v1047
        %1049 = vdwg.mxu0
        %v1050 = vpack.c.bf16 %v1048, %v1046
        %s1051 = scalar_lea.vmem [#allocation8], 32
        %v1052 = vld [vmem:[%s1051] sm:$0xf]
        %v1053 = vld [vmem:[%s1051 + $0x4] sm:$0xf]
        %v1054 = vld [vmem:[%s1051 + $0x8] sm:$0xf]
        %v1055 = vld [vmem:[%s1051 + $0xc] sm:$0xf]
        %v1060 = vunpack.c.l.b16 %v1052
        %v1061 = vunpack.c.l.b16 %v1053
        %v1062 = vunpack.c.l.b16 %v1054
        %v1063 = vunpack.c.l.b16 %v1055
        %v1064 = vpack.c.b16 %v1061, %v1060
        %v1065 = vpack.c.b16 %v1063, %v1062
        %v1069 = vsel %vm765, %v1050, 0
        %1071 = vmatpush.bf16.msra.mxu0 0
        %1072 = vmatpush.bf16.msra.mxu0 0
        %1073 = vmatpush.bf16.msra.mxu0 0
        %1074 = vmatpush.bf16.msra.mxu0 0
        %1075 = vmatpush.bf16.msra.mxu0 0
        %1076 = vmatpush.bf16.msra.mxu0 0
        %1077 = vmatpush.bf16.msra.mxu0 %v1065
        %1078 = vmatpush.bf16.msra.mxu0 %v1064
        %1079 = vmatmul.bf16.gmra.mxu0 %v1069
        %v1080 = vpop.f32.mrf.mxu0
        %v1081 = vadd.f32 0.0, %v1080
        %v1082 = vpop.f32.mrf.mxu0
        %v1083 = vadd.f32 0.0, %v1082
        %1084 = vdwg.mxu0
        %v1085 = vadd.f32 %v974, %v1081
        %v1086 = vadd.f32 %v976, %v1083
        %1087 = vrot.lane.b32.xlu0 %v761, 32
        %v1088 = vpop.permute.xlu0 %1087
        %1089 = vrot.lane.b32.xlu0 %v764, 32
        %v1090 = vpop.permute.xlu0 %1089
        %v1092 = vsel %vm765, %v1088, 0
        %v1095 = vsel %vm765, %v1090, 0
        %1097 = vmatpush.bf16.xpose.msra.mxu0 0
        %1098 = vmatpush.bf16.xpose.msra.mxu0 0
        %1099 = vmatpush.bf16.xpose.msra.mxu0 0
        %1100 = vmatpush.bf16.xpose.msra.mxu0 0
        %1101 = vmatpush.bf16.xpose.msra.mxu0 0
        %1102 = vmatpush.bf16.xpose.msra.mxu0 0
        %1103 = vmatpush.bf16.xpose.msra.mxu0 0
        %1104 = vmatpush.bf16.xpose.msra.mxu0 %v1095
        %1105 = vmatmul.bf16.gmra.mxu0 %v1092
        %v1106 = vpop.f32.mrf.mxu0
        %v1107 = vadd.f32 0.0, %v1106
        %v1108 = vpop.f32.mrf.mxu0
        %v1109 = vadd.f32 0.0, %v1108
        %1110 = vdwg.mxu0
        %v1111 = vmul.f32 %v1107, 0.17677669
        %v1112 = vmul.f32 %v1109, 0.17677669
        %v1113 = vsel %vm788, %v1111, -inf
        %1114 = vmax.xlane.f32.xlu0 %v1113
        %v1115 = vpop.xlane.xlu0 %1114
        %v1116 = vsel %vm788, %v1112, -inf
        %1117 = vmax.xlane.f32.xlu0 %v1116
        %v1118 = vpop.xlane.xlu0 %1117
        %v1119 = vsub.f32 %v1111, %v1115
        %v1120 = vsub.f32 %v1112, %v1118
        %v1121 = vmul.f32 %v1119, 1.442695
        %v1122 = vpow.pop %v1121
        %v1123 = vmul.f32 %v1120, 1.442695
        %v1124 = vpow.pop %v1123
        %v1125 = vsel %vm788, %v1122, 0.0
        %1126 = vadd.xlane.f32.xlu0 %v1125
        %v1127 = vpop.xlane.xlu0 %1126
        %v1128 = vsel %vm788, %v1124, 0.0
        %1129 = vadd.xlane.f32.xlu0 %v1128
        %v1130 = vpop.xlane.xlu0 %1129
        %v1131 = vrcp.pop %v1127
        %v1132 = vrcp.pop %v1130
        %v1133 = vmul.f32 %v1122, %v1131
        %v1134 = vmul.f32 %v1124, %v1132
        %s1135 = scalar_lea.vmem %s418, 48 [#allocation14]
        %1136 = vst.msk [vmem:[%s1135] sm:$0xff] %vm788, %v1133
        %1137 = vst.msk [vmem:[%s1135 + $0x8] sm:$0xff] %vm788, %v1134
        %v1138 = vpack.c.bf16 %v1134, %v1133
        %1139 = vrot.lane.b32.xlu0 %v818, 32
        %v1140 = vpop.permute.xlu0 %1139
        %v1143 = vsel %vm788, %v1138, 0
        %1145 = vmatpush.bf16.msra.mxu0 0
        %1146 = vmatpush.bf16.msra.mxu0 0
        %1147 = vmatpush.bf16.msra.mxu0 0
        %1148 = vmatpush.bf16.msra.mxu0 0
        %1149 = vmatpush.bf16.msra.mxu0 0
        %1150 = vmatpush.bf16.msra.mxu0 0
        %1151 = vmatpush.bf16.msra.mxu0 0
        %1152 = vmatpush.bf16.msra.mxu0 %v1140
        %1153 = vmatmul.bf16.gmra.mxu0 %v1143
        %v1154 = vpop.f32.mrf.mxu0
        %v1155 = vadd.f32 0.0, %v1154
        %v1156 = vpop.f32.mrf.mxu0
        %v1157 = vadd.f32 0.0, %v1156
        %1158 = vdwg.mxu0
        %v1159 = vpack.c.bf16 %v1157, %v1155
        %s1160 = scalar_lea.vmem [#allocation8], 48
        %v1161 = vld [vmem:[%s1160] sm:$0xf]
        %v1162 = vld [vmem:[%s1160 + $0x4] sm:$0xf]
        %v1163 = vld [vmem:[%s1160 + $0x8] sm:$0xf]
        %v1164 = vld [vmem:[%s1160 + $0xc] sm:$0xf]
        %v1169 = vunpack.c.l.b16 %v1161
        %v1170 = vunpack.c.l.b16 %v1162
        %v1171 = vunpack.c.l.b16 %v1163
        %v1172 = vunpack.c.l.b16 %v1164
        %v1173 = vpack.c.b16 %v1170, %v1169
        %v1174 = vpack.c.b16 %v1172, %v1171
        %v1178 = vsel %vm765, %v1159, 0
        %1180 = vmatpush.bf16.msra.mxu0 0
        %1181 = vmatpush.bf16.msra.mxu0 0
        %1182 = vmatpush.bf16.msra.mxu0 0
        %1183 = vmatpush.bf16.msra.mxu0 0
        %1184 = vmatpush.bf16.msra.mxu0 0
        %1185 = vmatpush.bf16.msra.mxu0 0
        %1186 = vmatpush.bf16.msra.mxu0 %v1174
        %1187 = vmatpush.bf16.msra.mxu0 %v1173
        %1188 = vmatmul.bf16.gmra.mxu0 %v1178
        %v1189 = vpop.f32.mrf.mxu0
        %v1190 = vadd.f32 0.0, %v1189
        %v1191 = vpop.f32.mrf.mxu0
        %v1192 = vadd.f32 0.0, %v1191
        %1193 = vdwg.mxu0
        %v1194 = vadd.f32 %v1085, %v1190
        %v1195 = vadd.f32 %v1086, %v1192
        %v1198 = vunpack.c.l.b16 %v753
        %v1199 = vunpack.c.l.b16 %v755
        %v1200 = vpack.c.b16 %v1199, %v1198
        %v1201 = vunpack.c.h.b16 %v753
        %v1202 = vunpack.c.h.b16 %v755
        %v1203 = vpack.c.b16 %v1202, %v1201
        %v1205 = vsel %vm765, %v1200, 0
        %v1208 = vsel %vm765, %v1203, 0
        %1210 = vmatpush.bf16.xpose.msra.mxu0 0
        %1211 = vmatpush.bf16.xpose.msra.mxu0 0
        %1212 = vmatpush.bf16.xpose.msra.mxu0 0
        %1213 = vmatpush.bf16.xpose.msra.mxu0 0
        %1214 = vmatpush.bf16.xpose.msra.mxu0 0
        %1215 = vmatpush.bf16.xpose.msra.mxu0 0
        %1216 = vmatpush.bf16.xpose.msra.mxu0 0
        %1217 = vmatpush.bf16.xpose.msra.mxu0 %v1208
        %1218 = vmatmul.bf16.gmra.mxu0 %v1205
        %v1219 = vpop.f32.mrf.mxu0
        %v1220 = vadd.f32 0.0, %v1219
        %v1221 = vpop.f32.mrf.mxu0
        %v1222 = vadd.f32 0.0, %v1221
        %1223 = vdwg.mxu0
        %v1224 = vmul.f32 %v1220, 0.17677669
        %v1225 = vmul.f32 %v1222, 0.17677669
        %v1226 = vsel %vm788, %v1224, -inf
        %1227 = vmax.xlane.f32.xlu0 %v1226
        %v1228 = vpop.xlane.xlu0 %1227
        %v1229 = vsel %vm788, %v1225, -inf
        %1230 = vmax.xlane.f32.xlu0 %v1229
        %v1231 = vpop.xlane.xlu0 %1230
        %v1232 = vsub.f32 %v1224, %v1228
        %v1233 = vsub.f32 %v1225, %v1231
        %v1234 = vmul.f32 %v1232, 1.442695
        %v1235 = vpow.pop %v1234
        %v1236 = vmul.f32 %v1233, 1.442695
        %v1237 = vpow.pop %v1236
        %v1238 = vsel %vm788, %v1235, 0.0
        %1239 = vadd.xlane.f32.xlu0 %v1238
        %v1240 = vpop.xlane.xlu0 %1239
        %v1241 = vsel %vm788, %v1237, 0.0
        %1242 = vadd.xlane.f32.xlu0 %v1241
        %v1243 = vpop.xlane.xlu0 %1242
        %v1244 = vrcp.pop %v1240
        %v1245 = vrcp.pop %v1243
        %v1246 = vmul.f32 %v1235, %v1244
        %v1247 = vmul.f32 %v1237, %v1245
        %s1248 = scalar_lea.vmem %s418, 64 [#allocation14]
        %1249 = vst.msk [vmem:[%s1248] sm:$0xff] %vm788, %v1246
        %1250 = vst.msk [vmem:[%s1248 + $0x8] sm:$0xff] %vm788, %v1247
        %v1251 = vpack.c.bf16 %v1247, %v1246
        %v1254 = vunpack.c.l.b16 %v754
        %v1255 = vunpack.c.l.b16 %v756
        %v1256 = vpack.c.b16 %v1255, %v1254
        %v1259 = vsel %vm788, %v1251, 0
        %1261 = vmatpush.bf16.msra.mxu0 0
        %1262 = vmatpush.bf16.msra.mxu0 0
        %1263 = vmatpush.bf16.msra.mxu0 0
        %1264 = vmatpush.bf16.msra.mxu0 0
        %1265 = vmatpush.bf16.msra.mxu0 0
        %1266 = vmatpush.bf16.msra.mxu0 0
        %1267 = vmatpush.bf16.msra.mxu0 0
        %1268 = vmatpush.bf16.msra.mxu0 %v1256
        %1269 = vmatmul.bf16.gmra.mxu0 %v1259
        %v1270 = vpop.f32.mrf.mxu0
        %v1271 = vadd.f32 0.0, %v1270
        %v1272 = vpop.f32.mrf.mxu0
        %v1273 = vadd.f32 0.0, %v1272
        %1274 = vdwg.mxu0
        %v1275 = vpack.c.bf16 %v1273, %v1271
        %v1276 = vld [vmem:[#allocation8] sm:$0xf]
        %v1277 = vld [vmem:[#allocation8 + $0x4] sm:$0xf]
        %v1278 = vld [vmem:[#allocation8 + $0x8] sm:$0xf]
        %v1279 = vld [vmem:[#allocation8 + $0xc] sm:$0xf]
        %1280 = vrot.lane.b32.xlu0 %v1200, 96
        %v1281 = vpop.permute.xlu0 %1280
        %1282 = vrot.lane.b32.xlu0 %v1203, 96
        %v1283 = vpop.permute.xlu0 %1282
        %v1285 = vsel %vm765, %v1281, 0
        %v1288 = vsel %vm765, %v1283, 0
        %1290 = vmatpush.bf16.xpose.msra.mxu0 0
        %1291 = vmatpush.bf16.xpose.msra.mxu0 0
        %1292 = vmatpush.bf16.xpose.msra.mxu0 0
        %1293 = vmatpush.bf16.xpose.msra.mxu0 0
        %1294 = vmatpush.bf16.xpose.msra.mxu0 0
        %1295 = vmatpush.bf16.xpose.msra.mxu0 0
        %1296 = vmatpush.bf16.xpose.msra.mxu0 0
        %1297 = vmatpush.bf16.xpose.msra.mxu0 %v1288
        %1298 = vmatmul.bf16.gmra.mxu0 %v1285
        %v1299 = vpop.f32.mrf.mxu0
        %v1300 = vadd.f32 0.0, %v1299
        %v1301 = vpop.f32.mrf.mxu0
        %v1302 = vadd.f32 0.0, %v1301
        %1303 = vdwg.mxu0
        %v1304 = vmul.f32 %v1300, 0.17677669
        %v1305 = vmul.f32 %v1302, 0.17677669
        %v1306 = vsel %vm788, %v1304, -inf
        %1307 = vmax.xlane.f32.xlu0 %v1306
        %v1308 = vpop.xlane.xlu0 %1307
        %v1309 = vsel %vm788, %v1305, -inf
        %1310 = vmax.xlane.f32.xlu0 %v1309
        %v1311 = vpop.xlane.xlu0 %1310
        %v1312 = vsub.f32 %v1304, %v1308
        %v1313 = vsub.f32 %v1305, %v1311
        %v1314 = vmul.f32 %v1312, 1.442695
        %v1315 = vpow.pop %v1314
        %v1316 = vmul.f32 %v1313, 1.442695
        %v1317 = vpow.pop %v1316
        %v1318 = vsel %vm788, %v1315, 0.0
        %1319 = vadd.xlane.f32.xlu0 %v1318
        %v1320 = vpop.xlane.xlu0 %1319
        %v1321 = vsel %vm788, %v1317, 0.0
        %1322 = vadd.xlane.f32.xlu0 %v1321
        %v1323 = vpop.xlane.xlu0 %1322
        %v1324 = vrcp.pop %v1320
        %v1325 = vrcp.pop %v1323
        %v1326 = vmul.f32 %v1315, %v1324
        %v1327 = vmul.f32 %v1317, %v1325
        %s1328 = scalar_lea.vmem %s418, 80 [#allocation14]
        %1329 = vst.msk [vmem:[%s1328] sm:$0xff] %vm788, %v1326
        %1330 = vst.msk [vmem:[%s1328 + $0x8] sm:$0xff] %vm788, %v1327
        %v1331 = vpack.c.bf16 %v1327, %v1326
        %1332 = vrot.lane.b32.xlu0 %v1256, 96
        %v1333 = vpop.permute.xlu0 %1332
        %v1336 = vsel %vm788, %v1331, 0
        %1338 = vmatpush.bf16.msra.mxu0 0
        %1339 = vmatpush.bf16.msra.mxu0 0
        %1340 = vmatpush.bf16.msra.mxu0 0
        %1341 = vmatpush.bf16.msra.mxu0 0
        %1342 = vmatpush.bf16.msra.mxu0 0
        %1343 = vmatpush.bf16.msra.mxu0 0
        %1344 = vmatpush.bf16.msra.mxu0 0
        %1345 = vmatpush.bf16.msra.mxu0 %v1333
        %1346 = vmatmul.bf16.gmra.mxu0 %v1336
        %v1347 = vpop.f32.mrf.mxu0
        %v1348 = vadd.f32 0.0, %v1347
        %v1349 = vpop.f32.mrf.mxu0
        %v1350 = vadd.f32 0.0, %v1349
        %1351 = vdwg.mxu0
        %v1352 = vpack.c.bf16 %v1350, %v1348
        %v1353 = vld [vmem:[%s915] sm:$0xf]
        %v1354 = vld [vmem:[%s915 + $0x4] sm:$0xf]
        %v1355 = vld [vmem:[%s915 + $0x8] sm:$0xf]
        %v1356 = vld [vmem:[%s915 + $0xc] sm:$0xf]
        %v1361 = vunpack.c.l.b16 %v1353
        %v1362 = vunpack.c.l.b16 %v1354
        %v1363 = vunpack.c.l.b16 %v1355
        %v1364 = vunpack.c.l.b16 %v1356
        %v1365 = vpack.c.b16 %v1362, %v1361
        %v1366 = vpack.c.b16 %v1364, %v1363
        %v1370 = vsel %vm765, %v1352, 0
        %1372 = vmatpush.bf16.msra.mxu0 0
        %1373 = vmatpush.bf16.msra.mxu0 0
        %1374 = vmatpush.bf16.msra.mxu0 0
        %1375 = vmatpush.bf16.msra.mxu0 0
        %1376 = vmatpush.bf16.msra.mxu0 0
        %1377 = vmatpush.bf16.msra.mxu0 0
        %1378 = vmatpush.bf16.msra.mxu0 %v1366
        %1379 = vmatpush.bf16.msra.mxu0 %v1365
        %1380 = vmatmul.bf16.gmra.mxu0 %v1370
        %v1381 = vpop.f32.mrf.mxu0
        %v1382 = vadd.f32 0.0, %v1381
        %v1383 = vpop.f32.mrf.mxu0
        %v1384 = vadd.f32 0.0, %v1383
        %1385 = vdwg.mxu0
        %v1390 = vunpack.c.l.b16 %v1276
        %v1391 = vunpack.c.l.b16 %v1277
        %v1392 = vunpack.c.l.b16 %v1278
        %v1393 = vunpack.c.l.b16 %v1279
        %v1394 = vpack.c.b16 %v1391, %v1390
        %v1395 = vpack.c.b16 %v1393, %v1392
        %v1399 = vsel %vm765, %v1275, 0
        %1401 = vmatpush.bf16.msra.mxu0 0
        %1402 = vmatpush.bf16.msra.mxu0 0
        %1403 = vmatpush.bf16.msra.mxu0 0
        %1404 = vmatpush.bf16.msra.mxu0 0
        %1405 = vmatpush.bf16.msra.mxu0 0
        %1406 = vmatpush.bf16.msra.mxu0 0
        %1407 = vmatpush.bf16.msra.mxu0 %v1395
        %1408 = vmatpush.bf16.msra.mxu0 %v1394
        %1409 = vmatmul.bf16.gmra.mxu0 %v1399
        %v1410 = vpop.f32.mrf.mxu0
        %v1411 = vadd.f32 %v1382, %v1410
        %v1412 = vpop.f32.mrf.mxu0
        %v1413 = vadd.f32 %v1384, %v1412
        %1414 = vdwg.mxu0
        %1415 = vrot.lane.b32.xlu0 %v1200, 64
        %v1416 = vpop.permute.xlu0 %1415
        %1417 = vrot.lane.b32.xlu0 %v1203, 64
        %v1418 = vpop.permute.xlu0 %1417
        %v1420 = vsel %vm765, %v1416, 0
        %v1423 = vsel %vm765, %v1418, 0
        %1425 = vmatpush.bf16.xpose.msra.mxu0 0
        %1426 = vmatpush.bf16.xpose.msra.mxu0 0
        %1427 = vmatpush.bf16.xpose.msra.mxu0 0
        %1428 = vmatpush.bf16.xpose.msra.mxu0 0
        %1429 = vmatpush.bf16.xpose.msra.mxu0 0
        %1430 = vmatpush.bf16.xpose.msra.mxu0 0
        %1431 = vmatpush.bf16.xpose.msra.mxu0 0
        %1432 = vmatpush.bf16.xpose.msra.mxu0 %v1423
        %1433 = vmatmul.bf16.gmra.mxu0 %v1420
        %v1434 = vpop.f32.mrf.mxu0
        %v1435 = vadd.f32 0.0, %v1434
        %v1436 = vpop.f32.mrf.mxu0
        %v1437 = vadd.f32 0.0, %v1436
        %1438 = vdwg.mxu0
        %v1439 = vmul.f32 %v1435, 0.17677669
        %v1440 = vmul.f32 %v1437, 0.17677669
        %v1441 = vsel %vm788, %v1439, -inf
        %1442 = vmax.xlane.f32.xlu0 %v1441
        %v1443 = vpop.xlane.xlu0 %1442
        %v1444 = vsel %vm788, %v1440, -inf
        %1445 = vmax.xlane.f32.xlu0 %v1444
        %v1446 = vpop.xlane.xlu0 %1445
        %v1447 = vsub.f32 %v1439, %v1443
        %v1448 = vsub.f32 %v1440, %v1446
        %v1449 = vmul.f32 %v1447, 1.442695
        %v1450 = vpow.pop %v1449
        %v1451 = vmul.f32 %v1448, 1.442695
        %v1452 = vpow.pop %v1451
        %v1453 = vsel %vm788, %v1450, 0.0
        %1454 = vadd.xlane.f32.xlu0 %v1453
        %v1455 = vpop.xlane.xlu0 %1454
        %v1456 = vsel %vm788, %v1452, 0.0
        %1457 = vadd.xlane.f32.xlu0 %v1456
        %v1458 = vpop.xlane.xlu0 %1457
        %v1459 = vrcp.pop %v1455
        %v1460 = vrcp.pop %v1458
        %v1461 = vmul.f32 %v1450, %v1459
        %v1462 = vmul.f32 %v1452, %v1460
        %s1463 = scalar_lea.vmem %s418, 96 [#allocation14]
        %1464 = vst.msk [vmem:[%s1463] sm:$0xff] %vm788, %v1461
        %1465 = vst.msk [vmem:[%s1463 + $0x8] sm:$0xff] %vm788, %v1462
        %v1466 = vpack.c.bf16 %v1462, %v1461
        %1467 = vrot.lane.b32.xlu0 %v1256, 64
        %v1468 = vpop.permute.xlu0 %1467
        %v1471 = vsel %vm788, %v1466, 0
        %1473 = vmatpush.bf16.msra.mxu0 0
        %1474 = vmatpush.bf16.msra.mxu0 0
        %1475 = vmatpush.bf16.msra.mxu0 0
        %1476 = vmatpush.bf16.msra.mxu0 0
        %1477 = vmatpush.bf16.msra.mxu0 0
        %1478 = vmatpush.bf16.msra.mxu0 0
        %1479 = vmatpush.bf16.msra.mxu0 0
        %1480 = vmatpush.bf16.msra.mxu0 %v1468
        %1481 = vmatmul.bf16.gmra.mxu0 %v1471
        %v1482 = vpop.f32.mrf.mxu0
        %v1483 = vadd.f32 0.0, %v1482
        %v1484 = vpop.f32.mrf.mxu0
        %v1485 = vadd.f32 0.0, %v1484
        %1486 = vdwg.mxu0
        %v1487 = vpack.c.bf16 %v1485, %v1483
        %v1488 = vld [vmem:[%s1051] sm:$0xf]
        %v1489 = vld [vmem:[%s1051 + $0x4] sm:$0xf]
        %v1490 = vld [vmem:[%s1051 + $0x8] sm:$0xf]
        %v1491 = vld [vmem:[%s1051 + $0xc] sm:$0xf]
        %v1496 = vunpack.c.l.b16 %v1488
        %v1497 = vunpack.c.l.b16 %v1489
        %v1498 = vunpack.c.l.b16 %v1490
        %v1499 = vunpack.c.l.b16 %v1491
        %v1500 = vpack.c.b16 %v1497, %v1496
        %v1501 = vpack.c.b16 %v1499, %v1498
        %v1505 = vsel %vm765, %v1487, 0
        %1507 = vmatpush.bf16.msra.mxu0 0
        %1508 = vmatpush.bf16.msra.mxu0 0
        %1509 = vmatpush.bf16.msra.mxu0 0
        %1510 = vmatpush.bf16.msra.mxu0 0
        %1511 = vmatpush.bf16.msra.mxu0 0
        %1512 = vmatpush.bf16.msra.mxu0 0
        %1513 = vmatpush.bf16.msra.mxu0 %v1501
        %1514 = vmatpush.bf16.msra.mxu0 %v1500
        %1515 = vmatmul.bf16.gmra.mxu0 %v1505
        %v1516 = vpop.f32.mrf.mxu0
        %v1517 = vadd.f32 0.0, %v1516
        %v1518 = vpop.f32.mrf.mxu0
        %v1519 = vadd.f32 0.0, %v1518
        %1520 = vdwg.mxu0
        %v1521 = vadd.f32 %v1411, %v1517
        %v1522 = vadd.f32 %v1413, %v1519
        %1523 = vrot.lane.b32.xlu0 %v1200, 32
        %v1524 = vpop.permute.xlu0 %1523
        %1525 = vrot.lane.b32.xlu0 %v1203, 32
        %v1526 = vpop.permute.xlu0 %1525
        %v1528 = vsel %vm765, %v1524, 0
        %v1531 = vsel %vm765, %v1526, 0
        %1533 = vmatpush.bf16.xpose.msra.mxu0 0
        %1534 = vmatpush.bf16.xpose.msra.mxu0 0
        %1535 = vmatpush.bf16.xpose.msra.mxu0 0
        %1536 = vmatpush.bf16.xpose.msra.mxu0 0
        %1537 = vmatpush.bf16.xpose.msra.mxu0 0
        %1538 = vmatpush.bf16.xpose.msra.mxu0 0
        %1539 = vmatpush.bf16.xpose.msra.mxu0 0
        %1540 = vmatpush.bf16.xpose.msra.mxu0 %v1531
        %1541 = vmatmul.bf16.gmra.mxu0 %v1528
        %v1542 = vpop.f32.mrf.mxu0
        %v1543 = vadd.f32 0.0, %v1542
        %v1544 = vpop.f32.mrf.mxu0
        %v1545 = vadd.f32 0.0, %v1544
        %1546 = vdwg.mxu0
        %v1547 = vmul.f32 %v1543, 0.17677669
        %v1548 = vmul.f32 %v1545, 0.17677669
        %v1549 = vsel %vm788, %v1547, -inf
        %1550 = vmax.xlane.f32.xlu0 %v1549
        %v1551 = vpop.xlane.xlu0 %1550
        %v1552 = vsel %vm788, %v1548, -inf
        %1553 = vmax.xlane.f32.xlu0 %v1552
        %v1554 = vpop.xlane.xlu0 %1553
        %v1555 = vsub.f32 %v1547, %v1551
        %v1556 = vsub.f32 %v1548, %v1554
        %v1557 = vmul.f32 %v1555, 1.442695
        %v1558 = vpow.pop %v1557
        %v1559 = vmul.f32 %v1556, 1.442695
        %v1560 = vpow.pop %v1559
        %v1561 = vsel %vm788, %v1558, 0.0
        %1562 = vadd.xlane.f32.xlu0 %v1561
        %v1563 = vpop.xlane.xlu0 %1562
        %v1564 = vsel %vm788, %v1560, 0.0
        %1565 = vadd.xlane.f32.xlu0 %v1564
        %v1566 = vpop.xlane.xlu0 %1565
        %v1567 = vrcp.pop %v1563
        %v1568 = vrcp.pop %v1566
        %v1569 = vmul.f32 %v1558, %v1567
        %v1570 = vmul.f32 %v1560, %v1568
        %s1571 = scalar_lea.vmem %s418, 112 [#allocation14]
        %1572 = vst.msk [vmem:[%s1571] sm:$0xff] %vm788, %v1569
        %1573 = vst.msk [vmem:[%s1571 + $0x8] sm:$0xff] %vm788, %v1570
        %v1574 = vpack.c.bf16 %v1570, %v1569
        %1575 = vrot.lane.b32.xlu0 %v1256, 32
        %v1576 = vpop.permute.xlu0 %1575
        %v1579 = vsel %vm788, %v1574, 0
        %1581 = vmatpush.bf16.msra.mxu0 0
        %1582 = vmatpush.bf16.msra.mxu0 0
        %1583 = vmatpush.bf16.msra.mxu0 0
        %1584 = vmatpush.bf16.msra.mxu0 0
        %1585 = vmatpush.bf16.msra.mxu0 0
        %1586 = vmatpush.bf16.msra.mxu0 0
        %1587 = vmatpush.bf16.msra.mxu0 0
        %1588 = vmatpush.bf16.msra.mxu0 %v1576
        %1589 = vmatmul.bf16.gmra.mxu0 %v1579
        %v1590 = vpop.f32.mrf.mxu0
        %v1591 = vadd.f32 0.0, %v1590
        %v1592 = vpop.f32.mrf.mxu0
        %v1593 = vadd.f32 0.0, %v1592
        %1594 = vdwg.mxu0
        %v1595 = vpack.c.bf16 %v1593, %v1591
        %v1596 = vld [vmem:[%s1160] sm:$0xf]
        %v1597 = vld [vmem:[%s1160 + $0x4] sm:$0xf]
        %v1598 = vld [vmem:[%s1160 + $0x8] sm:$0xf]
        %v1599 = vld [vmem:[%s1160 + $0xc] sm:$0xf]
        %v1604 = vunpack.c.l.b16 %v1596
        %v1605 = vunpack.c.l.b16 %v1597
        %v1606 = vunpack.c.l.b16 %v1598
        %v1607 = vunpack.c.l.b16 %v1599
        %v1608 = vpack.c.b16 %v1605, %v1604
        %v1609 = vpack.c.b16 %v1607, %v1606
        %v1613 = vsel %vm765, %v1595, 0
        %1615 = vmatpush.bf16.msra.mxu0 0
        %1616 = vmatpush.bf16.msra.mxu0 0
        %1617 = vmatpush.bf16.msra.mxu0 0
        %1618 = vmatpush.bf16.msra.mxu0 0
        %1619 = vmatpush.bf16.msra.mxu0 0
        %1620 = vmatpush.bf16.msra.mxu0 0
        %1621 = vmatpush.bf16.msra.mxu0 %v1609
        %1622 = vmatpush.bf16.msra.mxu0 %v1608
        %1623 = vmatmul.bf16.gmra.mxu0 %v1613
        %v1624 = vpop.f32.mrf.mxu0
        %v1625 = vadd.f32 0.0, %v1624
        %v1626 = vpop.f32.mrf.mxu0
        %v1627 = vadd.f32 0.0, %v1626
        %1628 = vdwg.mxu0
        %v1629 = vadd.f32 %v1521, %v1625
        %v1630 = vadd.f32 %v1522, %v1627
        %v1631 = vperm.slane %v431, 0
        %v1632 = vadd.f32 %v1194, %v1631
        %v1633 = vadd.f32 %v1195, %v1631
        %v1634 = vadd.f32 %v1629, %v1631
        %v1635 = vadd.f32 %v1630, %v1631
        %v1636 = vadd.f32 %v423, %v1632
        %v1637 = vadd.f32 %v424, %v1633
        %v1638 = vadd.f32 %v425, %v1634
        %v1639 = vadd.f32 %v426, %v1635
        %v1640 = vmul.f32 %v1636, 0.70710677
        %v1641 = vmul.f32 %v1637, 0.70710677
        %v1642 = vmul.f32 %v1638, 0.70710677
        %v1643 = vmul.f32 %v1639, 0.70710677
        %1644 = vadd.xlane.f32.xlu0 %v1640
        %v1645 = vpop.xlane.xlu0 %1644
        %1646 = vadd.xlane.f32.xlu0 %v1641
        %v1647 = vpop.xlane.xlu0 %1646
        %1648 = vadd.xlane.f32.xlu0 %v1642
        %v1649 = vpop.xlane.xlu0 %1648
        %1650 = vadd.xlane.f32.xlu0 %v1643
        %v1651 = vpop.xlane.xlu0 %1650
        %v1652 = vmul.f32 %v1645, %v447
        %v1653 = vmul.f32 %v1647, %v447
        %v1654 = vmul.f32 %v1649, %v447
        %v1655 = vmul.f32 %v1651, %v447
        %v1656 = vsub.f32 %v1640, %v1652
        %v1657 = vsub.f32 %v1641, %v1653
        %v1658 = vsub.f32 %v1642, %v1654
        %v1659 = vsub.f32 %v1643, %v1655
        %v1660 = vmul.f32 %v1656, %v1656
        %v1661 = vmul.f32 %v1657, %v1657
        %v1662 = vmul.f32 %v1658, %v1658
        %v1663 = vmul.f32 %v1659, %v1659
        %1664 = vadd.xlane.f32.xlu0 %v1660
        %v1665 = vpop.xlane.xlu0 %1664
        %1666 = vadd.xlane.f32.xlu0 %v1661
        %v1667 = vpop.xlane.xlu0 %1666
        %1668 = vadd.xlane.f32.xlu0 %v1662
        %v1669 = vpop.xlane.xlu0 %1668
        %1670 = vadd.xlane.f32.xlu0 %v1663
        %v1671 = vpop.xlane.xlu0 %1670
        %v1672 = vmul.f32 %v1665, %v447
        %v1673 = vmul.f32 %v1667, %v447
        %v1674 = vmul.f32 %v1669, %v447
        %v1675 = vmul.f32 %v1671, %v447
        %v1676 = vadd.f32 %v1672, 1e-05
        %v1677 = vadd.f32 %v1673, 1e-05
        %v1678 = vadd.f32 %v1674, 1e-05
        %v1679 = vadd.f32 %v1675, 1e-05
        %v1680 = vrsqrt.pop %v1676
        %v1681 = vmul.f32 %v1680, %v1676
        %v1682 = vmul.f32 %v1681, %v1680
        %v1683 = vmul.f32 0.5, %v1682
        %v1684 = vsub.f32 1.5, %v1683
        %v1685 = vmul.f32 %v1680, %v1684
        %vm1686 = vweird.f32 %v1676
        %vm1687 = vweird.f32 %v1680
        %vm1688 = vmor %vm1686, %vm1687
        %v1689 = vsel %vm1688, %v1680, %v1685
        %v1690 = vrsqrt.pop %v1677
        %v1691 = vmul.f32 %v1690, %v1677
        %v1692 = vmul.f32 %v1691, %v1690
        %v1693 = vmul.f32 0.5, %v1692
        %v1694 = vsub.f32 1.5, %v1693
        %v1695 = vmul.f32 %v1690, %v1694
        %vm1696 = vweird.f32 %v1677
        %vm1697 = vweird.f32 %v1690
        %vm1698 = vmor %vm1696, %vm1697
        %v1699 = vsel %vm1698, %v1690, %v1695
        %v1700 = vrsqrt.pop %v1678
        %v1701 = vmul.f32 %v1700, %v1678
        %v1702 = vmul.f32 %v1701, %v1700
        %v1703 = vmul.f32 0.5, %v1702
        %v1704 = vsub.f32 1.5, %v1703
        %v1705 = vmul.f32 %v1700, %v1704
        %vm1706 = vweird.f32 %v1678
        %vm1707 = vweird.f32 %v1700
        %vm1708 = vmor %vm1706, %vm1707
        %v1709 = vsel %vm1708, %v1700, %v1705
        %v1710 = vrsqrt.pop %v1679
        %v1711 = vmul.f32 %v1710, %v1679
        %v1712 = vmul.f32 %v1711, %v1710
        %v1713 = vmul.f32 0.5, %v1712
        %v1714 = vsub.f32 1.5, %v1713
        %v1715 = vmul.f32 %v1710, %v1714
        %vm1716 = vweird.f32 %v1679
        %vm1717 = vweird.f32 %v1710
        %vm1718 = vmor %vm1716, %vm1717
        %v1719 = vsel %vm1718, %v1710, %v1715
        %v1720 = vmul.f32 %v1656, %v1689
        %v1721 = vmul.f32 %v1657, %v1699
        %v1722 = vmul.f32 %v1658, %v1709
        %v1723 = vmul.f32 %v1659, %v1719
        %v1724 = vperm.slane %v429, 0
        %v1725 = vmul.f32 %v1720, %v1724
        %v1726 = vmul.f32 %v1721, %v1724
        %v1727 = vmul.f32 %v1722, %v1724
        %v1728 = vmul.f32 %v1723, %v1724
        %v1729 = vperm.slane %v430, 0
        %v1730 = vadd.f32 %v1725, %v1729
        %v1731 = vadd.f32 %v1726, %v1729
        %v1732 = vadd.f32 %v1727, %v1729
        %v1733 = vadd.f32 %v1728, %v1729
        %v1734 = vpack.c.bf16 %v1731, %v1730
        %v1735 = vpack.c.bf16 %v1733, %v1732
        %v1736 = vld [vmem:[#allocation10] sm:$0xf]
        %v1737 = vld [vmem:[#allocation10 + $0x4] sm:$0xf]
        %v1738 = vld [vmem:[#allocation10 + $0x8] sm:$0xf]
        %v1739 = vld [vmem:[#allocation10 + $0xc] sm:$0xf]
        %v1740 = vld [vmem:[#allocation10 + $0x10] sm:$0xf]
        %v1741 = vld [vmem:[#allocation10 + $0x14] sm:$0xf]
        %v1742 = vld [vmem:[#allocation10 + $0x18] sm:$0xf]
        %v1743 = vld [vmem:[#allocation10 + $0x1c] sm:$0xf]
        %v1744 = vld [vmem:[#allocation10 + $0x20] sm:$0xf]
        %v1745 = vld [vmem:[#allocation10 + $0x24] sm:$0xf]
        %v1746 = vld [vmem:[#allocation10 + $0x28] sm:$0xf]
        %v1747 = vld [vmem:[#allocation10 + $0x2c] sm:$0xf]
        %v1748 = vld [vmem:[#allocation10 + $0x30] sm:$0xf]
        %v1749 = vld [vmem:[#allocation10 + $0x34] sm:$0xf]
        %v1750 = vld [vmem:[#allocation10 + $0x38] sm:$0xf]
        %v1751 = vld [vmem:[#allocation10 + $0x3c] sm:$0xf]
        %v1752 = vperm.slane %v432, 0
        %v1769 = vunpack.c.l.b16 %v1736
        %v1770 = vunpack.c.l.b16 %v1737
        %v1771 = vunpack.c.l.b16 %v1738
        %v1772 = vunpack.c.l.b16 %v1739
        %v1773 = vunpack.c.l.b16 %v1740
        %v1774 = vunpack.c.l.b16 %v1741
        %v1775 = vunpack.c.l.b16 %v1742
        %v1776 = vunpack.c.l.b16 %v1743
        %v1777 = vunpack.c.l.b16 %v1744
        %v1778 = vunpack.c.l.b16 %v1745
        %v1779 = vunpack.c.l.b16 %v1746
        %v1780 = vunpack.c.l.b16 %v1747
        %v1781 = vunpack.c.l.b16 %v1748
        %v1782 = vunpack.c.l.b16 %v1749
        %v1783 = vunpack.c.l.b16 %v1750
        %v1784 = vunpack.c.l.b16 %v1751
        %v1785 = vpack.c.b16 %v1770, %v1769
        %v1786 = vpack.c.b16 %v1772, %v1771
        %v1787 = vpack.c.b16 %v1774, %v1773
        %v1788 = vpack.c.b16 %v1776, %v1775
        %v1789 = vpack.c.b16 %v1778, %v1777
        %v1790 = vpack.c.b16 %v1780, %v1779
        %v1791 = vpack.c.b16 %v1782, %v1781
        %v1792 = vpack.c.b16 %v1784, %v1783
        %1801 = vmatpush.bf16.msra.mxu0 %v1792
        %1802 = vmatpush.bf16.msra.mxu0 %v1791
        %1803 = vmatpush.bf16.msra.mxu0 %v1790
        %1804 = vmatpush.bf16.msra.mxu0 %v1789
        %1805 = vmatpush.bf16.msra.mxu0 %v1788
        %1806 = vmatpush.bf16.msra.mxu0 %v1787
        %1807 = vmatpush.bf16.msra.mxu0 %v1786
        %1808 = vmatpush.bf16.msra.mxu0 %v1785
        %1809 = vmatmul.bf16.gmra.mxu0 %v1734
        %v1810 = vpop.f32.mrf.mxu0
        %v1811 = vadd.f32 %v1752, %v1810
        %v1812 = vpop.f32.mrf.mxu0
        %v1813 = vadd.f32 %v1752, %v1812
        %1814 = vmatmul.bf16.gmra.mxu0 %v1735
        %v1815 = vpop.f32.mrf.mxu0
        %v1816 = vadd.f32 %v1752, %v1815
        %v1817 = vpop.f32.mrf.mxu0
        %v1818 = vadd.f32 %v1752, %v1817
        %1819 = vdwg.mxu0
        %v1820 = vlaneseq
        %v1821 = vshrl.u32 %v1820, 7
        %v1822 = vadd.s32 %v1821, 8
        %v1823 = vadd.s32 %v1821, 16
        %v1824 = vadd.s32 %v1821, 24
        %vm1825 = vcmp.eq.s32.totalorder %v1821, 0
        %vm1826 = vcmp.eq.s32.totalorder %v1822, 0
        %vm1827 = vcmp.eq.s32.totalorder %v1823, 0
        %vm1828 = vcmp.eq.s32.totalorder %v1824, 0
        %v1829 = vsel %vm1825, 1, 0
        %v1830 = vsel %vm1826, 1, 0
        %v1831 = vsel %vm1827, 1, 0
        %v1832 = vsel %vm1828, 1, 0
        %v1833 = vcvt.s32.f32 %v1829
        %v1834 = vcvt.s32.f32 %v1830
        %v1835 = vcvt.s32.f32 %v1831
        %v1836 = vcvt.s32.f32 %v1832
        %v1837 = vadd.f32 %v1833, 0.0
        %v1838 = vadd.f32 %v1834, 0.0
        %v1839 = vadd.f32 %v1835, 0.0
        %v1840 = vadd.f32 %v1836, 0.0
        %vm1841 = vcmp.eq.s32.totalorder %v1821, 16
        %vm1842 = vcmp.eq.s32.totalorder %v1822, 16
        %vm1843 = vcmp.eq.s32.totalorder %v1823, 16
        %vm1844 = vcmp.eq.s32.totalorder %v1824, 16
        %v1845 = vsel %vm1841, 1, 0
        %v1846 = vsel %vm1842, 1, 0
        %v1847 = vsel %vm1843, 1, 0
        %v1848 = vsel %vm1844, 1, 0
        %v1849 = vcvt.s32.f32 %v1845
        %v1850 = vcvt.s32.f32 %v1846
        %v1851 = vcvt.s32.f32 %v1847
        %v1852 = vcvt.s32.f32 %v1848
        %v1853 = vadd.f32 %v1837, %v1849
        %v1854 = vadd.f32 %v1838, %v1850
        %v1855 = vadd.f32 %v1839, %v1851
        %v1856 = vadd.f32 %v1840, %v1852
        %vm1857 = vcmp.eq.s32.totalorder %v1821, 15
        %vm1858 = vcmp.eq.s32.totalorder %v1822, 15
        %vm1859 = vcmp.eq.s32.totalorder %v1823, 15
        %vm1860 = vcmp.eq.s32.totalorder %v1824, 15
        %v1861 = vsel %vm1857, 1, 0
        %v1862 = vsel %vm1858, 1, 0
        %v1863 = vsel %vm1859, 1, 0
        %v1864 = vsel %vm1860, 1, 0
        %v1865 = vcvt.s32.f32 %v1861
        %v1866 = vcvt.s32.f32 %v1862
        %v1867 = vcvt.s32.f32 %v1863
        %v1868 = vcvt.s32.f32 %v1864
        %v1869 = vadd.f32 %v1865, 0.0
        %v1870 = vadd.f32 %v1866, 0.0
        %v1871 = vadd.f32 %v1867, 0.0
        %v1872 = vadd.f32 %v1868, 0.0
        %vm1873 = vcmp.eq.s32.totalorder %v1821, 31
        %vm1874 = vcmp.eq.s32.totalorder %v1822, 31
        %vm1875 = vcmp.eq.s32.totalorder %v1823, 31
        %vm1876 = vcmp.eq.s32.totalorder %v1824, 31
        %v1877 = vsel %vm1873, 1, 0
        %v1878 = vsel %vm1874, 1, 0
        %v1879 = vsel %vm1875, 1, 0
        %v1880 = vsel %vm1876, 1, 0
        %v1881 = vcvt.s32.f32 %v1877
        %v1882 = vcvt.s32.f32 %v1878
        %v1883 = vcvt.s32.f32 %v1879
        %v1884 = vcvt.s32.f32 %v1880
        %v1885 = vadd.f32 %v1869, %v1881
        %v1886 = vadd.f32 %v1870, %v1882
        %v1887 = vadd.f32 %v1871, %v1883
        %v1888 = vadd.f32 %v1872, %v1884
        %v1889 = vrot.slane %v1811, 7
        %v1890 = vrot.slane %v1813, 7
        %v1891 = vrot.slane %v1816, 7
        %v1892 = vrot.slane %v1818, 7
        %vm1893 = vcmp.lt.s32.totalorder %v1821, 1
        %v1894 = vsel %vm1893, %v1891, %v1892
        %v1895 = vsel %vm1893, %v1890, %v1891
        %v1896 = vsel %vm1893, %v1889, %v1890
        %v1897 = vsel %vm1893, %v1892, %v1889
        %v1898 = vsub.f32 1.0, %v1853
        %v1899 = vsub.f32 1.0, %v1854
        %v1900 = vsub.f32 1.0, %v1855
        %v1901 = vsub.f32 1.0, %v1856
        %v1902 = vmul.f32 %v1897, %v1898
        %v1903 = vmul.f32 %v1896, %v1899
        %v1904 = vmul.f32 %v1895, %v1900
        %v1905 = vmul.f32 %v1894, %v1901
        %v1906 = vrot.slane %v1811, 1
        %v1907 = vrot.slane %v1813, 1
        %v1908 = vrot.slane %v1816, 1
        %v1909 = vrot.slane %v1818, 1
        %vm1910 = vcmp.lt.s32.totalorder %v1821, 7
        %v1911 = vsel %vm1910, %v1908, %v1909
        %v1912 = vsel %vm1910, %v1907, %v1908
        %v1913 = vsel %vm1910, %v1906, %v1907
        %v1914 = vsel %vm1910, %v1909, %v1906
        %v1915 = vsub.f32 1.0, %v1885
        %v1916 = vsub.f32 1.0, %v1886
        %v1917 = vsub.f32 1.0, %v1887
        %v1918 = vsub.f32 1.0, %v1888
        %v1919 = vmul.f32 %v1913, %v1915
        %v1920 = vmul.f32 %v1912, %v1916
        %v1921 = vmul.f32 %v1911, %v1917
        %v1922 = vmul.f32 %v1914, %v1918
        %v1923 = vpack.c.bf16 %v1903, %v1902
        %v1924 = vpack.c.bf16 %v1905, %v1904
        %v1925 = vld [vmem:[#allocation11] sm:$0xff]
        %v1926 = vld [vmem:[#allocation11 + $0x8] sm:$0xff]
        %v1927 = vld [vmem:[#allocation11 + $0x10] sm:$0xff]
        %v1928 = vld [vmem:[#allocation11 + $0x18] sm:$0xff]
        %v1929 = vld [vmem:[#allocation11 + $0x20] sm:$0xff]
        %v1930 = vld [vmem:[#allocation11 + $0x28] sm:$0xff]
        %v1931 = vld [vmem:[#allocation11 + $0x30] sm:$0xff]
        %v1932 = vld [vmem:[#allocation11 + $0x38] sm:$0xff]
        %v1933 = vld [vmem:[#allocation11 + $0x40] sm:$0xff]
        %v1934 = vld [vmem:[#allocation11 + $0x48] sm:$0xff]
        %v1935 = vld [vmem:[#allocation11 + $0x50] sm:$0xff]
        %v1936 = vld [vmem:[#allocation11 + $0x58] sm:$0xff]
        %v1937 = vld [vmem:[#allocation11 + $0x60] sm:$0xff]
        %v1938 = vld [vmem:[#allocation11 + $0x68] sm:$0xff]
        %v1939 = vld [vmem:[#allocation11 + $0x70] sm:$0xff]
        %v1940 = vld [vmem:[#allocation11 + $0x78] sm:$0xff]
        %v1941 = vpack.c.bf16 %v1813, %v1811
        %v1942 = vpack.c.bf16 %v1818, %v1816
        %s1943 = scalar_lea.vmem [#allocation11], 128
        %v1944 = vld [vmem:[%s1943] sm:$0xff]
        %v1945 = vld [vmem:[%s1943 + $0x8] sm:$0xff]
        %v1946 = vld [vmem:[%s1943 + $0x10] sm:$0xff]
        %v1947 = vld [vmem:[%s1943 + $0x18] sm:$0xff]
        %v1948 = vld [vmem:[%s1943 + $0x20] sm:$0xff]
        %v1949 = vld [vmem:[%s1943 + $0x28] sm:$0xff]
        %v1950 = vld [vmem:[%s1943 + $0x30] sm:$0xff]
        %v1951 = vld [vmem:[%s1943 + $0x38] sm:$0xff]
        %v1952 = vld [vmem:[%s1943 + $0x40] sm:$0xff]
        %v1953 = vld [vmem:[%s1943 + $0x48] sm:$0xff]
        %v1954 = vld [vmem:[%s1943 + $0x50] sm:$0xff]
        %v1955 = vld [vmem:[%s1943 + $0x58] sm:$0xff]
        %v1956 = vld [vmem:[%s1943 + $0x60] sm:$0xff]
        %v1957 = vld [vmem:[%s1943 + $0x68] sm:$0xff]
        %v1958 = vld [vmem:[%s1943 + $0x70] sm:$0xff]
        %v1959 = vld [vmem:[%s1943 + $0x78] sm:$0xff]
        %v1976 = vunpack.c.l.b16 %v1944
        %v1977 = vunpack.c.h.b16 %v1944
        %v1978 = vunpack.c.l.b16 %v1945
        %v1979 = vunpack.c.h.b16 %v1945
        %v1980 = vunpack.c.l.b16 %v1946
        %v1981 = vunpack.c.h.b16 %v1946
        %v1982 = vunpack.c.l.b16 %v1947
        %v1983 = vunpack.c.h.b16 %v1947
        %v1984 = vunpack.c.l.b16 %v1948
        %v1985 = vunpack.c.h.b16 %v1948
        %v1986 = vunpack.c.l.b16 %v1949
        %v1987 = vunpack.c.h.b16 %v1949
        %v1988 = vunpack.c.l.b16 %v1950
        %v1989 = vunpack.c.h.b16 %v1950
        %v1990 = vunpack.c.l.b16 %v1951
        %v1991 = vunpack.c.h.b16 %v1951
        %v1992 = vunpack.c.l.b16 %v1952
        %v1993 = vunpack.c.h.b16 %v1952
        %v1994 = vunpack.c.l.b16 %v1953
        %v1995 = vunpack.c.h.b16 %v1953
        %v1996 = vunpack.c.l.b16 %v1954
        %v1997 = vunpack.c.h.b16 %v1954
        %v1998 = vunpack.c.l.b16 %v1955
        %v1999 = vunpack.c.h.b16 %v1955
        %v2000 = vunpack.c.l.b16 %v1956
        %v2001 = vunpack.c.h.b16 %v1956
        %v2002 = vunpack.c.l.b16 %v1957
        %v2003 = vunpack.c.h.b16 %v1957
        %v2004 = vunpack.c.l.b16 %v1958
        %v2005 = vunpack.c.h.b16 %v1958
        %v2006 = vunpack.c.l.b16 %v1959
        %v2007 = vunpack.c.h.b16 %v1959
        %v2008 = vpack.c.b16 %v1978, %v1976
        %v2009 = vpack.c.b16 %v1979, %v1977
        %v2010 = vpack.c.b16 %v1982, %v1980
        %v2011 = vpack.c.b16 %v1983, %v1981
        %v2012 = vpack.c.b16 %v1986, %v1984
        %v2013 = vpack.c.b16 %v1987, %v1985
        %v2014 = vpack.c.b16 %v1990, %v1988
        %v2015 = vpack.c.b16 %v1991, %v1989
        %v2016 = vpack.c.b16 %v1994, %v1992
        %v2017 = vpack.c.b16 %v1995, %v1993
        %v2018 = vpack.c.b16 %v1998, %v1996
        %v2019 = vpack.c.b16 %v1999, %v1997
        %v2020 = vpack.c.b16 %v2002, %v2000
        %v2021 = vpack.c.b16 %v2003, %v2001
        %v2022 = vpack.c.b16 %v2006, %v2004
        %v2023 = vpack.c.b16 %v2007, %v2005
        %2040 = vmatpush.bf16.msra.mxu0 %v2022
        %2041 = vmatpush.bf16.msra.mxu0 %v2020
        %2042 = vmatpush.bf16.msra.mxu0 %v2018
        %2043 = vmatpush.bf16.msra.mxu0 %v2016
        %2044 = vmatpush.bf16.msra.mxu0 %v2014
        %2045 = vmatpush.bf16.msra.mxu0 %v2012
        %2046 = vmatpush.bf16.msra.mxu0 %v2010
        %2047 = vmatpush.bf16.msra.mxu0 %v2008
        %2048 = vmatmul.bf16.gmra.mxu0 %v1941
        %v2049 = vpop.f32.mrf.mxu0
        %v2050 = vadd.f32 0.0, %v2049
        %v2051 = vpop.f32.mrf.mxu0
        %v2052 = vadd.f32 0.0, %v2051
        %2053 = vmatmul.bf16.gmra.mxu0 %v1942
        %v2054 = vpop.f32.mrf.mxu0
        %v2055 = vadd.f32 0.0, %v2054
        %v2056 = vpop.f32.mrf.mxu0
        %v2057 = vadd.f32 0.0, %v2056
        %2058 = vdwg.mxu0
        %2059 = vmatpush.bf16.msra.mxu0 %v2023
        %2060 = vmatpush.bf16.msra.mxu0 %v2021
        %2061 = vmatpush.bf16.msra.mxu0 %v2019
        %2062 = vmatpush.bf16.msra.mxu0 %v2017
        %2063 = vmatpush.bf16.msra.mxu0 %v2015
        %2064 = vmatpush.bf16.msra.mxu0 %v2013
        %2065 = vmatpush.bf16.msra.mxu0 %v2011
        %2066 = vmatpush.bf16.msra.mxu0 %v2009
        %2067 = vmatmul.bf16.gmra.mxu0 %v1941
        %v2068 = vpop.f32.mrf.mxu0
        %v2069 = vadd.f32 0.0, %v2068
        %v2070 = vpop.f32.mrf.mxu0
        %v2071 = vadd.f32 0.0, %v2070
        %2072 = vmatmul.bf16.gmra.mxu0 %v1942
        %v2073 = vpop.f32.mrf.mxu0
        %v2074 = vadd.f32 0.0, %v2073
        %v2075 = vpop.f32.mrf.mxu0
        %v2076 = vadd.f32 0.0, %v2075
        %2077 = vdwg.mxu0
        %v2094 = vunpack.c.l.b16 %v1925
        %v2095 = vunpack.c.h.b16 %v1925
        %v2096 = vunpack.c.l.b16 %v1926
        %v2097 = vunpack.c.h.b16 %v1926
        %v2098 = vunpack.c.l.b16 %v1927
        %v2099 = vunpack.c.h.b16 %v1927
        %v2100 = vunpack.c.l.b16 %v1928
        %v2101 = vunpack.c.h.b16 %v1928
        %v2102 = vunpack.c.l.b16 %v1929
        %v2103 = vunpack.c.h.b16 %v1929
        %v2104 = vunpack.c.l.b16 %v1930
        %v2105 = vunpack.c.h.b16 %v1930
        %v2106 = vunpack.c.l.b16 %v1931
        %v2107 = vunpack.c.h.b16 %v1931
        %v2108 = vunpack.c.l.b16 %v1932
        %v2109 = vunpack.c.h.b16 %v1932
        %v2110 = vunpack.c.l.b16 %v1933
        %v2111 = vunpack.c.h.b16 %v1933
        %v2112 = vunpack.c.l.b16 %v1934
        %v2113 = vunpack.c.h.b16 %v1934
        %v2114 = vunpack.c.l.b16 %v1935
        %v2115 = vunpack.c.h.b16 %v1935
        %v2116 = vunpack.c.l.b16 %v1936
        %v2117 = vunpack.c.h.b16 %v1936
        %v2118 = vunpack.c.l.b16 %v1937
        %v2119 = vunpack.c.h.b16 %v1937
        %v2120 = vunpack.c.l.b16 %v1938
        %v2121 = vunpack.c.h.b16 %v1938
        %v2122 = vunpack.c.l.b16 %v1939
        %v2123 = vunpack.c.h.b16 %v1939
        %v2124 = vunpack.c.l.b16 %v1940
        %v2125 = vunpack.c.h.b16 %v1940
        %v2126 = vpack.c.b16 %v2096, %v2094
        %v2127 = vpack.c.b16 %v2097, %v2095
        %v2128 = vpack.c.b16 %v2100, %v2098
        %v2129 = vpack.c.b16 %v2101, %v2099
        %v2130 = vpack.c.b16 %v2104, %v2102
        %v2131 = vpack.c.b16 %v2105, %v2103
        %v2132 = vpack.c.b16 %v2108, %v2106
        %v2133 = vpack.c.b16 %v2109, %v2107
        %v2134 = vpack.c.b16 %v2112, %v2110
        %v2135 = vpack.c.b16 %v2113, %v2111
        %v2136 = vpack.c.b16 %v2116, %v2114
        %v2137 = vpack.c.b16 %v2117, %v2115
        %v2138 = vpack.c.b16 %v2120, %v2118
        %v2139 = vpack.c.b16 %v2121, %v2119
        %v2140 = vpack.c.b16 %v2124, %v2122
        %v2141 = vpack.c.b16 %v2125, %v2123
        %2158 = vmatpush.bf16.msra.mxu0 %v2140
        %2159 = vmatpush.bf16.msra.mxu0 %v2138
        %2160 = vmatpush.bf16.msra.mxu0 %v2136
        %2161 = vmatpush.bf16.msra.mxu0 %v2134
        %2162 = vmatpush.bf16.msra.mxu0 %v2132
        %2163 = vmatpush.bf16.msra.mxu0 %v2130
        %2164 = vmatpush.bf16.msra.mxu0 %v2128
        %2165 = vmatpush.bf16.msra.mxu0 %v2126
        %2166 = vmatmul.bf16.gmra.mxu0 %v1923
        %v2167 = vpop.f32.mrf.mxu0
        %v2168 = vadd.f32 %v2050, %v2167
        %v2169 = vpop.f32.mrf.mxu0
        %v2170 = vadd.f32 %v2052, %v2169
        %2171 = vmatmul.bf16.gmra.mxu0 %v1924
        %v2172 = vpop.f32.mrf.mxu0
        %v2173 = vadd.f32 %v2055, %v2172
        %v2174 = vpop.f32.mrf.mxu0
        %v2175 = vadd.f32 %v2057, %v2174
        %2176 = vdwg.mxu0
        %2177 = vmatpush.bf16.msra.mxu0 %v2141
        %2178 = vmatpush.bf16.msra.mxu0 %v2139
        %2179 = vmatpush.bf16.msra.mxu0 %v2137
        %2180 = vmatpush.bf16.msra.mxu0 %v2135
        %2181 = vmatpush.bf16.msra.mxu0 %v2133
        %2182 = vmatpush.bf16.msra.mxu0 %v2131
        %2183 = vmatpush.bf16.msra.mxu0 %v2129
        %2184 = vmatpush.bf16.msra.mxu0 %v2127
        %2185 = vmatmul.bf16.gmra.mxu0 %v1923
        %v2186 = vpop.f32.mrf.mxu0
        %v2187 = vadd.f32 %v2069, %v2186
        %v2188 = vpop.f32.mrf.mxu0
        %v2189 = vadd.f32 %v2071, %v2188
        %2190 = vmatmul.bf16.gmra.mxu0 %v1924
        %v2191 = vpop.f32.mrf.mxu0
        %v2192 = vadd.f32 %v2074, %v2191
        %v2193 = vpop.f32.mrf.mxu0
        %v2194 = vadd.f32 %v2076, %v2193
        %2195 = vdwg.mxu0
        %v2196 = vpack.c.bf16 %v1920, %v1919
        %v2197 = vpack.c.bf16 %v1922, %v1921
        %s2198 = scalar_lea.vmem [#allocation11], 256
        %v2199 = vld [vmem:[%s2198] sm:$0xff]
        %v2200 = vld [vmem:[%s2198 + $0x8] sm:$0xff]
        %v2201 = vld [vmem:[%s2198 + $0x10] sm:$0xff]
        %v2202 = vld [vmem:[%s2198 + $0x18] sm:$0xff]
        %v2203 = vld [vmem:[%s2198 + $0x20] sm:$0xff]
        %v2204 = vld [vmem:[%s2198 + $0x28] sm:$0xff]
        %v2205 = vld [vmem:[%s2198 + $0x30] sm:$0xff]
        %v2206 = vld [vmem:[%s2198 + $0x38] sm:$0xff]
        %v2207 = vld [vmem:[%s2198 + $0x40] sm:$0xff]
        %v2208 = vld [vmem:[%s2198 + $0x48] sm:$0xff]
        %v2209 = vld [vmem:[%s2198 + $0x50] sm:$0xff]
        %v2210 = vld [vmem:[%s2198 + $0x58] sm:$0xff]
        %v2211 = vld [vmem:[%s2198 + $0x60] sm:$0xff]
        %v2212 = vld [vmem:[%s2198 + $0x68] sm:$0xff]
        %v2213 = vld [vmem:[%s2198 + $0x70] sm:$0xff]
        %v2214 = vld [vmem:[%s2198 + $0x78] sm:$0xff]
        %v2231 = vunpack.c.l.b16 %v2199
        %v2232 = vunpack.c.h.b16 %v2199
        %v2233 = vunpack.c.l.b16 %v2200
        %v2234 = vunpack.c.h.b16 %v2200
        %v2235 = vunpack.c.l.b16 %v2201
        %v2236 = vunpack.c.h.b16 %v2201
        %v2237 = vunpack.c.l.b16 %v2202
        %v2238 = vunpack.c.h.b16 %v2202
        %v2239 = vunpack.c.l.b16 %v2203
        %v2240 = vunpack.c.h.b16 %v2203
        %v2241 = vunpack.c.l.b16 %v2204
        %v2242 = vunpack.c.h.b16 %v2204
        %v2243 = vunpack.c.l.b16 %v2205
        %v2244 = vunpack.c.h.b16 %v2205
        %v2245 = vunpack.c.l.b16 %v2206
        %v2246 = vunpack.c.h.b16 %v2206
        %v2247 = vunpack.c.l.b16 %v2207
        %v2248 = vunpack.c.h.b16 %v2207
        %v2249 = vunpack.c.l.b16 %v2208
        %v2250 = vunpack.c.h.b16 %v2208
        %v2251 = vunpack.c.l.b16 %v2209
        %v2252 = vunpack.c.h.b16 %v2209
        %v2253 = vunpack.c.l.b16 %v2210
        %v2254 = vunpack.c.h.b16 %v2210
        %v2255 = vunpack.c.l.b16 %v2211
        %v2256 = vunpack.c.h.b16 %v2211
        %v2257 = vunpack.c.l.b16 %v2212
        %v2258 = vunpack.c.h.b16 %v2212
        %v2259 = vunpack.c.l.b16 %v2213
        %v2260 = vunpack.c.h.b16 %v2213
        %v2261 = vunpack.c.l.b16 %v2214
        %v2262 = vunpack.c.h.b16 %v2214
        %v2263 = vpack.c.b16 %v2233, %v2231
        %v2264 = vpack.c.b16 %v2234, %v2232
        %v2265 = vpack.c.b16 %v2237, %v2235
        %v2266 = vpack.c.b16 %v2238, %v2236
        %v2267 = vpack.c.b16 %v2241, %v2239
        %v2268 = vpack.c.b16 %v2242, %v2240
        %v2269 = vpack.c.b16 %v2245, %v2243
        %v2270 = vpack.c.b16 %v2246, %v2244
        %v2271 = vpack.c.b16 %v2249, %v2247
        %v2272 = vpack.c.b16 %v2250, %v2248
        %v2273 = vpack.c.b16 %v2253, %v2251
        %v2274 = vpack.c.b16 %v2254, %v2252
        %v2275 = vpack.c.b16 %v2257, %v2255
        %v2276 = vpack.c.b16 %v2258, %v2256
        %v2277 = vpack.c.b16 %v2261, %v2259
        %v2278 = vpack.c.b16 %v2262, %v2260
        %2295 = vmatpush.bf16.msra.mxu0 %v2277
        %2296 = vmatpush.bf16.msra.mxu0 %v2275
        %2297 = vmatpush.bf16.msra.mxu0 %v2273
        %2298 = vmatpush.bf16.msra.mxu0 %v2271
        %2299 = vmatpush.bf16.msra.mxu0 %v2269
        %2300 = vmatpush.bf16.msra.mxu0 %v2267
        %2301 = vmatpush.bf16.msra.mxu0 %v2265
        %2302 = vmatpush.bf16.msra.mxu0 %v2263
        %2303 = vmatmul.bf16.gmra.mxu0 %v2196
        %v2304 = vpop.f32.mrf.mxu0
        %v2305 = vadd.f32 0.0, %v2304
        %v2306 = vpop.f32.mrf.mxu0
        %v2307 = vadd.f32 0.0, %v2306
        %2308 = vmatmul.bf16.gmra.mxu0 %v2197
        %v2309 = vpop.f32.mrf.mxu0
        %v2310 = vadd.f32 0.0, %v2309
        %v2311 = vpop.f32.mrf.mxu0
        %v2312 = vadd.f32 0.0, %v2311
        %2313 = vdwg.mxu0
        %2314 = vmatpush.bf16.msra.mxu0 %v2278
        %2315 = vmatpush.bf16.msra.mxu0 %v2276
        %2316 = vmatpush.bf16.msra.mxu0 %v2274
        %2317 = vmatpush.bf16.msra.mxu0 %v2272
        %2318 = vmatpush.bf16.msra.mxu0 %v2270
        %2319 = vmatpush.bf16.msra.mxu0 %v2268
        %2320 = vmatpush.bf16.msra.mxu0 %v2266
        %2321 = vmatpush.bf16.msra.mxu0 %v2264
        %2322 = vmatmul.bf16.gmra.mxu0 %v2196
        %v2323 = vpop.f32.mrf.mxu0
        %v2324 = vadd.f32 0.0, %v2323
        %v2325 = vpop.f32.mrf.mxu0
        %v2326 = vadd.f32 0.0, %v2325
        %2327 = vmatmul.bf16.gmra.mxu0 %v2197
        %v2328 = vpop.f32.mrf.mxu0
        %v2329 = vadd.f32 0.0, %v2328
        %v2330 = vpop.f32.mrf.mxu0
        %v2331 = vadd.f32 0.0, %v2330
        %2332 = vdwg.mxu0
        %v2333 = vadd.f32 %v2168, %v2305
        %v2334 = vadd.f32 %v2187, %v2324
        %v2335 = vadd.f32 %v2170, %v2307
        %v2336 = vadd.f32 %v2189, %v2326
        %v2337 = vadd.f32 %v2173, %v2310
        %v2338 = vadd.f32 %v2192, %v2329
        %v2339 = vadd.f32 %v2175, %v2312
        %v2340 = vadd.f32 %v2194, %v2331
        %v2341 = vld [vmem:[%s6] sm:$0x3]
        %v2343 = vperm.slane %v2341, 0
        %v2344 = vperm.slane %v2341, 1
        %v2347 = vadd.f32 %v2333, %v2343
        %v2348 = vadd.f32 %v2334, %v2344
        %v2349 = vadd.f32 %v2335, %v2343
        %v2350 = vadd.f32 %v2336, %v2344
        %v2351 = vadd.f32 %v2337, %v2343
        %v2352 = vadd.f32 %v2338, %v2344
        %v2353 = vadd.f32 %v2339, %v2343
        %v2354 = vadd.f32 %v2340, %v2344
        %v2355 = vxor.u32 %v2348, 2147483648
        %v2356 = vxor.u32 %v2350, 2147483648
        %v2357 = vxor.u32 %v2352, 2147483648
        %v2358 = vxor.u32 %v2354, 2147483648
        %v2359 = vmul.f32 %v2355, 1.442695
        %v2360 = vpow.pop %v2359
        %v2361 = vmul.f32 %v2356, 1.442695
        %v2362 = vpow.pop %v2361
        %v2363 = vmul.f32 %v2357, 1.442695
        %v2364 = vpow.pop %v2363
        %v2365 = vmul.f32 %v2358, 1.442695
        %v2366 = vpow.pop %v2365
        %v2367 = vadd.f32 %v2360, 1.0
        %v2368 = vadd.f32 %v2362, 1.0
        %v2369 = vadd.f32 %v2364, 1.0
        %v2370 = vadd.f32 %v2366, 1.0
        %v2371 = vrcp.pop %v2367
        %v2372 = vmul.f32 %v2367, %v2371
        %v2373 = vsub.f32 1.0, %v2372
        %v2374 = vmul.f32 %v2371, %v2373
        %v2375 = vadd.f32 %v2371, %v2374
        %vm2376 = vweird.f32 %v2367
        %vm2377 = vweird.f32 %v2371
        %vm2378 = vmor %vm2376, %vm2377
        %v2379 = vsel %vm2378, %v2371, %v2375
        %v2380 = vand.u32 2147483647, %v2367
        %vm2381 = vcmp.eq.f32.partialorder %v2380, 8.507059e+37
        %v2382 = vand.u32 %v2367, 2147483648
        %v2383 = vor.u32 1.1754944e-38, %v2382
        %v2384 = vsel %vm2381, %v2383, %v2379
        %v2385 = vmul.f32 1.0, %v2384
        %v2386 = vrcp.pop %v2368
        %v2387 = vmul.f32 %v2368, %v2386
        %v2388 = vsub.f32 1.0, %v2387
        %v2389 = vmul.f32 %v2386, %v2388
        %v2390 = vadd.f32 %v2386, %v2389
        %vm2391 = vweird.f32 %v2368
        %vm2392 = vweird.f32 %v2386
        %vm2393 = vmor %vm2391, %vm2392
        %v2394 = vsel %vm2393, %v2386, %v2390
        %v2395 = vand.u32 2147483647, %v2368
        %vm2396 = vcmp.eq.f32.partialorder %v2395, 8.507059e+37
        %v2397 = vand.u32 %v2368, 2147483648
        %v2398 = vor.u32 1.1754944e-38, %v2397
        %v2399 = vsel %vm2396, %v2398, %v2394
        %v2400 = vmul.f32 1.0, %v2399
        %v2401 = vrcp.pop %v2369
        %v2402 = vmul.f32 %v2369, %v2401
        %v2403 = vsub.f32 1.0, %v2402
        %v2404 = vmul.f32 %v2401, %v2403
        %v2405 = vadd.f32 %v2401, %v2404
        %vm2406 = vweird.f32 %v2369
        %vm2407 = vweird.f32 %v2401
        %vm2408 = vmor %vm2406, %vm2407
        %v2409 = vsel %vm2408, %v2401, %v2405
        %v2410 = vand.u32 2147483647, %v2369
        %vm2411 = vcmp.eq.f32.partialorder %v2410, 8.507059e+37
        %v2412 = vand.u32 %v2369, 2147483648
        %v2413 = vor.u32 1.1754944e-38, %v2412
        %v2414 = vsel %vm2411, %v2413, %v2409
        %v2415 = vmul.f32 1.0, %v2414
        %v2416 = vrcp.pop %v2370
        %v2417 = vmul.f32 %v2370, %v2416
        %v2418 = vsub.f32 1.0, %v2417
        %v2419 = vmul.f32 %v2416, %v2418
        %v2420 = vadd.f32 %v2416, %v2419
        %vm2421 = vweird.f32 %v2370
        %vm2422 = vweird.f32 %v2416
        %vm2423 = vmor %vm2421, %vm2422
        %v2424 = vsel %vm2423, %v2416, %v2420
        %v2425 = vand.u32 2147483647, %v2370
        %vm2426 = vcmp.eq.f32.partialorder %v2425, 8.507059e+37
        %v2427 = vand.u32 %v2370, 2147483648
        %v2428 = vor.u32 1.1754944e-38, %v2427
        %v2429 = vsel %vm2426, %v2428, %v2424
        %v2430 = vmul.f32 1.0, %v2429
        %v2431 = vmul.f32 %v2347, %v2385
        %v2432 = vmul.f32 %v2349, %v2400
        %v2433 = vmul.f32 %v2351, %v2415
        %v2434 = vmul.f32 %v2353, %v2430
        %v2435 = vadd.f32 %v1811, %v2431
        %v2436 = vadd.f32 %v1813, %v2432
        %v2437 = vadd.f32 %v1816, %v2433
        %v2438 = vadd.f32 %v1818, %v2434
        %v2439 = vmul.f32 %v2435, 0.70710677
        %v2440 = vmul.f32 %v2436, 0.70710677
        %v2441 = vmul.f32 %v2437, 0.70710677
        %v2442 = vmul.f32 %v2438, 0.70710677
        %v2443 = vadd.f32 %v1640, %v2439
        %v2444 = vadd.f32 %v1641, %v2440
        %v2445 = vadd.f32 %v1642, %v2441
        %v2446 = vadd.f32 %v1643, %v2442
        %v2447 = vmul.f32 %v2443, 0.70710677
        %v2448 = vmul.f32 %v2444, 0.70710677
        %v2449 = vmul.f32 %v2445, 0.70710677
        %v2450 = vmul.f32 %v2446, 0.70710677
        %2451 = vst [vmem:[%s411] sm:$0xff] %v2447
        %2452 = vst [vmem:[%s411 + $0x8] sm:$0xff] %v2448
        %2453 = vst [vmem:[%s411 + $0x10] sm:$0xff] %v2449
        %2454 = vst [vmem:[%s411 + $0x18] sm:$0xff] %v2450
        %s2455 = sand.u32 %s192, 1
        %s2456 = scalar_lea.sflag [#allocation4], %s2455
        %s2457 = sand.u32 %s192, 1
        %s2458 = smul.addr %s2457, 32
        %s2459 = scalar_lea.vmem [#allocation13], %s2458
        %s2460 = sand.u32 %s218, 1
        %s2461 = scalar_lea.sflag [#allocation15], %s2460
        %s2462 = sand.u32 %s218, 1
        %s2463 = smul.addr %s2462, 128
        %s2464 = scalar_lea.vmem [#allocation14], %s2463
        // Predicated region
        $region73: #{tpu_custom_call.1} parent=47 // pred_check
          %p2465 = pneg %p202
        $region74: #{tpu_custom_call.1} parent=47 // pred_check_branch
          %2467 = sbr.rel (%p2465) target = $region76
        $region75: #{tpu_custom_call.1} parent=47 // pred_region
          %s2468 = smul.u32 2, %s32
          %2470 = vsyncadd %s2456, 0
          %s2471 = smul.addr %s2468, 2
          %s2472 = smul.addr %s2471, 8
          %s2473 = scalar_lea.hbm %s7, %s2472
          %s2474 = sshll.u32 %s2459, 4
          %s2475 = int_to_ptr.vmem [resolvable:$true] %s2474
          %s2476 = sshll.u32 %s2473, 4
          %s2477 = int_to_ptr.hbm [resolvable:$true] %s2476
          %2482 = dma.vmem_to_hbm [thread:$0]  %s2475, 512, %s2477, %s2456, 128, 128, 8
        $region76: #{tpu_custom_call.1} parent=47 // pred_fallthru
          _
        // Predicated region
        $region77: #{tpu_custom_call.1} parent=47 // pred_check
          %p2483 = pneg %p228
        $region78: #{tpu_custom_call.1} parent=47 // pred_check_branch
          %2485 = sbr.rel (%p2483) target = $region80
        $region79: #{tpu_custom_call.1} parent=47 // pred_region
          %s2486 = smul.u32 2, %s32
          %2488 = vsyncadd %s2461, 0
          %s2489 = smul.addr %s2486, 8
          %s2490 = smul.addr %s2489, 8
          %s2491 = scalar_lea.hbm %s8, %s2490
          %s2492 = sshll.u32 %s2464, 4
          %s2493 = int_to_ptr.vmem [resolvable:$true] %s2492
          %s2494 = sshll.u32 %s2491, 4
          %s2495 = int_to_ptr.hbm [resolvable:$true] %s2494
          %2500 = dma.vmem_to_hbm [thread:$0]  %s2493, 2048, %s2495, %s2461, 128, 128, 8
        $region80: #{tpu_custom_call.1} parent=47 // pred_fallthru
          _
      $region48: #{tpu_custom_call.1} parent=5 // pred_fallthru
        _
      %p2501 = scmp.le.s32.totalorder 2, %s27
      // Predicated region
      $region81: #{tpu_custom_call.1} parent=5 // pred_check
        %p2502 = pneg %p2501
      $region82: #{tpu_custom_call.1} parent=5 // pred_check_branch
        %2504 = sbr.rel (%p2502) target = $region84
      $region83: #{tpu_custom_call.1} parent=5 // pred_region
        %s2505 = ssub.s32 %s27, 2
        // Predicated region
        $region85: #{tpu_custom_call.1} parent=83 // pred_check
          %p2506 = pneg %p208
        $region86: #{tpu_custom_call.1} parent=83 // pred_check_branch
          %2508 = sbr.rel (%p2506) target = $region88
        $region87: #{tpu_custom_call.1} parent=83 // pred_region
          %s2509 = sand.u32 %s193, 1
          %s2510 = scalar_lea.sflag [#allocation4], %s2509
          %s2511 = sand.u32 %s193, 1
          %s2512 = smul.addr %s2511, 32
          %s2513 = scalar_lea.vmem [#allocation13], %s2512
          %2515 = dma.done %s2510, 512
        $region88: #{tpu_custom_call.1} parent=83 // pred_fallthru
          _
        // Predicated region
        $region89: #{tpu_custom_call.1} parent=83 // pred_check
          %p2516 = pneg %p234
        $region90: #{tpu_custom_call.1} parent=83 // pred_check_branch
          %2518 = sbr.rel (%p2516) target = $region92
        $region91: #{tpu_custom_call.1} parent=83 // pred_region
          %s2519 = sand.u32 %s219, 1
          %s2520 = scalar_lea.sflag [#allocation15], %s2519
          %s2521 = sand.u32 %s219, 1
          %s2522 = smul.addr %s2521, 128
          %s2523 = scalar_lea.vmem [#allocation14], %s2522
          %2525 = dma.done %s2520, 2048
        $region92: #{tpu_custom_call.1} parent=83 // pred_fallthru
          _
      $region84: #{tpu_custom_call.1} parent=5 // pred_fallthru
        _
    $region6: #{tpu_custom_call.1} parent=1 // loop_footer
      %s31 = sadd.s32 1, %s27
    $region7: #{tpu_custom_call.1} parent=1 // loop_footer_branch
      %26 = sbr.rel target = $region3
    $region8: #{tpu_custom_call.1} parent=1 // loop_exit
      _
    %2526 = vsyncpa [#allocation3], 1
    %s2527 = scalar_lea.sflag [#allocation3], 1
    %2528 = vsyncpa %s2527, 1
    %2529 = vsyncpa [#allocation6], 1
    %2530 = vsyncpa [#allocation9], 1
    %2531 = vsyncpa [#allocation12], 1
    %2532 = vsyncpa [#allocation4], 1
    %s2533 = scalar_lea.sflag [#allocation4], 1
    %2534 = vsyncpa %s2533, 1
    %2535 = vsyncpa [#allocation15], 1
    %s2536 = scalar_lea.sflag [#allocation15], 1
    %2537 = vsyncpa %s2536, 1

// kernel: tpu_custom_call.1
$region0: #{tpu_custom_call.1}
  #allocation0 [shape = 'u32[]', space=smem, size = 0x4, offset = 0x4, fixed_abs, tag = 'smem constant byte address 0x4 - core index']
  #allocation1 [shape = 'u32[72,128]{1,0:T(1,128)}', space=vmem, size = 0x9000, scoped, tag = 'internal scratch']
  %s0 = inlined_call_operand.hbm [shape: f32[4,16,128], index: 0, kind: input, shape index: {}]
  %s1 = inlined_call_operand.hbm [shape: f32[6,128], index: 1, kind: input, shape index: {}]
  %s2 = inlined_call_operand.hbm [shape: bf16[128,384], index: 2, kind: input, shape index: {}]
  %s3 = inlined_call_operand.hbm [shape: bf16[4,32,128], index: 3, kind: input, shape index: {}]
  %s4 = inlined_call_operand.hbm [shape: bf16[128,128], index: 4, kind: input, shape index: {}]
  %s5 = inlined_call_operand.hbm [shape: bf16[3,128,256], index: 5, kind: input, shape index: {}]
  %s6 = inlined_call_operand.vmem [shape: f32[1,256], index: 6, kind: input, shape index: {}]
  %s7 = inlined_call_operand.hbm [shape: f32[4,16,128], index: 7, kind: output, shape index: {0}]
  %s8 = inlined_call_operand.hbm [shape: f32[4,4,16,16], index: 8, kind: output, shape index: {1}]
  %9 = xla_tuple %s7, %s8
  %s10 = sld [smem:[#allocation0]]
  $region93: #{tpu_custom_call.1} parent=0
    _
  %s12 = ssub.s32 1, %s10
  %s13 = scalar_select 0, %s12, %s10
  $region1: #{tpu_custom_call.1} parent=0
    #allocation2 [shape = 'u8[32768]{0}', space=vmem, size = 0x8000, scoped, tag = 'input window, operand 0']
    #allocation3 [shape = 's32[2]{0}', space=sflag, size = 0x8, scoped, tag = 'scoped memory for tpu_custom_call.1']
    #allocation4 [shape = 's32[2]{0}', space=sflag, size = 0x8, scoped, tag = 'scoped memory for tpu_custom_call.1']
    #allocation5 [shape = 'u8[4096]{0}', space=vmem, size = 0x1000, scoped, tag = 'input window, operand 1, single buffered']
    #allocation6 [shape = 's32[1]{0}', space=sflag, size = 0x4, scoped, tag = 'scoped memory for tpu_custom_call.1']
    #allocation7 [shape = 'u8[98304]{0}', space=vmem, size = 0x18000, scoped, tag = 'input window, operand 2, single buffered']
    #allocation8 [shape = 'u8[32768]{0}', space=vmem, size = 0x8000, scoped, tag = 'input window, operand 3, single buffered']
    #allocation9 [shape = 's32[1]{0}', space=sflag, size = 0x4, scoped, tag = 'scoped memory for tpu_custom_call.1']
    #allocation10 [shape = 'u8[32768]{0}', space=vmem, size = 0x8000, scoped, tag = 'input window, operand 4, single buffered']
    #allocation11 [shape = 'u8[196608]{0}', space=vmem, size = 0x30000, scoped, tag = 'input window, operand 5, single buffered']
    #allocation12 [shape = 's32[1]{0}', space=sflag, size = 0x4, scoped, tag = 'scoped memory for tpu_custom_call.1']
    #allocation13 [shape = 'u8[32768]{0}', space=vmem, size = 0x8000, scoped, tag = 'output window, operand 0']
    #allocation14 [shape = 'u8[131072]{0}', space=vmem, size = 0x20000, scoped, tag = 'output window, operand 1']
    #allocation15 [shape = 's32[2]{0}', space=sflag, size = 0x8, scoped, tag = 'scoped memory for tpu_custom_call.1']
    %14 = vsyncpa [#allocation3], 0
    %s15 = scalar_lea.sflag [#allocation3], 1
    %16 = vsyncpa %s15, 0
    %17 = vsyncpa [#allocation6], 0
    %18 = vsyncpa [#allocation9], 0
    %19 = vsyncpa [#allocation12], 0
    %20 = vsyncpa [#allocation4], 0
    %s21 = scalar_lea.sflag [#allocation4], 1
    %22 = vsyncpa %s21, 0
    %23 = vsyncpa [#allocation15], 0
    %s24 = scalar_lea.sflag [#allocation15], 1
    %25 = vsyncpa %s24, 0
    loop: start=0, step=1, limit=4
    $region2: #{tpu_custom_call.1} parent=1 // loop_pre_header
      _
    $region3: #{tpu_custom_call.1} parent=1 // loop_header
      %s27 = sphi 0, %s31
      %p28 = scmp.ge.s32.totalorder %s27, 4
      %s37 = sphi 0, %s39
      %s40 = sphi 0, %s37
      %s41 = sphi 0, %s40
      %s57 = sphi 0, %s41
      %s61 = sphi 0, %s61
      %s63 = sphi 0, %s61
      %s64 = sphi 0, %s63
      %s78 = sphi 0, %s64
      %s82 = sphi 0, %s82
      %s84 = sphi 0, %s82
      %s85 = sphi 0, %s84
      %s99 = sphi 0, %s85
      %s103 = sphi 0, %s103
      %s105 = sphi 0, %s103
      %s106 = sphi 0, %s105
      %s120 = sphi 0, %s106
      %s124 = sphi 0, %s124
      %s126 = sphi 0, %s124
      %s127 = sphi 0, %s126
      %s141 = sphi 0, %s127
      %s145 = sphi 0, %s145
      %s147 = sphi 0, %s145
      %s148 = sphi 0, %s147
      %s162 = sphi 0, %s148
      %s166 = sphi 0, %s166
      %s168 = sphi 0, %s166
      %s169 = sphi 0, %s168
      %s183 = sphi 0, %s169
      %s189 = sphi 0, %s191
      %s192 = sphi 0, %s189
      %s193 = sphi 0, %s192
      %s209 = sphi 0, %s193
      %s215 = sphi 0, %s217
      %s218 = sphi 0, %s215
      %s219 = sphi 0, %s218
      %s235 = sphi 0, %s219
    $region4: #{tpu_custom_call.1} parent=1 // loop_header_branch
      %30 = sbr.rel (%p28) target = $region8
    $region5: #{tpu_custom_call.1} parent=1 // loop_body
      %s32 = ssub.s32 %s27, 1
      %s33 = ssub.s32 %s27, 2
      %s34 = sadd.s32 %s27, 1
      %s35 = ssub.s32 %s27, %s34
      %p36 = scmp.eq.s32.totalorder %s35, 0
      %s38 = sadd.s32 %s37, 1
      %s39 = scalar_select %p36, %s37, %s38
      %p42 = pneg %p36
      %p43 = scmp.eq.s32.totalorder %s27, 1
      %p44 = por %p42, %p43
      %p45 = scmp.ne.s32.totalorder %s37, %s40
      %p46 = scmp.eq.s32.totalorder %s27, 0
      %p47 = por %p45, %p46
      %p48 = scmp.ne.s32.totalorder %s37, %s40
      %p49 = scmp.eq.s32.totalorder %s32, 1
      %p50 = por %p48, %p49
      %p51 = scmp.ne.s32.totalorder %s40, %s41
      %p52 = scmp.eq.s32.totalorder %s32, 0
      %p53 = por %p51, %p52
      %p54 = scmp.ne.s32.totalorder %s40, %s41
      %p55 = scmp.eq.s32.totalorder %s33, 1
      %p56 = por %p54, %p55
      %p58 = scmp.ne.s32.totalorder %s41, %s57
      %p59 = scmp.eq.s32.totalorder %s33, 0
      %p60 = por %p58, %p59
      %s62 = sadd.s32 %s61, 1
      %p65 = scmp.eq.s32.totalorder %s27, 1
      %p66 = scmp.ne.s32.totalorder %s61, %s63
      %p67 = scmp.eq.s32.totalorder %s27, 0
      %p68 = por %p66, %p67
      %p69 = scmp.ne.s32.totalorder %s61, %s63
      %p70 = scmp.eq.s32.totalorder %s32, 1
      %p71 = por %p69, %p70
      %p72 = scmp.ne.s32.totalorder %s63, %s64
      %p73 = scmp.eq.s32.totalorder %s32, 0
      %p74 = por %p72, %p73
      %p75 = scmp.ne.s32.totalorder %s63, %s64
      %p76 = scmp.eq.s32.totalorder %s33, 1
      %p77 = por %p75, %p76
      %p79 = scmp.ne.s32.totalorder %s64, %s78
      %p80 = scmp.eq.s32.totalorder %s33, 0
      %p81 = por %p79, %p80
      %s83 = sadd.s32 %s82, 1
      %p86 = scmp.eq.s32.totalorder %s27, 1
      %p87 = scmp.ne.s32.totalorder %s82, %s84
      %p88 = scmp.eq.s32.totalorder %s27, 0
      %p89 = por %p87, %p88
      %p90 = scmp.ne.s32.totalorder %s82, %s84
      %p91 = scmp.eq.s32.totalorder %s32, 1
      %p92 = por %p90, %p91
      %p93 = scmp.ne.s32.totalorder %s84, %s85
      %p94 = scmp.eq.s32.totalorder %s32, 0
      %p95 = por %p93, %p94
      %p96 = scmp.ne.s32.totalorder %s84, %s85
      %p97 = scmp.eq.s32.totalorder %s33, 1
      %p98 = por %p96, %p97
      %p100 = scmp.ne.s32.totalorder %s85, %s99
      %p101 = scmp.eq.s32.totalorder %s33, 0
      %p102 = por %p100, %p101
      %s104 = sadd.s32 %s103, 1
      %p107 = scmp.eq.s32.totalorder %s27, 1
      %p108 = scmp.ne.s32.totalorder %s103, %s105
      %p109 = scmp.eq.s32.totalorder %s27, 0
      %p110 = por %p108, %p109
      %p111 = scmp.ne.s32.totalorder %s103, %s105
      %p112 = scmp.eq.s32.totalorder %s32, 1
      %p113 = por %p111, %p112
      %p114 = scmp.ne.s32.totalorder %s105, %s106
      %p115 = scmp.eq.s32.totalorder %s32, 0
      %p116 = por %p114, %p115
      %p117 = scmp.ne.s32.totalorder %s105, %s106
      %p118 = scmp.eq.s32.totalorder %s33, 1
      %p119 = por %p117, %p118
      %p121 = scmp.ne.s32.totalorder %s106, %s120
      %p122 = scmp.eq.s32.totalorder %s33, 0
      %p123 = por %p121, %p122
      %s125 = sadd.s32 %s124, 1
      %p128 = scmp.eq.s32.totalorder %s27, 1
      %p129 = scmp.ne.s32.totalorder %s124, %s126
      %p130 = scmp.eq.s32.totalorder %s27, 0
      %p131 = por %p129, %p130
      %p132 = scmp.ne.s32.totalorder %s124, %s126
      %p133 = scmp.eq.s32.totalorder %s32, 1
      %p134 = por %p132, %p133
      %p135 = scmp.ne.s32.totalorder %s126, %s127
      %p136 = scmp.eq.s32.totalorder %s32, 0
      %p137 = por %p135, %p136
      %p138 = scmp.ne.s32.totalorder %s126, %s127
      %p139 = scmp.eq.s32.totalorder %s33, 1
      %p140 = por %p138, %p139
      %p142 = scmp.ne.s32.totalorder %s127, %s141
      %p143 = scmp.eq.s32.totalorder %s33, 0
      %p144 = por %p142, %p143
      %s146 = sadd.s32 %s145, 1
      %p149 = scmp.eq.s32.totalorder %s27, 1
      %p150 = scmp.ne.s32.totalorder %s145, %s147
      %p151 = scmp.eq.s32.totalorder %s27, 0
      %p152 = por %p150, %p151
      %p153 = scmp.ne.s32.totalorder %s145, %s147
      %p154 = scmp.eq.s32.totalorder %s32, 1
      %p155 = por %p153, %p154
      %p156 = scmp.ne.s32.totalorder %s147, %s148
      %p157 = scmp.eq.s32.totalorder %s32, 0
      %p158 = por %p156, %p157
      %p159 = scmp.ne.s32.totalorder %s147, %s148
      %p160 = scmp.eq.s32.totalorder %s33, 1
      %p161 = por %p159, %p160
      %p163 = scmp.ne.s32.totalorder %s148, %s162
      %p164 = scmp.eq.s32.totalorder %s33, 0
      %p165 = por %p163, %p164
      %s167 = sadd.s32 %s166, 1
      %p170 = scmp.eq.s32.totalorder %s27, 1
      %p171 = scmp.ne.s32.totalorder %s166, %s168
      %p172 = scmp.eq.s32.totalorder %s27, 0
      %p173 = por %p171, %p172
      %p174 = scmp.ne.s32.totalorder %s166, %s168
      %p175 = scmp.eq.s32.totalorder %s32, 1
      %p176 = por %p174, %p175
      %p177 = scmp.ne.s32.totalorder %s168, %s169
      %p178 = scmp.eq.s32.totalorder %s32, 0
      %p179 = por %p177, %p178
      %p180 = scmp.ne.s32.totalorder %s168, %s169
      %p181 = scmp.eq.s32.totalorder %s33, 1
      %p182 = por %p180, %p181
      %p184 = scmp.ne.s32.totalorder %s169, %s183
      %p185 = scmp.eq.s32.totalorder %s33, 0
      %p186 = por %p184, %p185
      %s187 = ssub.s32 %s27, %s34
      %p188 = scmp.eq.s32.totalorder %s187, 0
      %s190 = sadd.s32 %s189, 1
      %s191 = scalar_select %p188, %s189, %s190
      %p194 = pneg %p188
      %p195 = scmp.eq.s32.totalorder %s27, 1
      %p196 = por %p194, %p195
      %p197 = scmp.ne.s32.totalorder %s189, %s192
      %p198 = scmp.eq.s32.totalorder %s27, 0
      %p199 = por %p197, %p198
      %p200 = scmp.ne.s32.totalorder %s189, %s192
      %p201 = scmp.eq.s32.totalorder %s32, 1
      %p202 = por %p200, %p201
      %p203 = scmp.ne.s32.totalorder %s192, %s193
      %p204 = scmp.eq.s32.totalorder %s32, 0
      %p205 = por %p203, %p204
      %p206 = scmp.ne.s32.totalorder %s192, %s193
      %p207 = scmp.eq.s32.totalorder %s33, 1
      %p208 = por %p206, %p207
      %p210 = scmp.ne.s32.totalorder %s193, %s209
      %p211 = scmp.eq.s32.totalorder %s33, 0
      %p212 = por %p210, %p211
      %s213 = ssub.s32 %s27, %s34
      %p214 = scmp.eq.s32.totalorder %s213, 0
      %s216 = sadd.s32 %s215, 1
      %s217 = scalar_select %p214, %s215, %s216
      %p220 = pneg %p214
      %p221 = scmp.eq.s32.totalorder %s27, 1
      %p222 = por %p220, %p221
      %p223 = scmp.ne.s32.totalorder %s215, %s218
      %p224 = scmp.eq.s32.totalorder %s27, 0
      %p225 = por %p223, %p224
      %p226 = scmp.ne.s32.totalorder %s215, %s218
      %p227 = scmp.eq.s32.totalorder %s32, 1
      %p228 = por %p226, %p227
      %p229 = scmp.ne.s32.totalorder %s218, %s219
      %p230 = scmp.eq.s32.totalorder %s32, 0
      %p231 = por %p229, %p230
      %p232 = scmp.ne.s32.totalorder %s218, %s219
      %p233 = scmp.eq.s32.totalorder %s33, 1
      %p234 = por %p232, %p233
      %p236 = scmp.ne.s32.totalorder %s219, %s235
      %p237 = scmp.eq.s32.totalorder %s33, 0
      %p238 = por %p236, %p237
      %p239 = scmp.le.s32.totalorder 1, %s27
      %p240 = scmp.lt.s32.totalorder %s27, 3
      %p241 = pnand %p239, %p240
      %p242 = pneg %p241
      // Predicated region
      $region9: #{tpu_custom_call.1} parent=5 // pred_check
        _
      $region10: #{tpu_custom_call.1} parent=5 // pred_check_branch
        %244 = sbr.rel (%p241) target = $region12
      $region11: #{tpu_custom_call.1} parent=5 // pred_region
        %s245 = ssub.s32 %s27, 1
        // Predicated region
        $region13: #{tpu_custom_call.1} parent=11 // pred_check
          %p246 = pneg %p74
        $region14: #{tpu_custom_call.1} parent=11 // pred_check_branch
          %248 = sbr.rel (%p246) target = $region16
        $region15: #{tpu_custom_call.1} parent=11 // pred_region
          %250 = vsyncadd [#allocation6], 0
          %s252 = sshll.u32 %s1, 4
          %s253 = int_to_ptr.hbm [resolvable:$true] %s252
          %s254 = sshll.u32 [#allocation5], 4
          %s255 = int_to_ptr.vmem [resolvable:$true] %s254
          %257 = dma.hbm_to_vmem [thread:$0]  %s253, 128, %s255, [#allocation6]
        $region16: #{tpu_custom_call.1} parent=11 // pred_fallthru
          _
        // Predicated region
        $region17: #{tpu_custom_call.1} parent=11 // pred_check
          %p258 = pneg %p95
        $region18: #{tpu_custom_call.1} parent=11 // pred_check_branch
          %260 = sbr.rel (%p258) target = $region20
        $region19: #{tpu_custom_call.1} parent=11 // pred_region
          %262 = vsyncadd [#allocation6], 0
          %s263 = sshll.u32 %s2, 4
          %s264 = int_to_ptr.hbm [resolvable:$true] %s263
          %s265 = sshll.u32 [#allocation7], 4
          %s266 = int_to_ptr.vmem [resolvable:$true] %s265
          %271 = dma.hbm_to_vmem [thread:$0]  %s264, 3072, %s266, [#allocation6], 192, 192, 12
        $region20: #{tpu_custom_call.1} parent=11 // pred_fallthru
          _
        // Predicated region
        $region21: #{tpu_custom_call.1} parent=11 // pred_check
          %p272 = pneg %p116
        $region22: #{tpu_custom_call.1} parent=11 // pred_check_branch
          %274 = sbr.rel (%p272) target = $region24
        $region23: #{tpu_custom_call.1} parent=11 // pred_region
          %276 = vsyncadd [#allocation9], 0
          %s277 = sshll.u32 %s3, 4
          %s278 = int_to_ptr.hbm [resolvable:$true] %s277
          %s279 = sshll.u32 [#allocation8], 4
          %s280 = int_to_ptr.vmem [resolvable:$true] %s279
          %285 = dma.hbm_to_vmem [thread:$0]  %s278, 1024, %s280, [#allocation9], 64, 64, 4
        $region24: #{tpu_custom_call.1} parent=11 // pred_fallthru
          _
        // Predicated region
        $region25: #{tpu_custom_call.1} parent=11 // pred_check
          %p286 = pneg %p137
        $region26: #{tpu_custom_call.1} parent=11 // pred_check_branch
          %288 = sbr.rel (%p286) target = $region28
        $region27: #{tpu_custom_call.1} parent=11 // pred_region
          %290 = vsyncadd [#allocation9], 0
          %s291 = sshll.u32 %s4, 4
          %s292 = int_to_ptr.hbm [resolvable:$true] %s291
          %s293 = sshll.u32 [#allocation10], 4
          %s294 = int_to_ptr.vmem [resolvable:$true] %s293
          %299 = dma.hbm_to_vmem [thread:$0]  %s292, 1024, %s294, [#allocation9], 64, 64, 4
        $region28: #{tpu_custom_call.1} parent=11 // pred_fallthru
          _
        // Predicated region
        $region29: #{tpu_custom_call.1} parent=11 // pred_check
          %p300 = pneg %p158
        $region30: #{tpu_custom_call.1} parent=11 // pred_check_branch
          %302 = sbr.rel (%p300) target = $region32
        $region31: #{tpu_custom_call.1} parent=11 // pred_region
          %304 = vsyncadd [#allocation12], 0
          %s305 = sshll.u32 %s5, 4
          %s306 = int_to_ptr.hbm [resolvable:$true] %s305
          %s307 = sshll.u32 [#allocation11], 4
          %s308 = int_to_ptr.vmem [resolvable:$true] %s307
          %313 = dma.hbm_to_vmem [thread:$0]  %s306, 6144, %s308, [#allocation12], 128, 128, 8
        $region32: #{tpu_custom_call.1} parent=11 // pred_fallthru
          _
        // Predicated region
        $region33: #{tpu_custom_call.1} parent=11 // pred_check
          %p314 = pneg %p179
        $region34: #{tpu_custom_call.1} parent=11 // pred_check_branch
          %316 = sbr.rel (%p314) target = $region36
        $region35: #{tpu_custom_call.1} parent=11 // pred_region
          _
        $region36: #{tpu_custom_call.1} parent=11 // pred_fallthru
          _
      $region12: #{tpu_custom_call.1} parent=5 // pred_fallthru
        _
      %p317 = scmp.lt.s32.totalorder %s27, 2
      // Predicated region
      $region37: #{tpu_custom_call.1} parent=5 // pred_check
        %p318 = pneg %p317
      $region38: #{tpu_custom_call.1} parent=5 // pred_check_branch
        %320 = sbr.rel (%p318) target = $region40
      $region39: #{tpu_custom_call.1} parent=5 // pred_region
        // Predicated region
        $region41: #{tpu_custom_call.1} parent=39 // pred_check
          %p321 = pneg %p47
        $region42: #{tpu_custom_call.1} parent=39 // pred_check_branch
          %323 = sbr.rel (%p321) target = $region44
        $region43: #{tpu_custom_call.1} parent=39 // pred_region
          %s324 = sand.u32 %s37, 1
          %s325 = scalar_lea.sflag [#allocation3], %s324
          %s326 = sand.u32 %s37, 1
          %s327 = smul.addr %s326, 32
          %s328 = scalar_lea.vmem [#allocation2], %s327
          %s329 = smul.u32 2, %s27
          %331 = vsyncadd %s325, 0
          %s332 = smul.addr %s329, 2
          %s333 = smul.addr %s332, 8
          %s334 = scalar_lea.hbm %s0, %s333
          %s335 = sshll.u32 %s334, 4
          %s336 = int_to_ptr.hbm [resolvable:$true] %s335
          %s337 = sshll.u32 %s328, 4
          %s338 = int_to_ptr.vmem [resolvable:$true] %s337
          %343 = dma.hbm_to_vmem [thread:$0]  %s336, 512, %s338, %s325, 128, 128, 8
        $region44: #{tpu_custom_call.1} parent=39 // pred_fallthru
          _
      $region40: #{tpu_custom_call.1} parent=5 // pred_fallthru
        _
      %p344 = scmp.le.s32.totalorder 1, %s27
      %p345 = scmp.lt.s32.totalorder %s27, 3
      %p346 = pnand %p344, %p345
      %p347 = pneg %p346
      // Predicated region
      $region45: #{tpu_custom_call.1} parent=5 // pred_check
        _
      $region46: #{tpu_custom_call.1} parent=5 // pred_check_branch
        %349 = sbr.rel (%p346) target = $region48
      $region47: #{tpu_custom_call.1} parent=5 // pred_region
        %s350 = ssub.s32 %s27, 1
        %s351 = sand.u32 %s40, 1
        %s352 = scalar_lea.sflag [#allocation3], %s351
        %s353 = sand.u32 %s40, 1
        %s354 = smul.addr %s353, 32
        %s355 = scalar_lea.vmem [#allocation2], %s354
        // Predicated region
        $region49: #{tpu_custom_call.1} parent=47 // pred_check
          %p356 = pneg %p53
        $region50: #{tpu_custom_call.1} parent=47 // pred_check_branch
          %358 = sbr.rel (%p356) target = $region52
        $region51: #{tpu_custom_call.1} parent=47 // pred_region
          %360 = dma.done %s352, 512
        $region52: #{tpu_custom_call.1} parent=47 // pred_fallthru
          _
        // Predicated region
        $region53: #{tpu_custom_call.1} parent=47 // pred_check
          %p361 = pneg %p74
        $region54: #{tpu_custom_call.1} parent=47 // pred_check_branch
          %363 = sbr.rel (%p361) target = $region56
        $region55: #{tpu_custom_call.1} parent=47 // pred_region
          %365 = dma.done [#allocation6], 128
        $region56: #{tpu_custom_call.1} parent=47 // pred_fallthru
          _
        // Predicated region
        $region57: #{tpu_custom_call.1} parent=47 // pred_check
          %p366 = pneg %p95
        $region58: #{tpu_custom_call.1} parent=47 // pred_check_branch
          %368 = sbr.rel (%p366) target = $region60
        $region59: #{tpu_custom_call.1} parent=47 // pred_region
          %370 = dma.done [#allocation6], 3072
        $region60: #{tpu_custom_call.1} parent=47 // pred_fallthru
          _
        // Predicated region
        $region61: #{tpu_custom_call.1} parent=47 // pred_check
          %p371 = pneg %p116
        $region62: #{tpu_custom_call.1} parent=47 // pred_check_branch
          %373 = sbr.rel (%p371) target = $region64
        $region63: #{tpu_custom_call.1} parent=47 // pred_region
          %375 = dma.done [#allocation9], 1024
        $region64: #{tpu_custom_call.1} parent=47 // pred_fallthru
          _
        // Predicated region
        $region65: #{tpu_custom_call.1} parent=47 // pred_check
          %p376 = pneg %p137
        $region66: #{tpu_custom_call.1} parent=47 // pred_check_branch
          %378 = sbr.rel (%p376) target = $region68
        $region67: #{tpu_custom_call.1} parent=47 // pred_region
          %380 = dma.done [#allocation9], 1024
        $region68: #{tpu_custom_call.1} parent=47 // pred_fallthru
          _
        // Predicated region
        $region69: #{tpu_custom_call.1} parent=47 // pred_check
          %p381 = pneg %p158
        $region70: #{tpu_custom_call.1} parent=47 // pred_check_branch
          %383 = sbr.rel (%p381) target = $region72
        $region71: #{tpu_custom_call.1} parent=47 // pred_region
          %385 = dma.done [#allocation12], 6144
        $region72: #{tpu_custom_call.1} parent=47 // pred_fallthru
          _
        %s386 = sand.u32 %s40, 1
        %s387 = scalar_lea.sflag [#allocation3], %s386
        %s388 = sand.u32 %s40, 1
        %s389 = smul.addr %s388, 32
        %s390 = scalar_lea.vmem [#allocation2], %s389
        %p391 = pneg %p53
        %p392 = pneg %p50
        %p393 = pneg %p74
        %p394 = pneg %p71
        %p395 = pneg %p95
        %p396 = pneg %p92
        %p397 = pneg %p116
        %p398 = pneg %p113
        %p399 = pneg %p137
        %p400 = pneg %p134
        %p401 = pneg %p158
        %p402 = pneg %p155
        %p403 = pneg %p179
        %p404 = pneg %p176
        %p405 = pneg %p205
        %p406 = pneg %p202
        %s407 = sand.u32 %s192, 1
        %s408 = scalar_lea.sflag [#allocation4], %s407
        %s409 = sand.u32 %s192, 1
        %s410 = smul.addr %s409, 32
        %s411 = scalar_lea.vmem [#allocation13], %s410
        %p412 = pneg %p231
        %p413 = pneg %p228
        %s414 = sand.u32 %s218, 1
        %s415 = scalar_lea.sflag [#allocation15], %s414
        %s416 = sand.u32 %s218, 1
        %s417 = smul.addr %s416, 128
        %s418 = scalar_lea.vmem [#allocation14], %s417
        %s419 = smul.u32 2, %s32
        %s420 = smul.u32 2, %s32
        %s421 = smul.u32 2, %s32
        %v423 = vld [vmem:[%s355] sm:$0xff]
        %v424 = vld [vmem:[%s355 + $0x8] sm:$0xff]
        %v425 = vld [vmem:[%s355 + $0x10] sm:$0xff]
        %v426 = vld [vmem:[%s355 + $0x18] sm:$0xff]
        %v427 = vld [vmem:[#allocation5] sm:$0x1]
        %v428 = vld [vmem:[#allocation5 + $0x1] sm:$0x1]
        %v429 = vld [vmem:[#allocation5 + $0x2] sm:$0x1]
        %v430 = vld [vmem:[#allocation5 + $0x3] sm:$0x1]
        %v431 = vld [vmem:[#allocation5 + $0x4] sm:$0x1]
        %v432 = vld [vmem:[#allocation5 + $0x5] sm:$0x1]
        %433 = vadd.xlane.f32.xlu0 %v423
        %v434 = vpop.xlane.xlu0 %433
        %435 = vadd.xlane.f32.xlu0 %v424
        %v436 = vpop.xlane.xlu0 %435
        %437 = vadd.xlane.f32.xlu0 %v425
        %v438 = vpop.xlane.xlu0 %437
        %439 = vadd.xlane.f32.xlu0 %v426
        %v440 = vpop.xlane.xlu0 %439
        %v441 = vrcp.pop 128.0
        %v442 = vmul.f32 128.0, %v441
        %v443 = vsub.f32 1.0, %v442
        %v444 = vmul.f32 %v441, %v443
        %v445 = vadd.f32 %v441, %v444
        %vm446 = vweird.f32 %v441
        %v447 = vsel %vm446, %v441, %v445
        %v448 = vmul.f32 %v434, %v447
        %v449 = vmul.f32 %v436, %v447
        %v450 = vmul.f32 %v438, %v447
        %v451 = vmul.f32 %v440, %v447
        %v452 = vsub.f32 %v423, %v448
        %v453 = vsub.f32 %v424, %v449
        %v454 = vsub.f32 %v425, %v450
        %v455 = vsub.f32 %v426, %v451
        %v456 = vmul.f32 %v452, %v452
        %v457 = vmul.f32 %v453, %v453
        %v458 = vmul.f32 %v454, %v454
        %v459 = vmul.f32 %v455, %v455
        %460 = vadd.xlane.f32.xlu0 %v456
        %v461 = vpop.xlane.xlu0 %460
        %462 = vadd.xlane.f32.xlu0 %v457
        %v463 = vpop.xlane.xlu0 %462
        %464 = vadd.xlane.f32.xlu0 %v458
        %v465 = vpop.xlane.xlu0 %464
        %466 = vadd.xlane.f32.xlu0 %v459
        %v467 = vpop.xlane.xlu0 %466
        %v468 = vmul.f32 %v461, %v447
        %v469 = vmul.f32 %v463, %v447
        %v470 = vmul.f32 %v465, %v447
        %v471 = vmul.f32 %v467, %v447
        %v472 = vadd.f32 %v468, 1e-05
        %v473 = vadd.f32 %v469, 1e-05
        %v474 = vadd.f32 %v470, 1e-05
        %v475 = vadd.f32 %v471, 1e-05
        %v476 = vrsqrt.pop %v472
        %v477 = vmul.f32 %v476, %v472
        %v478 = vmul.f32 %v477, %v476
        %v479 = vmul.f32 0.5, %v478
        %v480 = vsub.f32 1.5, %v479
        %v481 = vmul.f32 %v476, %v480
        %vm482 = vweird.f32 %v472
        %vm483 = vweird.f32 %v476
        %vm484 = vmor %vm482, %vm483
        %v485 = vsel %vm484, %v476, %v481
        %v486 = vrsqrt.pop %v473
        %v487 = vmul.f32 %v486, %v473
        %v488 = vmul.f32 %v487, %v486
        %v489 = vmul.f32 0.5, %v488
        %v490 = vsub.f32 1.5, %v489
        %v491 = vmul.f32 %v486, %v490
        %vm492 = vweird.f32 %v473
        %vm493 = vweird.f32 %v486
        %vm494 = vmor %vm492, %vm493
        %v495 = vsel %vm494, %v486, %v491
        %v496 = vrsqrt.pop %v474
        %v497 = vmul.f32 %v496, %v474
        %v498 = vmul.f32 %v497, %v496
        %v499 = vmul.f32 0.5, %v498
        %v500 = vsub.f32 1.5, %v499
        %v501 = vmul.f32 %v496, %v500
        %vm502 = vweird.f32 %v474
        %vm503 = vweird.f32 %v496
        %vm504 = vmor %vm502, %vm503
        %v505 = vsel %vm504, %v496, %v501
        %v506 = vrsqrt.pop %v475
        %v507 = vmul.f32 %v506, %v475
        %v508 = vmul.f32 %v507, %v506
        %v509 = vmul.f32 0.5, %v508
        %v510 = vsub.f32 1.5, %v509
        %v511 = vmul.f32 %v506, %v510
        %vm512 = vweird.f32 %v475
        %vm513 = vweird.f32 %v506
        %vm514 = vmor %vm512, %vm513
        %v515 = vsel %vm514, %v506, %v511
        %v516 = vmul.f32 %v452, %v485
        %v517 = vmul.f32 %v453, %v495
        %v518 = vmul.f32 %v454, %v505
        %v519 = vmul.f32 %v455, %v515
        %v520 = vperm.slane %v427, 0
        %v521 = vmul.f32 %v516, %v520
        %v522 = vmul.f32 %v517, %v520
        %v523 = vmul.f32 %v518, %v520
        %v524 = vmul.f32 %v519, %v520
        %v525 = vperm.slane %v428, 0
        %v526 = vadd.f32 %v521, %v525
        %v527 = vadd.f32 %v522, %v525
        %v528 = vadd.f32 %v523, %v525
        %v529 = vadd.f32 %v524, %v525
        %v530 = vpack.c.bf16 %v527, %v526
        %v531 = vpack.c.bf16 %v529, %v528
        %v532 = vld [vmem:[#allocation7] sm:$0xff]
        %v533 = vld [vmem:[#allocation7 + $0x8] sm:$0xf]
        %v534 = vld [vmem:[#allocation7 + $0xc] sm:$0xff]
        %v535 = vld [vmem:[#allocation7 + $0x14] sm:$0xf]
        %v536 = vld [vmem:[#allocation7 + $0x18] sm:$0xff]
        %v537 = vld [vmem:[#allocation7 + $0x20] sm:$0xf]
        %v538 = vld [vmem:[#allocation7 + $0x24] sm:$0xff]
        %v539 = vld [vmem:[#allocation7 + $0x2c] sm:$0xf]
        %v540 = vld [vmem:[#allocation7 + $0x30] sm:$0xff]
        %v541 = vld [vmem:[#allocation7 + $0x38] sm:$0xf]
        %v542 = vld [vmem:[#allocation7 + $0x3c] sm:$0xff]
        %v543 = vld [vmem:[#allocation7 + $0x44] sm:$0xf]
        %v544 = vld [vmem:[#allocation7 + $0x48] sm:$0xff]
        %v545 = vld [vmem:[#allocation7 + $0x50] sm:$0xf]
        %v546 = vld [vmem:[#allocation7 + $0x54] sm:$0xff]
        %v547 = vld [vmem:[#allocation7 + $0x5c] sm:$0xf]
        %v548 = vld [vmem:[#allocation7 + $0x60] sm:$0xff]
        %v549 = vld [vmem:[#allocation7 + $0x68] sm:$0xf]
        %v550 = vld [vmem:[#allocation7 + $0x6c] sm:$0xff]
        %v551 = vld [vmem:[#allocation7 + $0x74] sm:$0xf]
        %v552 = vld [vmem:[#allocation7 + $0x78] sm:$0xff]
        %v553 = vld [vmem:[#allocation7 + $0x80] sm:$0xf]
        %v554 = vld [vmem:[#allocation7 + $0x84] sm:$0xff]
        %v555 = vld [vmem:[#allocation7 + $0x8c] sm:$0xf]
        %v556 = vld [vmem:[#allocation7 + $0x90] sm:$0xff]
        %v557 = vld [vmem:[#allocation7 + $0x98] sm:$0xf]
        %v558 = vld [vmem:[#allocation7 + $0x9c] sm:$0xff]
        %v559 = vld [vmem:[#allocation7 + $0xa4] sm:$0xf]
        %v560 = vld [vmem:[#allocation7 + $0xa8] sm:$0xff]
        %v561 = vld [vmem:[#allocation7 + $0xb0] sm:$0xf]
        %v562 = vld [vmem:[#allocation7 + $0xb4] sm:$0xff]
        %v563 = vld [vmem:[#allocation7 + $0xbc] sm:$0xf]
        %v596 = vunpack.c.l.b16 %v532
        %v597 = vunpack.c.h.b16 %v532
        %v598 = vunpack.c.l.b16 %v533
        %v599 = vunpack.c.l.b16 %v534
        %v600 = vunpack.c.h.b16 %v534
        %v601 = vunpack.c.l.b16 %v535
        %v602 = vunpack.c.l.b16 %v536
        %v603 = vunpack.c.h.b16 %v536
        %v604 = vunpack.c.l.b16 %v537
        %v605 = vunpack.c.l.b16 %v538
        %v606 = vunpack.c.h.b16 %v538
        %v607 = vunpack.c.l.b16 %v539
        %v608 = vunpack.c.l.b16 %v540
        %v609 = vunpack.c.h.b16 %v540
        %v610 = vunpack.c.l.b16 %v541
        %v611 = vunpack.c.l.b16 %v542
        %v612 = vunpack.c.h.b16 %v542
        %v613 = vunpack.c.l.b16 %v543
        %v614 = vunpack.c.l.b16 %v544
        %v615 = vunpack.c.h.b16 %v544
        %v616 = vunpack.c.l.b16 %v545
        %v617 = vunpack.c.l.b16 %v546
        %v618 = vunpack.c.h.b16 %v546
        %v619 = vunpack.c.l.b16 %v547
        %v620 = vunpack.c.l.b16 %v548
        %v621 = vunpack.c.h.b16 %v548
        %v622 = vunpack.c.l.b16 %v549
        %v623 = vunpack.c.l.b16 %v550
        %v624 = vunpack.c.h.b16 %v550
        %v625 = vunpack.c.l.b16 %v551
        %v626 = vunpack.c.l.b16 %v552
        %v627 = vunpack.c.h.b16 %v552
        %v628 = vunpack.c.l.b16 %v553
        %v629 = vunpack.c.l.b16 %v554
        %v630 = vunpack.c.h.b16 %v554
        %v631 = vunpack.c.l.b16 %v555
        %v632 = vunpack.c.l.b16 %v556
        %v633 = vunpack.c.h.b16 %v556
        %v634 = vunpack.c.l.b16 %v557
        %v635 = vunpack.c.l.b16 %v558
        %v636 = vunpack.c.h.b16 %v558
        %v637 = vunpack.c.l.b16 %v559
        %v638 = vunpack.c.l.b16 %v560
        %v639 = vunpack.c.h.b16 %v560
        %v640 = vunpack.c.l.b16 %v561
        %v641 = vunpack.c.l.b16 %v562
        %v642 = vunpack.c.h.b16 %v562
        %v643 = vunpack.c.l.b16 %v563
        %v644 = vpack.c.b16 %v599, %v596
        %v645 = vpack.c.b16 %v600, %v597
        %v646 = vpack.c.b16 %v601, %v598
        %v647 = vpack.c.b16 %v605, %v602
        %v648 = vpack.c.b16 %v606, %v603
        %v649 = vpack.c.b16 %v607, %v604
        %v650 = vpack.c.b16 %v611, %v608
        %v651 = vpack.c.b16 %v612, %v609
        %v652 = vpack.c.b16 %v613, %v610
        %v653 = vpack.c.b16 %v617, %v614
        %v654 = vpack.c.b16 %v618, %v615
        %v655 = vpack.c.b16 %v619, %v616
        %v656 = vpack.c.b16 %v623, %v620
        %v657 = vpack.c.b16 %v624, %v621
        %v658 = vpack.c.b16 %v625, %v622
        %v659 = vpack.c.b16 %v629, %v626
        %v660 = vpack.c.b16 %v630, %v627
        %v661 = vpack.c.b16 %v631, %v628
        %v662 = vpack.c.b16 %v635, %v632
        %v663 = vpack.c.b16 %v636, %v633
        %v664 = vpack.c.b16 %v637, %v634
        %v665 = vpack.c.b16 %v641, %v638
        %v666 = vpack.c.b16 %v642, %v639
        %v667 = vpack.c.b16 %v643, %v640
        %692 = vmatpush.bf16.msra.mxu0 %v665
        %693 = vmatpush.bf16.msra.mxu0 %v662
        %694 = vmatpush.bf16.msra.mxu0 %v659
        %695 = vmatpush.bf16.msra.mxu0 %v656
        %696 = vmatpush.bf16.msra.mxu0 %v653
        %697 = vmatpush.bf16.msra.mxu0 %v650
        %698 = vmatpush.bf16.msra.mxu0 %v647
        %699 = vmatpush.bf16.msra.mxu0 %v644
        %700 = vmatmul.bf16.gmra.mxu0 %v530
        %v701 = vpop.f32.mrf.mxu0
        %v702 = vadd.f32 0.0, %v701
        %v703 = vpop.f32.mrf.mxu0
        %v704 = vadd.f32 0.0, %v703
        %705 = vmatmul.bf16.gmra.mxu0 %v531
        %v706 = vpop.f32.mrf.mxu0
        %v707 = vadd.f32 0.0, %v706
        %v708 = vpop.f32.mrf.mxu0
        %v709 = vadd.f32 0.0, %v708
        %710 = vdwg.mxu0
        %711 = vmatpush.bf16.msra.mxu0 %v666
        %712 = vmatpush.bf16.msra.mxu0 %v663
        %713 = vmatpush.bf16.msra.mxu0 %v660
        %714 = vmatpush.bf16.msra.mxu0 %v657
        %715 = vmatpush.bf16.msra.mxu0 %v654
        %716 = vmatpush.bf16.msra.mxu0 %v651
        %717 = vmatpush.bf16.msra.mxu0 %v648
        %718 = vmatpush.bf16.msra.mxu0 %v645
        %719 = vmatmul.bf16.gmra.mxu0 %v530
        %v720 = vpop.f32.mrf.mxu0
        %v721 = vadd.f32 0.0, %v720
        %v722 = vpop.f32.mrf.mxu0
        %v723 = vadd.f32 0.0, %v722
        %724 = vmatmul.bf16.gmra.mxu0 %v531
        %v725 = vpop.f32.mrf.mxu0
        %v726 = vadd.f32 0.0, %v725
        %v727 = vpop.f32.mrf.mxu0
        %v728 = vadd.f32 0.0, %v727
        %729 = vdwg.mxu0
        %730 = vmatpush.bf16.msra.mxu0 %v667
        %731 = vmatpush.bf16.msra.mxu0 %v664
        %732 = vmatpush.bf16.msra.mxu0 %v661
        %733 = vmatpush.bf16.msra.mxu0 %v658
        %734 = vmatpush.bf16.msra.mxu0 %v655
        %735 = vmatpush.bf16.msra.mxu0 %v652
        %736 = vmatpush.bf16.msra.mxu0 %v649
        %737 = vmatpush.bf16.msra.mxu0 %v646
        %738 = vmatmul.bf16.gmra.mxu0 %v530
        %v739 = vpop.f32.mrf.mxu0
        %v740 = vadd.f32 0.0, %v739
        %v741 = vpop.f32.mrf.mxu0
        %v742 = vadd.f32 0.0, %v741
        %743 = vmatmul.bf16.gmra.mxu0 %v531
        %v744 = vpop.f32.mrf.mxu0
        %v745 = vadd.f32 0.0, %v744
        %v746 = vpop.f32.mrf.mxu0
        %v747 = vadd.f32 0.0, %v746
        %748 = vdwg.mxu0
        %v749 = vpack.c.bf16 %v721, %v702
        %v750 = vpack.c.bf16 %v740, %v740
        %v751 = vpack.c.bf16 %v723, %v704
        %v752 = vpack.c.bf16 %v742, %v742
        %v753 = vpack.c.bf16 %v726, %v707
        %v754 = vpack.c.bf16 %v745, %v745
        %v755 = vpack.c.bf16 %v728, %v709
        %v756 = vpack.c.bf16 %v747, %v747
        %v759 = vunpack.c.l.b16 %v749
        %v760 = vunpack.c.l.b16 %v751
        %v761 = vpack.c.b16 %v760, %v759
        %v762 = vunpack.c.h.b16 %v749
        %v763 = vunpack.c.h.b16 %v751
        %v764 = vpack.c.b16 %v763, %v762
        %vm765 = vcmask 261120
        %v767 = vsel %vm765, %v761, 0
        %v770 = vsel %vm765, %v764, 0
        %772 = vmatpush.bf16.xpose.msra.mxu0 0
        %773 = vmatpush.bf16.xpose.msra.mxu0 0
        %774 = vmatpush.bf16.xpose.msra.mxu0 0
        %775 = vmatpush.bf16.xpose.msra.mxu0 0
        %776 = vmatpush.bf16.xpose.msra.mxu0 0
        %777 = vmatpush.bf16.xpose.msra.mxu0 0
        %778 = vmatpush.bf16.xpose.msra.mxu0 0
        %779 = vmatpush.bf16.xpose.msra.mxu0 %v770
        %780 = vmatmul.bf16.gmra.mxu0 %v767
        %v781 = vpop.f32.mrf.mxu0
        %v782 = vadd.f32 0.0, %v781
        %v783 = vpop.f32.mrf.mxu0
        %v784 = vadd.f32 0.0, %v783
        %785 = vdwg.mxu0
        %v786 = vmul.f32 %v782, 0.17677669
        %v787 = vmul.f32 %v784, 0.17677669
        %vm788 = vcmask 130048
        %v789 = vsel %vm788, %v786, -inf
        %790 = vmax.xlane.f32.xlu0 %v789
        %v791 = vpop.xlane.xlu0 %790
        %v792 = vsel %vm788, %v787, -inf
        %793 = vmax.xlane.f32.xlu0 %v792
        %v794 = vpop.xlane.xlu0 %793
        %v795 = vsub.f32 %v786, %v791
        %v796 = vsub.f32 %v787, %v794
        %v797 = vmul.f32 %v795, 1.442695
        %v798 = vpow.pop %v797
        %v799 = vmul.f32 %v796, 1.442695
        %v800 = vpow.pop %v799
        %v801 = vsel %vm788, %v798, 0.0
        %802 = vadd.xlane.f32.xlu0 %v801
        %v803 = vpop.xlane.xlu0 %802
        %v804 = vsel %vm788, %v800, 0.0
        %805 = vadd.xlane.f32.xlu0 %v804
        %v806 = vpop.xlane.xlu0 %805
        %v807 = vrcp.pop %v803
        %v808 = vrcp.pop %v806
        %v809 = vmul.f32 %v798, %v807
        %v810 = vmul.f32 %v800, %v808
        %811 = vst.msk [vmem:[%s418] sm:$0xff] %vm788, %v809
        %812 = vst.msk [vmem:[%s418 + $0x8] sm:$0xff] %vm788, %v810
        %v813 = vpack.c.bf16 %v810, %v809
        %v816 = vunpack.c.l.b16 %v750
        %v817 = vunpack.c.l.b16 %v752
        %v818 = vpack.c.b16 %v817, %v816
        %v821 = vsel %vm788, %v813, 0
        %823 = vmatpush.bf16.msra.mxu0 0
        %824 = vmatpush.bf16.msra.mxu0 0
        %825 = vmatpush.bf16.msra.mxu0 0
        %826 = vmatpush.bf16.msra.mxu0 0
        %827 = vmatpush.bf16.msra.mxu0 0
        %828 = vmatpush.bf16.msra.mxu0 0
        %829 = vmatpush.bf16.msra.mxu0 0
        %830 = vmatpush.bf16.msra.mxu0 %v818
        %831 = vmatmul.bf16.gmra.mxu0 %v821
        %v832 = vpop.f32.mrf.mxu0
        %v833 = vadd.f32 0.0, %v832
        %v834 = vpop.f32.mrf.mxu0
        %v835 = vadd.f32 0.0, %v834
        %836 = vdwg.mxu0
        %v837 = vpack.c.bf16 %v835, %v833
        %v838 = vld [vmem:[#allocation8] sm:$0xf]
        %v839 = vld [vmem:[#allocation8 + $0x4] sm:$0xf]
        %v840 = vld [vmem:[#allocation8 + $0x8] sm:$0xf]
        %v841 = vld [vmem:[#allocation8 + $0xc] sm:$0xf]
        %842 = vrot.lane.b32.xlu0 %v761, 96
        %v843 = vpop.permute.xlu0 %842
        %844 = vrot.lane.b32.xlu0 %v764, 96
        %v845 = vpop.permute.xlu0 %844
        %v847 = vsel %vm765, %v843, 0
        %v850 = vsel %vm765, %v845, 0
        %852 = vmatpush.bf16.xpose.msra.mxu0 0
        %853 = vmatpush.bf16.xpose.msra.mxu0 0
        %854 = vmatpush.bf16.xpose.msra.mxu0 0
        %855 = vmatpush.bf16.xpose.msra.mxu0 0
        %856 = vmatpush.bf16.xpose.msra.mxu0 0
        %857 = vmatpush.bf16.xpose.msra.mxu0 0
        %858 = vmatpush.bf16.xpose.msra.mxu0 0
        %859 = vmatpush.bf16.xpose.msra.mxu0 %v850
        %860 = vmatmul.bf16.gmra.mxu0 %v847
        %v861 = vpop.f32.mrf.mxu0
        %v862 = vadd.f32 0.0, %v861
        %v863 = vpop.f32.mrf.mxu0
        %v864 = vadd.f32 0.0, %v863
        %865 = vdwg.mxu0
        %v866 = vmul.f32 %v862, 0.17677669
        %v867 = vmul.f32 %v864, 0.17677669
        %v868 = vsel %vm788, %v866, -inf
        %869 = vmax.xlane.f32.xlu0 %v868
        %v870 = vpop.xlane.xlu0 %869
        %v871 = vsel %vm788, %v867, -inf
        %872 = vmax.xlane.f32.xlu0 %v871
        %v873 = vpop.xlane.xlu0 %872
        %v874 = vsub.f32 %v866, %v870
        %v875 = vsub.f32 %v867, %v873
        %v876 = vmul.f32 %v874, 1.442695
        %v877 = vpow.pop %v876
        %v878 = vmul.f32 %v875, 1.442695
        %v879 = vpow.pop %v878
        %v880 = vsel %vm788, %v877, 0.0
        %881 = vadd.xlane.f32.xlu0 %v880
        %v882 = vpop.xlane.xlu0 %881
        %v883 = vsel %vm788, %v879, 0.0
        %884 = vadd.xlane.f32.xlu0 %v883
        %v885 = vpop.xlane.xlu0 %884
        %v886 = vrcp.pop %v882
        %v887 = vrcp.pop %v885
        %v888 = vmul.f32 %v877, %v886
        %v889 = vmul.f32 %v879, %v887
        %s890 = scalar_lea.vmem %s418, 16 [#allocation14]
        %891 = vst.msk [vmem:[%s890] sm:$0xff] %vm788, %v888
        %892 = vst.msk [vmem:[%s890 + $0x8] sm:$0xff] %vm788, %v889
        %v893 = vpack.c.bf16 %v889, %v888
        %894 = vrot.lane.b32.xlu0 %v818, 96
        %v895 = vpop.permute.xlu0 %894
        %v898 = vsel %vm788, %v893, 0
        %900 = vmatpush.bf16.msra.mxu0 0
        %901 = vmatpush.bf16.msra.mxu0 0
        %902 = vmatpush.bf16.msra.mxu0 0
        %903 = vmatpush.bf16.msra.mxu0 0
        %904 = vmatpush.bf16.msra.mxu0 0
        %905 = vmatpush.bf16.msra.mxu0 0
        %906 = vmatpush.bf16.msra.mxu0 0
        %907 = vmatpush.bf16.msra.mxu0 %v895
        %908 = vmatmul.bf16.gmra.mxu0 %v898
        %v909 = vpop.f32.mrf.mxu0
        %v910 = vadd.f32 0.0, %v909
        %v911 = vpop.f32.mrf.mxu0
        %v912 = vadd.f32 0.0, %v911
        %913 = vdwg.mxu0
        %v914 = vpack.c.bf16 %v912, %v910
        %s915 = scalar_lea.vmem [#allocation8], 16
        %v916 = vld [vmem:[%s915] sm:$0xf]
        %v917 = vld [vmem:[%s915 + $0x4] sm:$0xf]
        %v918 = vld [vmem:[%s915 + $0x8] sm:$0xf]
        %v919 = vld [vmem:[%s915 + $0xc] sm:$0xf]
        %v924 = vunpack.c.l.b16 %v916
        %v925 = vunpack.c.l.b16 %v917
        %v926 = vunpack.c.l.b16 %v918
        %v927 = vunpack.c.l.b16 %v919
        %v928 = vpack.c.b16 %v925, %v924
        %v929 = vpack.c.b16 %v927, %v926
        %v933 = vsel %vm765, %v914, 0
        %935 = vmatpush.bf16.msra.mxu0 0
        %936 = vmatpush.bf16.msra.mxu0 0
        %937 = vmatpush.bf16.msra.mxu0 0
        %938 = vmatpush.bf16.msra.mxu0 0
        %939 = vmatpush.bf16.msra.mxu0 0
        %940 = vmatpush.bf16.msra.mxu0 0
        %941 = vmatpush.bf16.msra.mxu0 %v929
        %942 = vmatpush.bf16.msra.mxu0 %v928
        %943 = vmatmul.bf16.gmra.mxu0 %v933
        %v944 = vpop.f32.mrf.mxu0
        %v945 = vadd.f32 0.0, %v944
        %v946 = vpop.f32.mrf.mxu0
        %v947 = vadd.f32 0.0, %v946
        %948 = vdwg.mxu0
        %v953 = vunpack.c.l.b16 %v838
        %v954 = vunpack.c.l.b16 %v839
        %v955 = vunpack.c.l.b16 %v840
        %v956 = vunpack.c.l.b16 %v841
        %v957 = vpack.c.b16 %v954, %v953
        %v958 = vpack.c.b16 %v956, %v955
        %v962 = vsel %vm765, %v837, 0
        %964 = vmatpush.bf16.msra.mxu0 0
        %965 = vmatpush.bf16.msra.mxu0 0
        %966 = vmatpush.bf16.msra.mxu0 0
        %967 = vmatpush.bf16.msra.mxu0 0
        %968 = vmatpush.bf16.msra.mxu0 0
        %969 = vmatpush.bf16.msra.mxu0 0
        %970 = vmatpush.bf16.msra.mxu0 %v958
        %971 = vmatpush.bf16.msra.mxu0 %v957
        %972 = vmatmul.bf16.gmra.mxu0 %v962
        %v973 = vpop.f32.mrf.mxu0
        %v974 = vadd.f32 %v945, %v973
        %v975 = vpop.f32.mrf.mxu0
        %v976 = vadd.f32 %v947, %v975
        %977 = vdwg.mxu0
        %978 = vrot.lane.b32.xlu0 %v761, 64
        %v979 = vpop.permute.xlu0 %978
        %980 = vrot.lane.b32.xlu0 %v764, 64
        %v981 = vpop.permute.xlu0 %980
        %v983 = vsel %vm765, %v979, 0
        %v986 = vsel %vm765, %v981, 0
        %988 = vmatpush.bf16.xpose.msra.mxu0 0
        %989 = vmatpush.bf16.xpose.msra.mxu0 0
        %990 = vmatpush.bf16.xpose.msra.mxu0 0
        %991 = vmatpush.bf16.xpose.msra.mxu0 0
        %992 = vmatpush.bf16.xpose.msra.mxu0 0
        %993 = vmatpush.bf16.xpose.msra.mxu0 0
        %994 = vmatpush.bf16.xpose.msra.mxu0 0
        %995 = vmatpush.bf16.xpose.msra.mxu0 %v986
        %996 = vmatmul.bf16.gmra.mxu0 %v983
        %v997 = vpop.f32.mrf.mxu0
        %v998 = vadd.f32 0.0, %v997
        %v999 = vpop.f32.mrf.mxu0
        %v1000 = vadd.f32 0.0, %v999
        %1001 = vdwg.mxu0
        %v1002 = vmul.f32 %v998, 0.17677669
        %v1003 = vmul.f32 %v1000, 0.17677669
        %v1004 = vsel %vm788, %v1002, -inf
        %1005 = vmax.xlane.f32.xlu0 %v1004
        %v1006 = vpop.xlane.xlu0 %1005
        %v1007 = vsel %vm788, %v1003, -inf
        %1008 = vmax.xlane.f32.xlu0 %v1007
        %v1009 = vpop.xlane.xlu0 %1008
        %v1010 = vsub.f32 %v1002, %v1006
        %v1011 = vsub.f32 %v1003, %v1009
        %v1012 = vmul.f32 %v1010, 1.442695
        %v1013 = vpow.pop %v1012
        %v1014 = vmul.f32 %v1011, 1.442695
        %v1015 = vpow.pop %v1014
        %v1016 = vsel %vm788, %v1013, 0.0
        %1017 = vadd.xlane.f32.xlu0 %v1016
        %v1018 = vpop.xlane.xlu0 %1017
        %v1019 = vsel %vm788, %v1015, 0.0
        %1020 = vadd.xlane.f32.xlu0 %v1019
        %v1021 = vpop.xlane.xlu0 %1020
        %v1022 = vrcp.pop %v1018
        %v1023 = vrcp.pop %v1021
        %v1024 = vmul.f32 %v1013, %v1022
        %v1025 = vmul.f32 %v1015, %v1023
        %s1026 = scalar_lea.vmem %s418, 32 [#allocation14]
        %1027 = vst.msk [vmem:[%s1026] sm:$0xff] %vm788, %v1024
        %1028 = vst.msk [vmem:[%s1026 + $0x8] sm:$0xff] %vm788, %v1025
        %v1029 = vpack.c.bf16 %v1025, %v1024
        %1030 = vrot.lane.b32.xlu0 %v818, 64
        %v1031 = vpop.permute.xlu0 %1030
        %v1034 = vsel %vm788, %v1029, 0
        %1036 = vmatpush.bf16.msra.mxu0 0
        %1037 = vmatpush.bf16.msra.mxu0 0
        %1038 = vmatpush.bf16.msra.mxu0 0
        %1039 = vmatpush.bf16.msra.mxu0 0
        %1040 = vmatpush.bf16.msra.mxu0 0
        %1041 = vmatpush.bf16.msra.mxu0 0
        %1042 = vmatpush.bf16.msra.mxu0 0
        %1043 = vmatpush.bf16.msra.mxu0 %v1031
        %1044 = vmatmul.bf16.gmra.mxu0 %v1034
        %v1045 = vpop.f32.mrf.mxu0
        %v1046 = vadd.f32 0.0, %v1045
        %v1047 = vpop.f32.mrf.mxu0
        %v1048 = vadd.f32 0.0, %v1047
        %1049 = vdwg.mxu0
        %v1050 = vpack.c.bf16 %v1048, %v1046
        %s1051 = scalar_lea.vmem [#allocation8], 32
        %v1052 = vld [vmem:[%s1051] sm:$0xf]
        %v1053 = vld [vmem:[%s1051 + $0x4] sm:$0xf]
        %v1054 = vld [vmem:[%s1051 + $0x8] sm:$0xf]
        %v1055 = vld [vmem:[%s1051 + $0xc] sm:$0xf]
        %v1060 = vunpack.c.l.b16 %v1052
        %v1061 = vunpack.c.l.b16 %v1053
        %v1062 = vunpack.c.l.b16 %v1054
        %v1063 = vunpack.c.l.b16 %v1055
        %v1064 = vpack.c.b16 %v1061, %v1060
        %v1065 = vpack.c.b16 %v1063, %v1062
        %v1069 = vsel %vm765, %v1050, 0
        %1071 = vmatpush.bf16.msra.mxu0 0
        %1072 = vmatpush.bf16.msra.mxu0 0
        %1073 = vmatpush.bf16.msra.mxu0 0
        %1074 = vmatpush.bf16.msra.mxu0 0
        %1075 = vmatpush.bf16.msra.mxu0 0
        %1076 = vmatpush.bf16.msra.mxu0 0
        %1077 = vmatpush.bf16.msra.mxu0 %v1065
        %1078 = vmatpush.bf16.msra.mxu0 %v1064
        %1079 = vmatmul.bf16.gmra.mxu0 %v1069
        %v1080 = vpop.f32.mrf.mxu0
        %v1081 = vadd.f32 0.0, %v1080
        %v1082 = vpop.f32.mrf.mxu0
        %v1083 = vadd.f32 0.0, %v1082
        %1084 = vdwg.mxu0
        %v1085 = vadd.f32 %v974, %v1081
        %v1086 = vadd.f32 %v976, %v1083
        %1087 = vrot.lane.b32.xlu0 %v761, 32
        %v1088 = vpop.permute.xlu0 %1087
        %1089 = vrot.lane.b32.xlu0 %v764, 32
        %v1090 = vpop.permute.xlu0 %1089
        %v1092 = vsel %vm765, %v1088, 0
        %v1095 = vsel %vm765, %v1090, 0
        %1097 = vmatpush.bf16.xpose.msra.mxu0 0
        %1098 = vmatpush.bf16.xpose.msra.mxu0 0
        %1099 = vmatpush.bf16.xpose.msra.mxu0 0
        %1100 = vmatpush.bf16.xpose.msra.mxu0 0
        %1101 = vmatpush.bf16.xpose.msra.mxu0 0
        %1102 = vmatpush.bf16.xpose.msra.mxu0 0
        %1103 = vmatpush.bf16.xpose.msra.mxu0 0
        %1104 = vmatpush.bf16.xpose.msra.mxu0 %v1095
        %1105 = vmatmul.bf16.gmra.mxu0 %v1092
        %v1106 = vpop.f32.mrf.mxu0
        %v1107 = vadd.f32 0.0, %v1106
        %v1108 = vpop.f32.mrf.mxu0
        %v1109 = vadd.f32 0.0, %v1108
        %1110 = vdwg.mxu0
        %v1111 = vmul.f32 %v1107, 0.17677669
        %v1112 = vmul.f32 %v1109, 0.17677669
        %v1113 = vsel %vm788, %v1111, -inf
        %1114 = vmax.xlane.f32.xlu0 %v1113
        %v1115 = vpop.xlane.xlu0 %1114
        %v1116 = vsel %vm788, %v1112, -inf
        %1117 = vmax.xlane.f32.xlu0 %v1116
        %v1118 = vpop.xlane.xlu0 %1117
        %v1119 = vsub.f32 %v1111, %v1115
        %v1120 = vsub.f32 %v1112, %v1118
        %v1121 = vmul.f32 %v1119, 1.442695
        %v1122 = vpow.pop %v1121
        %v1123 = vmul.f32 %v1120, 1.442695
        %v1124 = vpow.pop %v1123
        %v1125 = vsel %vm788, %v1122, 0.0
        %1126 = vadd.xlane.f32.xlu0 %v1125
        %v1127 = vpop.xlane.xlu0 %1126
        %v1128 = vsel %vm788, %v1124, 0.0
        %1129 = vadd.xlane.f32.xlu0 %v1128
        %v1130 = vpop.xlane.xlu0 %1129
        %v1131 = vrcp.pop %v1127
        %v1132 = vrcp.pop %v1130
        %v1133 = vmul.f32 %v1122, %v1131
        %v1134 = vmul.f32 %v1124, %v1132
        %s1135 = scalar_lea.vmem %s418, 48 [#allocation14]
        %1136 = vst.msk [vmem:[%s1135] sm:$0xff] %vm788, %v1133
        %1137 = vst.msk [vmem:[%s1135 + $0x8] sm:$0xff] %vm788, %v1134
        %v1138 = vpack.c.bf16 %v1134, %v1133
        %1139 = vrot.lane.b32.xlu0 %v818, 32
        %v1140 = vpop.permute.xlu0 %1139
        %v1143 = vsel %vm788, %v1138, 0
        %1145 = vmatpush.bf16.msra.mxu0 0
        %1146 = vmatpush.bf16.msra.mxu0 0
        %1147 = vmatpush.bf16.msra.mxu0 0
        %1148 = vmatpush.bf16.msra.mxu0 0
        %1149 = vmatpush.bf16.msra.mxu0 0
        %1150 = vmatpush.bf16.msra.mxu0 0
        %1151 = vmatpush.bf16.msra.mxu0 0
        %1152 = vmatpush.bf16.msra.mxu0 %v1140
        %1153 = vmatmul.bf16.gmra.mxu0 %v1143
        %v1154 = vpop.f32.mrf.mxu0
        %v1155 = vadd.f32 0.0, %v1154
        %v1156 = vpop.f32.mrf.mxu0
        %v1157 = vadd.f32 0.0, %v1156
        %1158 = vdwg.mxu0
        %v1159 = vpack.c.bf16 %v1157, %v1155
        %s1160 = scalar_lea.vmem [#allocation8], 48
        %v1161 = vld [vmem:[%s1160] sm:$0xf]
        %v1162 = vld [vmem:[%s1160 + $0x4] sm:$0xf]
        %v1163 = vld [vmem:[%s1160 + $0x8] sm:$0xf]
        %v1164 = vld [vmem:[%s1160 + $0xc] sm:$0xf]
        %v1169 = vunpack.c.l.b16 %v1161
        %v1170 = vunpack.c.l.b16 %v1162
        %v1171 = vunpack.c.l.b16 %v1163
        %v1172 = vunpack.c.l.b16 %v1164
        %v1173 = vpack.c.b16 %v1170, %v1169
        %v1174 = vpack.c.b16 %v1172, %v1171
        %v1178 = vsel %vm765, %v1159, 0
        %1180 = vmatpush.bf16.msra.mxu0 0
        %1181 = vmatpush.bf16.msra.mxu0 0
        %1182 = vmatpush.bf16.msra.mxu0 0
        %1183 = vmatpush.bf16.msra.mxu0 0
        %1184 = vmatpush.bf16.msra.mxu0 0
        %1185 = vmatpush.bf16.msra.mxu0 0
        %1186 = vmatpush.bf16.msra.mxu0 %v1174
        %1187 = vmatpush.bf16.msra.mxu0 %v1173
        %1188 = vmatmul.bf16.gmra.mxu0 %v1178
        %v1189 = vpop.f32.mrf.mxu0
        %v1190 = vadd.f32 0.0, %v1189
        %v1191 = vpop.f32.mrf.mxu0
        %v1192 = vadd.f32 0.0, %v1191
        %1193 = vdwg.mxu0
        %v1194 = vadd.f32 %v1085, %v1190
        %v1195 = vadd.f32 %v1086, %v1192
        %v1198 = vunpack.c.l.b16 %v753
        %v1199 = vunpack.c.l.b16 %v755
        %v1200 = vpack.c.b16 %v1199, %v1198
        %v1201 = vunpack.c.h.b16 %v753
        %v1202 = vunpack.c.h.b16 %v755
        %v1203 = vpack.c.b16 %v1202, %v1201
        %v1205 = vsel %vm765, %v1200, 0
        %v1208 = vsel %vm765, %v1203, 0
        %1210 = vmatpush.bf16.xpose.msra.mxu0 0
        %1211 = vmatpush.bf16.xpose.msra.mxu0 0
        %1212 = vmatpush.bf16.xpose.msra.mxu0 0
        %1213 = vmatpush.bf16.xpose.msra.mxu0 0
        %1214 = vmatpush.bf16.xpose.msra.mxu0 0
        %1215 = vmatpush.bf16.xpose.msra.mxu0 0
        %1216 = vmatpush.bf16.xpose.msra.mxu0 0
        %1217 = vmatpush.bf16.xpose.msra.mxu0 %v1208
        %1218 = vmatmul.bf16.gmra.mxu0 %v1205
        %v1219 = vpop.f32.mrf.mxu0
        %v1220 = vadd.f32 0.0, %v1219
        %v1221 = vpop.f32.mrf.mxu0
        %v1222 = vadd.f32 0.0, %v1221
        %1223 = vdwg.mxu0
        %v1224 = vmul.f32 %v1220, 0.17677669
        %v1225 = vmul.f32 %v1222, 0.17677669
        %v1226 = vsel %vm788, %v1224, -inf
        %1227 = vmax.xlane.f32.xlu0 %v1226
        %v1228 = vpop.xlane.xlu0 %1227
        %v1229 = vsel %vm788, %v1225, -inf
        %1230 = vmax.xlane.f32.xlu0 %v1229
        %v1231 = vpop.xlane.xlu0 %1230
        %v1232 = vsub.f32 %v1224, %v1228
        %v1233 = vsub.f32 %v1225, %v1231
        %v1234 = vmul.f32 %v1232, 1.442695
        %v1235 = vpow.pop %v1234
        %v1236 = vmul.f32 %v1233, 1.442695
        %v1237 = vpow.pop %v1236
        %v1238 = vsel %vm788, %v1235, 0.0
        %1239 = vadd.xlane.f32.xlu0 %v1238
        %v1240 = vpop.xlane.xlu0 %1239
        %v1241 = vsel %vm788, %v1237, 0.0
        %1242 = vadd.xlane.f32.xlu0 %v1241
        %v1243 = vpop.xlane.xlu0 %1242
        %v1244 = vrcp.pop %v1240
        %v1245 = vrcp.pop %v1243
        %v1246 = vmul.f32 %v1235, %v1244
        %v1247 = vmul.f32 %v1237, %v1245
        %s1248 = scalar_lea.vmem %s418, 64 [#allocation14]
        %1249 = vst.msk [vmem:[%s1248] sm:$0xff] %vm788, %v1246
        %1250 = vst.msk [vmem:[%s1248 + $0x8] sm:$0xff] %vm788, %v1247
        %v1251 = vpack.c.bf16 %v1247, %v1246
        %v1254 = vunpack.c.l.b16 %v754
        %v1255 = vunpack.c.l.b16 %v756
        %v1256 = vpack.c.b16 %v1255, %v1254
        %v1259 = vsel %vm788, %v1251, 0
        %1261 = vmatpush.bf16.msra.mxu0 0
        %1262 = vmatpush.bf16.msra.mxu0 0
        %1263 = vmatpush.bf16.msra.mxu0 0
        %1264 = vmatpush.bf16.msra.mxu0 0
        %1265 = vmatpush.bf16.msra.mxu0 0
        %1266 = vmatpush.bf16.msra.mxu0 0
        %1267 = vmatpush.bf16.msra.mxu0 0
        %1268 = vmatpush.bf16.msra.mxu0 %v1256
        %1269 = vmatmul.bf16.gmra.mxu0 %v1259
        %v1270 = vpop.f32.mrf.mxu0
        %v1271 = vadd.f32 0.0, %v1270
        %v1272 = vpop.f32.mrf.mxu0
        %v1273 = vadd.f32 0.0, %v1272
        %1274 = vdwg.mxu0
        %v1275 = vpack.c.bf16 %v1273, %v1271
        %v1276 = vld [vmem:[#allocation8] sm:$0xf]
        %v1277 = vld [vmem:[#allocation8 + $0x4] sm:$0xf]
        %v1278 = vld [vmem:[#allocation8 + $0x8] sm:$0xf]
        %v1279 = vld [vmem:[#allocation8 + $0xc] sm:$0xf]
        %1280 = vrot.lane.b32.xlu0 %v1200, 96
        %v1281 = vpop.permute.xlu0 %1280
        %1282 = vrot.lane.b32.xlu0 %v1203, 96
        %v1283 = vpop.permute.xlu0 %1282
        %v1285 = vsel %vm765, %v1281, 0
        %v1288 = vsel %vm765, %v1283, 0
        %1290 = vmatpush.bf16.xpose.msra.mxu0 0
        %1291 = vmatpush.bf16.xpose.msra.mxu0 0
        %1292 = vmatpush.bf16.xpose.msra.mxu0 0
        %1293 = vmatpush.bf16.xpose.msra.mxu0 0
        %1294 = vmatpush.bf16.xpose.msra.mxu0 0
        %1295 = vmatpush.bf16.xpose.msra.mxu0 0
        %1296 = vmatpush.bf16.xpose.msra.mxu0 0
        %1297 = vmatpush.bf16.xpose.msra.mxu0 %v1288
        %1298 = vmatmul.bf16.gmra.mxu0 %v1285
        %v1299 = vpop.f32.mrf.mxu0
        %v1300 = vadd.f32 0.0, %v1299
        %v1301 = vpop.f32.mrf.mxu0
        %v1302 = vadd.f32 0.0, %v1301
        %1303 = vdwg.mxu0
        %v1304 = vmul.f32 %v1300, 0.17677669
        %v1305 = vmul.f32 %v1302, 0.17677669
        %v1306 = vsel %vm788, %v1304, -inf
        %1307 = vmax.xlane.f32.xlu0 %v1306
        %v1308 = vpop.xlane.xlu0 %1307
        %v1309 = vsel %vm788, %v1305, -inf
        %1310 = vmax.xlane.f32.xlu0 %v1309
        %v1311 = vpop.xlane.xlu0 %1310
        %v1312 = vsub.f32 %v1304, %v1308
        %v1313 = vsub.f32 %v1305, %v1311
        %v1314 = vmul.f32 %v1312, 1.442695
        %v1315 = vpow.pop %v1314
        %v1316 = vmul.f32 %v1313, 1.442695
        %v1317 = vpow.pop %v1316
        %v1318 = vsel %vm788, %v1315, 0.0
        %1319 = vadd.xlane.f32.xlu0 %v1318
        %v1320 = vpop.xlane.xlu0 %1319
        %v1321 = vsel %vm788, %v1317, 0.0
        %1322 = vadd.xlane.f32.xlu0 %v1321
        %v1323 = vpop.xlane.xlu0 %1322
        %v1324 = vrcp.pop %v1320
        %v1325 = vrcp.pop %v1323
        %v1326 = vmul.f32 %v1315, %v1324
        %v1327 = vmul.f32 %v1317, %v1325
        %s1328 = scalar_lea.vmem %s418, 80 [#allocation14]
        %1329 = vst.msk [vmem:[%s1328] sm:$0xff] %vm788, %v1326
        %1330 = vst.msk [vmem:[%s1328 + $0x8] sm:$0xff] %vm788, %v1327
        %v1331 = vpack.c.bf16 %v1327, %v1326
        %1332 = vrot.lane.b32.xlu0 %v1256, 96
        %v1333 = vpop.permute.xlu0 %1332
        %v1336 = vsel %vm788, %v1331, 0
        %1338 = vmatpush.bf16.msra.mxu0 0
        %1339 = vmatpush.bf16.msra.mxu0 0
        %1340 = vmatpush.bf16.msra.mxu0 0
        %1341 = vmatpush.bf16.msra.mxu0 0
        %1342 = vmatpush.bf16.msra.mxu0 0
        %1343 = vmatpush.bf16.msra.mxu0 0
        %1344 = vmatpush.bf16.msra.mxu0 0
        %1345 = vmatpush.bf16.msra.mxu0 %v1333
        %1346 = vmatmul.bf16.gmra.mxu0 %v1336
        %v1347 = vpop.f32.mrf.mxu0
        %v1348 = vadd.f32 0.0, %v1347
        %v1349 = vpop.f32.mrf.mxu0
        %v1350 = vadd.f32 0.0, %v1349
        %1351 = vdwg.mxu0
        %v1352 = vpack.c.bf16 %v1350, %v1348
        %v1353 = vld [vmem:[%s915] sm:$0xf]
        %v1354 = vld [vmem:[%s915 + $0x4] sm:$0xf]
        %v1355 = vld [vmem:[%s915 + $0x8] sm:$0xf]
        %v1356 = vld [vmem:[%s915 + $0xc] sm:$0xf]
        %v1361 = vunpack.c.l.b16 %v1353
        %v1362 = vunpack.c.l.b16 %v1354
        %v1363 = vunpack.c.l.b16 %v1355
        %v1364 = vunpack.c.l.b16 %v1356
        %v1365 = vpack.c.b16 %v1362, %v1361
        %v1366 = vpack.c.b16 %v1364, %v1363
        %v1370 = vsel %vm765, %v1352, 0
        %1372 = vmatpush.bf16.msra.mxu0 0
        %1373 = vmatpush.bf16.msra.mxu0 0
        %1374 = vmatpush.bf16.msra.mxu0 0
        %1375 = vmatpush.bf16.msra.mxu0 0
        %1376 = vmatpush.bf16.msra.mxu0 0
        %1377 = vmatpush.bf16.msra.mxu0 0
        %1378 = vmatpush.bf16.msra.mxu0 %v1366
        %1379 = vmatpush.bf16.msra.mxu0 %v1365
        %1380 = vmatmul.bf16.gmra.mxu0 %v1370
        %v1381 = vpop.f32.mrf.mxu0
        %v1382 = vadd.f32 0.0, %v1381
        %v1383 = vpop.f32.mrf.mxu0
        %v1384 = vadd.f32 0.0, %v1383
        %1385 = vdwg.mxu0
        %v1390 = vunpack.c.l.b16 %v1276
        %v1391 = vunpack.c.l.b16 %v1277
        %v1392 = vunpack.c.l.b16 %v1278
        %v1393 = vunpack.c.l.b16 %v1279
        %v1394 = vpack.c.b16 %v1391, %v1390
        %v1395 = vpack.c.b16 %v1393, %v1392
        %v1399 = vsel %vm765, %v1275, 0
        %1401 = vmatpush.bf16.msra.mxu0 0
        %1402 = vmatpush.bf16.msra.mxu0 0
        %1403 = vmatpush.bf16.msra.mxu0 0
        %1404 = vmatpush.bf16.msra.mxu0 0
        %1405 = vmatpush.bf16.msra.mxu0 0
        %1406 = vmatpush.bf16.msra.mxu0 0
        %1407 = vmatpush.bf16.msra.mxu0 %v1395
        %1408 = vmatpush.bf16.msra.mxu0 %v1394
        %1409 = vmatmul.bf16.gmra.mxu0 %v1399
        %v1410 = vpop.f32.mrf.mxu0
        %v1411 = vadd.f32 %v1382, %v1410
        %v1412 = vpop.f32.mrf.mxu0
        %v1413 = vadd.f32 %v1384, %v1412
        %1414 = vdwg.mxu0
        %1415 = vrot.lane.b32.xlu0 %v1200, 64
        %v1416 = vpop.permute.xlu0 %1415
        %1417 = vrot.lane.b32.xlu0 %v1203, 64
        %v1418 = vpop.permute.xlu0 %1417
        %v1420 = vsel %vm765, %v1416, 0
        %v1423 = vsel %vm765, %v1418, 0
        %1425 = vmatpush.bf16.xpose.msra.mxu0 0
        %1426 = vmatpush.bf16.xpose.msra.mxu0 0
        %1427 = vmatpush.bf16.xpose.msra.mxu0 0
        %1428 = vmatpush.bf16.xpose.msra.mxu0 0
        %1429 = vmatpush.bf16.xpose.msra.mxu0 0
        %1430 = vmatpush.bf16.xpose.msra.mxu0 0
        %1431 = vmatpush.bf16.xpose.msra.mxu0 0
        %1432 = vmatpush.bf16.xpose.msra.mxu0 %v1423
        %1433 = vmatmul.bf16.gmra.mxu0 %v1420
        %v1434 = vpop.f32.mrf.mxu0
        %v1435 = vadd.f32 0.0, %v1434
        %v1436 = vpop.f32.mrf.mxu0
        %v1437 = vadd.f32 0.0, %v1436
        %1438 = vdwg.mxu0
        %v1439 = vmul.f32 %v1435, 0.17677669
        %v1440 = vmul.f32 %v1437, 0.17677669
        %v1441 = vsel %vm788, %v1439, -inf
        %1442 = vmax.xlane.f32.xlu0 %v1441
        %v1443 = vpop.xlane.xlu0 %1442
        %v1444 = vsel %vm788, %v1440, -inf
        %1445 = vmax.xlane.f32.xlu0 %v1444
        %v1446 = vpop.xlane.xlu0 %1445
        %v1447 = vsub.f32 %v1439, %v1443
        %v1448 = vsub.f32 %v1440, %v1446
        %v1449 = vmul.f32 %v1447, 1.442695
        %v1450 = vpow.pop %v1449
        %v1451 = vmul.f32 %v1448, 1.442695
        %v1452 = vpow.pop %v1451
        %v1453 = vsel %vm788, %v1450, 0.0
        %1454 = vadd.xlane.f32.xlu0 %v1453
        %v1455 = vpop.xlane.xlu0 %1454
        %v1456 = vsel %vm788, %v1452, 0.0
        %1457 = vadd.xlane.f32.xlu0 %v1456
        %v1458 = vpop.xlane.xlu0 %1457
        %v1459 = vrcp.pop %v1455
        %v1460 = vrcp.pop %v1458
        %v1461 = vmul.f32 %v1450, %v1459
        %v1462 = vmul.f32 %v1452, %v1460
        %s1463 = scalar_lea.vmem %s418, 96 [#allocation14]
        %1464 = vst.msk [vmem:[%s1463] sm:$0xff] %vm788, %v1461
        %1465 = vst.msk [vmem:[%s1463 + $0x8] sm:$0xff] %vm788, %v1462
        %v1466 = vpack.c.bf16 %v1462, %v1461
        %1467 = vrot.lane.b32.xlu0 %v1256, 64
        %v1468 = vpop.permute.xlu0 %1467
        %v1471 = vsel %vm788, %v1466, 0
        %1473 = vmatpush.bf16.msra.mxu0 0
        %1474 = vmatpush.bf16.msra.mxu0 0
        %1475 = vmatpush.bf16.msra.mxu0 0
        %1476 = vmatpush.bf16.msra.mxu0 0
        %1477 = vmatpush.bf16.msra.mxu0 0
        %1478 = vmatpush.bf16.msra.mxu0 0
        %1479 = vmatpush.bf16.msra.mxu0 0
        %1480 = vmatpush.bf16.msra.mxu0 %v1468
        %1481 = vmatmul.bf16.gmra.mxu0 %v1471
        %v1482 = vpop.f32.mrf.mxu0
        %v1483 = vadd.f32 0.0, %v1482
        %v1484 = vpop.f32.mrf.mxu0
        %v1485 = vadd.f32 0.0, %v1484
        %1486 = vdwg.mxu0
        %v1487 = vpack.c.bf16 %v1485, %v1483
        %v1488 = vld [vmem:[%s1051] sm:$0xf]
        %v1489 = vld [vmem:[%s1051 + $0x4] sm:$0xf]
        %v1490 = vld [vmem:[%s1051 + $0x8] sm:$0xf]
        %v1491 = vld [vmem:[%s1051 + $0xc] sm:$0xf]
        %v1496 = vunpack.c.l.b16 %v1488
        %v1497 = vunpack.c.l.b16 %v1489
        %v1498 = vunpack.c.l.b16 %v1490
        %v1499 = vunpack.c.l.b16 %v1491
        %v1500 = vpack.c.b16 %v1497, %v1496
        %v1501 = vpack.c.b16 %v1499, %v1498
        %v1505 = vsel %vm765, %v1487, 0
        %1507 = vmatpush.bf16.msra.mxu0 0
        %1508 = vmatpush.bf16.msra.mxu0 0
        %1509 = vmatpush.bf16.msra.mxu0 0
        %1510 = vmatpush.bf16.msra.mxu0 0
        %1511 = vmatpush.bf16.msra.mxu0 0
        %1512 = vmatpush.bf16.msra.mxu0 0
        %1513 = vmatpush.bf16.msra.mxu0 %v1501
        %1514 = vmatpush.bf16.msra.mxu0 %v1500
        %1515 = vmatmul.bf16.gmra.mxu0 %v1505
        %v1516 = vpop.f32.mrf.mxu0
        %v1517 = vadd.f32 0.0, %v1516
        %v1518 = vpop.f32.mrf.mxu0
        %v1519 = vadd.f32 0.0, %v1518
        %1520 = vdwg.mxu0
        %v1521 = vadd.f32 %v1411, %v1517
        %v1522 = vadd.f32 %v1413, %v1519
        %1523 = vrot.lane.b32.xlu0 %v1200, 32
        %v1524 = vpop.permute.xlu0 %1523
        %1525 = vrot.lane.b32.xlu0 %v1203, 32
        %v1526 = vpop.permute.xlu0 %1525
        %v1528 = vsel %vm765, %v1524, 0
        %v1531 = vsel %vm765, %v1526, 0
        %1533 = vmatpush.bf16.xpose.msra.mxu0 0
        %1534 = vmatpush.bf16.xpose.msra.mxu0 0
        %1535 = vmatpush.bf16.xpose.msra.mxu0 0
        %1536 = vmatpush.bf16.xpose.msra.mxu0 0
        %1537 = vmatpush.bf16.xpose.msra.mxu0 0
        %1538 = vmatpush.bf16.xpose.msra.mxu0 0
        %1539 = vmatpush.bf16.xpose.msra.mxu0 0
        %1540 = vmatpush.bf16.xpose.msra.mxu0 %v1531
        %1541 = vmatmul.bf16.gmra.mxu0 %v1528
        %v1542 = vpop.f32.mrf.mxu0
        %v1543 = vadd.f32 0.0, %v1542
        %v1544 = vpop.f32.mrf.mxu0
        %v1545 = vadd.f32 0.0, %v1544
        %1546 = vdwg.mxu0
        %v1547 = vmul.f32 %v1543, 0.17677669
        %v1548 = vmul.f32 %v1545, 0.17677669
        %v1549 = vsel %vm788, %v1547, -inf
        %1550 = vmax.xlane.f32.xlu0 %v1549
        %v1551 = vpop.xlane.xlu0 %1550
        %v1552 = vsel %vm788, %v1548, -inf
        %1553 = vmax.xlane.f32.xlu0 %v1552
        %v1554 = vpop.xlane.xlu0 %1553
        %v1555 = vsub.f32 %v1547, %v1551
        %v1556 = vsub.f32 %v1548, %v1554
        %v1557 = vmul.f32 %v1555, 1.442695
        %v1558 = vpow.pop %v1557
        %v1559 = vmul.f32 %v1556, 1.442695
        %v1560 = vpow.pop %v1559
        %v1561 = vsel %vm788, %v1558, 0.0
        %1562 = vadd.xlane.f32.xlu0 %v1561
        %v1563 = vpop.xlane.xlu0 %1562
        %v1564 = vsel %vm788, %v1560, 0.0
        %1565 = vadd.xlane.f32.xlu0 %v1564
        %v1566 = vpop.xlane.xlu0 %1565
        %v1567 = vrcp.pop %v1563
        %v1568 = vrcp.pop %v1566
        %v1569 = vmul.f32 %v1558, %v1567
        %v1570 = vmul.f32 %v1560, %v1568
        %s1571 = scalar_lea.vmem %s418, 112 [#allocation14]
        %1572 = vst.msk [vmem:[%s1571] sm:$0xff] %vm788, %v1569
        %1573 = vst.msk [vmem:[%s1571 + $0x8] sm:$0xff] %vm788, %v1570
        %v1574 = vpack.c.bf16 %v1570, %v1569
        %1575 = vrot.lane.b32.xlu0 %v1256, 32
        %v1576 = vpop.permute.xlu0 %1575
        %v1579 = vsel %vm788, %v1574, 0
        %1581 = vmatpush.bf16.msra.mxu0 0
        %1582 = vmatpush.bf16.msra.mxu0 0
        %1583 = vmatpush.bf16.msra.mxu0 0
        %1584 = vmatpush.bf16.msra.mxu0 0
        %1585 = vmatpush.bf16.msra.mxu0 0
        %1586 = vmatpush.bf16.msra.mxu0 0
        %1587 = vmatpush.bf16.msra.mxu0 0
        %1588 = vmatpush.bf16.msra.mxu0 %v1576
        %1589 = vmatmul.bf16.gmra.mxu0 %v1579
        %v1590 = vpop.f32.mrf.mxu0
        %v1591 = vadd.f32 0.0, %v1590
        %v1592 = vpop.f32.mrf.mxu0
        %v1593 = vadd.f32 0.0, %v1592
        %1594 = vdwg.mxu0
        %v1595 = vpack.c.bf16 %v1593, %v1591
        %v1596 = vld [vmem:[%s1160] sm:$0xf]
        %v1597 = vld [vmem:[%s1160 + $0x4] sm:$0xf]
        %v1598 = vld [vmem:[%s1160 + $0x8] sm:$0xf]
        %v1599 = vld [vmem:[%s1160 + $0xc] sm:$0xf]
        %v1604 = vunpack.c.l.b16 %v1596
        %v1605 = vunpack.c.l.b16 %v1597
        %v1606 = vunpack.c.l.b16 %v1598
        %v1607 = vunpack.c.l.b16 %v1599
        %v1608 = vpack.c.b16 %v1605, %v1604
        %v1609 = vpack.c.b16 %v1607, %v1606
        %v1613 = vsel %vm765, %v1595, 0
        %1615 = vmatpush.bf16.msra.mxu0 0
        %1616 = vmatpush.bf16.msra.mxu0 0
        %1617 = vmatpush.bf16.msra.mxu0 0
        %1618 = vmatpush.bf16.msra.mxu0 0
        %1619 = vmatpush.bf16.msra.mxu0 0
        %1620 = vmatpush.bf16.msra.mxu0 0
        %1621 = vmatpush.bf16.msra.mxu0 %v1609
        %1622 = vmatpush.bf16.msra.mxu0 %v1608
        %1623 = vmatmul.bf16.gmra.mxu0 %v1613
        %v1624 = vpop.f32.mrf.mxu0
        %v1625 = vadd.f32 0.0, %v1624
        %v1626 = vpop.f32.mrf.mxu0
        %v1627 = vadd.f32 0.0, %v1626
        %1628 = vdwg.mxu0
        %v1629 = vadd.f32 %v1521, %v1625
        %v1630 = vadd.f32 %v1522, %v1627
        %v1631 = vperm.slane %v431, 0
        %v1632 = vadd.f32 %v1194, %v1631
        %v1633 = vadd.f32 %v1195, %v1631
        %v1634 = vadd.f32 %v1629, %v1631
        %v1635 = vadd.f32 %v1630, %v1631
        %v1636 = vadd.f32 %v423, %v1632
        %v1637 = vadd.f32 %v424, %v1633
        %v1638 = vadd.f32 %v425, %v1634
        %v1639 = vadd.f32 %v426, %v1635
        %v1640 = vmul.f32 %v1636, 0.70710677
        %v1641 = vmul.f32 %v1637, 0.70710677
        %v1642 = vmul.f32 %v1638, 0.70710677
        %v1643 = vmul.f32 %v1639, 0.70710677
        %1644 = vadd.xlane.f32.xlu0 %v1640
        %v1645 = vpop.xlane.xlu0 %1644
        %1646 = vadd.xlane.f32.xlu0 %v1641
        %v1647 = vpop.xlane.xlu0 %1646
        %1648 = vadd.xlane.f32.xlu0 %v1642
        %v1649 = vpop.xlane.xlu0 %1648
        %1650 = vadd.xlane.f32.xlu0 %v1643
        %v1651 = vpop.xlane.xlu0 %1650
        %v1652 = vmul.f32 %v1645, %v447
        %v1653 = vmul.f32 %v1647, %v447
        %v1654 = vmul.f32 %v1649, %v447
        %v1655 = vmul.f32 %v1651, %v447
        %v1656 = vsub.f32 %v1640, %v1652
        %v1657 = vsub.f32 %v1641, %v1653
        %v1658 = vsub.f32 %v1642, %v1654
        %v1659 = vsub.f32 %v1643, %v1655
        %v1660 = vmul.f32 %v1656, %v1656
        %v1661 = vmul.f32 %v1657, %v1657
        %v1662 = vmul.f32 %v1658, %v1658
        %v1663 = vmul.f32 %v1659, %v1659
        %1664 = vadd.xlane.f32.xlu0 %v1660
        %v1665 = vpop.xlane.xlu0 %1664
        %1666 = vadd.xlane.f32.xlu0 %v1661
        %v1667 = vpop.xlane.xlu0 %1666
        %1668 = vadd.xlane.f32.xlu0 %v1662
        %v1669 = vpop.xlane.xlu0 %1668
        %1670 = vadd.xlane.f32.xlu0 %v1663
        %v1671 = vpop.xlane.xlu0 %1670
        %v1672 = vmul.f32 %v1665, %v447
        %v1673 = vmul.f32 %v1667, %v447
        %v1674 = vmul.f32 %v1669, %v447
        %v1675 = vmul.f32 %v1671, %v447
        %v1676 = vadd.f32 %v1672, 1e-05
        %v1677 = vadd.f32 %v1673, 1e-05
        %v1678 = vadd.f32 %v1674, 1e-05
        %v1679 = vadd.f32 %v1675, 1e-05
        %v1680 = vrsqrt.pop %v1676
        %v1681 = vmul.f32 %v1680, %v1676
        %v1682 = vmul.f32 %v1681, %v1680
        %v1683 = vmul.f32 0.5, %v1682
        %v1684 = vsub.f32 1.5, %v1683
        %v1685 = vmul.f32 %v1680, %v1684
        %vm1686 = vweird.f32 %v1676
        %vm1687 = vweird.f32 %v1680
        %vm1688 = vmor %vm1686, %vm1687
        %v1689 = vsel %vm1688, %v1680, %v1685
        %v1690 = vrsqrt.pop %v1677
        %v1691 = vmul.f32 %v1690, %v1677
        %v1692 = vmul.f32 %v1691, %v1690
        %v1693 = vmul.f32 0.5, %v1692
        %v1694 = vsub.f32 1.5, %v1693
        %v1695 = vmul.f32 %v1690, %v1694
        %vm1696 = vweird.f32 %v1677
        %vm1697 = vweird.f32 %v1690
        %vm1698 = vmor %vm1696, %vm1697
        %v1699 = vsel %vm1698, %v1690, %v1695
        %v1700 = vrsqrt.pop %v1678
        %v1701 = vmul.f32 %v1700, %v1678
        %v1702 = vmul.f32 %v1701, %v1700
        %v1703 = vmul.f32 0.5, %v1702
        %v1704 = vsub.f32 1.5, %v1703
        %v1705 = vmul.f32 %v1700, %v1704
        %vm1706 = vweird.f32 %v1678
        %vm1707 = vweird.f32 %v1700
        %vm1708 = vmor %vm1706, %vm1707
        %v1709 = vsel %vm1708, %v1700, %v1705
        %v1710 = vrsqrt.pop %v1679
        %v1711 = vmul.f32 %v1710, %v1679
        %v1712 = vmul.f32 %v1711, %v1710
        %v1713 = vmul.f32 0.5, %v1712
        %v1714 = vsub.f32 1.5, %v1713
        %v1715 = vmul.f32 %v1710, %v1714
        %vm1716 = vweird.f32 %v1679
        %vm1717 = vweird.f32 %v1710
        %vm1718 = vmor %vm1716, %vm1717
        %v1719 = vsel %vm1718, %v1710, %v1715
        %v1720 = vmul.f32 %v1656, %v1689
        %v1721 = vmul.f32 %v1657, %v1699
        %v1722 = vmul.f32 %v1658, %v1709
        %v1723 = vmul.f32 %v1659, %v1719
        %v1724 = vperm.slane %v429, 0
        %v1725 = vmul.f32 %v1720, %v1724
        %v1726 = vmul.f32 %v1721, %v1724
        %v1727 = vmul.f32 %v1722, %v1724
        %v1728 = vmul.f32 %v1723, %v1724
        %v1729 = vperm.slane %v430, 0
        %v1730 = vadd.f32 %v1725, %v1729
        %v1731 = vadd.f32 %v1726, %v1729
        %v1732 = vadd.f32 %v1727, %v1729
        %v1733 = vadd.f32 %v1728, %v1729
        %v1734 = vpack.c.bf16 %v1731, %v1730
        %v1735 = vpack.c.bf16 %v1733, %v1732
        %v1736 = vld [vmem:[#allocation10] sm:$0xf]
        %v1737 = vld [vmem:[#allocation10 + $0x4] sm:$0xf]
        %v1738 = vld [vmem:[#allocation10 + $0x8] sm:$0xf]
        %v1739 = vld [vmem:[#allocation10 + $0xc] sm:$0xf]
        %v1740 = vld [vmem:[#allocation10 + $0x10] sm:$0xf]
        %v1741 = vld [vmem:[#allocation10 + $0x14] sm:$0xf]
        %v1742 = vld [vmem:[#allocation10 + $0x18] sm:$0xf]
        %v1743 = vld [vmem:[#allocation10 + $0x1c] sm:$0xf]
        %v1744 = vld [vmem:[#allocation10 + $0x20] sm:$0xf]
        %v1745 = vld [vmem:[#allocation10 + $0x24] sm:$0xf]
        %v1746 = vld [vmem:[#allocation10 + $0x28] sm:$0xf]
        %v1747 = vld [vmem:[#allocation10 + $0x2c] sm:$0xf]
        %v1748 = vld [vmem:[#allocation10 + $0x30] sm:$0xf]
        %v1749 = vld [vmem:[#allocation10 + $0x34] sm:$0xf]
        %v1750 = vld [vmem:[#allocation10 + $0x38] sm:$0xf]
        %v1751 = vld [vmem:[#allocation10 + $0x3c] sm:$0xf]
        %v1752 = vperm.slane %v432, 0
        %v1769 = vunpack.c.l.b16 %v1736
        %v1770 = vunpack.c.l.b16 %v1737
        %v1771 = vunpack.c.l.b16 %v1738
        %v1772 = vunpack.c.l.b16 %v1739
        %v1773 = vunpack.c.l.b16 %v1740
        %v1774 = vunpack.c.l.b16 %v1741
        %v1775 = vunpack.c.l.b16 %v1742
        %v1776 = vunpack.c.l.b16 %v1743
        %v1777 = vunpack.c.l.b16 %v1744
        %v1778 = vunpack.c.l.b16 %v1745
        %v1779 = vunpack.c.l.b16 %v1746
        %v1780 = vunpack.c.l.b16 %v1747
        %v1781 = vunpack.c.l.b16 %v1748
        %v1782 = vunpack.c.l.b16 %v1749
        %v1783 = vunpack.c.l.b16 %v1750
        %v1784 = vunpack.c.l.b16 %v1751
        %v1785 = vpack.c.b16 %v1770, %v1769
        %v1786 = vpack.c.b16 %v1772, %v1771
        %v1787 = vpack.c.b16 %v1774, %v1773
        %v1788 = vpack.c.b16 %v1776, %v1775
        %v1789 = vpack.c.b16 %v1778, %v1777
        %v1790 = vpack.c.b16 %v1780, %v1779
        %v1791 = vpack.c.b16 %v1782, %v1781
        %v1792 = vpack.c.b16 %v1784, %v1783
        %1801 = vmatpush.bf16.msra.mxu0 %v1792
        %1802 = vmatpush.bf16.msra.mxu0 %v1791
        %1803 = vmatpush.bf16.msra.mxu0 %v1790
        %1804 = vmatpush.bf16.msra.mxu0 %v1789
        %1805 = vmatpush.bf16.msra.mxu0 %v1788
        %1806 = vmatpush.bf16.msra.mxu0 %v1787
        %1807 = vmatpush.bf16.msra.mxu0 %v1786
        %1808 = vmatpush.bf16.msra.mxu0 %v1785
        %1809 = vmatmul.bf16.gmra.mxu0 %v1734
        %v1810 = vpop.f32.mrf.mxu0
        %v1811 = vadd.f32 %v1752, %v1810
        %v1812 = vpop.f32.mrf.mxu0
        %v1813 = vadd.f32 %v1752, %v1812
        %1814 = vmatmul.bf16.gmra.mxu0 %v1735
        %v1815 = vpop.f32.mrf.mxu0
        %v1816 = vadd.f32 %v1752, %v1815
        %v1817 = vpop.f32.mrf.mxu0
        %v1818 = vadd.f32 %v1752, %v1817
        %1819 = vdwg.mxu0
        %v1820 = vlaneseq
        %v1821 = vshrl.u32 %v1820, 7
        %v1822 = vadd.s32 %v1821, 8
        %v1823 = vadd.s32 %v1821, 16
        %v1824 = vadd.s32 %v1821, 24
        %vm1825 = vcmp.eq.s32.totalorder %v1821, 0
        %vm1826 = vcmp.eq.s32.totalorder %v1822, 0
        %vm1827 = vcmp.eq.s32.totalorder %v1823, 0
        %vm1828 = vcmp.eq.s32.totalorder %v1824, 0
        %v1829 = vsel %vm1825, 1, 0
        %v1830 = vsel %vm1826, 1, 0
        %v1831 = vsel %vm1827, 1, 0
        %v1832 = vsel %vm1828, 1, 0
        %v1833 = vcvt.s32.f32 %v1829
        %v1834 = vcvt.s32.f32 %v1830
        %v1835 = vcvt.s32.f32 %v1831
        %v1836 = vcvt.s32.f32 %v1832
        %v1837 = vadd.f32 %v1833, 0.0
        %v1838 = vadd.f32 %v1834, 0.0
        %v1839 = vadd.f32 %v1835, 0.0
        %v1840 = vadd.f32 %v1836, 0.0
        %vm1841 = vcmp.eq.s32.totalorder %v1821, 16
        %vm1842 = vcmp.eq.s32.totalorder %v1822, 16
        %vm1843 = vcmp.eq.s32.totalorder %v1823, 16
        %vm1844 = vcmp.eq.s32.totalorder %v1824, 16
        %v1845 = vsel %vm1841, 1, 0
        %v1846 = vsel %vm1842, 1, 0
        %v1847 = vsel %vm1843, 1, 0
        %v1848 = vsel %vm1844, 1, 0
        %v1849 = vcvt.s32.f32 %v1845
        %v1850 = vcvt.s32.f32 %v1846
        %v1851 = vcvt.s32.f32 %v1847
        %v1852 = vcvt.s32.f32 %v1848
        %v1853 = vadd.f32 %v1837, %v1849
        %v1854 = vadd.f32 %v1838, %v1850
        %v1855 = vadd.f32 %v1839, %v1851
        %v1856 = vadd.f32 %v1840, %v1852
        %vm1857 = vcmp.eq.s32.totalorder %v1821, 15
        %vm1858 = vcmp.eq.s32.totalorder %v1822, 15
        %vm1859 = vcmp.eq.s32.totalorder %v1823, 15
        %vm1860 = vcmp.eq.s32.totalorder %v1824, 15
        %v1861 = vsel %vm1857, 1, 0
        %v1862 = vsel %vm1858, 1, 0
        %v1863 = vsel %vm1859, 1, 0
        %v1864 = vsel %vm1860, 1, 0
        %v1865 = vcvt.s32.f32 %v1861
        %v1866 = vcvt.s32.f32 %v1862
        %v1867 = vcvt.s32.f32 %v1863
        %v1868 = vcvt.s32.f32 %v1864
        %v1869 = vadd.f32 %v1865, 0.0
        %v1870 = vadd.f32 %v1866, 0.0
        %v1871 = vadd.f32 %v1867, 0.0
        %v1872 = vadd.f32 %v1868, 0.0
        %vm1873 = vcmp.eq.s32.totalorder %v1821, 31
        %vm1874 = vcmp.eq.s32.totalorder %v1822, 31
        %vm1875 = vcmp.eq.s32.totalorder %v1823, 31
        %vm1876 = vcmp.eq.s32.totalorder %v1824, 31
        %v1877 = vsel %vm1873, 1, 0
        %v1878 = vsel %vm1874, 1, 0
        %v1879 = vsel %vm1875, 1, 0
        %v1880 = vsel %vm1876, 1, 0
        %v1881 = vcvt.s32.f32 %v1877
        %v1882 = vcvt.s32.f32 %v1878
        %v1883 = vcvt.s32.f32 %v1879
        %v1884 = vcvt.s32.f32 %v1880
        %v1885 = vadd.f32 %v1869, %v1881
        %v1886 = vadd.f32 %v1870, %v1882
        %v1887 = vadd.f32 %v1871, %v1883
        %v1888 = vadd.f32 %v1872, %v1884
        %v1889 = vrot.slane %v1811, 7
        %v1890 = vrot.slane %v1813, 7
        %v1891 = vrot.slane %v1816, 7
        %v1892 = vrot.slane %v1818, 7
        %vm1893 = vcmp.lt.s32.totalorder %v1821, 1
        %v1894 = vsel %vm1893, %v1891, %v1892
        %v1895 = vsel %vm1893, %v1890, %v1891
        %v1896 = vsel %vm1893, %v1889, %v1890
        %v1897 = vsel %vm1893, %v1892, %v1889
        %v1898 = vsub.f32 1.0, %v1853
        %v1899 = vsub.f32 1.0, %v1854
        %v1900 = vsub.f32 1.0, %v1855
        %v1901 = vsub.f32 1.0, %v1856
        %v1902 = vmul.f32 %v1897, %v1898
        %v1903 = vmul.f32 %v1896, %v1899
        %v1904 = vmul.f32 %v1895, %v1900
        %v1905 = vmul.f32 %v1894, %v1901
        %v1906 = vrot.slane %v1811, 1
        %v1907 = vrot.slane %v1813, 1
        %v1908 = vrot.slane %v1816, 1
        %v1909 = vrot.slane %v1818, 1
        %vm1910 = vcmp.lt.s32.totalorder %v1821, 7
        %v1911 = vsel %vm1910, %v1908, %v1909
        %v1912 = vsel %vm1910, %v1907, %v1908
        %v1913 = vsel %vm1910, %v1906, %v1907
        %v1914 = vsel %vm1910, %v1909, %v1906
        %v1915 = vsub.f32 1.0, %v1885
        %v1916 = vsub.f32 1.0, %v1886
        %v1917 = vsub.f32 1.0, %v1887
        %v1918 = vsub.f32 1.0, %v1888
        %v1919 = vmul.f32 %v1913, %v1915
        %v1920 = vmul.f32 %v1912, %v1916
        %v1921 = vmul.f32 %v1911, %v1917
        %v1922 = vmul.f32 %v1914, %v1918
        %v1923 = vpack.c.bf16 %v1903, %v1902
        %v1924 = vpack.c.bf16 %v1905, %v1904
        %v1925 = vld [vmem:[#allocation11] sm:$0xff]
        %v1926 = vld [vmem:[#allocation11 + $0x8] sm:$0xff]
        %v1927 = vld [vmem:[#allocation11 + $0x10] sm:$0xff]
        %v1928 = vld [vmem:[#allocation11 + $0x18] sm:$0xff]
        %v1929 = vld [vmem:[#allocation11 + $0x20] sm:$0xff]
        %v1930 = vld [vmem:[#allocation11 + $0x28] sm:$0xff]
        %v1931 = vld [vmem:[#allocation11 + $0x30] sm:$0xff]
        %v1932 = vld [vmem:[#allocation11 + $0x38] sm:$0xff]
        %v1933 = vld [vmem:[#allocation11 + $0x40] sm:$0xff]
        %v1934 = vld [vmem:[#allocation11 + $0x48] sm:$0xff]
        %v1935 = vld [vmem:[#allocation11 + $0x50] sm:$0xff]
        %v1936 = vld [vmem:[#allocation11 + $0x58] sm:$0xff]
        %v1937 = vld [vmem:[#allocation11 + $0x60] sm:$0xff]
        %v1938 = vld [vmem:[#allocation11 + $0x68] sm:$0xff]
        %v1939 = vld [vmem:[#allocation11 + $0x70] sm:$0xff]
        %v1940 = vld [vmem:[#allocation11 + $0x78] sm:$0xff]
        %v1941 = vpack.c.bf16 %v1813, %v1811
        %v1942 = vpack.c.bf16 %v1818, %v1816
        %s1943 = scalar_lea.vmem [#allocation11], 128
        %v1944 = vld [vmem:[%s1943] sm:$0xff]
        %v1945 = vld [vmem:[%s1943 + $0x8] sm:$0xff]
        %v1946 = vld [vmem:[%s1943 + $0x10] sm:$0xff]
        %v1947 = vld [vmem:[%s1943 + $0x18] sm:$0xff]
        %v1948 = vld [vmem:[%s1943 + $0x20] sm:$0xff]
        %v1949 = vld [vmem:[%s1943 + $0x28] sm:$0xff]
        %v1950 = vld [vmem:[%s1943 + $0x30] sm:$0xff]
        %v1951 = vld [vmem:[%s1943 + $0x38] sm:$0xff]
        %v1952 = vld [vmem:[%s1943 + $0x40] sm:$0xff]
        %v1953 = vld [vmem:[%s1943 + $0x48] sm:$0xff]
        %v1954 = vld [vmem:[%s1943 + $0x50] sm:$0xff]
        %v1955 = vld [vmem:[%s1943 + $0x58] sm:$0xff]
        %v1956 = vld [vmem:[%s1943 + $0x60] sm:$0xff]
        %v1957 = vld [vmem:[%s1943 + $0x68] sm:$0xff]
        %v1958 = vld [vmem:[%s1943 + $0x70] sm:$0xff]
        %v1959 = vld [vmem:[%s1943 + $0x78] sm:$0xff]
        %v1976 = vunpack.c.l.b16 %v1944
        %v1977 = vunpack.c.h.b16 %v1944
        %v1978 = vunpack.c.l.b16 %v1945
        %v1979 = vunpack.c.h.b16 %v1945
        %v1980 = vunpack.c.l.b16 %v1946
        %v1981 = vunpack.c.h.b16 %v1946
        %v1982 = vunpack.c.l.b16 %v1947
        %v1983 = vunpack.c.h.b16 %v1947
        %v1984 = vunpack.c.l.b16 %v1948
        %v1985 = vunpack.c.h.b16 %v1948
        %v1986 = vunpack.c.l.b16 %v1949
        %v1987 = vunpack.c.h.b16 %v1949
        %v1988 = vunpack.c.l.b16 %v1950
        %v1989 = vunpack.c.h.b16 %v1950
        %v1990 = vunpack.c.l.b16 %v1951
        %v1991 = vunpack.c.h.b16 %v1951
        %v1992 = vunpack.c.l.b16 %v1952
        %v1993 = vunpack.c.h.b16 %v1952
        %v1994 = vunpack.c.l.b16 %v1953
        %v1995 = vunpack.c.h.b16 %v1953
        %v1996 = vunpack.c.l.b16 %v1954
        %v1997 = vunpack.c.h.b16 %v1954
        %v1998 = vunpack.c.l.b16 %v1955
        %v1999 = vunpack.c.h.b16 %v1955
        %v2000 = vunpack.c.l.b16 %v1956
        %v2001 = vunpack.c.h.b16 %v1956
        %v2002 = vunpack.c.l.b16 %v1957
        %v2003 = vunpack.c.h.b16 %v1957
        %v2004 = vunpack.c.l.b16 %v1958
        %v2005 = vunpack.c.h.b16 %v1958
        %v2006 = vunpack.c.l.b16 %v1959
        %v2007 = vunpack.c.h.b16 %v1959
        %v2008 = vpack.c.b16 %v1978, %v1976
        %v2009 = vpack.c.b16 %v1979, %v1977
        %v2010 = vpack.c.b16 %v1982, %v1980
        %v2011 = vpack.c.b16 %v1983, %v1981
        %v2012 = vpack.c.b16 %v1986, %v1984
        %v2013 = vpack.c.b16 %v1987, %v1985
        %v2014 = vpack.c.b16 %v1990, %v1988
        %v2015 = vpack.c.b16 %v1991, %v1989
        %v2016 = vpack.c.b16 %v1994, %v1992
        %v2017 = vpack.c.b16 %v1995, %v1993
        %v2018 = vpack.c.b16 %v1998, %v1996
        %v2019 = vpack.c.b16 %v1999, %v1997
        %v2020 = vpack.c.b16 %v2002, %v2000
        %v2021 = vpack.c.b16 %v2003, %v2001
        %v2022 = vpack.c.b16 %v2006, %v2004
        %v2023 = vpack.c.b16 %v2007, %v2005
        %2040 = vmatpush.bf16.msra.mxu0 %v2022
        %2041 = vmatpush.bf16.msra.mxu0 %v2020
        %2042 = vmatpush.bf16.msra.mxu0 %v2018
        %2043 = vmatpush.bf16.msra.mxu0 %v2016
        %2044 = vmatpush.bf16.msra.mxu0 %v2014
        %2045 = vmatpush.bf16.msra.mxu0 %v2012
        %2046 = vmatpush.bf16.msra.mxu0 %v2010
        %2047 = vmatpush.bf16.msra.mxu0 %v2008
        %2048 = vmatmul.bf16.gmra.mxu0 %v1941
        %v2049 = vpop.f32.mrf.mxu0
        %v2050 = vadd.f32 0.0, %v2049
        %v2051 = vpop.f32.mrf.mxu0
        %v2052 = vadd.f32 0.0, %v2051
        %2053 = vmatmul.bf16.gmra.mxu0 %v1942
        %v2054 = vpop.f32.mrf.mxu0
        %v2055 = vadd.f32 0.0, %v2054
        %v2056 = vpop.f32.mrf.mxu0
        %v2057 = vadd.f32 0.0, %v2056
        %2058 = vdwg.mxu0
        %2059 = vmatpush.bf16.msra.mxu0 %v2023
        %2060 = vmatpush.bf16.msra.mxu0 %v2021
        %2061 = vmatpush.bf16.msra.mxu0 %v2019
        %2062 = vmatpush.bf16.msra.mxu0 %v2017
        %2063 = vmatpush.bf16.msra.mxu0 %v2015
        %2064 = vmatpush.bf16.msra.mxu0 %v2013
        %2065 = vmatpush.bf16.msra.mxu0 %v2011
        %2066 = vmatpush.bf16.msra.mxu0 %v2009
        %2067 = vmatmul.bf16.gmra.mxu0 %v1941
        %v2068 = vpop.f32.mrf.mxu0
        %v2069 = vadd.f32 0.0, %v2068
        %v2070 = vpop.f32.mrf.mxu0
        %v2071 = vadd.f32 0.0, %v2070
        %2072 = vmatmul.bf16.gmra.mxu0 %v1942
        %v2073 = vpop.f32.mrf.mxu0
        %v2074 = vadd.f32 0.0, %v2073
        %v2075 = vpop.f32.mrf.mxu0
        %v2076 = vadd.f32 0.0, %v2075
        %2077 = vdwg.mxu0
        %v2094 = vunpack.c.l.b16 %v1925
        %v2095 = vunpack.c.h.b16 %v1925
        %v2096 = vunpack.c.l.b16 %v1926
        %v2097 = vunpack.c.h.b16 %v1926
        %v2098 = vunpack.c.l.b16 %v1927
        %v2099 = vunpack.c.h.b16 %v1927
        %v2100 = vunpack.c.l.b16 %v1928
        %v2101 = vunpack.c.h.b16 %v1928
        %v2102 = vunpack.c.l.b16 %v1929
        %v2103 = vunpack.c.h.b16 %v1929
        %v2104 = vunpack.c.l.b16 %v1930
        %v2105 = vunpack.c.h.b16 %v1930
        %v2106 = vunpack.c.l.b16 %v1931
        %v2107 = vunpack.c.h.b16 %v1931
        %v2108 = vunpack.c.l.b16 %v1932
        %v2109 = vunpack.c.h.b16 %v1932
        %v2110 = vunpack.c.l.b16 %v1933
        %v2111 = vunpack.c.h.b16 %v1933
        %v2112 = vunpack.c.l.b16 %v1934
        %v2113 = vunpack.c.h.b16 %v1934
        %v2114 = vunpack.c.l.b16 %v1935
        %v2115 = vunpack.c.h.b16 %v1935
        %v2116 = vunpack.c.l.b16 %v1936
        %v2117 = vunpack.c.h.b16 %v1936
        %v2118 = vunpack.c.l.b16 %v1937
        %v2119 = vunpack.c.h.b16 %v1937
        %v2120 = vunpack.c.l.b16 %v1938
        %v2121 = vunpack.c.h.b16 %v1938
        %v2122 = vunpack.c.l.b16 %v1939
        %v2123 = vunpack.c.h.b16 %v1939
        %v2124 = vunpack.c.l.b16 %v1940
        %v2125 = vunpack.c.h.b16 %v1940
        %v2126 = vpack.c.b16 %v2096, %v2094
        %v2127 = vpack.c.b16 %v2097, %v2095
        %v2128 = vpack.c.b16 %v2100, %v2098
        %v2129 = vpack.c.b16 %v2101, %v2099
        %v2130 = vpack.c.b16 %v2104, %v2102
        %v2131 = vpack.c.b16 %v2105, %v2103
        %v2132 = vpack.c.b16 %v2108, %v2106
        %v2133 = vpack.c.b16 %v2109, %v2107
        %v2134 = vpack.c.b16 %v2112, %v2110
        %v2135 = vpack.c.b16 %v2113, %v2111
        %v2136 = vpack.c.b16 %v2116, %v2114
        %v2137 = vpack.c.b16 %v2117, %v2115
        %v2138 = vpack.c.b16 %v2120, %v2118
        %v2139 = vpack.c.b16 %v2121, %v2119
        %v2140 = vpack.c.b16 %v2124, %v2122
        %v2141 = vpack.c.b16 %v2125, %v2123
        %2158 = vmatpush.bf16.msra.mxu0 %v2140
        %2159 = vmatpush.bf16.msra.mxu0 %v2138
        %2160 = vmatpush.bf16.msra.mxu0 %v2136
        %2161 = vmatpush.bf16.msra.mxu0 %v2134
        %2162 = vmatpush.bf16.msra.mxu0 %v2132
        %2163 = vmatpush.bf16.msra.mxu0 %v2130
        %2164 = vmatpush.bf16.msra.mxu0 %v2128
        %2165 = vmatpush.bf16.msra.mxu0 %v2126
        %2166 = vmatmul.bf16.gmra.mxu0 %v1923
        %v2167 = vpop.f32.mrf.mxu0
        %v2168 = vadd.f32 %v2050, %v2167
        %v2169 = vpop.f32.mrf.mxu0
        %v2170 = vadd.f32 %v2052, %v2169
        %2171 = vmatmul.bf16.gmra.mxu0 %v1924
        %v2172 = vpop.f32.mrf.mxu0
        %v2173 = vadd.f32 %v2055, %v2172
        %v2174 = vpop.f32.mrf.mxu0
        %v2175 = vadd.f32 %v2057, %v2174
        %2176 = vdwg.mxu0
        %2177 = vmatpush.bf16.msra.mxu0 %v2141
        %2178 = vmatpush.bf16.msra.mxu0 %v2139
        %2179 = vmatpush.bf16.msra.mxu0 %v2137
        %2180 = vmatpush.bf16.msra.mxu0 %v2135
        %2181 = vmatpush.bf16.msra.mxu0 %v2133
        %2182 = vmatpush.bf16.msra.mxu0 %v2131
        %2183 = vmatpush.bf16.msra.mxu0 %v2129
        %2184 = vmatpush.bf16.msra.mxu0 %v2127
        %2185 = vmatmul.bf16.gmra.mxu0 %v1923
        %v2186 = vpop.f32.mrf.mxu0
        %v2187 = vadd.f32 %v2069, %v2186
        %v2188 = vpop.f32.mrf.mxu0
        %v2189 = vadd.f32 %v2071, %v2188
        %2190 = vmatmul.bf16.gmra.mxu0 %v1924
        %v2191 = vpop.f32.mrf.mxu0
        %v2192 = vadd.f32 %v2074, %v2191
        %v2193 = vpop.f32.mrf.mxu0
        %v2194 = vadd.f32 %v2076, %v2193
        %2195 = vdwg.mxu0
        %v2196 = vpack.c.bf16 %v1920, %v1919
        %v2197 = vpack.c.bf16 %v1922, %v1921
        %s2198 = scalar_lea.vmem [#allocation11], 256
        %v2199 = vld [vmem:[%s2198] sm:$0xff]
        %v2200 = vld [vmem:[%s2198 + $0x8] sm:$0xff]
        %v2201 = vld [vmem:[%s2198 + $0x10] sm:$0xff]
        %v2202 = vld [vmem:[%s2198 + $0x18] sm:$0xff]
        %v2203 = vld [vmem:[%s2198 + $0x20] sm:$0xff]
        %v2204 = vld [vmem:[%s2198 + $0x28] sm:$0xff]
        %v2205 = vld [vmem:[%s2198 + $0x30] sm:$0xff]
        %v2206 = vld [vmem:[%s2198 + $0x38] sm:$0xff]
        %v2207 = vld [vmem:[%s2198 + $0x40] sm:$0xff]
        %v2208 = vld [vmem:[%s2198 + $0x48] sm:$0xff]
        %v2209 = vld [vmem:[%s2198 + $0x50] sm:$0xff]
        %v2210 = vld [vmem:[%s2198 + $0x58] sm:$0xff]
        %v2211 = vld [vmem:[%s2198 + $0x60] sm:$0xff]
        %v2212 = vld [vmem:[%s2198 + $0x68] sm:$0xff]
        %v2213 = vld [vmem:[%s2198 + $0x70] sm:$0xff]
        %v2214 = vld [vmem:[%s2198 + $0x78] sm:$0xff]
        %v2231 = vunpack.c.l.b16 %v2199
        %v2232 = vunpack.c.h.b16 %v2199
        %v2233 = vunpack.c.l.b16 %v2200
        %v2234 = vunpack.c.h.b16 %v2200
        %v2235 = vunpack.c.l.b16 %v2201
        %v2236 = vunpack.c.h.b16 %v2201
        %v2237 = vunpack.c.l.b16 %v2202
        %v2238 = vunpack.c.h.b16 %v2202
        %v2239 = vunpack.c.l.b16 %v2203
        %v2240 = vunpack.c.h.b16 %v2203
        %v2241 = vunpack.c.l.b16 %v2204
        %v2242 = vunpack.c.h.b16 %v2204
        %v2243 = vunpack.c.l.b16 %v2205
        %v2244 = vunpack.c.h.b16 %v2205
        %v2245 = vunpack.c.l.b16 %v2206
        %v2246 = vunpack.c.h.b16 %v2206
        %v2247 = vunpack.c.l.b16 %v2207
        %v2248 = vunpack.c.h.b16 %v2207
        %v2249 = vunpack.c.l.b16 %v2208
        %v2250 = vunpack.c.h.b16 %v2208
        %v2251 = vunpack.c.l.b16 %v2209
        %v2252 = vunpack.c.h.b16 %v2209
        %v2253 = vunpack.c.l.b16 %v2210
        %v2254 = vunpack.c.h.b16 %v2210
        %v2255 = vunpack.c.l.b16 %v2211
        %v2256 = vunpack.c.h.b16 %v2211
        %v2257 = vunpack.c.l.b16 %v2212
        %v2258 = vunpack.c.h.b16 %v2212
        %v2259 = vunpack.c.l.b16 %v2213
        %v2260 = vunpack.c.h.b16 %v2213
        %v2261 = vunpack.c.l.b16 %v2214
        %v2262 = vunpack.c.h.b16 %v2214
        %v2263 = vpack.c.b16 %v2233, %v2231
        %v2264 = vpack.c.b16 %v2234, %v2232
        %v2265 = vpack.c.b16 %v2237, %v2235
        %v2266 = vpack.c.b16 %v2238, %v2236
        %v2267 = vpack.c.b16 %v2241, %v2239
        %v2268 = vpack.c.b16 %v2242, %v2240
        %v2269 = vpack.c.b16 %v2245, %v2243
        %v2270 = vpack.c.b16 %v2246, %v2244
        %v2271 = vpack.c.b16 %v2249, %v2247
        %v2272 = vpack.c.b16 %v2250, %v2248
        %v2273 = vpack.c.b16 %v2253, %v2251
        %v2274 = vpack.c.b16 %v2254, %v2252
        %v2275 = vpack.c.b16 %v2257, %v2255
        %v2276 = vpack.c.b16 %v2258, %v2256
        %v2277 = vpack.c.b16 %v2261, %v2259
        %v2278 = vpack.c.b16 %v2262, %v2260
        %2295 = vmatpush.bf16.msra.mxu0 %v2277
        %2296 = vmatpush.bf16.msra.mxu0 %v2275
        %2297 = vmatpush.bf16.msra.mxu0 %v2273
        %2298 = vmatpush.bf16.msra.mxu0 %v2271
        %2299 = vmatpush.bf16.msra.mxu0 %v2269
        %2300 = vmatpush.bf16.msra.mxu0 %v2267
        %2301 = vmatpush.bf16.msra.mxu0 %v2265
        %2302 = vmatpush.bf16.msra.mxu0 %v2263
        %2303 = vmatmul.bf16.gmra.mxu0 %v2196
        %v2304 = vpop.f32.mrf.mxu0
        %v2305 = vadd.f32 0.0, %v2304
        %v2306 = vpop.f32.mrf.mxu0
        %v2307 = vadd.f32 0.0, %v2306
        %2308 = vmatmul.bf16.gmra.mxu0 %v2197
        %v2309 = vpop.f32.mrf.mxu0
        %v2310 = vadd.f32 0.0, %v2309
        %v2311 = vpop.f32.mrf.mxu0
        %v2312 = vadd.f32 0.0, %v2311
        %2313 = vdwg.mxu0
        %2314 = vmatpush.bf16.msra.mxu0 %v2278
        %2315 = vmatpush.bf16.msra.mxu0 %v2276
        %2316 = vmatpush.bf16.msra.mxu0 %v2274
        %2317 = vmatpush.bf16.msra.mxu0 %v2272
        %2318 = vmatpush.bf16.msra.mxu0 %v2270
        %2319 = vmatpush.bf16.msra.mxu0 %v2268
        %2320 = vmatpush.bf16.msra.mxu0 %v2266
        %2321 = vmatpush.bf16.msra.mxu0 %v2264
        %2322 = vmatmul.bf16.gmra.mxu0 %v2196
        %v2323 = vpop.f32.mrf.mxu0
        %v2324 = vadd.f32 0.0, %v2323
        %v2325 = vpop.f32.mrf.mxu0
        %v2326 = vadd.f32 0.0, %v2325
        %2327 = vmatmul.bf16.gmra.mxu0 %v2197
        %v2328 = vpop.f32.mrf.mxu0
        %v2329 = vadd.f32 0.0, %v2328
        %v2330 = vpop.f32.mrf.mxu0
        %v2331 = vadd.f32 0.0, %v2330
        %2332 = vdwg.mxu0
        %v2333 = vadd.f32 %v2168, %v2305
        %v2334 = vadd.f32 %v2187, %v2324
        %v2335 = vadd.f32 %v2170, %v2307
        %v2336 = vadd.f32 %v2189, %v2326
        %v2337 = vadd.f32 %v2173, %v2310
        %v2338 = vadd.f32 %v2192, %v2329
        %v2339 = vadd.f32 %v2175, %v2312
        %v2340 = vadd.f32 %v2194, %v2331
        %v2341 = vld [vmem:[%s6] sm:$0x3]
        %v2343 = vperm.slane %v2341, 0
        %v2344 = vperm.slane %v2341, 1
        %v2347 = vadd.f32 %v2333, %v2343
        %v2348 = vadd.f32 %v2334, %v2344
        %v2349 = vadd.f32 %v2335, %v2343
        %v2350 = vadd.f32 %v2336, %v2344
        %v2351 = vadd.f32 %v2337, %v2343
        %v2352 = vadd.f32 %v2338, %v2344
        %v2353 = vadd.f32 %v2339, %v2343
        %v2354 = vadd.f32 %v2340, %v2344
        %v2355 = vxor.u32 %v2348, 2147483648
        %v2356 = vxor.u32 %v2350, 2147483648
        %v2357 = vxor.u32 %v2352, 2147483648
        %v2358 = vxor.u32 %v2354, 2147483648
        %v2359 = vmul.f32 %v2355, 1.442695
        %v2360 = vpow.pop %v2359
        %v2361 = vmul.f32 %v2356, 1.442695
        %v2362 = vpow.pop %v2361
        %v2363 = vmul.f32 %v2357, 1.442695
        %v2364 = vpow.pop %v2363
        %v2365 = vmul.f32 %v2358, 1.442695
        %v2366 = vpow.pop %v2365
        %v2367 = vadd.f32 %v2360, 1.0
        %v2368 = vadd.f32 %v2362, 1.0
        %v2369 = vadd.f32 %v2364, 1.0
        %v2370 = vadd.f32 %v2366, 1.0
        %v2371 = vrcp.pop %v2367
        %v2372 = vmul.f32 %v2367, %v2371
        %v2373 = vsub.f32 1.0, %v2372
        %v2374 = vmul.f32 %v2371, %v2373
        %v2375 = vadd.f32 %v2371, %v2374
        %vm2376 = vweird.f32 %v2367
        %vm2377 = vweird.f32 %v2371
        %vm2378 = vmor %vm2376, %vm2377
        %v2379 = vsel %vm2378, %v2371, %v2375
        %v2380 = vand.u32 2147483647, %v2367
        %vm2381 = vcmp.eq.f32.partialorder %v2380, 8.507059e+37
        %v2382 = vand.u32 %v2367, 2147483648
        %v2383 = vor.u32 1.1754944e-38, %v2382
        %v2384 = vsel %vm2381, %v2383, %v2379
        %v2385 = vmul.f32 1.0, %v2384
        %v2386 = vrcp.pop %v2368
        %v2387 = vmul.f32 %v2368, %v2386
        %v2388 = vsub.f32 1.0, %v2387
        %v2389 = vmul.f32 %v2386, %v2388
        %v2390 = vadd.f32 %v2386, %v2389
        %vm2391 = vweird.f32 %v2368
        %vm2392 = vweird.f32 %v2386
        %vm2393 = vmor %vm2391, %vm2392
        %v2394 = vsel %vm2393, %v2386, %v2390
        %v2395 = vand.u32 2147483647, %v2368
        %vm2396 = vcmp.eq.f32.partialorder %v2395, 8.507059e+37
        %v2397 = vand.u32 %v2368, 2147483648
        %v2398 = vor.u32 1.1754944e-38, %v2397
        %v2399 = vsel %vm2396, %v2398, %v2394
        %v2400 = vmul.f32 1.0, %v2399
        %v2401 = vrcp.pop %v2369
        %v2402 = vmul.f32 %v2369, %v2401
        %v2403 = vsub.f32 1.0, %v2402
        %v2404 = vmul.f32 %v2401, %v2403
        %v2405 = vadd.f32 %v2401, %v2404
        %vm2406 = vweird.f32 %v2369
        %vm2407 = vweird.f32 %v2401
        %vm2408 = vmor %vm2406, %vm2407
        %v2409 = vsel %vm2408, %v2401, %v2405
        %v2410 = vand.u32 2147483647, %v2369
        %vm2411 = vcmp.eq.f32.partialorder %v2410, 8.507059e+37
        %v2412 = vand.u32 %v2369, 2147483648
        %v2413 = vor.u32 1.1754944e-38, %v2412
        %v2414 = vsel %vm2411, %v2413, %v2409
        %v2415 = vmul.f32 1.0, %v2414
        %v2416 = vrcp.pop %v2370
        %v2417 = vmul.f32 %v2370, %v2416
        %v2418 = vsub.f32 1.0, %v2417
        %v2419 = vmul.f32 %v2416, %v2418
        %v2420 = vadd.f32 %v2416, %v2419
        %vm2421 = vweird.f32 %v2370
        %vm2422 = vweird.f32 %v2416
        %vm2423 = vmor %vm2421, %vm2422
        %v2424 = vsel %vm2423, %v2416, %v2420
        %v2425 = vand.u32 2147483647, %v2370
        %vm2426 = vcmp.eq.f32.partialorder %v2425, 8.507059e+37
        %v2427 = vand.u32 %v2370, 2147483648
        %v2428 = vor.u32 1.1754944e-38, %v2427
        %v2429 = vsel %vm2426, %v2428, %v2424
        %v2430 = vmul.f32 1.0, %v2429
        %v2431 = vmul.f32 %v2347, %v2385
        %v2432 = vmul.f32 %v2349, %v2400
        %v2433 = vmul.f32 %v2351, %v2415
        %v2434 = vmul.f32 %v2353, %v2430
        %v2435 = vadd.f32 %v1811, %v2431
        %v2436 = vadd.f32 %v1813, %v2432
        %v2437 = vadd.f32 %v1816, %v2433
        %v2438 = vadd.f32 %v1818, %v2434
        %v2439 = vmul.f32 %v2435, 0.70710677
        %v2440 = vmul.f32 %v2436, 0.70710677
        %v2441 = vmul.f32 %v2437, 0.70710677
        %v2442 = vmul.f32 %v2438, 0.70710677
        %v2443 = vadd.f32 %v1640, %v2439
        %v2444 = vadd.f32 %v1641, %v2440
        %v2445 = vadd.f32 %v1642, %v2441
        %v2446 = vadd.f32 %v1643, %v2442
        %v2447 = vmul.f32 %v2443, 0.70710677
        %v2448 = vmul.f32 %v2444, 0.70710677
        %v2449 = vmul.f32 %v2445, 0.70710677
        %v2450 = vmul.f32 %v2446, 0.70710677
        %2451 = vst [vmem:[%s411] sm:$0xff] %v2447
        %2452 = vst [vmem:[%s411 + $0x8] sm:$0xff] %v2448
        %2453 = vst [vmem:[%s411 + $0x10] sm:$0xff] %v2449
        %2454 = vst [vmem:[%s411 + $0x18] sm:$0xff] %v2450
        %s2455 = sand.u32 %s192, 1
        %s2456 = scalar_lea.sflag [#allocation4], %s2455
        %s2457 = sand.u32 %s192, 1
        %s2458 = smul.addr %s2457, 32
        %s2459 = scalar_lea.vmem [#allocation13], %s2458
        %s2460 = sand.u32 %s218, 1
        %s2461 = scalar_lea.sflag [#allocation15], %s2460
        %s2462 = sand.u32 %s218, 1
        %s2463 = smul.addr %s2462, 128
        %s2464 = scalar_lea.vmem [#allocation14], %s2463
        // Predicated region
        $region73: #{tpu_custom_call.1} parent=47 // pred_check
          %p2465 = pneg %p202
        $region74: #{tpu_custom_call.1} parent=47 // pred_check_branch
          %2467 = sbr.rel (%p2465) target = $region76
        $region75: #{tpu_custom_call.1} parent=47 // pred_region
          %s2468 = smul.u32 2, %s32
          %2470 = vsyncadd %s2456, 0
          %s2471 = smul.addr %s2468, 2
          %s2472 = smul.addr %s2471, 8
          %s2473 = scalar_lea.hbm %s7, %s2472
          %s2474 = sshll.u32 %s2459, 4
          %s2475 = int_to_ptr.vmem [resolvable:$true] %s2474
          %s2476 = sshll.u32 %s2473, 4
          %s2477 = int_to_ptr.hbm [resolvable:$true] %s2476
          %2482 = dma.vmem_to_hbm [thread:$0]  %s2475, 512, %s2477, %s2456, 128, 128, 8
        $region76: #{tpu_custom_call.1} parent=47 // pred_fallthru
          _
        // Predicated region
        $region77: #{tpu_custom_call.1} parent=47 // pred_check
          %p2483 = pneg %p228
        $region78: #{tpu_custom_call.1} parent=47 // pred_check_branch
          %2485 = sbr.rel (%p2483) target = $region80
        $region79: #{tpu_custom_call.1} parent=47 // pred_region
          %s2486 = smul.u32 2, %s32
          %2488 = vsyncadd %s2461, 0
          %s2489 = smul.addr %s2486, 8
          %s2490 = smul.addr %s2489, 8
          %s2491 = scalar_lea.hbm %s8, %s2490
          %s2492 = sshll.u32 %s2464, 4
          %s2493 = int_to_ptr.vmem [resolvable:$true] %s2492
          %s2494 = sshll.u32 %s2491, 4
          %s2495 = int_to_ptr.hbm [resolvable:$true] %s2494
          %2500 = dma.vmem_to_hbm [thread:$0]  %s2493, 2048, %s2495, %s2461, 128, 128, 8
        $region80: #{tpu_custom_call.1} parent=47 // pred_fallthru
          _
      $region48: #{tpu_custom_call.1} parent=5 // pred_fallthru
        _
      %p2501 = scmp.le.s32.totalorder 2, %s27
      // Predicated region
      $region81: #{tpu_custom_call.1} parent=5 // pred_check
        %p2502 = pneg %p2501
      $region82: #{tpu_custom_call.1} parent=5 // pred_check_branch
        %2504 = sbr.rel (%p2502) target = $region84
      $region83: #{tpu_custom_call.1} parent=5 // pred_region
        %s2505 = ssub.s32 %s27, 2
        // Predicated region
        $region85: #{tpu_custom_call.1} parent=83 // pred_check
          %p2506 = pneg %p208
        $region86: #{tpu_custom_call.1} parent=83 // pred_check_branch
          %2508 = sbr.rel (%p2506) target = $region88
        $region87: #{tpu_custom_call.1} parent=83 // pred_region
          %s2509 = sand.u32 %s193, 1
          %s2510 = scalar_lea.sflag [#allocation4], %s2509
          %s2511 = sand.u32 %s193, 1
          %s2512 = smul.addr %s2511, 32
          %s2513 = scalar_lea.vmem [#allocation13], %s2512
          %2515 = dma.done %s2510, 512
        $region88: #{tpu_custom_call.1} parent=83 // pred_fallthru
          _
        // Predicated region
        $region89: #{tpu_custom_call.1} parent=83 // pred_check
          %p2516 = pneg %p234
        $region90: #{tpu_custom_call.1} parent=83 // pred_check_branch
          %2518 = sbr.rel (%p2516) target = $region92
        $region91: #{tpu_custom_call.1} parent=83 // pred_region
          %s2519 = sand.u32 %s219, 1
          %s2520 = scalar_lea.sflag [#allocation15], %s2519
          %s2521 = sand.u32 %s219, 1
          %s2522 = smul.addr %s2521, 128
          %s2523 = scalar_lea.vmem [#allocation14], %s2522
          %2525 = dma.done %s2520, 2048
        $region92: #{tpu_custom_call.1} parent=83 // pred_fallthru
          _
      $region84: #{tpu_custom_call.1} parent=5 // pred_fallthru
        _
    $region6: #{tpu_custom_call.1} parent=1 // loop_footer
      %s31 = sadd.s32 1, %s27
    $region7: #{tpu_custom_call.1} parent=1 // loop_footer_branch
      %26 = sbr.rel target = $region3
    $region8: #{tpu_custom_call.1} parent=1 // loop_exit
      _
    %2526 = vsyncpa [#allocation3], 1
    %s2527 = scalar_lea.sflag [#allocation3], 1
    %2528 = vsyncpa %s2527, 1
    %2529 = vsyncpa [#allocation6], 1
    %2530 = vsyncpa [#allocation9], 1
    %2531 = vsyncpa [#allocation12], 1
    %2532 = vsyncpa [#allocation4], 1
    %s2533 = scalar_lea.sflag [#allocation4], 1
    %2534 = vsyncpa %s2533, 1
    %2535 = vsyncpa [#allocation15], 1
    %s2536 = scalar_lea.sflag [#allocation15], 1
    %2537 = vsyncpa %s2536, 1

</llo_original>
